<compile_context>
chip_gen: v5e
topology: v5e:2x2
jax: 0.10.0
libtpu: 0.0.40
codegen_flags: <defaults>
</compile_context>

<pallas_src>
import functools
import math

import numpy as np

import jax
import jax.numpy as jnp
from jax.experimental import pallas as pl
from jax.experimental.pallas import tpu as pltpu


# ----------------------------- Pallas kernel --------------------------------


def _conv_bn_relu_kernel(w_ref, shift_ref, m_ref, x_ref, o_ref, *,
                         kd, kh, kw, sd, width, guard, ph, pw, do_block, lanes):
    """One (batch, Do-slab) tile of relu(conv3d(x) * bn_scale + bn_shift).

    w_ref:     (kvol, Cout, Cin_p)     bf16  weights, BN scale folded, tap-major
    shift_ref: (Cout, 1)               f32   (conv_bias - mean) * scale + beta
    m_ref:     (kh*kw, 1, lanes)       bf16  0/1 validity mask per (zh, zw) tap
    x_ref:     (Dp, Cin_p, Lin)        bf16  zero-guarded flattened input planes
    o_ref:     (Cout, do_block*lanes)  f32   NCDHW-flat output slab
    """
    cout = o_ref.shape[0]
    shift = shift_ref[...]                                  # (Cout, 1)
    masks = [m_ref[t] for t in range(kh * kw)]              # (1, lanes) each
    taps = [w_ref[t] for t in range(kd * kh * kw)]          # (Cout, Cin_p) each

    do0 = pl.program_id(1) * do_block
    for t in range(do_block):                               # static unroll
        acc = jnp.zeros((cout, lanes), jnp.float32)
        for zd in range(kd):
            x_d = x_ref[(do0 + t) * sd + zd]                # (Cin_p, Lin)
            for zh in range(kh):
                for zw in range(kw):
                    start = guard + (zh - ph) * width + (zw - pw)
                    xs = x_d[:, start:start + lanes] * masks[zh * kw + zw]
                    acc = acc + jnp.dot(taps[zd * kh * kw + zh * kw + zw], xs,
                                        preferred_element_type=jnp.float32)
        y = jnp.maximum(acc + shift, 0.0)
        o_ref[:, t * lanes:(t + 1) * lanes] = y.astype(o_ref.dtype)


def _pick_do_block(do_total, lanes, n_batch, target_lanes=1024):
    """Depth-slabs per grid step: ~1024 output lanes/step, keep >= 4 steps."""
    t = max(1, min(do_total, target_lanes // max(lanes, 1)))
    while do_total % t:
        t -= 1
    while t > 1 and n_batch * (do_total // t) < 4:
        t -= 1
        while do_total % t:
            t -= 1
    return t


# ----------------------------- forward wrapper ------------------------------


@functools.partial(jax.jit, static_argnames=("stride", "padding", "eps"))
def conv3d_block_forward(x, weight, bias, gamma, beta, running_mean, running_var,
                         *, stride=(1, 1, 1), padding=(0, 0, 0), eps=1e-5):
    """relu(batchnorm3d(conv3d(x))).  x: (N,Cin,D,H,W), weight: (Cout,Cin,kd,kh,kw)."""
    N, Cin, D, H, W = x.shape
    Cout, _, kd, kh, kw = weight.shape
    sd, sh, sw = stride
    pd, ph, pw = padding
    if sh != 1 or sw != 1:
        raise NotImplementedError("Pallas Conv3DBlock kernel needs stride 1 in H/W")

    Do = (D + 2 * pd - kd) // sd + 1
    Ho = (H + 2 * ph - kh) // sh + 1
    Wo = (W + 2 * pw - kw) // sw + 1
    kvol = kd * kh * kw
    HW = H * W

    # Compute-plane lanes: p = ho*W + wo' for ho in [0,Ho), wo' in [0,W).
    # Valid outputs sit at wo' < Wo (== everything for 'same' convs).
    hwc = Ho * W
    lanes = ((hwc + 127) // 128) * 128                      # lane-dense output blocks

    # Static per-tap lane offsets; zero guards make every tap window a plain
    # contiguous in-bounds slice of the flattened plane.
    offs = [(zh - ph) * W + (zw - pw) for zh in range(kh) for zw in range(kw)]
    guard = max(0, -min(offs))
    lin = guard + max(HW, max(offs) + lanes)

    cin_p = ((Cin + 7) // 8) * 8
    dp = D + 2 * pd

    # ---- tiny host-side layout prep (no im2col blowup) ----------------------
    xp = jnp.pad(x, ((0, 0), (0, 0), (pd, pd), (0, 0), (0, 0)))       # pad D only
    xf = xp.transpose(0, 2, 1, 3, 4).reshape(N, dp, Cin, HW)
    xf = jnp.pad(xf, ((0, 0), (0, 0), (0, cin_p - Cin), (guard, lin - guard - HW)))
    xf = xf.astype(jnp.bfloat16)                                      # (N, Dp, Cin_p, Lin)

    # ---- fold conv bias + BatchNorm (inference stats) into weights / shift ---
    inv_std = jax.lax.rsqrt(running_var.astype(jnp.float32) + eps)
    scale = gamma.astype(jnp.float32) * inv_std                       # (Cout,)
    shift = ((bias.astype(jnp.float32) - running_mean.astype(jnp.float32)) * scale
             + beta.astype(jnp.float32)).reshape(Cout, 1)
    w_fold = weight.astype(jnp.float32) * scale[:, None, None, None, None]
    w_taps = jnp.pad(w_fold.transpose(2, 3, 4, 0, 1).reshape(kvol, Cout, Cin),
                     ((0, 0), (0, 0), (0, cin_p - Cin))).astype(jnp.bfloat16)

    # ---- per-(zh,zw) validity masks for the virtual H/W zero padding --------
    q = np.arange(lanes, dtype=np.int64)
    hq, wq = q // W, q % W
    m = np.zeros((kh * kw, 1, lanes), dtype=np.float32)
    for zh in range(kh):
        for zw in range(kw):
            hh, ww = hq + (zh - ph), wq + (zw - pw)
            m[zh * kw + zw, 0] = ((hh >= 0) & (hh < H) & (ww >= 0) & (ww < W))
    masks = jnp.asarray(m, dtype=jnp.bfloat16)

    do_block = _pick_do_block(Do, lanes, N)

    kernel = functools.partial(
        _conv_bn_relu_kernel, kd=kd, kh=kh, kw=kw, sd=sd, width=W,
        guard=guard, ph=ph, pw=pw, do_block=do_block, lanes=lanes)

    out_flat = pl.pallas_call(
        kernel,
        out_shape=jax.ShapeDtypeStruct((N, Cout, Do * lanes), jnp.float32),
        grid=(N, Do // do_block),
        in_specs=[
            pl.BlockSpec((kvol, Cout, cin_p), lambda n, d: (0, 0, 0)),   # weights (VMEM)
            pl.BlockSpec((Cout, 1), lambda n, d: (0, 0)),                # folded BN shift
            pl.BlockSpec((kh * kw, 1, lanes), lambda n, d: (0, 0, 0)),   # tap masks
            pl.BlockSpec((None, dp, cin_p, lin), lambda n, d: (n, 0, 0, 0)),  # input volume
        ],
        out_specs=pl.BlockSpec((None, Cout, do_block * lanes),
                               lambda n, d: (n, 0, d)),
        compiler_params=pltpu.CompilerParams(
            dimension_semantics=("parallel", "parallel"),
            vmem_limit_bytes=32 * 1024 * 1024),
        cost_estimate=pl.CostEstimate(
            flops=2 * N * Do * lanes * Cout * cin_p * kvol,
            transcendentals=0,
            bytes_accessed=(N * dp * cin_p * lin * 2
                            + kvol * Cout * cin_p * 2
                            + N * Cout * Do * lanes * 4)),
    )(w_taps, shift, masks, xf)

    # Free reshapes for 'same' convs; tiny slice only when Wo < W / lane padding.
    out = out_flat.reshape(N, Cout, Do, lanes)[..., :hwc]
    out = out.reshape(N, Cout, Do, Ho, W)[..., :Wo]
    return out


# ----------------------------- pure-JAX reference ----------------------------


def _reference(x, weight, bias, gamma, beta, rmean, rvar, stride, padding, eps):
    dn = jax.lax.conv_dimension_numbers(x.shape, weight.shape,
                                        ("NCDHW", "OIDHW", "NCDHW"))
    y = jax.lax.conv_general_dilated(
        x, weight, window_strides=stride,
        padding=[(padding[0], padding[0]),
                 (padding[1], padding[1]),
                 (padding[2], padding[2])],
        dimension_numbers=dn,
        precision=jax.lax.Precision.HIGHEST)
    b = lambda v: v[None, :, None, None, None]
    y = y + b(bias)
    y = (y - b(rmean)) * b(jax.lax.rsqrt(rvar + eps))
    y = y * b(gamma) + b(beta)
    return jnp.maximum(y, 0.0)


# ----------------------------- main ------------------------------------------


if __name__ == "__main__":
    key = jax.random.PRNGKey(0)
    kx, kw_, kb, kg, kbe, km, kv = jax.random.split(key, 7)

    N, CIN, COUT = 2, 4, 8
    D = H = W = 16
    KSIZE = (3, 3, 3)
    STRIDE = (1, 1, 1)
    PADDING = (1, 1, 1)
    EPS = 1e-5

    x = jax.random.normal(kx, (N, CIN, D, H, W), dtype=jnp.float32)
    fan_in = CIN * KSIZE[0] * KSIZE[1] * KSIZE[2]
    weight = jax.random.normal(kw_, (COUT, CIN) + KSIZE, dtype=jnp.float32) / math.sqrt(fan_in)
    bias = 0.1 * jax.random.normal(kb, (COUT,), dtype=jnp.float32)
    gamma = 1.0 + 0.1 * jax.random.normal(kg, (COUT,), dtype=jnp.float32)
    beta = 0.1 * jax.random.normal(kbe, (COUT,), dtype=jnp.float32)
    running_mean = 0.1 * jax.random.normal(km, (COUT,), dtype=jnp.float32)
    running_var = 0.5 + jnp.abs(jax.random.normal(kv, (COUT,), dtype=jnp.float32))

    out = conv3d_block_forward(x, weight, bias, gamma, beta,
                               running_mean, running_var,
                               stride=STRIDE, padding=PADDING, eps=EPS)
    out = jax.block_until_ready(out)

    assert out.shape == (N, COUT, D, H, W), out.shape
    assert bool(jnp.all(jnp.isfinite(out)))

    ref = _reference(x, weight, bias, gamma, beta, running_mean, running_var,
                     STRIDE, PADDING, EPS)
    max_err = float(jnp.max(jnp.abs(out - ref)))
    mean_err = float(jnp.mean(jnp.abs(out - ref)))
    # bf16 inputs/weights with f32 MXU accumulation: expect ~1e-2 max abs error.
    assert max_err < 8e-2, f"max abs error vs XLA reference: {max_err}"
    assert mean_err < 1e-2, f"mean abs error vs XLA reference: {mean_err}"

    print("KERNEL_OK")
</pallas_src>

<mosaic_0001>
module attributes {stable_mosaic.version = 11 : i64} {
  func.func @_conv_bn_relu_kernel(%arg0: i32, %arg1: i32, %arg2: memref<27x8x8xbf16, #tpu.memory_space<vmem>>, %arg3: memref<8x1xf32, #tpu.memory_space<vmem>>, %arg4: memref<9x1x256xbf16, #tpu.memory_space<vmem>>, %arg5: memref<1x18x8x290xbf16, #tpu.memory_space<vmem>>, %arg6: memref<1x8x1024xf32, #tpu.memory_space<vmem>>) attributes {dimension_semantics = [#tpu.dimension_semantics<parallel>, #tpu.dimension_semantics<parallel>], iteration_bounds = array<i64: 2, 4>, scalar_prefetch = 0 : i64, scratch_operands = 0 : i64, tpu.core_type = #tpu.core_type<tc>, window_params = [{pipeline_mode = #tpu.pipeline_mode<synchronous>, transform_indices = @transform_0, window_bounds = array<i64: 27, 8, 8>}, {pipeline_mode = #tpu.pipeline_mode<synchronous>, transform_indices = @transform_1, window_bounds = array<i64: 8, 1>}, {pipeline_mode = #tpu.pipeline_mode<synchronous>, transform_indices = @transform_2, window_bounds = array<i64: 9, 1, 256>}, {transform_indices = @transform_3, window_bounds = array<i64: 1, 18, 8, 290>}, {transform_indices = @transform_4, window_bounds = array<i64: 1, 8, 1024>}]} {
    %c0 = arith.constant 0 : index
    %c0_0 = arith.constant 0 : index
    %0 = vector.load %arg3[%c0, %c0_0] : memref<8x1xf32, #tpu.memory_space<vmem>>, vector<8x1xf32>
    %c0_1 = arith.constant 0 : index
    %c0_2 = arith.constant 0 : index
    %c0_3 = arith.constant 0 : index
    %1 = vector.load %arg4[%c0_1, %c0_2, %c0_3] : memref<9x1x256xbf16, #tpu.memory_space<vmem>>, vector<1x1x256xbf16>
    %2 = vector.shape_cast %1 : vector<1x1x256xbf16> to vector<1x256xbf16>
    %c1 = arith.constant 1 : index
    %c0_4 = arith.constant 0 : index
    %c0_5 = arith.constant 0 : index
    %3 = vector.load %arg4[%c1, %c0_4, %c0_5] : memref<9x1x256xbf16, #tpu.memory_space<vmem>>, vector<1x1x256xbf16>
    %4 = vector.shape_cast %3 : vector<1x1x256xbf16> to vector<1x256xbf16>
    %c2 = arith.constant 2 : index
    %c0_6 = arith.constant 0 : index
    %c0_7 = arith.constant 0 : index
    %5 = vector.load %arg4[%c2, %c0_6, %c0_7] : memref<9x1x256xbf16, #tpu.memory_space<vmem>>, vector<1x1x256xbf16>
    %6 = vector.shape_cast %5 : vector<1x1x256xbf16> to vector<1x256xbf16>
    %c3 = arith.constant 3 : index
    %c0_8 = arith.constant 0 : index
    %c0_9 = arith.constant 0 : index
    %7 = vector.load %arg4[%c3, %c0_8, %c0_9] : memref<9x1x256xbf16, #tpu.memory_space<vmem>>, vector<1x1x256xbf16>
    %8 = vector.shape_cast %7 : vector<1x1x256xbf16> to vector<1x256xbf16>
    %c4 = arith.constant 4 : index
    %c0_10 = arith.constant 0 : index
    %c0_11 = arith.constant 0 : index
    %9 = vector.load %arg4[%c4, %c0_10, %c0_11] : memref<9x1x256xbf16, #tpu.memory_space<vmem>>, vector<1x1x256xbf16>
    %10 = vector.shape_cast %9 : vector<1x1x256xbf16> to vector<1x256xbf16>
    %c5 = arith.constant 5 : index
    %c0_12 = arith.constant 0 : index
    %c0_13 = arith.constant 0 : index
    %11 = vector.load %arg4[%c5, %c0_12, %c0_13] : memref<9x1x256xbf16, #tpu.memory_space<vmem>>, vector<1x1x256xbf16>
    %12 = vector.shape_cast %11 : vector<1x1x256xbf16> to vector<1x256xbf16>
    %c6 = arith.constant 6 : index
    %c0_14 = arith.constant 0 : index
    %c0_15 = arith.constant 0 : index
    %13 = vector.load %arg4[%c6, %c0_14, %c0_15] : memref<9x1x256xbf16, #tpu.memory_space<vmem>>, vector<1x1x256xbf16>
    %14 = vector.shape_cast %13 : vector<1x1x256xbf16> to vector<1x256xbf16>
    %c7 = arith.constant 7 : index
    %c0_16 = arith.constant 0 : index
    %c0_17 = arith.constant 0 : index
    %15 = vector.load %arg4[%c7, %c0_16, %c0_17] : memref<9x1x256xbf16, #tpu.memory_space<vmem>>, vector<1x1x256xbf16>
    %16 = vector.shape_cast %15 : vector<1x1x256xbf16> to vector<1x256xbf16>
    %c8 = arith.constant 8 : index
    %c0_18 = arith.constant 0 : index
    %c0_19 = arith.constant 0 : index
    %17 = vector.load %arg4[%c8, %c0_18, %c0_19] : memref<9x1x256xbf16, #tpu.memory_space<vmem>>, vector<1x1x256xbf16>
    %18 = vector.shape_cast %17 : vector<1x1x256xbf16> to vector<1x256xbf16>
    %c0_20 = arith.constant 0 : index
    %c0_21 = arith.constant 0 : index
    %c0_22 = arith.constant 0 : index
    %19 = vector.load %arg2[%c0_20, %c0_21, %c0_22] : memref<27x8x8xbf16, #tpu.memory_space<vmem>>, vector<1x8x8xbf16>
    %20 = vector.shape_cast %19 : vector<1x8x8xbf16> to vector<8x8xbf16>
    %c1_23 = arith.constant 1 : index
    %c0_24 = arith.constant 0 : index
    %c0_25 = arith.constant 0 : index
    %21 = vector.load %arg2[%c1_23, %c0_24, %c0_25] : memref<27x8x8xbf16, #tpu.memory_space<vmem>>, vector<1x8x8xbf16>
    %22 = vector.shape_cast %21 : vector<1x8x8xbf16> to vector<8x8xbf16>
    %c2_26 = arith.constant 2 : index
    %c0_27 = arith.constant 0 : index
    %c0_28 = arith.constant 0 : index
    %23 = vector.load %arg2[%c2_26, %c0_27, %c0_28] : memref<27x8x8xbf16, #tpu.memory_space<vmem>>, vector<1x8x8xbf16>
    %24 = vector.shape_cast %23 : vector<1x8x8xbf16> to vector<8x8xbf16>
    %c3_29 = arith.constant 3 : index
    %c0_30 = arith.constant 0 : index
    %c0_31 = arith.constant 0 : index
    %25 = vector.load %arg2[%c3_29, %c0_30, %c0_31] : memref<27x8x8xbf16, #tpu.memory_space<vmem>>, vector<1x8x8xbf16>
    %26 = vector.shape_cast %25 : vector<1x8x8xbf16> to vector<8x8xbf16>
    %c4_32 = arith.constant 4 : index
    %c0_33 = arith.constant 0 : index
    %c0_34 = arith.constant 0 : index
    %27 = vector.load %arg2[%c4_32, %c0_33, %c0_34] : memref<27x8x8xbf16, #tpu.memory_space<vmem>>, vector<1x8x8xbf16>
    %28 = vector.shape_cast %27 : vector<1x8x8xbf16> to vector<8x8xbf16>
    %c5_35 = arith.constant 5 : index
    %c0_36 = arith.constant 0 : index
    %c0_37 = arith.constant 0 : index
    %29 = vector.load %arg2[%c5_35, %c0_36, %c0_37] : memref<27x8x8xbf16, #tpu.memory_space<vmem>>, vector<1x8x8xbf16>
    %30 = vector.shape_cast %29 : vector<1x8x8xbf16> to vector<8x8xbf16>
    %c6_38 = arith.constant 6 : index
    %c0_39 = arith.constant 0 : index
    %c0_40 = arith.constant 0 : index
    %31 = vector.load %arg2[%c6_38, %c0_39, %c0_40] : memref<27x8x8xbf16, #tpu.memory_space<vmem>>, vector<1x8x8xbf16>
    %32 = vector.shape_cast %31 : vector<1x8x8xbf16> to vector<8x8xbf16>
    %c7_41 = arith.constant 7 : index
    %c0_42 = arith.constant 0 : index
    %c0_43 = arith.constant 0 : index
    %33 = vector.load %arg2[%c7_41, %c0_42, %c0_43] : memref<27x8x8xbf16, #tpu.memory_space<vmem>>, vector<1x8x8xbf16>
    %34 = vector.shape_cast %33 : vector<1x8x8xbf16> to vector<8x8xbf16>
    %c8_44 = arith.constant 8 : index
    %c0_45 = arith.constant 0 : index
    %c0_46 = arith.constant 0 : index
    %35 = vector.load %arg2[%c8_44, %c0_45, %c0_46] : memref<27x8x8xbf16, #tpu.memory_space<vmem>>, vector<1x8x8xbf16>
    %36 = vector.shape_cast %35 : vector<1x8x8xbf16> to vector<8x8xbf16>
    %c9 = arith.constant 9 : index
    %c0_47 = arith.constant 0 : index
    %c0_48 = arith.constant 0 : index
    %37 = vector.load %arg2[%c9, %c0_47, %c0_48] : memref<27x8x8xbf16, #tpu.memory_space<vmem>>, vector<1x8x8xbf16>
    %38 = vector.shape_cast %37 : vector<1x8x8xbf16> to vector<8x8xbf16>
    %c10 = arith.constant 10 : index
    %c0_49 = arith.constant 0 : index
    %c0_50 = arith.constant 0 : index
    %39 = vector.load %arg2[%c10, %c0_49, %c0_50] : memref<27x8x8xbf16, #tpu.memory_space<vmem>>, vector<1x8x8xbf16>
    %40 = vector.shape_cast %39 : vector<1x8x8xbf16> to vector<8x8xbf16>
    %c11 = arith.constant 11 : index
    %c0_51 = arith.constant 0 : index
    %c0_52 = arith.constant 0 : index
    %41 = vector.load %arg2[%c11, %c0_51, %c0_52] : memref<27x8x8xbf16, #tpu.memory_space<vmem>>, vector<1x8x8xbf16>
    %42 = vector.shape_cast %41 : vector<1x8x8xbf16> to vector<8x8xbf16>
    %c12 = arith.constant 12 : index
    %c0_53 = arith.constant 0 : index
    %c0_54 = arith.constant 0 : index
    %43 = vector.load %arg2[%c12, %c0_53, %c0_54] : memref<27x8x8xbf16, #tpu.memory_space<vmem>>, vector<1x8x8xbf16>
    %44 = vector.shape_cast %43 : vector<1x8x8xbf16> to vector<8x8xbf16>
    %c13 = arith.constant 13 : index
    %c0_55 = arith.constant 0 : index
    %c0_56 = arith.constant 0 : index
    %45 = vector.load %arg2[%c13, %c0_55, %c0_56] : memref<27x8x8xbf16, #tpu.memory_space<vmem>>, vector<1x8x8xbf16>
    %46 = vector.shape_cast %45 : vector<1x8x8xbf16> to vector<8x8xbf16>
    %c14 = arith.constant 14 : index
    %c0_57 = arith.constant 0 : index
    %c0_58 = arith.constant 0 : index
    %47 = vector.load %arg2[%c14, %c0_57, %c0_58] : memref<27x8x8xbf16, #tpu.memory_space<vmem>>, vector<1x8x8xbf16>
    %48 = vector.shape_cast %47 : vector<1x8x8xbf16> to vector<8x8xbf16>
    %c15 = arith.constant 15 : index
    %c0_59 = arith.constant 0 : index
    %c0_60 = arith.constant 0 : index
    %49 = vector.load %arg2[%c15, %c0_59, %c0_60] : memref<27x8x8xbf16, #tpu.memory_space<vmem>>, vector<1x8x8xbf16>
    %50 = vector.shape_cast %49 : vector<1x8x8xbf16> to vector<8x8xbf16>
    %c16 = arith.constant 16 : index
    %c0_61 = arith.constant 0 : index
    %c0_62 = arith.constant 0 : index
    %51 = vector.load %arg2[%c16, %c0_61, %c0_62] : memref<27x8x8xbf16, #tpu.memory_space<vmem>>, vector<1x8x8xbf16>
    %52 = vector.shape_cast %51 : vector<1x8x8xbf16> to vector<8x8xbf16>
    %c17 = arith.constant 17 : index
    %c0_63 = arith.constant 0 : index
    %c0_64 = arith.constant 0 : index
    %53 = vector.load %arg2[%c17, %c0_63, %c0_64] : memref<27x8x8xbf16, #tpu.memory_space<vmem>>, vector<1x8x8xbf16>
    %54 = vector.shape_cast %53 : vector<1x8x8xbf16> to vector<8x8xbf16>
    %c18 = arith.constant 18 : index
    %c0_65 = arith.constant 0 : index
    %c0_66 = arith.constant 0 : index
    %55 = vector.load %arg2[%c18, %c0_65, %c0_66] : memref<27x8x8xbf16, #tpu.memory_space<vmem>>, vector<1x8x8xbf16>
    %56 = vector.shape_cast %55 : vector<1x8x8xbf16> to vector<8x8xbf16>
    %c19 = arith.constant 19 : index
    %c0_67 = arith.constant 0 : index
    %c0_68 = arith.constant 0 : index
    %57 = vector.load %arg2[%c19, %c0_67, %c0_68] : memref<27x8x8xbf16, #tpu.memory_space<vmem>>, vector<1x8x8xbf16>
    %58 = vector.shape_cast %57 : vector<1x8x8xbf16> to vector<8x8xbf16>
    %c20 = arith.constant 20 : index
    %c0_69 = arith.constant 0 : index
    %c0_70 = arith.constant 0 : index
    %59 = vector.load %arg2[%c20, %c0_69, %c0_70] : memref<27x8x8xbf16, #tpu.memory_space<vmem>>, vector<1x8x8xbf16>
    %60 = vector.shape_cast %59 : vector<1x8x8xbf16> to vector<8x8xbf16>
    %c21 = arith.constant 21 : index
    %c0_71 = arith.constant 0 : index
    %c0_72 = arith.constant 0 : index
    %61 = vector.load %arg2[%c21, %c0_71, %c0_72] : memref<27x8x8xbf16, #tpu.memory_space<vmem>>, vector<1x8x8xbf16>
    %62 = vector.shape_cast %61 : vector<1x8x8xbf16> to vector<8x8xbf16>
    %c22 = arith.constant 22 : index
    %c0_73 = arith.constant 0 : index
    %c0_74 = arith.constant 0 : index
    %63 = vector.load %arg2[%c22, %c0_73, %c0_74] : memref<27x8x8xbf16, #tpu.memory_space<vmem>>, vector<1x8x8xbf16>
    %64 = vector.shape_cast %63 : vector<1x8x8xbf16> to vector<8x8xbf16>
    %c23 = arith.constant 23 : index
    %c0_75 = arith.constant 0 : index
    %c0_76 = arith.constant 0 : index
    %65 = vector.load %arg2[%c23, %c0_75, %c0_76] : memref<27x8x8xbf16, #tpu.memory_space<vmem>>, vector<1x8x8xbf16>
    %66 = vector.shape_cast %65 : vector<1x8x8xbf16> to vector<8x8xbf16>
    %c24 = arith.constant 24 : index
    %c0_77 = arith.constant 0 : index
    %c0_78 = arith.constant 0 : index
    %67 = vector.load %arg2[%c24, %c0_77, %c0_78] : memref<27x8x8xbf16, #tpu.memory_space<vmem>>, vector<1x8x8xbf16>
    %68 = vector.shape_cast %67 : vector<1x8x8xbf16> to vector<8x8xbf16>
    %c25 = arith.constant 25 : index
    %c0_79 = arith.constant 0 : index
    %c0_80 = arith.constant 0 : index
    %69 = vector.load %arg2[%c25, %c0_79, %c0_80] : memref<27x8x8xbf16, #tpu.memory_space<vmem>>, vector<1x8x8xbf16>
    %70 = vector.shape_cast %69 : vector<1x8x8xbf16> to vector<8x8xbf16>
    %c26 = arith.constant 26 : index
    %c0_81 = arith.constant 0 : index
    %c0_82 = arith.constant 0 : index
    %71 = vector.load %arg2[%c26, %c0_81, %c0_82] : memref<27x8x8xbf16, #tpu.memory_space<vmem>>, vector<1x8x8xbf16>
    %72 = vector.shape_cast %71 : vector<1x8x8xbf16> to vector<8x8xbf16>
    %c4_i32 = arith.constant 4 : i32
    %73 = arith.muli %arg1, %c4_i32 : i32
    %cst = arith.constant 0.000000e+00 : f32
    %74 = vector.broadcast %cst : f32 to vector<8x256xf32>
    %c0_i32 = arith.constant 0 : i32
    %75 = arith.addi %73, %c0_i32 : i32
    %c1_i32 = arith.constant 1 : i32
    %76 = arith.muli %75, %c1_i32 : i32
    %c0_i32_83 = arith.constant 0 : i32
    %77 = arith.addi %76, %c0_i32_83 : i32
    %c0_84 = arith.constant 0 : index
    %78 = arith.index_cast %77 : i32 to index
    %c0_85 = arith.constant 0 : index
    %c0_86 = arith.constant 0 : index
    %79 = vector.load %arg5[%c0_84, %78, %c0_85, %c0_86] : memref<1x18x8x290xbf16, #tpu.memory_space<vmem>>, vector<1x1x8x290xbf16>
    %80 = vector.shape_cast %79 : vector<1x1x8x290xbf16> to vector<8x290xbf16>
    %81 = vector.extract_strided_slice %80 {offsets = [0, 0], sizes = [8, 256], strides = [1, 1]} : vector<8x290xbf16> to vector<8x256xbf16>
    %82 = vector.broadcast %2 : vector<1x256xbf16> to vector<8x256xbf16>
    %83 = arith.mulf %81, %82 : vector<8x256xbf16>
    %cst_87 = arith.constant dense<0.000000e+00> : vector<8x256xf32>
    %84 = tpu.matmul %20, %83, %cst_87 {dimension_numbers = #tpu.dot_dimension_numbers<[1], [0], [0], [1], [0, 0, 1, 1], [], []>} : vector<8x8xbf16>, vector<8x256xbf16>, vector<8x256xf32> -> vector<8x256xf32>
    %85 = arith.addf %74, %84 : vector<8x256xf32>
    %86 = vector.extract_strided_slice %80 {offsets = [0, 1], sizes = [8, 256], strides = [1, 1]} : vector<8x290xbf16> to vector<8x256xbf16>
    %87 = vector.broadcast %4 : vector<1x256xbf16> to vector<8x256xbf16>
    %88 = arith.mulf %86, %87 : vector<8x256xbf16>
    %cst_88 = arith.constant dense<0.000000e+00> : vector<8x256xf32>
    %89 = tpu.matmul %22, %88, %cst_88 {dimension_numbers = #tpu.dot_dimension_numbers<[1], [0], [0], [1], [0, 0, 1, 1], [], []>} : vector<8x8xbf16>, vector<8x256xbf16>, vector<8x256xf32> -> vector<8x256xf32>
    %90 = arith.addf %85, %89 : vector<8x256xf32>
    %91 = vector.extract_strided_slice %80 {offsets = [0, 2], sizes = [8, 256], strides = [1, 1]} : vector<8x290xbf16> to vector<8x256xbf16>
    %92 = vector.broadcast %6 : vector<1x256xbf16> to vector<8x256xbf16>
    %93 = arith.mulf %91, %92 : vector<8x256xbf16>
    %cst_89 = arith.constant dense<0.000000e+00> : vector<8x256xf32>
    %94 = tpu.matmul %24, %93, %cst_89 {dimension_numbers = #tpu.dot_dimension_numbers<[1], [0], [0], [1], [0, 0, 1, 1], [], []>} : vector<8x8xbf16>, vector<8x256xbf16>, vector<8x256xf32> -> vector<8x256xf32>
    %95 = arith.addf %90, %94 : vector<8x256xf32>
    %96 = vector.extract_strided_slice %80 {offsets = [0, 16], sizes = [8, 256], strides = [1, 1]} : vector<8x290xbf16> to vector<8x256xbf16>
    %97 = vector.broadcast %8 : vector<1x256xbf16> to vector<8x256xbf16>
    %98 = arith.mulf %96, %97 : vector<8x256xbf16>
    %cst_90 = arith.constant dense<0.000000e+00> : vector<8x256xf32>
    %99 = tpu.matmul %26, %98, %cst_90 {dimension_numbers = #tpu.dot_dimension_numbers<[1], [0], [0], [1], [0, 0, 1, 1], [], []>} : vector<8x8xbf16>, vector<8x256xbf16>, vector<8x256xf32> -> vector<8x256xf32>
    %100 = arith.addf %95, %99 : vector<8x256xf32>
    %101 = vector.extract_strided_slice %80 {offsets = [0, 17], sizes = [8, 256], strides = [1, 1]} : vector<8x290xbf16> to vector<8x256xbf16>
    %102 = vector.broadcast %10 : vector<1x256xbf16> to vector<8x256xbf16>
    %103 = arith.mulf %101, %102 : vector<8x256xbf16>
    %cst_91 = arith.constant dense<0.000000e+00> : vector<8x256xf32>
    %104 = tpu.matmul %28, %103, %cst_91 {dimension_numbers = #tpu.dot_dimension_numbers<[1], [0], [0], [1], [0, 0, 1, 1], [], []>} : vector<8x8xbf16>, vector<8x256xbf16>, vector<8x256xf32> -> vector<8x256xf32>
    %105 = arith.addf %100, %104 : vector<8x256xf32>
    %106 = vector.extract_strided_slice %80 {offsets = [0, 18], sizes = [8, 256], strides = [1, 1]} : vector<8x290xbf16> to vector<8x256xbf16>
    %107 = vector.broadcast %12 : vector<1x256xbf16> to vector<8x256xbf16>
    %108 = arith.mulf %106, %107 : vector<8x256xbf16>
    %cst_92 = arith.constant dense<0.000000e+00> : vector<8x256xf32>
    %109 = tpu.matmul %30, %108, %cst_92 {dimension_numbers = #tpu.dot_dimension_numbers<[1], [0], [0], [1], [0, 0, 1, 1], [], []>} : vector<8x8xbf16>, vector<8x256xbf16>, vector<8x256xf32> -> vector<8x256xf32>
    %110 = arith.addf %105, %109 : vector<8x256xf32>
    %111 = vector.extract_strided_slice %80 {offsets = [0, 32], sizes = [8, 256], strides = [1, 1]} : vector<8x290xbf16> to vector<8x256xbf16>
    %112 = vector.broadcast %14 : vector<1x256xbf16> to vector<8x256xbf16>
    %113 = arith.mulf %111, %112 : vector<8x256xbf16>
    %cst_93 = arith.constant dense<0.000000e+00> : vector<8x256xf32>
    %114 = tpu.matmul %32, %113, %cst_93 {dimension_numbers = #tpu.dot_dimension_numbers<[1], [0], [0], [1], [0, 0, 1, 1], [], []>} : vector<8x8xbf16>, vector<8x256xbf16>, vector<8x256xf32> -> vector<8x256xf32>
    %115 = arith.addf %110, %114 : vector<8x256xf32>
    %116 = vector.extract_strided_slice %80 {offsets = [0, 33], sizes = [8, 256], strides = [1, 1]} : vector<8x290xbf16> to vector<8x256xbf16>
    %117 = vector.broadcast %16 : vector<1x256xbf16> to vector<8x256xbf16>
    %118 = arith.mulf %116, %117 : vector<8x256xbf16>
    %cst_94 = arith.constant dense<0.000000e+00> : vector<8x256xf32>
    %119 = tpu.matmul %34, %118, %cst_94 {dimension_numbers = #tpu.dot_dimension_numbers<[1], [0], [0], [1], [0, 0, 1, 1], [], []>} : vector<8x8xbf16>, vector<8x256xbf16>, vector<8x256xf32> -> vector<8x256xf32>
    %120 = arith.addf %115, %119 : vector<8x256xf32>
    %121 = vector.extract_strided_slice %80 {offsets = [0, 34], sizes = [8, 256], strides = [1, 1]} : vector<8x290xbf16> to vector<8x256xbf16>
    %122 = vector.broadcast %18 : vector<1x256xbf16> to vector<8x256xbf16>
    %123 = arith.mulf %121, %122 : vector<8x256xbf16>
    %cst_95 = arith.constant dense<0.000000e+00> : vector<8x256xf32>
    %124 = tpu.matmul %36, %123, %cst_95 {dimension_numbers = #tpu.dot_dimension_numbers<[1], [0], [0], [1], [0, 0, 1, 1], [], []>} : vector<8x8xbf16>, vector<8x256xbf16>, vector<8x256xf32> -> vector<8x256xf32>
    %125 = arith.addf %120, %124 : vector<8x256xf32>
    %c0_i32_96 = arith.constant 0 : i32
    %126 = arith.addi %73, %c0_i32_96 : i32
    %c1_i32_97 = arith.constant 1 : i32
    %127 = arith.muli %126, %c1_i32_97 : i32
    %c1_i32_98 = arith.constant 1 : i32
    %128 = arith.addi %127, %c1_i32_98 : i32
    %c0_99 = arith.constant 0 : index
    %129 = arith.index_cast %128 : i32 to index
    %c0_100 = arith.constant 0 : index
    %c0_101 = arith.constant 0 : index
    %130 = vector.load %arg5[%c0_99, %129, %c0_100, %c0_101] : memref<1x18x8x290xbf16, #tpu.memory_space<vmem>>, vector<1x1x8x290xbf16>
    %131 = vector.shape_cast %130 : vector<1x1x8x290xbf16> to vector<8x290xbf16>
    %132 = vector.extract_strided_slice %131 {offsets = [0, 0], sizes = [8, 256], strides = [1, 1]} : vector<8x290xbf16> to vector<8x256xbf16>
    %133 = vector.broadcast %2 : vector<1x256xbf16> to vector<8x256xbf16>
    %134 = arith.mulf %132, %133 : vector<8x256xbf16>
    %cst_102 = arith.constant dense<0.000000e+00> : vector<8x256xf32>
    %135 = tpu.matmul %38, %134, %cst_102 {dimension_numbers = #tpu.dot_dimension_numbers<[1], [0], [0], [1], [0, 0, 1, 1], [], []>} : vector<8x8xbf16>, vector<8x256xbf16>, vector<8x256xf32> -> vector<8x256xf32>
    %136 = arith.addf %125, %135 : vector<8x256xf32>
    %137 = vector.extract_strided_slice %131 {offsets = [0, 1], sizes = [8, 256], strides = [1, 1]} : vector<8x290xbf16> to vector<8x256xbf16>
    %138 = vector.broadcast %4 : vector<1x256xbf16> to vector<8x256xbf16>
    %139 = arith.mulf %137, %138 : vector<8x256xbf16>
    %cst_103 = arith.constant dense<0.000000e+00> : vector<8x256xf32>
    %140 = tpu.matmul %40, %139, %cst_103 {dimension_numbers = #tpu.dot_dimension_numbers<[1], [0], [0], [1], [0, 0, 1, 1], [], []>} : vector<8x8xbf16>, vector<8x256xbf16>, vector<8x256xf32> -> vector<8x256xf32>
    %141 = arith.addf %136, %140 : vector<8x256xf32>
    %142 = vector.extract_strided_slice %131 {offsets = [0, 2], sizes = [8, 256], strides = [1, 1]} : vector<8x290xbf16> to vector<8x256xbf16>
    %143 = vector.broadcast %6 : vector<1x256xbf16> to vector<8x256xbf16>
    %144 = arith.mulf %142, %143 : vector<8x256xbf16>
    %cst_104 = arith.constant dense<0.000000e+00> : vector<8x256xf32>
    %145 = tpu.matmul %42, %144, %cst_104 {dimension_numbers = #tpu.dot_dimension_numbers<[1], [0], [0], [1], [0, 0, 1, 1], [], []>} : vector<8x8xbf16>, vector<8x256xbf16>, vector<8x256xf32> -> vector<8x256xf32>
    %146 = arith.addf %141, %145 : vector<8x256xf32>
    %147 = vector.extract_strided_slice %131 {offsets = [0, 16], sizes = [8, 256], strides = [1, 1]} : vector<8x290xbf16> to vector<8x256xbf16>
    %148 = vector.broadcast %8 : vector<1x256xbf16> to vector<8x256xbf16>
    %149 = arith.mulf %147, %148 : vector<8x256xbf16>
    %cst_105 = arith.constant dense<0.000000e+00> : vector<8x256xf32>
    %150 = tpu.matmul %44, %149, %cst_105 {dimension_numbers = #tpu.dot_dimension_numbers<[1], [0], [0], [1], [0, 0, 1, 1], [], []>} : vector<8x8xbf16>, vector<8x256xbf16>, vector<8x256xf32> -> vector<8x256xf32>
    %151 = arith.addf %146, %150 : vector<8x256xf32>
    %152 = vector.extract_strided_slice %131 {offsets = [0, 17], sizes = [8, 256], strides = [1, 1]} : vector<8x290xbf16> to vector<8x256xbf16>
    %153 = vector.broadcast %10 : vector<1x256xbf16> to vector<8x256xbf16>
    %154 = arith.mulf %152, %153 : vector<8x256xbf16>
    %cst_106 = arith.constant dense<0.000000e+00> : vector<8x256xf32>
    %155 = tpu.matmul %46, %154, %cst_106 {dimension_numbers = #tpu.dot_dimension_numbers<[1], [0], [0], [1], [0, 0, 1, 1], [], []>} : vector<8x8xbf16>, vector<8x256xbf16>, vector<8x256xf32> -> vector<8x256xf32>
    %156 = arith.addf %151, %155 : vector<8x256xf32>
    %157 = vector.extract_strided_slice %131 {offsets = [0, 18], sizes = [8, 256], strides = [1, 1]} : vector<8x290xbf16> to vector<8x256xbf16>
    %158 = vector.broadcast %12 : vector<1x256xbf16> to vector<8x256xbf16>
    %159 = arith.mulf %157, %158 : vector<8x256xbf16>
    %cst_107 = arith.constant dense<0.000000e+00> : vector<8x256xf32>
    %160 = tpu.matmul %48, %159, %cst_107 {dimension_numbers = #tpu.dot_dimension_numbers<[1], [0], [0], [1], [0, 0, 1, 1], [], []>} : vector<8x8xbf16>, vector<8x256xbf16>, vector<8x256xf32> -> vector<8x256xf32>
    %161 = arith.addf %156, %160 : vector<8x256xf32>
    %162 = vector.extract_strided_slice %131 {offsets = [0, 32], sizes = [8, 256], strides = [1, 1]} : vector<8x290xbf16> to vector<8x256xbf16>
    %163 = vector.broadcast %14 : vector<1x256xbf16> to vector<8x256xbf16>
    %164 = arith.mulf %162, %163 : vector<8x256xbf16>
    %cst_108 = arith.constant dense<0.000000e+00> : vector<8x256xf32>
    %165 = tpu.matmul %50, %164, %cst_108 {dimension_numbers = #tpu.dot_dimension_numbers<[1], [0], [0], [1], [0, 0, 1, 1], [], []>} : vector<8x8xbf16>, vector<8x256xbf16>, vector<8x256xf32> -> vector<8x256xf32>
    %166 = arith.addf %161, %165 : vector<8x256xf32>
    %167 = vector.extract_strided_slice %131 {offsets = [0, 33], sizes = [8, 256], strides = [1, 1]} : vector<8x290xbf16> to vector<8x256xbf16>
    %168 = vector.broadcast %16 : vector<1x256xbf16> to vector<8x256xbf16>
    %169 = arith.mulf %167, %168 : vector<8x256xbf16>
    %cst_109 = arith.constant dense<0.000000e+00> : vector<8x256xf32>
    %170 = tpu.matmul %52, %169, %cst_109 {dimension_numbers = #tpu.dot_dimension_numbers<[1], [0], [0], [1], [0, 0, 1, 1], [], []>} : vector<8x8xbf16>, vector<8x256xbf16>, vector<8x256xf32> -> vector<8x256xf32>
    %171 = arith.addf %166, %170 : vector<8x256xf32>
    %172 = vector.extract_strided_slice %131 {offsets = [0, 34], sizes = [8, 256], strides = [1, 1]} : vector<8x290xbf16> to vector<8x256xbf16>
    %173 = vector.broadcast %18 : vector<1x256xbf16> to vector<8x256xbf16>
    %174 = arith.mulf %172, %173 : vector<8x256xbf16>
    %cst_110 = arith.constant dense<0.000000e+00> : vector<8x256xf32>
    %175 = tpu.matmul %54, %174, %cst_110 {dimension_numbers = #tpu.dot_dimension_numbers<[1], [0], [0], [1], [0, 0, 1, 1], [], []>} : vector<8x8xbf16>, vector<8x256xbf16>, vector<8x256xf32> -> vector<8x256xf32>
    %176 = arith.addf %171, %175 : vector<8x256xf32>
    %c0_i32_111 = arith.constant 0 : i32
    %177 = arith.addi %73, %c0_i32_111 : i32
    %c1_i32_112 = arith.constant 1 : i32
    %178 = arith.muli %177, %c1_i32_112 : i32
    %c2_i32 = arith.constant 2 : i32
    %179 = arith.addi %178, %c2_i32 : i32
    %c0_113 = arith.constant 0 : index
    %180 = arith.index_cast %179 : i32 to index
    %c0_114 = arith.constant 0 : index
    %c0_115 = arith.constant 0 : index
    %181 = vector.load %arg5[%c0_113, %180, %c0_114, %c0_115] : memref<1x18x8x290xbf16, #tpu.memory_space<vmem>>, vector<1x1x8x290xbf16>
    %182 = vector.shape_cast %181 : vector<1x1x8x290xbf16> to vector<8x290xbf16>
    %183 = vector.extract_strided_slice %182 {offsets = [0, 0], sizes = [8, 256], strides = [1, 1]} : vector<8x290xbf16> to vector<8x256xbf16>
    %184 = vector.broadcast %2 : vector<1x256xbf16> to vector<8x256xbf16>
    %185 = arith.mulf %183, %184 : vector<8x256xbf16>
    %cst_116 = arith.constant dense<0.000000e+00> : vector<8x256xf32>
    %186 = tpu.matmul %56, %185, %cst_116 {dimension_numbers = #tpu.dot_dimension_numbers<[1], [0], [0], [1], [0, 0, 1, 1], [], []>} : vector<8x8xbf16>, vector<8x256xbf16>, vector<8x256xf32> -> vector<8x256xf32>
    %187 = arith.addf %176, %186 : vector<8x256xf32>
    %188 = vector.extract_strided_slice %182 {offsets = [0, 1], sizes = [8, 256], strides = [1, 1]} : vector<8x290xbf16> to vector<8x256xbf16>
    %189 = vector.broadcast %4 : vector<1x256xbf16> to vector<8x256xbf16>
    %190 = arith.mulf %188, %189 : vector<8x256xbf16>
    %cst_117 = arith.constant dense<0.000000e+00> : vector<8x256xf32>
    %191 = tpu.matmul %58, %190, %cst_117 {dimension_numbers = #tpu.dot_dimension_numbers<[1], [0], [0], [1], [0, 0, 1, 1], [], []>} : vector<8x8xbf16>, vector<8x256xbf16>, vector<8x256xf32> -> vector<8x256xf32>
    %192 = arith.addf %187, %191 : vector<8x256xf32>
    %193 = vector.extract_strided_slice %182 {offsets = [0, 2], sizes = [8, 256], strides = [1, 1]} : vector<8x290xbf16> to vector<8x256xbf16>
    %194 = vector.broadcast %6 : vector<1x256xbf16> to vector<8x256xbf16>
    %195 = arith.mulf %193, %194 : vector<8x256xbf16>
    %cst_118 = arith.constant dense<0.000000e+00> : vector<8x256xf32>
    %196 = tpu.matmul %60, %195, %cst_118 {dimension_numbers = #tpu.dot_dimension_numbers<[1], [0], [0], [1], [0, 0, 1, 1], [], []>} : vector<8x8xbf16>, vector<8x256xbf16>, vector<8x256xf32> -> vector<8x256xf32>
    %197 = arith.addf %192, %196 : vector<8x256xf32>
    %198 = vector.extract_strided_slice %182 {offsets = [0, 16], sizes = [8, 256], strides = [1, 1]} : vector<8x290xbf16> to vector<8x256xbf16>
    %199 = vector.broadcast %8 : vector<1x256xbf16> to vector<8x256xbf16>
    %200 = arith.mulf %198, %199 : vector<8x256xbf16>
    %cst_119 = arith.constant dense<0.000000e+00> : vector<8x256xf32>
    %201 = tpu.matmul %62, %200, %cst_119 {dimension_numbers = #tpu.dot_dimension_numbers<[1], [0], [0], [1], [0, 0, 1, 1], [], []>} : vector<8x8xbf16>, vector<8x256xbf16>, vector<8x256xf32> -> vector<8x256xf32>
    %202 = arith.addf %197, %201 : vector<8x256xf32>
    %203 = vector.extract_strided_slice %182 {offsets = [0, 17], sizes = [8, 256], strides = [1, 1]} : vector<8x290xbf16> to vector<8x256xbf16>
    %204 = vector.broadcast %10 : vector<1x256xbf16> to vector<8x256xbf16>
    %205 = arith.mulf %203, %204 : vector<8x256xbf16>
    %cst_120 = arith.constant dense<0.000000e+00> : vector<8x256xf32>
    %206 = tpu.matmul %64, %205, %cst_120 {dimension_numbers = #tpu.dot_dimension_numbers<[1], [0], [0], [1], [0, 0, 1, 1], [], []>} : vector<8x8xbf16>, vector<8x256xbf16>, vector<8x256xf32> -> vector<8x256xf32>
    %207 = arith.addf %202, %206 : vector<8x256xf32>
    %208 = vector.extract_strided_slice %182 {offsets = [0, 18], sizes = [8, 256], strides = [1, 1]} : vector<8x290xbf16> to vector<8x256xbf16>
    %209 = vector.broadcast %12 : vector<1x256xbf16> to vector<8x256xbf16>
    %210 = arith.mulf %208, %209 : vector<8x256xbf16>
    %cst_121 = arith.constant dense<0.000000e+00> : vector<8x256xf32>
    %211 = tpu.matmul %66, %210, %cst_121 {dimension_numbers = #tpu.dot_dimension_numbers<[1], [0], [0], [1], [0, 0, 1, 1], [], []>} : vector<8x8xbf16>, vector<8x256xbf16>, vector<8x256xf32> -> vector<8x256xf32>
    %212 = arith.addf %207, %211 : vector<8x256xf32>
    %213 = vector.extract_strided_slice %182 {offsets = [0, 32], sizes = [8, 256], strides = [1, 1]} : vector<8x290xbf16> to vector<8x256xbf16>
    %214 = vector.broadcast %14 : vector<1x256xbf16> to vector<8x256xbf16>
    %215 = arith.mulf %213, %214 : vector<8x256xbf16>
    %cst_122 = arith.constant dense<0.000000e+00> : vector<8x256xf32>
    %216 = tpu.matmul %68, %215, %cst_122 {dimension_numbers = #tpu.dot_dimension_numbers<[1], [0], [0], [1], [0, 0, 1, 1], [], []>} : vector<8x8xbf16>, vector<8x256xbf16>, vector<8x256xf32> -> vector<8x256xf32>
    %217 = arith.addf %212, %216 : vector<8x256xf32>
    %218 = vector.extract_strided_slice %182 {offsets = [0, 33], sizes = [8, 256], strides = [1, 1]} : vector<8x290xbf16> to vector<8x256xbf16>
    %219 = vector.broadcast %16 : vector<1x256xbf16> to vector<8x256xbf16>
    %220 = arith.mulf %218, %219 : vector<8x256xbf16>
    %cst_123 = arith.constant dense<0.000000e+00> : vector<8x256xf32>
    %221 = tpu.matmul %70, %220, %cst_123 {dimension_numbers = #tpu.dot_dimension_numbers<[1], [0], [0], [1], [0, 0, 1, 1], [], []>} : vector<8x8xbf16>, vector<8x256xbf16>, vector<8x256xf32> -> vector<8x256xf32>
    %222 = arith.addf %217, %221 : vector<8x256xf32>
    %223 = vector.extract_strided_slice %182 {offsets = [0, 34], sizes = [8, 256], strides = [1, 1]} : vector<8x290xbf16> to vector<8x256xbf16>
    %224 = vector.broadcast %18 : vector<1x256xbf16> to vector<8x256xbf16>
    %225 = arith.mulf %223, %224 : vector<8x256xbf16>
    %cst_124 = arith.constant dense<0.000000e+00> : vector<8x256xf32>
    %226 = tpu.matmul %72, %225, %cst_124 {dimension_numbers = #tpu.dot_dimension_numbers<[1], [0], [0], [1], [0, 0, 1, 1], [], []>} : vector<8x8xbf16>, vector<8x256xbf16>, vector<8x256xf32> -> vector<8x256xf32>
    %227 = arith.addf %222, %226 : vector<8x256xf32>
    %228 = vector.broadcast %0 : vector<8x1xf32> to vector<8x256xf32>
    %229 = arith.addf %227, %228 : vector<8x256xf32>
    %cst_125 = arith.constant 0.000000e+00 : f32
    %230 = vector.broadcast %cst_125 : f32 to vector<8x256xf32>
    %231 = arith.maximumf %229, %230 : vector<8x256xf32>
    %c0_126 = arith.constant 0 : index
    %c0_127 = arith.constant 0 : index
    %c0_128 = arith.constant 0 : index
    %232 = vector.load %arg6[%c0_126, %c0_127, %c0_128] : memref<1x8x1024xf32, #tpu.memory_space<vmem>>, vector<1x8x256xf32>
    %233 = vector.shape_cast %232 : vector<1x8x256xf32> to vector<8x256xf32>
    %234 = vector.shape_cast %231 : vector<8x256xf32> to vector<1x8x256xf32>
    tpu.vector_store %arg6[%c0_126, %c0_127, %c0_128], %234 {strides = array<i32>} : memref<1x8x1024xf32, #tpu.memory_space<vmem>>, vector<1x8x256xf32>,
    %cst_129 = arith.constant 0.000000e+00 : f32
    %235 = vector.broadcast %cst_129 : f32 to vector<8x256xf32>
    %c1_i32_130 = arith.constant 1 : i32
    %236 = arith.addi %73, %c1_i32_130 : i32
    %c1_i32_131 = arith.constant 1 : i32
    %237 = arith.muli %236, %c1_i32_131 : i32
    %c0_i32_132 = arith.constant 0 : i32
    %238 = arith.addi %237, %c0_i32_132 : i32
    %c0_133 = arith.constant 0 : index
    %239 = arith.index_cast %238 : i32 to index
    %c0_134 = arith.constant 0 : index
    %c0_135 = arith.constant 0 : index
    %240 = vector.load %arg5[%c0_133, %239, %c0_134, %c0_135] : memref<1x18x8x290xbf16, #tpu.memory_space<vmem>>, vector<1x1x8x290xbf16>
    %241 = vector.shape_cast %240 : vector<1x1x8x290xbf16> to vector<8x290xbf16>
    %242 = vector.extract_strided_slice %241 {offsets = [0, 0], sizes = [8, 256], strides = [1, 1]} : vector<8x290xbf16> to vector<8x256xbf16>
    %243 = vector.broadcast %2 : vector<1x256xbf16> to vector<8x256xbf16>
    %244 = arith.mulf %242, %243 : vector<8x256xbf16>
    %cst_136 = arith.constant dense<0.000000e+00> : vector<8x256xf32>
    %245 = tpu.matmul %20, %244, %cst_136 {dimension_numbers = #tpu.dot_dimension_numbers<[1], [0], [0], [1], [0, 0, 1, 1], [], []>} : vector<8x8xbf16>, vector<8x256xbf16>, vector<8x256xf32> -> vector<8x256xf32>
    %246 = arith.addf %235, %245 : vector<8x256xf32>
    %247 = vector.extract_strided_slice %241 {offsets = [0, 1], sizes = [8, 256], strides = [1, 1]} : vector<8x290xbf16> to vector<8x256xbf16>
    %248 = vector.broadcast %4 : vector<1x256xbf16> to vector<8x256xbf16>
    %249 = arith.mulf %247, %248 : vector<8x256xbf16>
    %cst_137 = arith.constant dense<0.000000e+00> : vector<8x256xf32>
    %250 = tpu.matmul %22, %249, %cst_137 {dimension_numbers = #tpu.dot_dimension_numbers<[1], [0], [0], [1], [0, 0, 1, 1], [], []>} : vector<8x8xbf16>, vector<8x256xbf16>, vector<8x256xf32> -> vector<8x256xf32>
    %251 = arith.addf %246, %250 : vector<8x256xf32>
    %252 = vector.extract_strided_slice %241 {offsets = [0, 2], sizes = [8, 256], strides = [1, 1]} : vector<8x290xbf16> to vector<8x256xbf16>
    %253 = vector.broadcast %6 : vector<1x256xbf16> to vector<8x256xbf16>
    %254 = arith.mulf %252, %253 : vector<8x256xbf16>
    %cst_138 = arith.constant dense<0.000000e+00> : vector<8x256xf32>
    %255 = tpu.matmul %24, %254, %cst_138 {dimension_numbers = #tpu.dot_dimension_numbers<[1], [0], [0], [1], [0, 0, 1, 1], [], []>} : vector<8x8xbf16>, vector<8x256xbf16>, vector<8x256xf32> -> vector<8x256xf32>
    %256 = arith.addf %251, %255 : vector<8x256xf32>
    %257 = vector.extract_strided_slice %241 {offsets = [0, 16], sizes = [8, 256], strides = [1, 1]} : vector<8x290xbf16> to vector<8x256xbf16>
    %258 = vector.broadcast %8 : vector<1x256xbf16> to vector<8x256xbf16>
    %259 = arith.mulf %257, %258 : vector<8x256xbf16>
    %cst_139 = arith.constant dense<0.000000e+00> : vector<8x256xf32>
    %260 = tpu.matmul %26, %259, %cst_139 {dimension_numbers = #tpu.dot_dimension_numbers<[1], [0], [0], [1], [0, 0, 1, 1], [], []>} : vector<8x8xbf16>, vector<8x256xbf16>, vector<8x256xf32> -> vector<8x256xf32>
    %261 = arith.addf %256, %260 : vector<8x256xf32>
    %262 = vector.extract_strided_slice %241 {offsets = [0, 17], sizes = [8, 256], strides = [1, 1]} : vector<8x290xbf16> to vector<8x256xbf16>
    %263 = vector.broadcast %10 : vector<1x256xbf16> to vector<8x256xbf16>
    %264 = arith.mulf %262, %263 : vector<8x256xbf16>
    %cst_140 = arith.constant dense<0.000000e+00> : vector<8x256xf32>
    %265 = tpu.matmul %28, %264, %cst_140 {dimension_numbers = #tpu.dot_dimension_numbers<[1], [0], [0], [1], [0, 0, 1, 1], [], []>} : vector<8x8xbf16>, vector<8x256xbf16>, vector<8x256xf32> -> vector<8x256xf32>
    %266 = arith.addf %261, %265 : vector<8x256xf32>
    %267 = vector.extract_strided_slice %241 {offsets = [0, 18], sizes = [8, 256], strides = [1, 1]} : vector<8x290xbf16> to vector<8x256xbf16>
    %268 = vector.broadcast %12 : vector<1x256xbf16> to vector<8x256xbf16>
    %269 = arith.mulf %267, %268 : vector<8x256xbf16>
    %cst_141 = arith.constant dense<0.000000e+00> : vector<8x256xf32>
    %270 = tpu.matmul %30, %269, %cst_141 {dimension_numbers = #tpu.dot_dimension_numbers<[1], [0], [0], [1], [0, 0, 1, 1], [], []>} : vector<8x8xbf16>, vector<8x256xbf16>, vector<8x256xf32> -> vector<8x256xf32>
    %271 = arith.addf %266, %270 : vector<8x256xf32>
    %272 = vector.extract_strided_slice %241 {offsets = [0, 32], sizes = [8, 256], strides = [1, 1]} : vector<8x290xbf16> to vector<8x256xbf16>
    %273 = vector.broadcast %14 : vector<1x256xbf16> to vector<8x256xbf16>
    %274 = arith.mulf %272, %273 : vector<8x256xbf16>
    %cst_142 = arith.constant dense<0.000000e+00> : vector<8x256xf32>
    %275 = tpu.matmul %32, %274, %cst_142 {dimension_numbers = #tpu.dot_dimension_numbers<[1], [0], [0], [1], [0, 0, 1, 1], [], []>} : vector<8x8xbf16>, vector<8x256xbf16>, vector<8x256xf32> -> vector<8x256xf32>
    %276 = arith.addf %271, %275 : vector<8x256xf32>
    %277 = vector.extract_strided_slice %241 {offsets = [0, 33], sizes = [8, 256], strides = [1, 1]} : vector<8x290xbf16> to vector<8x256xbf16>
    %278 = vector.broadcast %16 : vector<1x256xbf16> to vector<8x256xbf16>
    %279 = arith.mulf %277, %278 : vector<8x256xbf16>
    %cst_143 = arith.constant dense<0.000000e+00> : vector<8x256xf32>
    %280 = tpu.matmul %34, %279, %cst_143 {dimension_numbers = #tpu.dot_dimension_numbers<[1], [0], [0], [1], [0, 0, 1, 1], [], []>} : vector<8x8xbf16>, vector<8x256xbf16>, vector<8x256xf32> -> vector<8x256xf32>
    %281 = arith.addf %276, %280 : vector<8x256xf32>
    %282 = vector.extract_strided_slice %241 {offsets = [0, 34], sizes = [8, 256], strides = [1, 1]} : vector<8x290xbf16> to vector<8x256xbf16>
    %283 = vector.broadcast %18 : vector<1x256xbf16> to vector<8x256xbf16>
    %284 = arith.mulf %282, %283 : vector<8x256xbf16>
    %cst_144 = arith.constant dense<0.000000e+00> : vector<8x256xf32>
    %285 = tpu.matmul %36, %284, %cst_144 {dimension_numbers = #tpu.dot_dimension_numbers<[1], [0], [0], [1], [0, 0, 1, 1], [], []>} : vector<8x8xbf16>, vector<8x256xbf16>, vector<8x256xf32> -> vector<8x256xf32>
    %286 = arith.addf %281, %285 : vector<8x256xf32>
    %c1_i32_145 = arith.constant 1 : i32
    %287 = arith.addi %73, %c1_i32_145 : i32
    %c1_i32_146 = arith.constant 1 : i32
    %288 = arith.muli %287, %c1_i32_146 : i32
    %c1_i32_147 = arith.constant 1 : i32
    %289 = arith.addi %288, %c1_i32_147 : i32
    %c0_148 = arith.constant 0 : index
    %290 = arith.index_cast %289 : i32 to index
    %c0_149 = arith.constant 0 : index
    %c0_150 = arith.constant 0 : index
    %291 = vector.load %arg5[%c0_148, %290, %c0_149, %c0_150] : memref<1x18x8x290xbf16, #tpu.memory_space<vmem>>, vector<1x1x8x290xbf16>
    %292 = vector.shape_cast %291 : vector<1x1x8x290xbf16> to vector<8x290xbf16>
    %293 = vector.extract_strided_slice %292 {offsets = [0, 0], sizes = [8, 256], strides = [1, 1]} : vector<8x290xbf16> to vector<8x256xbf16>
    %294 = vector.broadcast %2 : vector<1x256xbf16> to vector<8x256xbf16>
    %295 = arith.mulf %293, %294 : vector<8x256xbf16>
    %cst_151 = arith.constant dense<0.000000e+00> : vector<8x256xf32>
    %296 = tpu.matmul %38, %295, %cst_151 {dimension_numbers = #tpu.dot_dimension_numbers<[1], [0], [0], [1], [0, 0, 1, 1], [], []>} : vector<8x8xbf16>, vector<8x256xbf16>, vector<8x256xf32> -> vector<8x256xf32>
    %297 = arith.addf %286, %296 : vector<8x256xf32>
    %298 = vector.extract_strided_slice %292 {offsets = [0, 1], sizes = [8, 256], strides = [1, 1]} : vector<8x290xbf16> to vector<8x256xbf16>
    %299 = vector.broadcast %4 : vector<1x256xbf16> to vector<8x256xbf16>
    %300 = arith.mulf %298, %299 : vector<8x256xbf16>
    %cst_152 = arith.constant dense<0.000000e+00> : vector<8x256xf32>
    %301 = tpu.matmul %40, %300, %cst_152 {dimension_numbers = #tpu.dot_dimension_numbers<[1], [0], [0], [1], [0, 0, 1, 1], [], []>} : vector<8x8xbf16>, vector<8x256xbf16>, vector<8x256xf32> -> vector<8x256xf32>
    %302 = arith.addf %297, %301 : vector<8x256xf32>
    %303 = vector.extract_strided_slice %292 {offsets = [0, 2], sizes = [8, 256], strides = [1, 1]} : vector<8x290xbf16> to vector<8x256xbf16>
    %304 = vector.broadcast %6 : vector<1x256xbf16> to vector<8x256xbf16>
    %305 = arith.mulf %303, %304 : vector<8x256xbf16>
    %cst_153 = arith.constant dense<0.000000e+00> : vector<8x256xf32>
    %306 = tpu.matmul %42, %305, %cst_153 {dimension_numbers = #tpu.dot_dimension_numbers<[1], [0], [0], [1], [0, 0, 1, 1], [], []>} : vector<8x8xbf16>, vector<8x256xbf16>, vector<8x256xf32> -> vector<8x256xf32>
    %307 = arith.addf %302, %306 : vector<8x256xf32>
    %308 = vector.extract_strided_slice %292 {offsets = [0, 16], sizes = [8, 256], strides = [1, 1]} : vector<8x290xbf16> to vector<8x256xbf16>
    %309 = vector.broadcast %8 : vector<1x256xbf16> to vector<8x256xbf16>
    %310 = arith.mulf %308, %309 : vector<8x256xbf16>
    %cst_154 = arith.constant dense<0.000000e+00> : vector<8x256xf32>
    %311 = tpu.matmul %44, %310, %cst_154 {dimension_numbers = #tpu.dot_dimension_numbers<[1], [0], [0], [1], [0, 0, 1, 1], [], []>} : vector<8x8xbf16>, vector<8x256xbf16>, vector<8x256xf32> -> vector<8x256xf32>
    %312 = arith.addf %307, %311 : vector<8x256xf32>
    %313 = vector.extract_strided_slice %292 {offsets = [0, 17], sizes = [8, 256], strides = [1, 1]} : vector<8x290xbf16> to vector<8x256xbf16>
    %314 = vector.broadcast %10 : vector<1x256xbf16> to vector<8x256xbf16>
    %315 = arith.mulf %313, %314 : vector<8x256xbf16>
    %cst_155 = arith.constant dense<0.000000e+00> : vector<8x256xf32>
    %316 = tpu.matmul %46, %315, %cst_155 {dimension_numbers = #tpu.dot_dimension_numbers<[1], [0], [0], [1], [0, 0, 1, 1], [], []>} : vector<8x8xbf16>, vector<8x256xbf16>, vector<8x256xf32> -> vector<8x256xf32>
    %317 = arith.addf %312, %316 : vector<8x256xf32>
    %318 = vector.extract_strided_slice %292 {offsets = [0, 18], sizes = [8, 256], strides = [1, 1]} : vector<8x290xbf16> to vector<8x256xbf16>
    %319 = vector.broadcast %12 : vector<1x256xbf16> to vector<8x256xbf16>
    %320 = arith.mulf %318, %319 : vector<8x256xbf16>
    %cst_156 = arith.constant dense<0.000000e+00> : vector<8x256xf32>
    %321 = tpu.matmul %48, %320, %cst_156 {dimension_numbers = #tpu.dot_dimension_numbers<[1], [0], [0], [1], [0, 0, 1, 1], [], []>} : vector<8x8xbf16>, vector<8x256xbf16>, vector<8x256xf32> -> vector<8x256xf32>
    %322 = arith.addf %317, %321 : vector<8x256xf32>
    %323 = vector.extract_strided_slice %292 {offsets = [0, 32], sizes = [8, 256], strides = [1, 1]} : vector<8x290xbf16> to vector<8x256xbf16>
    %324 = vector.broadcast %14 : vector<1x256xbf16> to vector<8x256xbf16>
    %325 = arith.mulf %323, %324 : vector<8x256xbf16>
    %cst_157 = arith.constant dense<0.000000e+00> : vector<8x256xf32>
    %326 = tpu.matmul %50, %325, %cst_157 {dimension_numbers = #tpu.dot_dimension_numbers<[1], [0], [0], [1], [0, 0, 1, 1], [], []>} : vector<8x8xbf16>, vector<8x256xbf16>, vector<8x256xf32> -> vector<8x256xf32>
    %327 = arith.addf %322, %326 : vector<8x256xf32>
    %328 = vector.extract_strided_slice %292 {offsets = [0, 33], sizes = [8, 256], strides = [1, 1]} : vector<8x290xbf16> to vector<8x256xbf16>
    %329 = vector.broadcast %16 : vector<1x256xbf16> to vector<8x256xbf16>
    %330 = arith.mulf %328, %329 : vector<8x256xbf16>
    %cst_158 = arith.constant dense<0.000000e+00> : vector<8x256xf32>
    %331 = tpu.matmul %52, %330, %cst_158 {dimension_numbers = #tpu.dot_dimension_numbers<[1], [0], [0], [1], [0, 0, 1, 1], [], []>} : vector<8x8xbf16>, vector<8x256xbf16>, vector<8x256xf32> -> vector<8x256xf32>
    %332 = arith.addf %327, %331 : vector<8x256xf32>
    %333 = vector.extract_strided_slice %292 {offsets = [0, 34], sizes = [8, 256], strides = [1, 1]} : vector<8x290xbf16> to vector<8x256xbf16>
    %334 = vector.broadcast %18 : vector<1x256xbf16> to vector<8x256xbf16>
    %335 = arith.mulf %333, %334 : vector<8x256xbf16>
    %cst_159 = arith.constant dense<0.000000e+00> : vector<8x256xf32>
    %336 = tpu.matmul %54, %335, %cst_159 {dimension_numbers = #tpu.dot_dimension_numbers<[1], [0], [0], [1], [0, 0, 1, 1], [], []>} : vector<8x8xbf16>, vector<8x256xbf16>, vector<8x256xf32> -> vector<8x256xf32>
    %337 = arith.addf %332, %336 : vector<8x256xf32>
    %c1_i32_160 = arith.constant 1 : i32
    %338 = arith.addi %73, %c1_i32_160 : i32
    %c1_i32_161 = arith.constant 1 : i32
    %339 = arith.muli %338, %c1_i32_161 : i32
    %c2_i32_162 = arith.constant 2 : i32
    %340 = arith.addi %339, %c2_i32_162 : i32
    %c0_163 = arith.constant 0 : index
    %341 = arith.index_cast %340 : i32 to index
    %c0_164 = arith.constant 0 : index
    %c0_165 = arith.constant 0 : index
    %342 = vector.load %arg5[%c0_163, %341, %c0_164, %c0_165] : memref<1x18x8x290xbf16, #tpu.memory_space<vmem>>, vector<1x1x8x290xbf16>
    %343 = vector.shape_cast %342 : vector<1x1x8x290xbf16> to vector<8x290xbf16>
    %344 = vector.extract_strided_slice %343 {offsets = [0, 0], sizes = [8, 256], strides = [1, 1]} : vector<8x290xbf16> to vector<8x256xbf16>
    %345 = vector.broadcast %2 : vector<1x256xbf16> to vector<8x256xbf16>
    %346 = arith.mulf %344, %345 : vector<8x256xbf16>
    %cst_166 = arith.constant dense<0.000000e+00> : vector<8x256xf32>
    %347 = tpu.matmul %56, %346, %cst_166 {dimension_numbers = #tpu.dot_dimension_numbers<[1], [0], [0], [1], [0, 0, 1, 1], [], []>} : vector<8x8xbf16>, vector<8x256xbf16>, vector<8x256xf32> -> vector<8x256xf32>
    %348 = arith.addf %337, %347 : vector<8x256xf32>
    %349 = vector.extract_strided_slice %343 {offsets = [0, 1], sizes = [8, 256], strides = [1, 1]} : vector<8x290xbf16> to vector<8x256xbf16>
    %350 = vector.broadcast %4 : vector<1x256xbf16> to vector<8x256xbf16>
    %351 = arith.mulf %349, %350 : vector<8x256xbf16>
    %cst_167 = arith.constant dense<0.000000e+00> : vector<8x256xf32>
    %352 = tpu.matmul %58, %351, %cst_167 {dimension_numbers = #tpu.dot_dimension_numbers<[1], [0], [0], [1], [0, 0, 1, 1], [], []>} : vector<8x8xbf16>, vector<8x256xbf16>, vector<8x256xf32> -> vector<8x256xf32>
    %353 = arith.addf %348, %352 : vector<8x256xf32>
    %354 = vector.extract_strided_slice %343 {offsets = [0, 2], sizes = [8, 256], strides = [1, 1]} : vector<8x290xbf16> to vector<8x256xbf16>
    %355 = vector.broadcast %6 : vector<1x256xbf16> to vector<8x256xbf16>
    %356 = arith.mulf %354, %355 : vector<8x256xbf16>
    %cst_168 = arith.constant dense<0.000000e+00> : vector<8x256xf32>
    %357 = tpu.matmul %60, %356, %cst_168 {dimension_numbers = #tpu.dot_dimension_numbers<[1], [0], [0], [1], [0, 0, 1, 1], [], []>} : vector<8x8xbf16>, vector<8x256xbf16>, vector<8x256xf32> -> vector<8x256xf32>
    %358 = arith.addf %353, %357 : vector<8x256xf32>
    %359 = vector.extract_strided_slice %343 {offsets = [0, 16], sizes = [8, 256], strides = [1, 1]} : vector<8x290xbf16> to vector<8x256xbf16>
    %360 = vector.broadcast %8 : vector<1x256xbf16> to vector<8x256xbf16>
    %361 = arith.mulf %359, %360 : vector<8x256xbf16>
    %cst_169 = arith.constant dense<0.000000e+00> : vector<8x256xf32>
    %362 = tpu.matmul %62, %361, %cst_169 {dimension_numbers = #tpu.dot_dimension_numbers<[1], [0], [0], [1], [0, 0, 1, 1], [], []>} : vector<8x8xbf16>, vector<8x256xbf16>, vector<8x256xf32> -> vector<8x256xf32>
    %363 = arith.addf %358, %362 : vector<8x256xf32>
    %364 = vector.extract_strided_slice %343 {offsets = [0, 17], sizes = [8, 256], strides = [1, 1]} : vector<8x290xbf16> to vector<8x256xbf16>
    %365 = vector.broadcast %10 : vector<1x256xbf16> to vector<8x256xbf16>
    %366 = arith.mulf %364, %365 : vector<8x256xbf16>
    %cst_170 = arith.constant dense<0.000000e+00> : vector<8x256xf32>
    %367 = tpu.matmul %64, %366, %cst_170 {dimension_numbers = #tpu.dot_dimension_numbers<[1], [0], [0], [1], [0, 0, 1, 1], [], []>} : vector<8x8xbf16>, vector<8x256xbf16>, vector<8x256xf32> -> vector<8x256xf32>
    %368 = arith.addf %363, %367 : vector<8x256xf32>
    %369 = vector.extract_strided_slice %343 {offsets = [0, 18], sizes = [8, 256], strides = [1, 1]} : vector<8x290xbf16> to vector<8x256xbf16>
    %370 = vector.broadcast %12 : vector<1x256xbf16> to vector<8x256xbf16>
    %371 = arith.mulf %369, %370 : vector<8x256xbf16>
    %cst_171 = arith.constant dense<0.000000e+00> : vector<8x256xf32>
    %372 = tpu.matmul %66, %371, %cst_171 {dimension_numbers = #tpu.dot_dimension_numbers<[1], [0], [0], [1], [0, 0, 1, 1], [], []>} : vector<8x8xbf16>, vector<8x256xbf16>, vector<8x256xf32> -> vector<8x256xf32>
    %373 = arith.addf %368, %372 : vector<8x256xf32>
    %374 = vector.extract_strided_slice %343 {offsets = [0, 32], sizes = [8, 256], strides = [1, 1]} : vector<8x290xbf16> to vector<8x256xbf16>
    %375 = vector.broadcast %14 : vector<1x256xbf16> to vector<8x256xbf16>
    %376 = arith.mulf %374, %375 : vector<8x256xbf16>
    %cst_172 = arith.constant dense<0.000000e+00> : vector<8x256xf32>
    %377 = tpu.matmul %68, %376, %cst_172 {dimension_numbers = #tpu.dot_dimension_numbers<[1], [0], [0], [1], [0, 0, 1, 1], [], []>} : vector<8x8xbf16>, vector<8x256xbf16>, vector<8x256xf32> -> vector<8x256xf32>
    %378 = arith.addf %373, %377 : vector<8x256xf32>
    %379 = vector.extract_strided_slice %343 {offsets = [0, 33], sizes = [8, 256], strides = [1, 1]} : vector<8x290xbf16> to vector<8x256xbf16>
    %380 = vector.broadcast %16 : vector<1x256xbf16> to vector<8x256xbf16>
    %381 = arith.mulf %379, %380 : vector<8x256xbf16>
    %cst_173 = arith.constant dense<0.000000e+00> : vector<8x256xf32>
    %382 = tpu.matmul %70, %381, %cst_173 {dimension_numbers = #tpu.dot_dimension_numbers<[1], [0], [0], [1], [0, 0, 1, 1], [], []>} : vector<8x8xbf16>, vector<8x256xbf16>, vector<8x256xf32> -> vector<8x256xf32>
    %383 = arith.addf %378, %382 : vector<8x256xf32>
    %384 = vector.extract_strided_slice %343 {offsets = [0, 34], sizes = [8, 256], strides = [1, 1]} : vector<8x290xbf16> to vector<8x256xbf16>
    %385 = vector.broadcast %18 : vector<1x256xbf16> to vector<8x256xbf16>
    %386 = arith.mulf %384, %385 : vector<8x256xbf16>
    %cst_174 = arith.constant dense<0.000000e+00> : vector<8x256xf32>
    %387 = tpu.matmul %72, %386, %cst_174 {dimension_numbers = #tpu.dot_dimension_numbers<[1], [0], [0], [1], [0, 0, 1, 1], [], []>} : vector<8x8xbf16>, vector<8x256xbf16>, vector<8x256xf32> -> vector<8x256xf32>
    %388 = arith.addf %383, %387 : vector<8x256xf32>
    %389 = vector.broadcast %0 : vector<8x1xf32> to vector<8x256xf32>
    %390 = arith.addf %388, %389 : vector<8x256xf32>
    %cst_175 = arith.constant 0.000000e+00 : f32
    %391 = vector.broadcast %cst_175 : f32 to vector<8x256xf32>
    %392 = arith.maximumf %390, %391 : vector<8x256xf32>
    %c0_176 = arith.constant 0 : index
    %c0_177 = arith.constant 0 : index
    %c256 = arith.constant 256 : index
    %393 = vector.load %arg6[%c0_176, %c0_177, %c256] : memref<1x8x1024xf32, #tpu.memory_space<vmem>>, vector<1x8x256xf32>
    %394 = vector.shape_cast %393 : vector<1x8x256xf32> to vector<8x256xf32>
    %395 = vector.shape_cast %392 : vector<8x256xf32> to vector<1x8x256xf32>
    tpu.vector_store %arg6[%c0_176, %c0_177, %c256], %395 {strides = array<i32>} : memref<1x8x1024xf32, #tpu.memory_space<vmem>>, vector<1x8x256xf32>,
    %cst_178 = arith.constant 0.000000e+00 : f32
    %396 = vector.broadcast %cst_178 : f32 to vector<8x256xf32>
    %c2_i32_179 = arith.constant 2 : i32
    %397 = arith.addi %73, %c2_i32_179 : i32
    %c1_i32_180 = arith.constant 1 : i32
    %398 = arith.muli %397, %c1_i32_180 : i32
    %c0_i32_181 = arith.constant 0 : i32
    %399 = arith.addi %398, %c0_i32_181 : i32
    %c0_182 = arith.constant 0 : index
    %400 = arith.index_cast %399 : i32 to index
    %c0_183 = arith.constant 0 : index
    %c0_184 = arith.constant 0 : index
    %401 = vector.load %arg5[%c0_182, %400, %c0_183, %c0_184] : memref<1x18x8x290xbf16, #tpu.memory_space<vmem>>, vector<1x1x8x290xbf16>
    %402 = vector.shape_cast %401 : vector<1x1x8x290xbf16> to vector<8x290xbf16>
    %403 = vector.extract_strided_slice %402 {offsets = [0, 0], sizes = [8, 256], strides = [1, 1]} : vector<8x290xbf16> to vector<8x256xbf16>
    %404 = vector.broadcast %2 : vector<1x256xbf16> to vector<8x256xbf16>
    %405 = arith.mulf %403, %404 : vector<8x256xbf16>
    %cst_185 = arith.constant dense<0.000000e+00> : vector<8x256xf32>
    %406 = tpu.matmul %20, %405, %cst_185 {dimension_numbers = #tpu.dot_dimension_numbers<[1], [0], [0], [1], [0, 0, 1, 1], [], []>} : vector<8x8xbf16>, vector<8x256xbf16>, vector<8x256xf32> -> vector<8x256xf32>
    %407 = arith.addf %396, %406 : vector<8x256xf32>
    %408 = vector.extract_strided_slice %402 {offsets = [0, 1], sizes = [8, 256], strides = [1, 1]} : vector<8x290xbf16> to vector<8x256xbf16>
    %409 = vector.broadcast %4 : vector<1x256xbf16> to vector<8x256xbf16>
    %410 = arith.mulf %408, %409 : vector<8x256xbf16>
    %cst_186 = arith.constant dense<0.000000e+00> : vector<8x256xf32>
    %411 = tpu.matmul %22, %410, %cst_186 {dimension_numbers = #tpu.dot_dimension_numbers<[1], [0], [0], [1], [0, 0, 1, 1], [], []>} : vector<8x8xbf16>, vector<8x256xbf16>, vector<8x256xf32> -> vector<8x256xf32>
    %412 = arith.addf %407, %411 : vector<8x256xf32>
    %413 = vector.extract_strided_slice %402 {offsets = [0, 2], sizes = [8, 256], strides = [1, 1]} : vector<8x290xbf16> to vector<8x256xbf16>
    %414 = vector.broadcast %6 : vector<1x256xbf16> to vector<8x256xbf16>
    %415 = arith.mulf %413, %414 : vector<8x256xbf16>
    %cst_187 = arith.constant dense<0.000000e+00> : vector<8x256xf32>
    %416 = tpu.matmul %24, %415, %cst_187 {dimension_numbers = #tpu.dot_dimension_numbers<[1], [0], [0], [1], [0, 0, 1, 1], [], []>} : vector<8x8xbf16>, vector<8x256xbf16>, vector<8x256xf32> -> vector<8x256xf32>
    %417 = arith.addf %412, %416 : vector<8x256xf32>
    %418 = vector.extract_strided_slice %402 {offsets = [0, 16], sizes = [8, 256], strides = [1, 1]} : vector<8x290xbf16> to vector<8x256xbf16>
    %419 = vector.broadcast %8 : vector<1x256xbf16> to vector<8x256xbf16>
    %420 = arith.mulf %418, %419 : vector<8x256xbf16>
    %cst_188 = arith.constant dense<0.000000e+00> : vector<8x256xf32>
    %421 = tpu.matmul %26, %420, %cst_188 {dimension_numbers = #tpu.dot_dimension_numbers<[1], [0], [0], [1], [0, 0, 1, 1], [], []>} : vector<8x8xbf16>, vector<8x256xbf16>, vector<8x256xf32> -> vector<8x256xf32>
    %422 = arith.addf %417, %421 : vector<8x256xf32>
    %423 = vector.extract_strided_slice %402 {offsets = [0, 17], sizes = [8, 256], strides = [1, 1]} : vector<8x290xbf16> to vector<8x256xbf16>
    %424 = vector.broadcast %10 : vector<1x256xbf16> to vector<8x256xbf16>
    %425 = arith.mulf %423, %424 : vector<8x256xbf16>
    %cst_189 = arith.constant dense<0.000000e+00> : vector<8x256xf32>
    %426 = tpu.matmul %28, %425, %cst_189 {dimension_numbers = #tpu.dot_dimension_numbers<[1], [0], [0], [1], [0, 0, 1, 1], [], []>} : vector<8x8xbf16>, vector<8x256xbf16>, vector<8x256xf32> -> vector<8x256xf32>
    %427 = arith.addf %422, %426 : vector<8x256xf32>
    %428 = vector.extract_strided_slice %402 {offsets = [0, 18], sizes = [8, 256], strides = [1, 1]} : vector<8x290xbf16> to vector<8x256xbf16>
    %429 = vector.broadcast %12 : vector<1x256xbf16> to vector<8x256xbf16>
    %430 = arith.mulf %428, %429 : vector<8x256xbf16>
    %cst_190 = arith.constant dense<0.000000e+00> : vector<8x256xf32>
    %431 = tpu.matmul %30, %430, %cst_190 {dimension_numbers = #tpu.dot_dimension_numbers<[1], [0], [0], [1], [0, 0, 1, 1], [], []>} : vector<8x8xbf16>, vector<8x256xbf16>, vector<8x256xf32> -> vector<8x256xf32>
    %432 = arith.addf %427, %431 : vector<8x256xf32>
    %433 = vector.extract_strided_slice %402 {offsets = [0, 32], sizes = [8, 256], strides = [1, 1]} : vector<8x290xbf16> to vector<8x256xbf16>
    %434 = vector.broadcast %14 : vector<1x256xbf16> to vector<8x256xbf16>
    %435 = arith.mulf %433, %434 : vector<8x256xbf16>
    %cst_191 = arith.constant dense<0.000000e+00> : vector<8x256xf32>
    %436 = tpu.matmul %32, %435, %cst_191 {dimension_numbers = #tpu.dot_dimension_numbers<[1], [0], [0], [1], [0, 0, 1, 1], [], []>} : vector<8x8xbf16>, vector<8x256xbf16>, vector<8x256xf32> -> vector<8x256xf32>
    %437 = arith.addf %432, %436 : vector<8x256xf32>
    %438 = vector.extract_strided_slice %402 {offsets = [0, 33], sizes = [8, 256], strides = [1, 1]} : vector<8x290xbf16> to vector<8x256xbf16>
    %439 = vector.broadcast %16 : vector<1x256xbf16> to vector<8x256xbf16>
    %440 = arith.mulf %438, %439 : vector<8x256xbf16>
    %cst_192 = arith.constant dense<0.000000e+00> : vector<8x256xf32>
    %441 = tpu.matmul %34, %440, %cst_192 {dimension_numbers = #tpu.dot_dimension_numbers<[1], [0], [0], [1], [0, 0, 1, 1], [], []>} : vector<8x8xbf16>, vector<8x256xbf16>, vector<8x256xf32> -> vector<8x256xf32>
    %442 = arith.addf %437, %441 : vector<8x256xf32>
    %443 = vector.extract_strided_slice %402 {offsets = [0, 34], sizes = [8, 256], strides = [1, 1]} : vector<8x290xbf16> to vector<8x256xbf16>
    %444 = vector.broadcast %18 : vector<1x256xbf16> to vector<8x256xbf16>
    %445 = arith.mulf %443, %444 : vector<8x256xbf16>
    %cst_193 = arith.constant dense<0.000000e+00> : vector<8x256xf32>
    %446 = tpu.matmul %36, %445, %cst_193 {dimension_numbers = #tpu.dot_dimension_numbers<[1], [0], [0], [1], [0, 0, 1, 1], [], []>} : vector<8x8xbf16>, vector<8x256xbf16>, vector<8x256xf32> -> vector<8x256xf32>
    %447 = arith.addf %442, %446 : vector<8x256xf32>
    %c2_i32_194 = arith.constant 2 : i32
    %448 = arith.addi %73, %c2_i32_194 : i32
    %c1_i32_195 = arith.constant 1 : i32
    %449 = arith.muli %448, %c1_i32_195 : i32
    %c1_i32_196 = arith.constant 1 : i32
    %450 = arith.addi %449, %c1_i32_196 : i32
    %c0_197 = arith.constant 0 : index
    %451 = arith.index_cast %450 : i32 to index
    %c0_198 = arith.constant 0 : index
    %c0_199 = arith.constant 0 : index
    %452 = vector.load %arg5[%c0_197, %451, %c0_198, %c0_199] : memref<1x18x8x290xbf16, #tpu.memory_space<vmem>>, vector<1x1x8x290xbf16>
    %453 = vector.shape_cast %452 : vector<1x1x8x290xbf16> to vector<8x290xbf16>
    %454 = vector.extract_strided_slice %453 {offsets = [0, 0], sizes = [8, 256], strides = [1, 1]} : vector<8x290xbf16> to vector<8x256xbf16>
    %455 = vector.broadcast %2 : vector<1x256xbf16> to vector<8x256xbf16>
    %456 = arith.mulf %454, %455 : vector<8x256xbf16>
    %cst_200 = arith.constant dense<0.000000e+00> : vector<8x256xf32>
    %457 = tpu.matmul %38, %456, %cst_200 {dimension_numbers = #tpu.dot_dimension_numbers<[1], [0], [0], [1], [0, 0, 1, 1], [], []>} : vector<8x8xbf16>, vector<8x256xbf16>, vector<8x256xf32> -> vector<8x256xf32>
    %458 = arith.addf %447, %457 : vector<8x256xf32>
    %459 = vector.extract_strided_slice %453 {offsets = [0, 1], sizes = [8, 256], strides = [1, 1]} : vector<8x290xbf16> to vector<8x256xbf16>
    %460 = vector.broadcast %4 : vector<1x256xbf16> to vector<8x256xbf16>
    %461 = arith.mulf %459, %460 : vector<8x256xbf16>
    %cst_201 = arith.constant dense<0.000000e+00> : vector<8x256xf32>
    %462 = tpu.matmul %40, %461, %cst_201 {dimension_numbers = #tpu.dot_dimension_numbers<[1], [0], [0], [1], [0, 0, 1, 1], [], []>} : vector<8x8xbf16>, vector<8x256xbf16>, vector<8x256xf32> -> vector<8x256xf32>
    %463 = arith.addf %458, %462 : vector<8x256xf32>
    %464 = vector.extract_strided_slice %453 {offsets = [0, 2], sizes = [8, 256], strides = [1, 1]} : vector<8x290xbf16> to vector<8x256xbf16>
    %465 = vector.broadcast %6 : vector<1x256xbf16> to vector<8x256xbf16>
    %466 = arith.mulf %464, %465 : vector<8x256xbf16>
    %cst_202 = arith.constant dense<0.000000e+00> : vector<8x256xf32>
    %467 = tpu.matmul %42, %466, %cst_202 {dimension_numbers = #tpu.dot_dimension_numbers<[1], [0], [0], [1], [0, 0, 1, 1], [], []>} : vector<8x8xbf16>, vector<8x256xbf16>, vector<8x256xf32> -> vector<8x256xf32>
    %468 = arith.addf %463, %467 : vector<8x256xf32>
    %469 = vector.extract_strided_slice %453 {offsets = [0, 16], sizes = [8, 256], strides = [1, 1]} : vector<8x290xbf16> to vector<8x256xbf16>
    %470 = vector.broadcast %8 : vector<1x256xbf16> to vector<8x256xbf16>
    %471 = arith.mulf %469, %470 : vector<8x256xbf16>
    %cst_203 = arith.constant dense<0.000000e+00> : vector<8x256xf32>
    %472 = tpu.matmul %44, %471, %cst_203 {dimension_numbers = #tpu.dot_dimension_numbers<[1], [0], [0], [1], [0, 0, 1, 1], [], []>} : vector<8x8xbf16>, vector<8x256xbf16>, vector<8x256xf32> -> vector<8x256xf32>
    %473 = arith.addf %468, %472 : vector<8x256xf32>
    %474 = vector.extract_strided_slice %453 {offsets = [0, 17], sizes = [8, 256], strides = [1, 1]} : vector<8x290xbf16> to vector<8x256xbf16>
    %475 = vector.broadcast %10 : vector<1x256xbf16> to vector<8x256xbf16>
    %476 = arith.mulf %474, %475 : vector<8x256xbf16>
    %cst_204 = arith.constant dense<0.000000e+00> : vector<8x256xf32>
    %477 = tpu.matmul %46, %476, %cst_204 {dimension_numbers = #tpu.dot_dimension_numbers<[1], [0], [0], [1], [0, 0, 1, 1], [], []>} : vector<8x8xbf16>, vector<8x256xbf16>, vector<8x256xf32> -> vector<8x256xf32>
    %478 = arith.addf %473, %477 : vector<8x256xf32>
    %479 = vector.extract_strided_slice %453 {offsets = [0, 18], sizes = [8, 256], strides = [1, 1]} : vector<8x290xbf16> to vector<8x256xbf16>
    %480 = vector.broadcast %12 : vector<1x256xbf16> to vector<8x256xbf16>
    %481 = arith.mulf %479, %480 : vector<8x256xbf16>
    %cst_205 = arith.constant dense<0.000000e+00> : vector<8x256xf32>
    %482 = tpu.matmul %48, %481, %cst_205 {dimension_numbers = #tpu.dot_dimension_numbers<[1], [0], [0], [1], [0, 0, 1, 1], [], []>} : vector<8x8xbf16>, vector<8x256xbf16>, vector<8x256xf32> -> vector<8x256xf32>
    %483 = arith.addf %478, %482 : vector<8x256xf32>
    %484 = vector.extract_strided_slice %453 {offsets = [0, 32], sizes = [8, 256], strides = [1, 1]} : vector<8x290xbf16> to vector<8x256xbf16>
    %485 = vector.broadcast %14 : vector<1x256xbf16> to vector<8x256xbf16>
    %486 = arith.mulf %484, %485 : vector<8x256xbf16>
    %cst_206 = arith.constant dense<0.000000e+00> : vector<8x256xf32>
    %487 = tpu.matmul %50, %486, %cst_206 {dimension_numbers = #tpu.dot_dimension_numbers<[1], [0], [0], [1], [0, 0, 1, 1], [], []>} : vector<8x8xbf16>, vector<8x256xbf16>, vector<8x256xf32> -> vector<8x256xf32>
    %488 = arith.addf %483, %487 : vector<8x256xf32>
    %489 = vector.extract_strided_slice %453 {offsets = [0, 33], sizes = [8, 256], strides = [1, 1]} : vector<8x290xbf16> to vector<8x256xbf16>
    %490 = vector.broadcast %16 : vector<1x256xbf16> to vector<8x256xbf16>
    %491 = arith.mulf %489, %490 : vector<8x256xbf16>
    %cst_207 = arith.constant dense<0.000000e+00> : vector<8x256xf32>
    %492 = tpu.matmul %52, %491, %cst_207 {dimension_numbers = #tpu.dot_dimension_numbers<[1], [0], [0], [1], [0, 0, 1, 1], [], []>} : vector<8x8xbf16>, vector<8x256xbf16>, vector<8x256xf32> -> vector<8x256xf32>
    %493 = arith.addf %488, %492 : vector<8x256xf32>
    %494 = vector.extract_strided_slice %453 {offsets = [0, 34], sizes = [8, 256], strides = [1, 1]} : vector<8x290xbf16> to vector<8x256xbf16>
    %495 = vector.broadcast %18 : vector<1x256xbf16> to vector<8x256xbf16>
    %496 = arith.mulf %494, %495 : vector<8x256xbf16>
    %cst_208 = arith.constant dense<0.000000e+00> : vector<8x256xf32>
    %497 = tpu.matmul %54, %496, %cst_208 {dimension_numbers = #tpu.dot_dimension_numbers<[1], [0], [0], [1], [0, 0, 1, 1], [], []>} : vector<8x8xbf16>, vector<8x256xbf16>, vector<8x256xf32> -> vector<8x256xf32>
    %498 = arith.addf %493, %497 : vector<8x256xf32>
    %c2_i32_209 = arith.constant 2 : i32
    %499 = arith.addi %73, %c2_i32_209 : i32
    %c1_i32_210 = arith.constant 1 : i32
    %500 = arith.muli %499, %c1_i32_210 : i32
    %c2_i32_211 = arith.constant 2 : i32
    %501 = arith.addi %500, %c2_i32_211 : i32
    %c0_212 = arith.constant 0 : index
    %502 = arith.index_cast %501 : i32 to index
    %c0_213 = arith.constant 0 : index
    %c0_214 = arith.constant 0 : index
    %503 = vector.load %arg5[%c0_212, %502, %c0_213, %c0_214] : memref<1x18x8x290xbf16, #tpu.memory_space<vmem>>, vector<1x1x8x290xbf16>
    %504 = vector.shape_cast %503 : vector<1x1x8x290xbf16> to vector<8x290xbf16>
    %505 = vector.extract_strided_slice %504 {offsets = [0, 0], sizes = [8, 256], strides = [1, 1]} : vector<8x290xbf16> to vector<8x256xbf16>
    %506 = vector.broadcast %2 : vector<1x256xbf16> to vector<8x256xbf16>
    %507 = arith.mulf %505, %506 : vector<8x256xbf16>
    %cst_215 = arith.constant dense<0.000000e+00> : vector<8x256xf32>
    %508 = tpu.matmul %56, %507, %cst_215 {dimension_numbers = #tpu.dot_dimension_numbers<[1], [0], [0], [1], [0, 0, 1, 1], [], []>} : vector<8x8xbf16>, vector<8x256xbf16>, vector<8x256xf32> -> vector<8x256xf32>
    %509 = arith.addf %498, %508 : vector<8x256xf32>
    %510 = vector.extract_strided_slice %504 {offsets = [0, 1], sizes = [8, 256], strides = [1, 1]} : vector<8x290xbf16> to vector<8x256xbf16>
    %511 = vector.broadcast %4 : vector<1x256xbf16> to vector<8x256xbf16>
    %512 = arith.mulf %510, %511 : vector<8x256xbf16>
    %cst_216 = arith.constant dense<0.000000e+00> : vector<8x256xf32>
    %513 = tpu.matmul %58, %512, %cst_216 {dimension_numbers = #tpu.dot_dimension_numbers<[1], [0], [0], [1], [0, 0, 1, 1], [], []>} : vector<8x8xbf16>, vector<8x256xbf16>, vector<8x256xf32> -> vector<8x256xf32>
    %514 = arith.addf %509, %513 : vector<8x256xf32>
    %515 = vector.extract_strided_slice %504 {offsets = [0, 2], sizes = [8, 256], strides = [1, 1]} : vector<8x290xbf16> to vector<8x256xbf16>
    %516 = vector.broadcast %6 : vector<1x256xbf16> to vector<8x256xbf16>
    %517 = arith.mulf %515, %516 : vector<8x256xbf16>
    %cst_217 = arith.constant dense<0.000000e+00> : vector<8x256xf32>
    %518 = tpu.matmul %60, %517, %cst_217 {dimension_numbers = #tpu.dot_dimension_numbers<[1], [0], [0], [1], [0, 0, 1, 1], [], []>} : vector<8x8xbf16>, vector<8x256xbf16>, vector<8x256xf32> -> vector<8x256xf32>
    %519 = arith.addf %514, %518 : vector<8x256xf32>
    %520 = vector.extract_strided_slice %504 {offsets = [0, 16], sizes = [8, 256], strides = [1, 1]} : vector<8x290xbf16> to vector<8x256xbf16>
    %521 = vector.broadcast %8 : vector<1x256xbf16> to vector<8x256xbf16>
    %522 = arith.mulf %520, %521 : vector<8x256xbf16>
    %cst_218 = arith.constant dense<0.000000e+00> : vector<8x256xf32>
    %523 = tpu.matmul %62, %522, %cst_218 {dimension_numbers = #tpu.dot_dimension_numbers<[1], [0], [0], [1], [0, 0, 1, 1], [], []>} : vector<8x8xbf16>, vector<8x256xbf16>, vector<8x256xf32> -> vector<8x256xf32>
    %524 = arith.addf %519, %523 : vector<8x256xf32>
    %525 = vector.extract_strided_slice %504 {offsets = [0, 17], sizes = [8, 256], strides = [1, 1]} : vector<8x290xbf16> to vector<8x256xbf16>
    %526 = vector.broadcast %10 : vector<1x256xbf16> to vector<8x256xbf16>
    %527 = arith.mulf %525, %526 : vector<8x256xbf16>
    %cst_219 = arith.constant dense<0.000000e+00> : vector<8x256xf32>
    %528 = tpu.matmul %64, %527, %cst_219 {dimension_numbers = #tpu.dot_dimension_numbers<[1], [0], [0], [1], [0, 0, 1, 1], [], []>} : vector<8x8xbf16>, vector<8x256xbf16>, vector<8x256xf32> -> vector<8x256xf32>
    %529 = arith.addf %524, %528 : vector<8x256xf32>
    %530 = vector.extract_strided_slice %504 {offsets = [0, 18], sizes = [8, 256], strides = [1, 1]} : vector<8x290xbf16> to vector<8x256xbf16>
    %531 = vector.broadcast %12 : vector<1x256xbf16> to vector<8x256xbf16>
    %532 = arith.mulf %530, %531 : vector<8x256xbf16>
    %cst_220 = arith.constant dense<0.000000e+00> : vector<8x256xf32>
    %533 = tpu.matmul %66, %532, %cst_220 {dimension_numbers = #tpu.dot_dimension_numbers<[1], [0], [0], [1], [0, 0, 1, 1], [], []>} : vector<8x8xbf16>, vector<8x256xbf16>, vector<8x256xf32> -> vector<8x256xf32>
    %534 = arith.addf %529, %533 : vector<8x256xf32>
    %535 = vector.extract_strided_slice %504 {offsets = [0, 32], sizes = [8, 256], strides = [1, 1]} : vector<8x290xbf16> to vector<8x256xbf16>
    %536 = vector.broadcast %14 : vector<1x256xbf16> to vector<8x256xbf16>
    %537 = arith.mulf %535, %536 : vector<8x256xbf16>
    %cst_221 = arith.constant dense<0.000000e+00> : vector<8x256xf32>
    %538 = tpu.matmul %68, %537, %cst_221 {dimension_numbers = #tpu.dot_dimension_numbers<[1], [0], [0], [1], [0, 0, 1, 1], [], []>} : vector<8x8xbf16>, vector<8x256xbf16>, vector<8x256xf32> -> vector<8x256xf32>
    %539 = arith.addf %534, %538 : vector<8x256xf32>
    %540 = vector.extract_strided_slice %504 {offsets = [0, 33], sizes = [8, 256], strides = [1, 1]} : vector<8x290xbf16> to vector<8x256xbf16>
    %541 = vector.broadcast %16 : vector<1x256xbf16> to vector<8x256xbf16>
    %542 = arith.mulf %540, %541 : vector<8x256xbf16>
    %cst_222 = arith.constant dense<0.000000e+00> : vector<8x256xf32>
    %543 = tpu.matmul %70, %542, %cst_222 {dimension_numbers = #tpu.dot_dimension_numbers<[1], [0], [0], [1], [0, 0, 1, 1], [], []>} : vector<8x8xbf16>, vector<8x256xbf16>, vector<8x256xf32> -> vector<8x256xf32>
    %544 = arith.addf %539, %543 : vector<8x256xf32>
    %545 = vector.extract_strided_slice %504 {offsets = [0, 34], sizes = [8, 256], strides = [1, 1]} : vector<8x290xbf16> to vector<8x256xbf16>
    %546 = vector.broadcast %18 : vector<1x256xbf16> to vector<8x256xbf16>
    %547 = arith.mulf %545, %546 : vector<8x256xbf16>
    %cst_223 = arith.constant dense<0.000000e+00> : vector<8x256xf32>
    %548 = tpu.matmul %72, %547, %cst_223 {dimension_numbers = #tpu.dot_dimension_numbers<[1], [0], [0], [1], [0, 0, 1, 1], [], []>} : vector<8x8xbf16>, vector<8x256xbf16>, vector<8x256xf32> -> vector<8x256xf32>
    %549 = arith.addf %544, %548 : vector<8x256xf32>
    %550 = vector.broadcast %0 : vector<8x1xf32> to vector<8x256xf32>
    %551 = arith.addf %549, %550 : vector<8x256xf32>
    %cst_224 = arith.constant 0.000000e+00 : f32
    %552 = vector.broadcast %cst_224 : f32 to vector<8x256xf32>
    %553 = arith.maximumf %551, %552 : vector<8x256xf32>
    %c0_225 = arith.constant 0 : index
    %c0_226 = arith.constant 0 : index
    %c512 = arith.constant 512 : index
    %554 = vector.load %arg6[%c0_225, %c0_226, %c512] : memref<1x8x1024xf32, #tpu.memory_space<vmem>>, vector<1x8x256xf32>
    %555 = vector.shape_cast %554 : vector<1x8x256xf32> to vector<8x256xf32>
    %556 = vector.shape_cast %553 : vector<8x256xf32> to vector<1x8x256xf32>
    tpu.vector_store %arg6[%c0_225, %c0_226, %c512], %556 {strides = array<i32>} : memref<1x8x1024xf32, #tpu.memory_space<vmem>>, vector<1x8x256xf32>,
    %cst_227 = arith.constant 0.000000e+00 : f32
    %557 = vector.broadcast %cst_227 : f32 to vector<8x256xf32>
    %c3_i32 = arith.constant 3 : i32
    %558 = arith.addi %73, %c3_i32 : i32
    %c1_i32_228 = arith.constant 1 : i32
    %559 = arith.muli %558, %c1_i32_228 : i32
    %c0_i32_229 = arith.constant 0 : i32
    %560 = arith.addi %559, %c0_i32_229 : i32
    %c0_230 = arith.constant 0 : index
    %561 = arith.index_cast %560 : i32 to index
    %c0_231 = arith.constant 0 : index
    %c0_232 = arith.constant 0 : index
    %562 = vector.load %arg5[%c0_230, %561, %c0_231, %c0_232] : memref<1x18x8x290xbf16, #tpu.memory_space<vmem>>, vector<1x1x8x290xbf16>
    %563 = vector.shape_cast %562 : vector<1x1x8x290xbf16> to vector<8x290xbf16>
    %564 = vector.extract_strided_slice %563 {offsets = [0, 0], sizes = [8, 256], strides = [1, 1]} : vector<8x290xbf16> to vector<8x256xbf16>
    %565 = vector.broadcast %2 : vector<1x256xbf16> to vector<8x256xbf16>
    %566 = arith.mulf %564, %565 : vector<8x256xbf16>
    %cst_233 = arith.constant dense<0.000000e+00> : vector<8x256xf32>
    %567 = tpu.matmul %20, %566, %cst_233 {dimension_numbers = #tpu.dot_dimension_numbers<[1], [0], [0], [1], [0, 0, 1, 1], [], []>} : vector<8x8xbf16>, vector<8x256xbf16>, vector<8x256xf32> -> vector<8x256xf32>
    %568 = arith.addf %557, %567 : vector<8x256xf32>
    %569 = vector.extract_strided_slice %563 {offsets = [0, 1], sizes = [8, 256], strides = [1, 1]} : vector<8x290xbf16> to vector<8x256xbf16>
    %570 = vector.broadcast %4 : vector<1x256xbf16> to vector<8x256xbf16>
    %571 = arith.mulf %569, %570 : vector<8x256xbf16>
    %cst_234 = arith.constant dense<0.000000e+00> : vector<8x256xf32>
    %572 = tpu.matmul %22, %571, %cst_234 {dimension_numbers = #tpu.dot_dimension_numbers<[1], [0], [0], [1], [0, 0, 1, 1], [], []>} : vector<8x8xbf16>, vector<8x256xbf16>, vector<8x256xf32> -> vector<8x256xf32>
    %573 = arith.addf %568, %572 : vector<8x256xf32>
    %574 = vector.extract_strided_slice %563 {offsets = [0, 2], sizes = [8, 256], strides = [1, 1]} : vector<8x290xbf16> to vector<8x256xbf16>
    %575 = vector.broadcast %6 : vector<1x256xbf16> to vector<8x256xbf16>
    %576 = arith.mulf %574, %575 : vector<8x256xbf16>
    %cst_235 = arith.constant dense<0.000000e+00> : vector<8x256xf32>
    %577 = tpu.matmul %24, %576, %cst_235 {dimension_numbers = #tpu.dot_dimension_numbers<[1], [0], [0], [1], [0, 0, 1, 1], [], []>} : vector<8x8xbf16>, vector<8x256xbf16>, vector<8x256xf32> -> vector<8x256xf32>
    %578 = arith.addf %573, %577 : vector<8x256xf32>
    %579 = vector.extract_strided_slice %563 {offsets = [0, 16], sizes = [8, 256], strides = [1, 1]} : vector<8x290xbf16> to vector<8x256xbf16>
    %580 = vector.broadcast %8 : vector<1x256xbf16> to vector<8x256xbf16>
    %581 = arith.mulf %579, %580 : vector<8x256xbf16>
    %cst_236 = arith.constant dense<0.000000e+00> : vector<8x256xf32>
    %582 = tpu.matmul %26, %581, %cst_236 {dimension_numbers = #tpu.dot_dimension_numbers<[1], [0], [0], [1], [0, 0, 1, 1], [], []>} : vector<8x8xbf16>, vector<8x256xbf16>, vector<8x256xf32> -> vector<8x256xf32>
    %583 = arith.addf %578, %582 : vector<8x256xf32>
    %584 = vector.extract_strided_slice %563 {offsets = [0, 17], sizes = [8, 256], strides = [1, 1]} : vector<8x290xbf16> to vector<8x256xbf16>
    %585 = vector.broadcast %10 : vector<1x256xbf16> to vector<8x256xbf16>
    %586 = arith.mulf %584, %585 : vector<8x256xbf16>
    %cst_237 = arith.constant dense<0.000000e+00> : vector<8x256xf32>
    %587 = tpu.matmul %28, %586, %cst_237 {dimension_numbers = #tpu.dot_dimension_numbers<[1], [0], [0], [1], [0, 0, 1, 1], [], []>} : vector<8x8xbf16>, vector<8x256xbf16>, vector<8x256xf32> -> vector<8x256xf32>
    %588 = arith.addf %583, %587 : vector<8x256xf32>
    %589 = vector.extract_strided_slice %563 {offsets = [0, 18], sizes = [8, 256], strides = [1, 1]} : vector<8x290xbf16> to vector<8x256xbf16>
    %590 = vector.broadcast %12 : vector<1x256xbf16> to vector<8x256xbf16>
    %591 = arith.mulf %589, %590 : vector<8x256xbf16>
    %cst_238 = arith.constant dense<0.000000e+00> : vector<8x256xf32>
    %592 = tpu.matmul %30, %591, %cst_238 {dimension_numbers = #tpu.dot_dimension_numbers<[1], [0], [0], [1], [0, 0, 1, 1], [], []>} : vector<8x8xbf16>, vector<8x256xbf16>, vector<8x256xf32> -> vector<8x256xf32>
    %593 = arith.addf %588, %592 : vector<8x256xf32>
    %594 = vector.extract_strided_slice %563 {offsets = [0, 32], sizes = [8, 256], strides = [1, 1]} : vector<8x290xbf16> to vector<8x256xbf16>
    %595 = vector.broadcast %14 : vector<1x256xbf16> to vector<8x256xbf16>
    %596 = arith.mulf %594, %595 : vector<8x256xbf16>
    %cst_239 = arith.constant dense<0.000000e+00> : vector<8x256xf32>
    %597 = tpu.matmul %32, %596, %cst_239 {dimension_numbers = #tpu.dot_dimension_numbers<[1], [0], [0], [1], [0, 0, 1, 1], [], []>} : vector<8x8xbf16>, vector<8x256xbf16>, vector<8x256xf32> -> vector<8x256xf32>
    %598 = arith.addf %593, %597 : vector<8x256xf32>
    %599 = vector.extract_strided_slice %563 {offsets = [0, 33], sizes = [8, 256], strides = [1, 1]} : vector<8x290xbf16> to vector<8x256xbf16>
    %600 = vector.broadcast %16 : vector<1x256xbf16> to vector<8x256xbf16>
    %601 = arith.mulf %599, %600 : vector<8x256xbf16>
    %cst_240 = arith.constant dense<0.000000e+00> : vector<8x256xf32>
    %602 = tpu.matmul %34, %601, %cst_240 {dimension_numbers = #tpu.dot_dimension_numbers<[1], [0], [0], [1], [0, 0, 1, 1], [], []>} : vector<8x8xbf16>, vector<8x256xbf16>, vector<8x256xf32> -> vector<8x256xf32>
    %603 = arith.addf %598, %602 : vector<8x256xf32>
    %604 = vector.extract_strided_slice %563 {offsets = [0, 34], sizes = [8, 256], strides = [1, 1]} : vector<8x290xbf16> to vector<8x256xbf16>
    %605 = vector.broadcast %18 : vector<1x256xbf16> to vector<8x256xbf16>
    %606 = arith.mulf %604, %605 : vector<8x256xbf16>
    %cst_241 = arith.constant dense<0.000000e+00> : vector<8x256xf32>
    %607 = tpu.matmul %36, %606, %cst_241 {dimension_numbers = #tpu.dot_dimension_numbers<[1], [0], [0], [1], [0, 0, 1, 1], [], []>} : vector<8x8xbf16>, vector<8x256xbf16>, vector<8x256xf32> -> vector<8x256xf32>
    %608 = arith.addf %603, %607 : vector<8x256xf32>
    %c3_i32_242 = arith.constant 3 : i32
    %609 = arith.addi %73, %c3_i32_242 : i32
    %c1_i32_243 = arith.constant 1 : i32
    %610 = arith.muli %609, %c1_i32_243 : i32
    %c1_i32_244 = arith.constant 1 : i32
    %611 = arith.addi %610, %c1_i32_244 : i32
    %c0_245 = arith.constant 0 : index
    %612 = arith.index_cast %611 : i32 to index
    %c0_246 = arith.constant 0 : index
    %c0_247 = arith.constant 0 : index
    %613 = vector.load %arg5[%c0_245, %612, %c0_246, %c0_247] : memref<1x18x8x290xbf16, #tpu.memory_space<vmem>>, vector<1x1x8x290xbf16>
    %614 = vector.shape_cast %613 : vector<1x1x8x290xbf16> to vector<8x290xbf16>
    %615 = vector.extract_strided_slice %614 {offsets = [0, 0], sizes = [8, 256], strides = [1, 1]} : vector<8x290xbf16> to vector<8x256xbf16>
    %616 = vector.broadcast %2 : vector<1x256xbf16> to vector<8x256xbf16>
    %617 = arith.mulf %615, %616 : vector<8x256xbf16>
    %cst_248 = arith.constant dense<0.000000e+00> : vector<8x256xf32>
    %618 = tpu.matmul %38, %617, %cst_248 {dimension_numbers = #tpu.dot_dimension_numbers<[1], [0], [0], [1], [0, 0, 1, 1], [], []>} : vector<8x8xbf16>, vector<8x256xbf16>, vector<8x256xf32> -> vector<8x256xf32>
    %619 = arith.addf %608, %618 : vector<8x256xf32>
    %620 = vector.extract_strided_slice %614 {offsets = [0, 1], sizes = [8, 256], strides = [1, 1]} : vector<8x290xbf16> to vector<8x256xbf16>
    %621 = vector.broadcast %4 : vector<1x256xbf16> to vector<8x256xbf16>
    %622 = arith.mulf %620, %621 : vector<8x256xbf16>
    %cst_249 = arith.constant dense<0.000000e+00> : vector<8x256xf32>
    %623 = tpu.matmul %40, %622, %cst_249 {dimension_numbers = #tpu.dot_dimension_numbers<[1], [0], [0], [1], [0, 0, 1, 1], [], []>} : vector<8x8xbf16>, vector<8x256xbf16>, vector<8x256xf32> -> vector<8x256xf32>
    %624 = arith.addf %619, %623 : vector<8x256xf32>
    %625 = vector.extract_strided_slice %614 {offsets = [0, 2], sizes = [8, 256], strides = [1, 1]} : vector<8x290xbf16> to vector<8x256xbf16>
    %626 = vector.broadcast %6 : vector<1x256xbf16> to vector<8x256xbf16>
    %627 = arith.mulf %625, %626 : vector<8x256xbf16>
    %cst_250 = arith.constant dense<0.000000e+00> : vector<8x256xf32>
    %628 = tpu.matmul %42, %627, %cst_250 {dimension_numbers = #tpu.dot_dimension_numbers<[1], [0], [0], [1], [0, 0, 1, 1], [], []>} : vector<8x8xbf16>, vector<8x256xbf16>, vector<8x256xf32> -> vector<8x256xf32>
    %629 = arith.addf %624, %628 : vector<8x256xf32>
    %630 = vector.extract_strided_slice %614 {offsets = [0, 16], sizes = [8, 256], strides = [1, 1]} : vector<8x290xbf16> to vector<8x256xbf16>
    %631 = vector.broadcast %8 : vector<1x256xbf16> to vector<8x256xbf16>
    %632 = arith.mulf %630, %631 : vector<8x256xbf16>
    %cst_251 = arith.constant dense<0.000000e+00> : vector<8x256xf32>
    %633 = tpu.matmul %44, %632, %cst_251 {dimension_numbers = #tpu.dot_dimension_numbers<[1], [0], [0], [1], [0, 0, 1, 1], [], []>} : vector<8x8xbf16>, vector<8x256xbf16>, vector<8x256xf32> -> vector<8x256xf32>
    %634 = arith.addf %629, %633 : vector<8x256xf32>
    %635 = vector.extract_strided_slice %614 {offsets = [0, 17], sizes = [8, 256], strides = [1, 1]} : vector<8x290xbf16> to vector<8x256xbf16>
    %636 = vector.broadcast %10 : vector<1x256xbf16> to vector<8x256xbf16>
    %637 = arith.mulf %635, %636 : vector<8x256xbf16>
    %cst_252 = arith.constant dense<0.000000e+00> : vector<8x256xf32>
    %638 = tpu.matmul %46, %637, %cst_252 {dimension_numbers = #tpu.dot_dimension_numbers<[1], [0], [0], [1], [0, 0, 1, 1], [], []>} : vector<8x8xbf16>, vector<8x256xbf16>, vector<8x256xf32> -> vector<8x256xf32>
    %639 = arith.addf %634, %638 : vector<8x256xf32>
    %640 = vector.extract_strided_slice %614 {offsets = [0, 18], sizes = [8, 256], strides = [1, 1]} : vector<8x290xbf16> to vector<8x256xbf16>
    %641 = vector.broadcast %12 : vector<1x256xbf16> to vector<8x256xbf16>
    %642 = arith.mulf %640, %641 : vector<8x256xbf16>
    %cst_253 = arith.constant dense<0.000000e+00> : vector<8x256xf32>
    %643 = tpu.matmul %48, %642, %cst_253 {dimension_numbers = #tpu.dot_dimension_numbers<[1], [0], [0], [1], [0, 0, 1, 1], [], []>} : vector<8x8xbf16>, vector<8x256xbf16>, vector<8x256xf32> -> vector<8x256xf32>
    %644 = arith.addf %639, %643 : vector<8x256xf32>
    %645 = vector.extract_strided_slice %614 {offsets = [0, 32], sizes = [8, 256], strides = [1, 1]} : vector<8x290xbf16> to vector<8x256xbf16>
    %646 = vector.broadcast %14 : vector<1x256xbf16> to vector<8x256xbf16>
    %647 = arith.mulf %645, %646 : vector<8x256xbf16>
    %cst_254 = arith.constant dense<0.000000e+00> : vector<8x256xf32>
    %648 = tpu.matmul %50, %647, %cst_254 {dimension_numbers = #tpu.dot_dimension_numbers<[1], [0], [0], [1], [0, 0, 1, 1], [], []>} : vector<8x8xbf16>, vector<8x256xbf16>, vector<8x256xf32> -> vector<8x256xf32>
    %649 = arith.addf %644, %648 : vector<8x256xf32>
    %650 = vector.extract_strided_slice %614 {offsets = [0, 33], sizes = [8, 256], strides = [1, 1]} : vector<8x290xbf16> to vector<8x256xbf16>
    %651 = vector.broadcast %16 : vector<1x256xbf16> to vector<8x256xbf16>
    %652 = arith.mulf %650, %651 : vector<8x256xbf16>
    %cst_255 = arith.constant dense<0.000000e+00> : vector<8x256xf32>
    %653 = tpu.matmul %52, %652, %cst_255 {dimension_numbers = #tpu.dot_dimension_numbers<[1], [0], [0], [1], [0, 0, 1, 1], [], []>} : vector<8x8xbf16>, vector<8x256xbf16>, vector<8x256xf32> -> vector<8x256xf32>
    %654 = arith.addf %649, %653 : vector<8x256xf32>
    %655 = vector.extract_strided_slice %614 {offsets = [0, 34], sizes = [8, 256], strides = [1, 1]} : vector<8x290xbf16> to vector<8x256xbf16>
    %656 = vector.broadcast %18 : vector<1x256xbf16> to vector<8x256xbf16>
    %657 = arith.mulf %655, %656 : vector<8x256xbf16>
    %cst_256 = arith.constant dense<0.000000e+00> : vector<8x256xf32>
    %658 = tpu.matmul %54, %657, %cst_256 {dimension_numbers = #tpu.dot_dimension_numbers<[1], [0], [0], [1], [0, 0, 1, 1], [], []>} : vector<8x8xbf16>, vector<8x256xbf16>, vector<8x256xf32> -> vector<8x256xf32>
    %659 = arith.addf %654, %658 : vector<8x256xf32>
    %c3_i32_257 = arith.constant 3 : i32
    %660 = arith.addi %73, %c3_i32_257 : i32
    %c1_i32_258 = arith.constant 1 : i32
    %661 = arith.muli %660, %c1_i32_258 : i32
    %c2_i32_259 = arith.constant 2 : i32
    %662 = arith.addi %661, %c2_i32_259 : i32
    %c0_260 = arith.constant 0 : index
    %663 = arith.index_cast %662 : i32 to index
    %c0_261 = arith.constant 0 : index
    %c0_262 = arith.constant 0 : index
    %664 = vector.load %arg5[%c0_260, %663, %c0_261, %c0_262] : memref<1x18x8x290xbf16, #tpu.memory_space<vmem>>, vector<1x1x8x290xbf16>
    %665 = vector.shape_cast %664 : vector<1x1x8x290xbf16> to vector<8x290xbf16>
    %666 = vector.extract_strided_slice %665 {offsets = [0, 0], sizes = [8, 256], strides = [1, 1]} : vector<8x290xbf16> to vector<8x256xbf16>
    %667 = vector.broadcast %2 : vector<1x256xbf16> to vector<8x256xbf16>
    %668 = arith.mulf %666, %667 : vector<8x256xbf16>
    %cst_263 = arith.constant dense<0.000000e+00> : vector<8x256xf32>
    %669 = tpu.matmul %56, %668, %cst_263 {dimension_numbers = #tpu.dot_dimension_numbers<[1], [0], [0], [1], [0, 0, 1, 1], [], []>} : vector<8x8xbf16>, vector<8x256xbf16>, vector<8x256xf32> -> vector<8x256xf32>
    %670 = arith.addf %659, %669 : vector<8x256xf32>
    %671 = vector.extract_strided_slice %665 {offsets = [0, 1], sizes = [8, 256], strides = [1, 1]} : vector<8x290xbf16> to vector<8x256xbf16>
    %672 = vector.broadcast %4 : vector<1x256xbf16> to vector<8x256xbf16>
    %673 = arith.mulf %671, %672 : vector<8x256xbf16>
    %cst_264 = arith.constant dense<0.000000e+00> : vector<8x256xf32>
    %674 = tpu.matmul %58, %673, %cst_264 {dimension_numbers = #tpu.dot_dimension_numbers<[1], [0], [0], [1], [0, 0, 1, 1], [], []>} : vector<8x8xbf16>, vector<8x256xbf16>, vector<8x256xf32> -> vector<8x256xf32>
    %675 = arith.addf %670, %674 : vector<8x256xf32>
    %676 = vector.extract_strided_slice %665 {offsets = [0, 2], sizes = [8, 256], strides = [1, 1]} : vector<8x290xbf16> to vector<8x256xbf16>
    %677 = vector.broadcast %6 : vector<1x256xbf16> to vector<8x256xbf16>
    %678 = arith.mulf %676, %677 : vector<8x256xbf16>
    %cst_265 = arith.constant dense<0.000000e+00> : vector<8x256xf32>
    %679 = tpu.matmul %60, %678, %cst_265 {dimension_numbers = #tpu.dot_dimension_numbers<[1], [0], [0], [1], [0, 0, 1, 1], [], []>} : vector<8x8xbf16>, vector<8x256xbf16>, vector<8x256xf32> -> vector<8x256xf32>
    %680 = arith.addf %675, %679 : vector<8x256xf32>
    %681 = vector.extract_strided_slice %665 {offsets = [0, 16], sizes = [8, 256], strides = [1, 1]} : vector<8x290xbf16> to vector<8x256xbf16>
    %682 = vector.broadcast %8 : vector<1x256xbf16> to vector<8x256xbf16>
    %683 = arith.mulf %681, %682 : vector<8x256xbf16>
    %cst_266 = arith.constant dense<0.000000e+00> : vector<8x256xf32>
    %684 = tpu.matmul %62, %683, %cst_266 {dimension_numbers = #tpu.dot_dimension_numbers<[1], [0], [0], [1], [0, 0, 1, 1], [], []>} : vector<8x8xbf16>, vector<8x256xbf16>, vector<8x256xf32> -> vector<8x256xf32>
    %685 = arith.addf %680, %684 : vector<8x256xf32>
    %686 = vector.extract_strided_slice %665 {offsets = [0, 17], sizes = [8, 256], strides = [1, 1]} : vector<8x290xbf16> to vector<8x256xbf16>
    %687 = vector.broadcast %10 : vector<1x256xbf16> to vector<8x256xbf16>
    %688 = arith.mulf %686, %687 : vector<8x256xbf16>
    %cst_267 = arith.constant dense<0.000000e+00> : vector<8x256xf32>
    %689 = tpu.matmul %64, %688, %cst_267 {dimension_numbers = #tpu.dot_dimension_numbers<[1], [0], [0], [1], [0, 0, 1, 1], [], []>} : vector<8x8xbf16>, vector<8x256xbf16>, vector<8x256xf32> -> vector<8x256xf32>
    %690 = arith.addf %685, %689 : vector<8x256xf32>
    %691 = vector.extract_strided_slice %665 {offsets = [0, 18], sizes = [8, 256], strides = [1, 1]} : vector<8x290xbf16> to vector<8x256xbf16>
    %692 = vector.broadcast %12 : vector<1x256xbf16> to vector<8x256xbf16>
    %693 = arith.mulf %691, %692 : vector<8x256xbf16>
    %cst_268 = arith.constant dense<0.000000e+00> : vector<8x256xf32>
    %694 = tpu.matmul %66, %693, %cst_268 {dimension_numbers = #tpu.dot_dimension_numbers<[1], [0], [0], [1], [0, 0, 1, 1], [], []>} : vector<8x8xbf16>, vector<8x256xbf16>, vector<8x256xf32> -> vector<8x256xf32>
    %695 = arith.addf %690, %694 : vector<8x256xf32>
    %696 = vector.extract_strided_slice %665 {offsets = [0, 32], sizes = [8, 256], strides = [1, 1]} : vector<8x290xbf16> to vector<8x256xbf16>
    %697 = vector.broadcast %14 : vector<1x256xbf16> to vector<8x256xbf16>
    %698 = arith.mulf %696, %697 : vector<8x256xbf16>
    %cst_269 = arith.constant dense<0.000000e+00> : vector<8x256xf32>
    %699 = tpu.matmul %68, %698, %cst_269 {dimension_numbers = #tpu.dot_dimension_numbers<[1], [0], [0], [1], [0, 0, 1, 1], [], []>} : vector<8x8xbf16>, vector<8x256xbf16>, vector<8x256xf32> -> vector<8x256xf32>
    %700 = arith.addf %695, %699 : vector<8x256xf32>
    %701 = vector.extract_strided_slice %665 {offsets = [0, 33], sizes = [8, 256], strides = [1, 1]} : vector<8x290xbf16> to vector<8x256xbf16>
    %702 = vector.broadcast %16 : vector<1x256xbf16> to vector<8x256xbf16>
    %703 = arith.mulf %701, %702 : vector<8x256xbf16>
    %cst_270 = arith.constant dense<0.000000e+00> : vector<8x256xf32>
    %704 = tpu.matmul %70, %703, %cst_270 {dimension_numbers = #tpu.dot_dimension_numbers<[1], [0], [0], [1], [0, 0, 1, 1], [], []>} : vector<8x8xbf16>, vector<8x256xbf16>, vector<8x256xf32> -> vector<8x256xf32>
    %705 = arith.addf %700, %704 : vector<8x256xf32>
    %706 = vector.extract_strided_slice %665 {offsets = [0, 34], sizes = [8, 256], strides = [1, 1]} : vector<8x290xbf16> to vector<8x256xbf16>
    %707 = vector.broadcast %18 : vector<1x256xbf16> to vector<8x256xbf16>
    %708 = arith.mulf %706, %707 : vector<8x256xbf16>
    %cst_271 = arith.constant dense<0.000000e+00> : vector<8x256xf32>
    %709 = tpu.matmul %72, %708, %cst_271 {dimension_numbers = #tpu.dot_dimension_numbers<[1], [0], [0], [1], [0, 0, 1, 1], [], []>} : vector<8x8xbf16>, vector<8x256xbf16>, vector<8x256xf32> -> vector<8x256xf32>
    %710 = arith.addf %705, %709 : vector<8x256xf32>
    %711 = vector.broadcast %0 : vector<8x1xf32> to vector<8x256xf32>
    %712 = arith.addf %710, %711 : vector<8x256xf32>
    %cst_272 = arith.constant 0.000000e+00 : f32
    %713 = vector.broadcast %cst_272 : f32 to vector<8x256xf32>
    %714 = arith.maximumf %712, %713 : vector<8x256xf32>
    %c0_273 = arith.constant 0 : index
    %c0_274 = arith.constant 0 : index
    %c768 = arith.constant 768 : index
    %715 = vector.load %arg6[%c0_273, %c0_274, %c768] : memref<1x8x1024xf32, #tpu.memory_space<vmem>>, vector<1x8x256xf32>
    %716 = vector.shape_cast %715 : vector<1x8x256xf32> to vector<8x256xf32>
    %717 = vector.shape_cast %714 : vector<8x256xf32> to vector<1x8x256xf32>
    tpu.vector_store %arg6[%c0_273, %c0_274, %c768], %717 {strides = array<i32>} : memref<1x8x1024xf32, #tpu.memory_space<vmem>>, vector<1x8x256xf32>,
    return
  }
  func.func @transform_0(%arg0: i32, %arg1: i32) -> (i32, i32, i32) {
    %c0_i32 = arith.constant 0 : i32
    %c0_i32_0 = arith.constant 0 : i32
    %c0_i32_1 = arith.constant 0 : i32
    %c0_i32_2 = arith.constant 0 : i32
    return %c0_i32, %c0_i32_0, %c0_i32_1 : i32, i32, i32
  }
  func.func @transform_1(%arg0: i32, %arg1: i32) -> (i32, i32) {
    %c0_i32 = arith.constant 0 : i32
    %c0_i32_0 = arith.constant 0 : i32
    %c0_i32_1 = arith.constant 0 : i32
    return %c0_i32, %c0_i32_0 : i32, i32
  }
  func.func @transform_2(%arg0: i32, %arg1: i32) -> (i32, i32, i32) {
    %c0_i32 = arith.constant 0 : i32
    %c0_i32_0 = arith.constant 0 : i32
    %c0_i32_1 = arith.constant 0 : i32
    %c0_i32_2 = arith.constant 0 : i32
    return %c0_i32, %c0_i32_0, %c0_i32_1 : i32, i32, i32
  }
  func.func @transform_3(%arg0: i32, %arg1: i32) -> (i32, i32, i32, i32) {
    %c0_i32 = arith.constant 0 : i32
    %c0_i32_0 = arith.constant 0 : i32
    %c0_i32_1 = arith.constant 0 : i32
    %c0_i32_2 = arith.constant 0 : i32
    return %arg0, %c0_i32, %c0_i32_0, %c0_i32_1 : i32, i32, i32, i32
  }
  func.func @transform_4(%arg0: i32, %arg1: i32) -> (i32, i32, i32) {
    %c0_i32 = arith.constant 0 : i32
    %c0_i32_0 = arith.constant 0 : i32
    return %arg0, %c0_i32, %arg1 : i32, i32, i32
  }
}

</mosaic_0001>

<llo_original>
// kernel: conv3d_block_forward.1
$region0: #{conv3d_block_forward.1}
  #allocation0 [shape = 'u32[]', space=smem, size = 0x4, offset = 0x4, fixed_abs, tag = 'smem constant byte address 0x4 - core index']
  #allocation1 [shape = 'u32[72,128]{1,0:T(1,128)}', space=vmem, size = 0x9000, scoped, tag = 'internal scratch']
  %s0 = inlined_call_operand.vmem [shape: bf16[27,8,8], index: 0, kind: input, shape index: {}]
  %s1 = inlined_call_operand.vmem [shape: f32[8,1], index: 1, kind: input, shape index: {}]
  %s2 = inlined_call_operand.vmem [shape: bf16[9,1,256], index: 2, kind: input, shape index: {}]
  %s3 = inlined_call_operand.vmem [shape: bf16[2,18,8,290], index: 3, kind: input, shape index: {}]
  %s4 = inlined_call_operand.vmem [shape: f32[2,8,4096], index: 4, kind: output, shape index: {}]
  %s5 = sld [smem:[#allocation0]]
  $region49: #{conv3d_block_forward.1} parent=0
    _
  %s7 = ssub.s32 1, %s5
  %s8 = scalar_select 0, %s7, %s5
  loop: start=0, step=1, limit=10
  $region2: #{conv3d_block_forward.1} parent=0 // loop_pre_header
    _
  $region3: #{conv3d_block_forward.1} parent=0 // loop_header
    %s10 = sphi 0, %s14
    %p11 = scmp.ge.s32.totalorder %s10, 10
    %s17 = sphi 0, %s29
    %s18 = sphi 0, %s25
    %s19 = sphi 0, %s17
    %s20 = sphi 0, %s18
    %s21 = sphi 0, %s19
    %s22 = sphi 0, %s20
    %s30 = sphi 0, %s30
    %s32 = sphi 0, %s30
    %s33 = sphi 0, %s32
    %s47 = sphi 0, %s33
    %s51 = sphi 0, %s51
    %s53 = sphi 0, %s51
    %s54 = sphi 0, %s53
    %s68 = sphi 0, %s54
    %s72 = sphi 0, %s72
    %s74 = sphi 0, %s72
    %s75 = sphi 0, %s74
    %s89 = sphi 0, %s75
    %s95 = sphi 0, %s97
    %s98 = sphi 0, %s95
    %s99 = sphi 0, %s98
    %s115 = sphi 0, %s99
    %s123 = sphi 0, %s125
    %s126 = sphi 0, %s123
    %s127 = sphi 0, %s126
    %s143 = sphi 0, %s127
  $region4: #{conv3d_block_forward.1} parent=0 // loop_header_branch
    %13 = sbr.rel (%p11) target = $region8
  $region5: #{conv3d_block_forward.1} parent=0 // loop_body
    %s15 = ssub.s32 %s10, 1
    %s16 = ssub.s32 %s10, 2
    %s23 = sadd.s32 1, %s18
    %p24 = scmp.ge.s32.totalorder %s23, 4
    %s25 = scalar_select %p24, 0, %s23
    %s26 = sadd.s32 1, %s17
    %s27 = scalar_select %p24, %s26, %s17
    %p28 = scmp.ge.s32.totalorder %s27, 2
    %s29 = scalar_select %p28, 0, %s27
    %s31 = sadd.s32 %s30, 1
    %p34 = scmp.eq.s32.totalorder %s10, 7
    %p35 = scmp.ne.s32.totalorder %s30, %s32
    %p36 = scmp.eq.s32.totalorder %s10, 0
    %p37 = por %p35, %p36
    %p38 = scmp.ne.s32.totalorder %s30, %s32
    %p39 = scmp.eq.s32.totalorder %s15, 7
    %p40 = por %p38, %p39
    %p41 = scmp.ne.s32.totalorder %s32, %s33
    %p42 = scmp.eq.s32.totalorder %s15, 0
    %p43 = por %p41, %p42
    %p44 = scmp.ne.s32.totalorder %s32, %s33
    %p45 = scmp.eq.s32.totalorder %s16, 7
    %p46 = por %p44, %p45
    %p48 = scmp.ne.s32.totalorder %s33, %s47
    %p49 = scmp.eq.s32.totalorder %s16, 0
    %p50 = por %p48, %p49
    %s52 = sadd.s32 %s51, 1
    %p55 = scmp.eq.s32.totalorder %s10, 7
    %p56 = scmp.ne.s32.totalorder %s51, %s53
    %p57 = scmp.eq.s32.totalorder %s10, 0
    %p58 = por %p56, %p57
    %p59 = scmp.ne.s32.totalorder %s51, %s53
    %p60 = scmp.eq.s32.totalorder %s15, 7
    %p61 = por %p59, %p60
    %p62 = scmp.ne.s32.totalorder %s53, %s54
    %p63 = scmp.eq.s32.totalorder %s15, 0
    %p64 = por %p62, %p63
    %p65 = scmp.ne.s32.totalorder %s53, %s54
    %p66 = scmp.eq.s32.totalorder %s16, 7
    %p67 = por %p65, %p66
    %p69 = scmp.ne.s32.totalorder %s54, %s68
    %p70 = scmp.eq.s32.totalorder %s16, 0
    %p71 = por %p69, %p70
    %s73 = sadd.s32 %s72, 1
    %p76 = scmp.eq.s32.totalorder %s10, 7
    %p77 = scmp.ne.s32.totalorder %s72, %s74
    %p78 = scmp.eq.s32.totalorder %s10, 0
    %p79 = por %p77, %p78
    %p80 = scmp.ne.s32.totalorder %s72, %s74
    %p81 = scmp.eq.s32.totalorder %s15, 7
    %p82 = por %p80, %p81
    %p83 = scmp.ne.s32.totalorder %s74, %s75
    %p84 = scmp.eq.s32.totalorder %s15, 0
    %p85 = por %p83, %p84
    %p86 = scmp.ne.s32.totalorder %s74, %s75
    %p87 = scmp.eq.s32.totalorder %s16, 7
    %p88 = por %p86, %p87
    %p90 = scmp.ne.s32.totalorder %s75, %s89
    %p91 = scmp.eq.s32.totalorder %s16, 0
    %p92 = por %p90, %p91
    %s93 = ssub.s32 %s17, %s29
    %p94 = scmp.eq.s32.totalorder %s93, 0
    %s96 = sadd.s32 %s95, 1
    %s97 = scalar_select %p94, %s95, %s96
    %p100 = pneg %p94
    %p101 = scmp.eq.s32.totalorder %s10, 7
    %p102 = por %p100, %p101
    %p103 = scmp.ne.s32.totalorder %s95, %s98
    %p104 = scmp.eq.s32.totalorder %s10, 0
    %p105 = por %p103, %p104
    %p106 = scmp.ne.s32.totalorder %s95, %s98
    %p107 = scmp.eq.s32.totalorder %s15, 7
    %p108 = por %p106, %p107
    %p109 = scmp.ne.s32.totalorder %s98, %s99
    %p110 = scmp.eq.s32.totalorder %s15, 0
    %p111 = por %p109, %p110
    %p112 = scmp.ne.s32.totalorder %s98, %s99
    %p113 = scmp.eq.s32.totalorder %s16, 7
    %p114 = por %p112, %p113
    %p116 = scmp.ne.s32.totalorder %s99, %s115
    %p117 = scmp.eq.s32.totalorder %s16, 0
    %p118 = por %p116, %p117
    %s119 = ssub.s32 %s17, %s29
    %s120 = ssub.s32 %s18, %s25
    %s121 = sor.u32 %s119, %s120
    %p122 = scmp.eq.s32.totalorder %s121, 0
    %s124 = sadd.s32 %s123, 1
    %s125 = scalar_select %p122, %s123, %s124
    %p128 = pneg %p122
    %p129 = scmp.eq.s32.totalorder %s10, 7
    %p130 = por %p128, %p129
    %p131 = scmp.ne.s32.totalorder %s123, %s126
    %p132 = scmp.eq.s32.totalorder %s10, 0
    %p133 = por %p131, %p132
    %p134 = scmp.ne.s32.totalorder %s123, %s126
    %p135 = scmp.eq.s32.totalorder %s15, 7
    %p136 = por %p134, %p135
    %p137 = scmp.ne.s32.totalorder %s126, %s127
    %p138 = scmp.eq.s32.totalorder %s15, 0
    %p139 = por %p137, %p138
    %p140 = scmp.ne.s32.totalorder %s126, %s127
    %p141 = scmp.eq.s32.totalorder %s16, 7
    %p142 = por %p140, %p141
    %p144 = scmp.ne.s32.totalorder %s127, %s143
    %p145 = scmp.eq.s32.totalorder %s16, 0
    %p146 = por %p144, %p145
    %p147 = scmp.le.s32.totalorder 1, %s10
    %p148 = scmp.lt.s32.totalorder %s10, 9
    %p149 = pnand %p147, %p148
    %p150 = pneg %p149
    // Predicated region
    $region9: #{conv3d_block_forward.1} parent=5 // pred_check
      _
    $region10: #{conv3d_block_forward.1} parent=5 // pred_check_branch
      %152 = sbr.rel (%p149) target = $region12
    $region11: #{conv3d_block_forward.1} parent=5 // pred_region
      %s153 = ssub.s32 %s10, 1
      // Predicated region
      $region13: #{conv3d_block_forward.1} parent=11 // pred_check
        %p154 = pneg %p43
      $region14: #{conv3d_block_forward.1} parent=11 // pred_check_branch
        %156 = sbr.rel (%p154) target = $region16
      $region15: #{conv3d_block_forward.1} parent=11 // pred_region
        _
      $region16: #{conv3d_block_forward.1} parent=11 // pred_fallthru
        _
      // Predicated region
      $region17: #{conv3d_block_forward.1} parent=11 // pred_check
        %p157 = pneg %p64
      $region18: #{conv3d_block_forward.1} parent=11 // pred_check_branch
        %159 = sbr.rel (%p157) target = $region20
      $region19: #{conv3d_block_forward.1} parent=11 // pred_region
        _
      $region20: #{conv3d_block_forward.1} parent=11 // pred_fallthru
        _
      // Predicated region
      $region21: #{conv3d_block_forward.1} parent=11 // pred_check
        %p160 = pneg %p85
      $region22: #{conv3d_block_forward.1} parent=11 // pred_check_branch
        %162 = sbr.rel (%p160) target = $region24
      $region23: #{conv3d_block_forward.1} parent=11 // pred_region
        _
      $region24: #{conv3d_block_forward.1} parent=11 // pred_fallthru
        _
    $region12: #{conv3d_block_forward.1} parent=5 // pred_fallthru
      _
    %p163 = scmp.lt.s32.totalorder %s10, 8
    // Predicated region
    $region25: #{conv3d_block_forward.1} parent=5 // pred_check
      %p164 = pneg %p163
    $region26: #{conv3d_block_forward.1} parent=5 // pred_check_branch
      %166 = sbr.rel (%p164) target = $region28
    $region27: #{conv3d_block_forward.1} parent=5 // pred_region
      // Predicated region
      $region29: #{conv3d_block_forward.1} parent=27 // pred_check
        %p167 = pneg %p105
      $region30: #{conv3d_block_forward.1} parent=27 // pred_check_branch
        %169 = sbr.rel (%p167) target = $region32
      $region31: #{conv3d_block_forward.1} parent=27 // pred_region
        %p170 = scmp.lt.s32.totalorder %s17, 1
        %s171 = scalar_select %p170, %s17, 1
        %s172 = smul.addr %s171, 54
        %s173 = smul.addr %s172, 4
        %s174 = scalar_lea.vmem %s3, %s173
      $region32: #{conv3d_block_forward.1} parent=27 // pred_fallthru
        _
    $region28: #{conv3d_block_forward.1} parent=5 // pred_fallthru
      _
    %p175 = scmp.le.s32.totalorder 1, %s10
    %p176 = scmp.lt.s32.totalorder %s10, 9
    %p177 = pnand %p175, %p176
    %p178 = pneg %p177
    // Predicated region
    $region33: #{conv3d_block_forward.1} parent=5 // pred_check
      _
    $region34: #{conv3d_block_forward.1} parent=5 // pred_check_branch
      %180 = sbr.rel (%p177) target = $region36
    $region35: #{conv3d_block_forward.1} parent=5 // pred_region
      %s181 = ssub.s32 %s10, 1
      %p182 = pneg %p43
      %p183 = pneg %p40
      %p184 = pneg %p64
      %p185 = pneg %p61
      %p186 = pneg %p85
      %p187 = pneg %p82
      %p188 = scmp.lt.s32.totalorder %s19, 1
      %s189 = scalar_select %p188, %s19, 1
      %s190 = smul.addr %s189, 54
      %s191 = smul.addr %s190, 4
      %s192 = scalar_lea.vmem %s3, %s191
      %p193 = pneg %p111
      %p194 = pneg %p108
      %p195 = pneg %p139
      %p196 = pneg %p136
      %s197 = smul.u32 8, %s20
      %p198 = scmp.lt.s32.totalorder %s19, 1
      %s199 = scalar_select %p198, %s19, 1
      %p200 = scmp.lt.s32.totalorder %s197, 31
      %s201 = scalar_select %p200, %s197, 31
      %s202 = smul.addr %s199, 32
      %s203 = sadd.s32 %s201, %s202
      %s204 = smul.addr %s203, 8
      %s205 = scalar_lea.vmem %s4, %s204
      %p206 = scmp.lt.s32.totalorder %s19, 1
      %s207 = scalar_select %p206, %s19, 1
      %s208 = smul.addr %s207, 54
      %s209 = smul.addr %s208, 4
      %s210 = scalar_lea.vmem %s3, %s209
      %s211 = smul.u32 8, %s20
      %p212 = scmp.lt.s32.totalorder %s19, 1
      %s213 = scalar_select %p212, %s19, 1
      %p214 = scmp.lt.s32.totalorder %s211, 31
      %s215 = scalar_select %p214, %s211, 31
      %s216 = smul.addr %s213, 32
      %s217 = sadd.s32 %s215, %s216
      %s218 = smul.addr %s217, 8
      %s219 = scalar_lea.vmem %s4, %s218
      %s220 = smul.u32 8, %s20
      %v222 = vld [vmem:[%s1] sm:$0xff]
      %v223 = vld [vmem:[%s2] sm:$0x3]
      %s224 = scalar_lea.vmem %s2, 2
      %v225 = vld [vmem:[%s224] sm:$0x3]
      %s226 = scalar_lea.vmem %s2, 4
      %v227 = vld [vmem:[%s226] sm:$0x3]
      %s228 = scalar_lea.vmem %s2, 6
      %v229 = vld [vmem:[%s228] sm:$0x3]
      %s230 = scalar_lea.vmem %s2, 8
      %v231 = vld [vmem:[%s230] sm:$0x3]
      %s232 = scalar_lea.vmem %s2, 10
      %v233 = vld [vmem:[%s232] sm:$0x3]
      %s234 = scalar_lea.vmem %s2, 12
      %v235 = vld [vmem:[%s234] sm:$0x3]
      %s236 = scalar_lea.vmem %s2, 14
      %v237 = vld [vmem:[%s236] sm:$0x3]
      %s238 = scalar_lea.vmem %s2, 16
      %v239 = vld [vmem:[%s238] sm:$0x3]
      %v240 = vld [vmem:[%s0] sm:$0xf]
      %s241 = scalar_lea.vmem %s0, 4
      %v242 = vld [vmem:[%s241] sm:$0xf]
      %s243 = scalar_lea.vmem %s0, 8
      %v244 = vld [vmem:[%s243] sm:$0xf]
      %s245 = scalar_lea.vmem %s0, 12
      %v246 = vld [vmem:[%s245] sm:$0xf]
      %s247 = scalar_lea.vmem %s0, 16
      %v248 = vld [vmem:[%s247] sm:$0xf]
      %s249 = scalar_lea.vmem %s0, 20
      %v250 = vld [vmem:[%s249] sm:$0xf]
      %s251 = scalar_lea.vmem %s0, 24
      %v252 = vld [vmem:[%s251] sm:$0xf]
      %s253 = scalar_lea.vmem %s0, 28
      %v254 = vld [vmem:[%s253] sm:$0xf]
      %s255 = scalar_lea.vmem %s0, 32
      %v256 = vld [vmem:[%s255] sm:$0xf]
      %s257 = scalar_lea.vmem %s0, 36
      %v258 = vld [vmem:[%s257] sm:$0xf]
      %s259 = scalar_lea.vmem %s0, 40
      %v260 = vld [vmem:[%s259] sm:$0xf]
      %s261 = scalar_lea.vmem %s0, 44
      %v262 = vld [vmem:[%s261] sm:$0xf]
      %s263 = scalar_lea.vmem %s0, 48
      %v264 = vld [vmem:[%s263] sm:$0xf]
      %s265 = scalar_lea.vmem %s0, 52
      %v266 = vld [vmem:[%s265] sm:$0xf]
      %s267 = scalar_lea.vmem %s0, 56
      %v268 = vld [vmem:[%s267] sm:$0xf]
      %s269 = scalar_lea.vmem %s0, 60
      %v270 = vld [vmem:[%s269] sm:$0xf]
      %s271 = scalar_lea.vmem %s0, 64
      %v272 = vld [vmem:[%s271] sm:$0xf]
      %s273 = scalar_lea.vmem %s0, 68
      %v274 = vld [vmem:[%s273] sm:$0xf]
      %s275 = scalar_lea.vmem %s0, 72
      %v276 = vld [vmem:[%s275] sm:$0xf]
      %s277 = scalar_lea.vmem %s0, 76
      %v278 = vld [vmem:[%s277] sm:$0xf]
      %s279 = scalar_lea.vmem %s0, 80
      %v280 = vld [vmem:[%s279] sm:$0xf]
      %s281 = scalar_lea.vmem %s0, 84
      %v282 = vld [vmem:[%s281] sm:$0xf]
      %s283 = scalar_lea.vmem %s0, 88
      %v284 = vld [vmem:[%s283] sm:$0xf]
      %s285 = scalar_lea.vmem %s0, 92
      %v286 = vld [vmem:[%s285] sm:$0xf]
      %s287 = scalar_lea.vmem %s0, 96
      %v288 = vld [vmem:[%s287] sm:$0xf]
      %s289 = scalar_lea.vmem %s0, 100
      %v290 = vld [vmem:[%s289] sm:$0xf]
      %s291 = scalar_lea.vmem %s0, 104
      %v292 = vld [vmem:[%s291] sm:$0xf]
      %s293 = smul.u32 %s20, 4
      %s294 = smul.u32 %s293, 3
      %s295 = smul.addr %s294, 4
      %s296 = scalar_lea.vmem %s210, %s295
      %v297 = vld [vmem:[%s296] sm:$0xff]
      %v298 = vld [vmem:[%s296 + $0x8] sm:$0xf]
      %300 = vst [vmem:[#allocation1] ss:$9 sm:$0xff] %v223
      %v301 = vld [vmem:[#allocation1] sm:$0xff]
      %v302 = vld [vmem:[#allocation1 + $0x9] sm:$0xff]
      %v303 = vpack.i.b16 %v301, %v301
      %v305 = vperm.slane %v303, 0
      %v306 = vpack.i.b16 %v302, %v302
      %v308 = vperm.slane %v306, 0
      %v309 = vunpack.c.l.bf16 %v297
      %v310 = vunpack.c.h.bf16 %v297
      %v311 = vunpack.c.l.bf16 %v305
      %v312 = vunpack.c.l.bf16 %v308
      %v313 = vmul.f32 %v309, %v311
      %v314 = vmul.f32 %v310, %v312
      %v315 = vpack.c.bf16 %v313, %v313
      %v316 = vpack.c.bf16 %v314, %v314
      %318 = vst [vmem:[#allocation1] ss:$9 sm:$0xff] %v225
      %v319 = vld [vmem:[#allocation1] sm:$0xff]
      %v320 = vld [vmem:[#allocation1 + $0x9] sm:$0xff]
      %v321 = vpack.i.b16 %v319, %v319
      %v323 = vperm.slane %v321, 0
      %v324 = vpack.i.b16 %v320, %v320
      %v326 = vperm.slane %v324, 0
      %v327 = vunpack.c.l.bf16 %v298
      %v328 = vunpack.c.l.bf16 %v323
      %v329 = vunpack.c.l.bf16 %v326
      %332 = vrot.lane.b32.xlu0 %v328, 1
      %v333 = vpop.permute.xlu0 %332
      %334 = vrot.lane.b32.xlu0 %v329, 1
      %v335 = vpop.permute.xlu0 %334
      %vm336 = vcmask 7168
      %v337 = vsel %vm336, %v333, %v335
      %v341 = vmul.f32 %v309, %v333
      %v342 = vmul.f32 %v310, %v337
      %v343 = vmul.f32 %v327, %v335
      %v344 = vpack.c.bf16 %v341, %v341
      %v345 = vpack.c.bf16 %v342, %v342
      %v346 = vpack.c.bf16 %v343, %v343
      %350 = vrot.lane.b32.xlu0 %v344, 127
      %v351 = vpop.permute.xlu0 %350
      %352 = vrot.lane.b32.xlu0 %v345, 127
      %v353 = vpop.permute.xlu0 %352
      %354 = vrot.lane.b32.xlu0 %v346, 127
      %v355 = vpop.permute.xlu0 %354
      %vm356 = vcmask 1039360
      %v357 = vsel %vm356, %v351, %v353
      %v358 = vsel %vm356, %v353, %v355
      %vm359 = vcmask 64512
      %v361 = vsel %vm359, %v242, 0
      %vm363 = vcmask 1043456
      %v365 = vsel %vm363, %v357, 0
      %v368 = vsel %vm363, %v358, 0
      %370 = vmatpush.bf16.msra.mxu0 0
      %371 = vmatpush.bf16.msra.mxu0 0
      %372 = vmatpush.bf16.msra.mxu0 0
      %373 = vmatpush.bf16.msra.mxu0 0
      %374 = vmatpush.bf16.msra.mxu0 0
      %375 = vmatpush.bf16.msra.mxu0 0
      %376 = vmatpush.bf16.msra.mxu0 0
      %377 = vmatpush.bf16.msra.mxu0 %v365
      %378 = vmatmul.bf16.gmra.mxu0 %v361
      %v379 = vpop.f32.mrf.mxu0
      %v380 = vadd.f32 0.0, %v379
      %v381 = vpop.f32.mrf.mxu0
      %382 = vdwg.mxu0
      %383 = vmatpush.bf16.msra.mxu0 0
      %384 = vmatpush.bf16.msra.mxu0 0
      %385 = vmatpush.bf16.msra.mxu0 0
      %386 = vmatpush.bf16.msra.mxu0 0
      %387 = vmatpush.bf16.msra.mxu0 0
      %388 = vmatpush.bf16.msra.mxu0 0
      %389 = vmatpush.bf16.msra.mxu0 0
      %390 = vmatpush.bf16.msra.mxu0 %v368
      %391 = vmatmul.bf16.gmra.mxu0 %v361
      %v392 = vpop.f32.mrf.mxu0
      %v393 = vadd.f32 0.0, %v392
      %v394 = vpop.f32.mrf.mxu0
      %395 = vdwg.mxu0
      %v397 = vsel %vm359, %v240, 0
      %v400 = vsel %vm363, %v315, 0
      %v403 = vsel %vm363, %v316, 0
      %405 = vmatpush.bf16.msra.mxu0 0
      %406 = vmatpush.bf16.msra.mxu0 0
      %407 = vmatpush.bf16.msra.mxu0 0
      %408 = vmatpush.bf16.msra.mxu0 0
      %409 = vmatpush.bf16.msra.mxu0 0
      %410 = vmatpush.bf16.msra.mxu0 0
      %411 = vmatpush.bf16.msra.mxu0 0
      %412 = vmatpush.bf16.msra.mxu0 %v400
      %413 = vmatmul.bf16.gmra.mxu0 %v397
      %v414 = vpop.f32.mrf.mxu0
      %v415 = vadd.f32 %v380, %v414
      %v416 = vpop.f32.mrf.mxu0
      %417 = vdwg.mxu0
      %418 = vmatpush.bf16.msra.mxu0 0
      %419 = vmatpush.bf16.msra.mxu0 0
      %420 = vmatpush.bf16.msra.mxu0 0
      %421 = vmatpush.bf16.msra.mxu0 0
      %422 = vmatpush.bf16.msra.mxu0 0
      %423 = vmatpush.bf16.msra.mxu0 0
      %424 = vmatpush.bf16.msra.mxu0 0
      %425 = vmatpush.bf16.msra.mxu0 %v403
      %426 = vmatmul.bf16.gmra.mxu0 %v397
      %v427 = vpop.f32.mrf.mxu0
      %v428 = vadd.f32 %v393, %v427
      %v429 = vpop.f32.mrf.mxu0
      %430 = vdwg.mxu0
      %432 = vst [vmem:[#allocation1] ss:$9 sm:$0xff] %v227
      %v433 = vld [vmem:[#allocation1] sm:$0xff]
      %v434 = vld [vmem:[#allocation1 + $0x9] sm:$0xff]
      %v435 = vpack.i.b16 %v433, %v433
      %v437 = vperm.slane %v435, 0
      %v438 = vpack.i.b16 %v434, %v434
      %v440 = vperm.slane %v438, 0
      %v441 = vunpack.c.l.bf16 %v437
      %v442 = vunpack.c.l.bf16 %v440
      %445 = vrot.lane.b32.xlu0 %v441, 2
      %v446 = vpop.permute.xlu0 %445
      %447 = vrot.lane.b32.xlu0 %v442, 2
      %v448 = vpop.permute.xlu0 %447
      %vm449 = vcmask 15360
      %v450 = vsel %vm449, %v446, %v448
      %v454 = vmul.f32 %v309, %v446
      %v455 = vmul.f32 %v310, %v450
      %v456 = vmul.f32 %v327, %v448
      %v457 = vpack.c.bf16 %v454, %v454
      %v458 = vpack.c.bf16 %v455, %v455
      %v459 = vpack.c.bf16 %v456, %v456
      %463 = vrot.lane.b32.xlu0 %v457, 126
      %v464 = vpop.permute.xlu0 %463
      %465 = vrot.lane.b32.xlu0 %v458, 126
      %v466 = vpop.permute.xlu0 %465
      %467 = vrot.lane.b32.xlu0 %v459, 126
      %v468 = vpop.permute.xlu0 %467
      %vm469 = vcmask 1031168
      %v470 = vsel %vm469, %v464, %v466
      %v471 = vsel %vm469, %v466, %v468
      %v473 = vsel %vm359, %v244, 0
      %v476 = vsel %vm363, %v470, 0
      %v479 = vsel %vm363, %v471, 0
      %481 = vmatpush.bf16.msra.mxu0 0
      %482 = vmatpush.bf16.msra.mxu0 0
      %483 = vmatpush.bf16.msra.mxu0 0
      %484 = vmatpush.bf16.msra.mxu0 0
      %485 = vmatpush.bf16.msra.mxu0 0
      %486 = vmatpush.bf16.msra.mxu0 0
      %487 = vmatpush.bf16.msra.mxu0 0
      %488 = vmatpush.bf16.msra.mxu0 %v476
      %489 = vmatmul.bf16.gmra.mxu0 %v473
      %v490 = vpop.f32.mrf.mxu0
      %v491 = vadd.f32 0.0, %v490
      %v492 = vpop.f32.mrf.mxu0
      %493 = vdwg.mxu0
      %494 = vmatpush.bf16.msra.mxu0 0
      %495 = vmatpush.bf16.msra.mxu0 0
      %496 = vmatpush.bf16.msra.mxu0 0
      %497 = vmatpush.bf16.msra.mxu0 0
      %498 = vmatpush.bf16.msra.mxu0 0
      %499 = vmatpush.bf16.msra.mxu0 0
      %500 = vmatpush.bf16.msra.mxu0 0
      %501 = vmatpush.bf16.msra.mxu0 %v479
      %502 = vmatmul.bf16.gmra.mxu0 %v473
      %v503 = vpop.f32.mrf.mxu0
      %v504 = vadd.f32 0.0, %v503
      %v505 = vpop.f32.mrf.mxu0
      %506 = vdwg.mxu0
      %v507 = vadd.f32 %v415, %v491
      %v508 = vadd.f32 %v428, %v504
      %510 = vst [vmem:[#allocation1] ss:$9 sm:$0xff] %v229
      %v511 = vld [vmem:[#allocation1] sm:$0xff]
      %v512 = vld [vmem:[#allocation1 + $0x9] sm:$0xff]
      %v513 = vpack.i.b16 %v511, %v511
      %v515 = vperm.slane %v513, 0
      %v516 = vpack.i.b16 %v512, %v512
      %v518 = vperm.slane %v516, 0
      %v519 = vunpack.c.l.bf16 %v515
      %v520 = vunpack.c.l.bf16 %v518
      %523 = vrot.lane.b32.xlu0 %v519, 16
      %v524 = vpop.permute.xlu0 %523
      %525 = vrot.lane.b32.xlu0 %v520, 16
      %v526 = vpop.permute.xlu0 %525
      %vm527 = vcmask 130048
      %v528 = vsel %vm527, %v524, %v526
      %v532 = vmul.f32 %v309, %v524
      %v533 = vmul.f32 %v310, %v528
      %v534 = vmul.f32 %v327, %v526
      %v535 = vpack.c.bf16 %v532, %v532
      %v536 = vpack.c.bf16 %v533, %v533
      %v537 = vpack.c.bf16 %v534, %v534
      %541 = vrot.lane.b32.xlu0 %v535, 112
      %v542 = vpop.permute.xlu0 %541
      %543 = vrot.lane.b32.xlu0 %v536, 112
      %v544 = vpop.permute.xlu0 %543
      %545 = vrot.lane.b32.xlu0 %v537, 112
      %v546 = vpop.permute.xlu0 %545
      %vm547 = vcmask 916480
      %v548 = vsel %vm547, %v542, %v544
      %v549 = vsel %vm547, %v544, %v546
      %v551 = vsel %vm359, %v246, 0
      %v554 = vsel %vm363, %v548, 0
      %v557 = vsel %vm363, %v549, 0
      %559 = vmatpush.bf16.msra.mxu0 0
      %560 = vmatpush.bf16.msra.mxu0 0
      %561 = vmatpush.bf16.msra.mxu0 0
      %562 = vmatpush.bf16.msra.mxu0 0
      %563 = vmatpush.bf16.msra.mxu0 0
      %564 = vmatpush.bf16.msra.mxu0 0
      %565 = vmatpush.bf16.msra.mxu0 0
      %566 = vmatpush.bf16.msra.mxu0 %v554
      %567 = vmatmul.bf16.gmra.mxu0 %v551
      %v568 = vpop.f32.mrf.mxu0
      %v569 = vadd.f32 0.0, %v568
      %v570 = vpop.f32.mrf.mxu0
      %571 = vdwg.mxu0
      %572 = vmatpush.bf16.msra.mxu0 0
      %573 = vmatpush.bf16.msra.mxu0 0
      %574 = vmatpush.bf16.msra.mxu0 0
      %575 = vmatpush.bf16.msra.mxu0 0
      %576 = vmatpush.bf16.msra.mxu0 0
      %577 = vmatpush.bf16.msra.mxu0 0
      %578 = vmatpush.bf16.msra.mxu0 0
      %579 = vmatpush.bf16.msra.mxu0 %v557
      %580 = vmatmul.bf16.gmra.mxu0 %v551
      %v581 = vpop.f32.mrf.mxu0
      %v582 = vadd.f32 0.0, %v581
      %v583 = vpop.f32.mrf.mxu0
      %584 = vdwg.mxu0
      %v585 = vadd.f32 %v507, %v569
      %v586 = vadd.f32 %v508, %v582
      %588 = vst [vmem:[#allocation1] ss:$9 sm:$0xff] %v231
      %v589 = vld [vmem:[#allocation1] sm:$0xff]
      %v590 = vld [vmem:[#allocation1 + $0x9] sm:$0xff]
      %v591 = vpack.i.b16 %v589, %v589
      %v593 = vperm.slane %v591, 0
      %v594 = vpack.i.b16 %v590, %v590
      %v596 = vperm.slane %v594, 0
      %v597 = vunpack.c.l.bf16 %v593
      %v598 = vunpack.c.l.bf16 %v596
      %601 = vrot.lane.b32.xlu0 %v597, 17
      %v602 = vpop.permute.xlu0 %601
      %603 = vrot.lane.b32.xlu0 %v598, 17
      %v604 = vpop.permute.xlu0 %603
      %vm605 = vcmask 138240
      %v606 = vsel %vm605, %v602, %v604
      %v610 = vmul.f32 %v309, %v602
      %v611 = vmul.f32 %v310, %v606
      %v612 = vmul.f32 %v327, %v604
      %v613 = vpack.c.bf16 %v610, %v610
      %v614 = vpack.c.bf16 %v611, %v611
      %v615 = vpack.c.bf16 %v612, %v612
      %619 = vrot.lane.b32.xlu0 %v613, 111
      %v620 = vpop.permute.xlu0 %619
      %621 = vrot.lane.b32.xlu0 %v614, 111
      %v622 = vpop.permute.xlu0 %621
      %623 = vrot.lane.b32.xlu0 %v615, 111
      %v624 = vpop.permute.xlu0 %623
      %vm625 = vcmask 908288
      %v626 = vsel %vm625, %v620, %v622
      %v627 = vsel %vm625, %v622, %v624
      %v629 = vsel %vm359, %v248, 0
      %v632 = vsel %vm363, %v626, 0
      %v635 = vsel %vm363, %v627, 0
      %637 = vmatpush.bf16.msra.mxu0 0
      %638 = vmatpush.bf16.msra.mxu0 0
      %639 = vmatpush.bf16.msra.mxu0 0
      %640 = vmatpush.bf16.msra.mxu0 0
      %641 = vmatpush.bf16.msra.mxu0 0
      %642 = vmatpush.bf16.msra.mxu0 0
      %643 = vmatpush.bf16.msra.mxu0 0
      %644 = vmatpush.bf16.msra.mxu0 %v632
      %645 = vmatmul.bf16.gmra.mxu0 %v629
      %v646 = vpop.f32.mrf.mxu0
      %v647 = vadd.f32 0.0, %v646
      %v648 = vpop.f32.mrf.mxu0
      %649 = vdwg.mxu0
      %650 = vmatpush.bf16.msra.mxu0 0
      %651 = vmatpush.bf16.msra.mxu0 0
      %652 = vmatpush.bf16.msra.mxu0 0
      %653 = vmatpush.bf16.msra.mxu0 0
      %654 = vmatpush.bf16.msra.mxu0 0
      %655 = vmatpush.bf16.msra.mxu0 0
      %656 = vmatpush.bf16.msra.mxu0 0
      %657 = vmatpush.bf16.msra.mxu0 %v635
      %658 = vmatmul.bf16.gmra.mxu0 %v629
      %v659 = vpop.f32.mrf.mxu0
      %v660 = vadd.f32 0.0, %v659
      %v661 = vpop.f32.mrf.mxu0
      %662 = vdwg.mxu0
      %v663 = vadd.f32 %v585, %v647
      %v664 = vadd.f32 %v586, %v660
      %666 = vst [vmem:[#allocation1] ss:$9 sm:$0xff] %v233
      %v667 = vld [vmem:[#allocation1] sm:$0xff]
      %v668 = vld [vmem:[#allocation1 + $0x9] sm:$0xff]
      %v669 = vpack.i.b16 %v667, %v667
      %v671 = vperm.slane %v669, 0
      %v672 = vpack.i.b16 %v668, %v668
      %v674 = vperm.slane %v672, 0
      %v675 = vunpack.c.l.bf16 %v671
      %v676 = vunpack.c.l.bf16 %v674
      %679 = vrot.lane.b32.xlu0 %v675, 18
      %v680 = vpop.permute.xlu0 %679
      %681 = vrot.lane.b32.xlu0 %v676, 18
      %v682 = vpop.permute.xlu0 %681
      %vm683 = vcmask 146432
      %v684 = vsel %vm683, %v680, %v682
      %v688 = vmul.f32 %v309, %v680
      %v689 = vmul.f32 %v310, %v684
      %v690 = vmul.f32 %v327, %v682
      %v691 = vpack.c.bf16 %v688, %v688
      %v692 = vpack.c.bf16 %v689, %v689
      %v693 = vpack.c.bf16 %v690, %v690
      %697 = vrot.lane.b32.xlu0 %v691, 110
      %v698 = vpop.permute.xlu0 %697
      %699 = vrot.lane.b32.xlu0 %v692, 110
      %v700 = vpop.permute.xlu0 %699
      %701 = vrot.lane.b32.xlu0 %v693, 110
      %v702 = vpop.permute.xlu0 %701
      %vm703 = vcmask 900096
      %v704 = vsel %vm703, %v698, %v700
      %v705 = vsel %vm703, %v700, %v702
      %v707 = vsel %vm359, %v250, 0
      %v710 = vsel %vm363, %v704, 0
      %v713 = vsel %vm363, %v705, 0
      %715 = vmatpush.bf16.msra.mxu0 0
      %716 = vmatpush.bf16.msra.mxu0 0
      %717 = vmatpush.bf16.msra.mxu0 0
      %718 = vmatpush.bf16.msra.mxu0 0
      %719 = vmatpush.bf16.msra.mxu0 0
      %720 = vmatpush.bf16.msra.mxu0 0
      %721 = vmatpush.bf16.msra.mxu0 0
      %722 = vmatpush.bf16.msra.mxu0 %v710
      %723 = vmatmul.bf16.gmra.mxu0 %v707
      %v724 = vpop.f32.mrf.mxu0
      %v725 = vadd.f32 0.0, %v724
      %v726 = vpop.f32.mrf.mxu0
      %727 = vdwg.mxu0
      %728 = vmatpush.bf16.msra.mxu0 0
      %729 = vmatpush.bf16.msra.mxu0 0
      %730 = vmatpush.bf16.msra.mxu0 0
      %731 = vmatpush.bf16.msra.mxu0 0
      %732 = vmatpush.bf16.msra.mxu0 0
      %733 = vmatpush.bf16.msra.mxu0 0
      %734 = vmatpush.bf16.msra.mxu0 0
      %735 = vmatpush.bf16.msra.mxu0 %v713
      %736 = vmatmul.bf16.gmra.mxu0 %v707
      %v737 = vpop.f32.mrf.mxu0
      %v738 = vadd.f32 0.0, %v737
      %v739 = vpop.f32.mrf.mxu0
      %740 = vdwg.mxu0
      %v741 = vadd.f32 %v663, %v725
      %v742 = vadd.f32 %v664, %v738
      %744 = vst [vmem:[#allocation1] ss:$9 sm:$0xff] %v235
      %v745 = vld [vmem:[#allocation1] sm:$0xff]
      %v746 = vld [vmem:[#allocation1 + $0x9] sm:$0xff]
      %v747 = vpack.i.b16 %v745, %v745
      %v749 = vperm.slane %v747, 0
      %v750 = vpack.i.b16 %v746, %v746
      %v752 = vperm.slane %v750, 0
      %v753 = vunpack.c.l.bf16 %v749
      %v754 = vunpack.c.l.bf16 %v752
      %757 = vrot.lane.b32.xlu0 %v753, 32
      %v758 = vpop.permute.xlu0 %757
      %759 = vrot.lane.b32.xlu0 %v754, 32
      %v760 = vpop.permute.xlu0 %759
      %vm761 = vcmask 261120
      %v762 = vsel %vm761, %v758, %v760
      %v766 = vmul.f32 %v309, %v758
      %v767 = vmul.f32 %v310, %v762
      %v768 = vmul.f32 %v327, %v760
      %v769 = vpack.c.bf16 %v766, %v766
      %v770 = vpack.c.bf16 %v767, %v767
      %v771 = vpack.c.bf16 %v768, %v768
      %775 = vrot.lane.b32.xlu0 %v769, 96
      %v776 = vpop.permute.xlu0 %775
      %777 = vrot.lane.b32.xlu0 %v770, 96
      %v778 = vpop.permute.xlu0 %777
      %779 = vrot.lane.b32.xlu0 %v771, 96
      %v780 = vpop.permute.xlu0 %779
      %vm781 = vcmask 785408
      %v782 = vsel %vm781, %v776, %v778
      %v783 = vsel %vm781, %v778, %v780
      %v785 = vsel %vm359, %v252, 0
      %v788 = vsel %vm363, %v782, 0
      %v791 = vsel %vm363, %v783, 0
      %793 = vmatpush.bf16.msra.mxu0 0
      %794 = vmatpush.bf16.msra.mxu0 0
      %795 = vmatpush.bf16.msra.mxu0 0
      %796 = vmatpush.bf16.msra.mxu0 0
      %797 = vmatpush.bf16.msra.mxu0 0
      %798 = vmatpush.bf16.msra.mxu0 0
      %799 = vmatpush.bf16.msra.mxu0 0
      %800 = vmatpush.bf16.msra.mxu0 %v788
      %801 = vmatmul.bf16.gmra.mxu0 %v785
      %v802 = vpop.f32.mrf.mxu0
      %v803 = vadd.f32 0.0, %v802
      %v804 = vpop.f32.mrf.mxu0
      %805 = vdwg.mxu0
      %806 = vmatpush.bf16.msra.mxu0 0
      %807 = vmatpush.bf16.msra.mxu0 0
      %808 = vmatpush.bf16.msra.mxu0 0
      %809 = vmatpush.bf16.msra.mxu0 0
      %810 = vmatpush.bf16.msra.mxu0 0
      %811 = vmatpush.bf16.msra.mxu0 0
      %812 = vmatpush.bf16.msra.mxu0 0
      %813 = vmatpush.bf16.msra.mxu0 %v791
      %814 = vmatmul.bf16.gmra.mxu0 %v785
      %v815 = vpop.f32.mrf.mxu0
      %v816 = vadd.f32 0.0, %v815
      %v817 = vpop.f32.mrf.mxu0
      %818 = vdwg.mxu0
      %v819 = vadd.f32 %v741, %v803
      %v820 = vadd.f32 %v742, %v816
      %822 = vst [vmem:[#allocation1] ss:$9 sm:$0xff] %v237
      %v823 = vld [vmem:[#allocation1] sm:$0xff]
      %v824 = vld [vmem:[#allocation1 + $0x9] sm:$0xff]
      %v825 = vpack.i.b16 %v823, %v823
      %v827 = vperm.slane %v825, 0
      %v828 = vpack.i.b16 %v824, %v824
      %v830 = vperm.slane %v828, 0
      %v831 = vunpack.c.l.bf16 %v827
      %v832 = vunpack.c.l.bf16 %v830
      %835 = vrot.lane.b32.xlu0 %v831, 33
      %v836 = vpop.permute.xlu0 %835
      %837 = vrot.lane.b32.xlu0 %v832, 33
      %v838 = vpop.permute.xlu0 %837
      %vm839 = vcmask 269312
      %v840 = vsel %vm839, %v836, %v838
      %v844 = vmul.f32 %v309, %v836
      %v845 = vmul.f32 %v310, %v840
      %v846 = vmul.f32 %v327, %v838
      %v847 = vpack.c.bf16 %v844, %v844
      %v848 = vpack.c.bf16 %v845, %v845
      %v849 = vpack.c.bf16 %v846, %v846
      %853 = vrot.lane.b32.xlu0 %v847, 95
      %v854 = vpop.permute.xlu0 %853
      %855 = vrot.lane.b32.xlu0 %v848, 95
      %v856 = vpop.permute.xlu0 %855
      %857 = vrot.lane.b32.xlu0 %v849, 95
      %v858 = vpop.permute.xlu0 %857
      %vm859 = vcmask 777216
      %v860 = vsel %vm859, %v854, %v856
      %v861 = vsel %vm859, %v856, %v858
      %v863 = vsel %vm359, %v254, 0
      %v866 = vsel %vm363, %v860, 0
      %v869 = vsel %vm363, %v861, 0
      %871 = vmatpush.bf16.msra.mxu0 0
      %872 = vmatpush.bf16.msra.mxu0 0
      %873 = vmatpush.bf16.msra.mxu0 0
      %874 = vmatpush.bf16.msra.mxu0 0
      %875 = vmatpush.bf16.msra.mxu0 0
      %876 = vmatpush.bf16.msra.mxu0 0
      %877 = vmatpush.bf16.msra.mxu0 0
      %878 = vmatpush.bf16.msra.mxu0 %v866
      %879 = vmatmul.bf16.gmra.mxu0 %v863
      %v880 = vpop.f32.mrf.mxu0
      %v881 = vadd.f32 0.0, %v880
      %v882 = vpop.f32.mrf.mxu0
      %883 = vdwg.mxu0
      %884 = vmatpush.bf16.msra.mxu0 0
      %885 = vmatpush.bf16.msra.mxu0 0
      %886 = vmatpush.bf16.msra.mxu0 0
      %887 = vmatpush.bf16.msra.mxu0 0
      %888 = vmatpush.bf16.msra.mxu0 0
      %889 = vmatpush.bf16.msra.mxu0 0
      %890 = vmatpush.bf16.msra.mxu0 0
      %891 = vmatpush.bf16.msra.mxu0 %v869
      %892 = vmatmul.bf16.gmra.mxu0 %v863
      %v893 = vpop.f32.mrf.mxu0
      %v894 = vadd.f32 0.0, %v893
      %v895 = vpop.f32.mrf.mxu0
      %896 = vdwg.mxu0
      %v897 = vadd.f32 %v819, %v881
      %v898 = vadd.f32 %v820, %v894
      %900 = vst [vmem:[#allocation1] ss:$9 sm:$0xff] %v239
      %v901 = vld [vmem:[#allocation1] sm:$0xff]
      %v902 = vld [vmem:[#allocation1 + $0x9] sm:$0xff]
      %v903 = vpack.i.b16 %v901, %v901
      %v905 = vperm.slane %v903, 0
      %v906 = vpack.i.b16 %v902, %v902
      %v908 = vperm.slane %v906, 0
      %v909 = vunpack.c.l.bf16 %v905
      %v910 = vunpack.c.l.bf16 %v908
      %913 = vrot.lane.b32.xlu0 %v909, 34
      %v914 = vpop.permute.xlu0 %913
      %915 = vrot.lane.b32.xlu0 %v910, 34
      %v916 = vpop.permute.xlu0 %915
      %vm917 = vcmask 277504
      %v918 = vsel %vm917, %v914, %v916
      %v922 = vmul.f32 %v309, %v914
      %v923 = vmul.f32 %v310, %v918
      %v924 = vmul.f32 %v327, %v916
      %v925 = vpack.c.bf16 %v922, %v922
      %v926 = vpack.c.bf16 %v923, %v923
      %v927 = vpack.c.bf16 %v924, %v924
      %931 = vrot.lane.b32.xlu0 %v925, 94
      %v932 = vpop.permute.xlu0 %931
      %933 = vrot.lane.b32.xlu0 %v926, 94
      %v934 = vpop.permute.xlu0 %933
      %935 = vrot.lane.b32.xlu0 %v927, 94
      %v936 = vpop.permute.xlu0 %935
      %vm937 = vcmask 769024
      %v938 = vsel %vm937, %v932, %v934
      %v939 = vsel %vm937, %v934, %v936
      %v941 = vsel %vm359, %v256, 0
      %v944 = vsel %vm363, %v938, 0
      %v947 = vsel %vm363, %v939, 0
      %949 = vmatpush.bf16.msra.mxu0 0
      %950 = vmatpush.bf16.msra.mxu0 0
      %951 = vmatpush.bf16.msra.mxu0 0
      %952 = vmatpush.bf16.msra.mxu0 0
      %953 = vmatpush.bf16.msra.mxu0 0
      %954 = vmatpush.bf16.msra.mxu0 0
      %955 = vmatpush.bf16.msra.mxu0 0
      %956 = vmatpush.bf16.msra.mxu0 %v944
      %957 = vmatmul.bf16.gmra.mxu0 %v941
      %v958 = vpop.f32.mrf.mxu0
      %v959 = vadd.f32 0.0, %v958
      %v960 = vpop.f32.mrf.mxu0
      %961 = vdwg.mxu0
      %962 = vmatpush.bf16.msra.mxu0 0
      %963 = vmatpush.bf16.msra.mxu0 0
      %964 = vmatpush.bf16.msra.mxu0 0
      %965 = vmatpush.bf16.msra.mxu0 0
      %966 = vmatpush.bf16.msra.mxu0 0
      %967 = vmatpush.bf16.msra.mxu0 0
      %968 = vmatpush.bf16.msra.mxu0 0
      %969 = vmatpush.bf16.msra.mxu0 %v947
      %970 = vmatmul.bf16.gmra.mxu0 %v941
      %v971 = vpop.f32.mrf.mxu0
      %v972 = vadd.f32 0.0, %v971
      %v973 = vpop.f32.mrf.mxu0
      %974 = vdwg.mxu0
      %v975 = vadd.f32 %v897, %v959
      %v976 = vadd.f32 %v898, %v972
      %s977 = sadd.s32 %s293, 1
      %s978 = smul.u32 %s977, 3
      %s979 = smul.addr %s978, 4
      %s980 = scalar_lea.vmem %s210, %s979
      %v981 = vld [vmem:[%s980] sm:$0xff]
      %v982 = vld [vmem:[%s980 + $0x8] sm:$0xf]
      %v983 = vunpack.c.l.bf16 %v981
      %v984 = vunpack.c.h.bf16 %v981
      %v985 = vmul.f32 %v983, %v311
      %v986 = vmul.f32 %v984, %v312
      %v987 = vpack.c.bf16 %v985, %v985
      %v988 = vpack.c.bf16 %v986, %v986
      %v990 = vsel %vm359, %v258, 0
      %v993 = vsel %vm363, %v987, 0
      %v996 = vsel %vm363, %v988, 0
      %998 = vmatpush.bf16.msra.mxu0 0
      %999 = vmatpush.bf16.msra.mxu0 0
      %1000 = vmatpush.bf16.msra.mxu0 0
      %1001 = vmatpush.bf16.msra.mxu0 0
      %1002 = vmatpush.bf16.msra.mxu0 0
      %1003 = vmatpush.bf16.msra.mxu0 0
      %1004 = vmatpush.bf16.msra.mxu0 0
      %1005 = vmatpush.bf16.msra.mxu0 %v993
      %1006 = vmatmul.bf16.gmra.mxu0 %v990
      %v1007 = vpop.f32.mrf.mxu0
      %v1008 = vadd.f32 0.0, %v1007
      %v1009 = vpop.f32.mrf.mxu0
      %1010 = vdwg.mxu0
      %1011 = vmatpush.bf16.msra.mxu0 0
      %1012 = vmatpush.bf16.msra.mxu0 0
      %1013 = vmatpush.bf16.msra.mxu0 0
      %1014 = vmatpush.bf16.msra.mxu0 0
      %1015 = vmatpush.bf16.msra.mxu0 0
      %1016 = vmatpush.bf16.msra.mxu0 0
      %1017 = vmatpush.bf16.msra.mxu0 0
      %1018 = vmatpush.bf16.msra.mxu0 %v996
      %1019 = vmatmul.bf16.gmra.mxu0 %v990
      %v1020 = vpop.f32.mrf.mxu0
      %v1021 = vadd.f32 0.0, %v1020
      %v1022 = vpop.f32.mrf.mxu0
      %1023 = vdwg.mxu0
      %v1024 = vadd.f32 %v975, %v1008
      %v1025 = vadd.f32 %v976, %v1021
      %v1026 = vunpack.c.l.bf16 %v982
      %v1027 = vmul.f32 %v983, %v333
      %v1028 = vmul.f32 %v984, %v337
      %v1029 = vmul.f32 %v1026, %v335
      %v1030 = vpack.c.bf16 %v1027, %v1027
      %v1031 = vpack.c.bf16 %v1028, %v1028
      %v1032 = vpack.c.bf16 %v1029, %v1029
      %1036 = vrot.lane.b32.xlu0 %v1030, 127
      %v1037 = vpop.permute.xlu0 %1036
      %1038 = vrot.lane.b32.xlu0 %v1031, 127
      %v1039 = vpop.permute.xlu0 %1038
      %1040 = vrot.lane.b32.xlu0 %v1032, 127
      %v1041 = vpop.permute.xlu0 %1040
      %v1042 = vsel %vm356, %v1037, %v1039
      %v1043 = vsel %vm356, %v1039, %v1041
      %v1045 = vsel %vm359, %v260, 0
      %v1048 = vsel %vm363, %v1042, 0
      %v1051 = vsel %vm363, %v1043, 0
      %1053 = vmatpush.bf16.msra.mxu0 0
      %1054 = vmatpush.bf16.msra.mxu0 0
      %1055 = vmatpush.bf16.msra.mxu0 0
      %1056 = vmatpush.bf16.msra.mxu0 0
      %1057 = vmatpush.bf16.msra.mxu0 0
      %1058 = vmatpush.bf16.msra.mxu0 0
      %1059 = vmatpush.bf16.msra.mxu0 0
      %1060 = vmatpush.bf16.msra.mxu0 %v1048
      %1061 = vmatmul.bf16.gmra.mxu0 %v1045
      %v1062 = vpop.f32.mrf.mxu0
      %v1063 = vadd.f32 0.0, %v1062
      %v1064 = vpop.f32.mrf.mxu0
      %1065 = vdwg.mxu0
      %1066 = vmatpush.bf16.msra.mxu0 0
      %1067 = vmatpush.bf16.msra.mxu0 0
      %1068 = vmatpush.bf16.msra.mxu0 0
      %1069 = vmatpush.bf16.msra.mxu0 0
      %1070 = vmatpush.bf16.msra.mxu0 0
      %1071 = vmatpush.bf16.msra.mxu0 0
      %1072 = vmatpush.bf16.msra.mxu0 0
      %1073 = vmatpush.bf16.msra.mxu0 %v1051
      %1074 = vmatmul.bf16.gmra.mxu0 %v1045
      %v1075 = vpop.f32.mrf.mxu0
      %v1076 = vadd.f32 0.0, %v1075
      %v1077 = vpop.f32.mrf.mxu0
      %1078 = vdwg.mxu0
      %v1079 = vadd.f32 %v1024, %v1063
      %v1080 = vadd.f32 %v1025, %v1076
      %v1081 = vmul.f32 %v983, %v446
      %v1082 = vmul.f32 %v984, %v450
      %v1083 = vmul.f32 %v1026, %v448
      %v1084 = vpack.c.bf16 %v1081, %v1081
      %v1085 = vpack.c.bf16 %v1082, %v1082
      %v1086 = vpack.c.bf16 %v1083, %v1083
      %1090 = vrot.lane.b32.xlu0 %v1084, 126
      %v1091 = vpop.permute.xlu0 %1090
      %1092 = vrot.lane.b32.xlu0 %v1085, 126
      %v1093 = vpop.permute.xlu0 %1092
      %1094 = vrot.lane.b32.xlu0 %v1086, 126
      %v1095 = vpop.permute.xlu0 %1094
      %v1096 = vsel %vm469, %v1091, %v1093
      %v1097 = vsel %vm469, %v1093, %v1095
      %v1099 = vsel %vm359, %v262, 0
      %v1102 = vsel %vm363, %v1096, 0
      %v1105 = vsel %vm363, %v1097, 0
      %1107 = vmatpush.bf16.msra.mxu0 0
      %1108 = vmatpush.bf16.msra.mxu0 0
      %1109 = vmatpush.bf16.msra.mxu0 0
      %1110 = vmatpush.bf16.msra.mxu0 0
      %1111 = vmatpush.bf16.msra.mxu0 0
      %1112 = vmatpush.bf16.msra.mxu0 0
      %1113 = vmatpush.bf16.msra.mxu0 0
      %1114 = vmatpush.bf16.msra.mxu0 %v1102
      %1115 = vmatmul.bf16.gmra.mxu0 %v1099
      %v1116 = vpop.f32.mrf.mxu0
      %v1117 = vadd.f32 0.0, %v1116
      %v1118 = vpop.f32.mrf.mxu0
      %1119 = vdwg.mxu0
      %1120 = vmatpush.bf16.msra.mxu0 0
      %1121 = vmatpush.bf16.msra.mxu0 0
      %1122 = vmatpush.bf16.msra.mxu0 0
      %1123 = vmatpush.bf16.msra.mxu0 0
      %1124 = vmatpush.bf16.msra.mxu0 0
      %1125 = vmatpush.bf16.msra.mxu0 0
      %1126 = vmatpush.bf16.msra.mxu0 0
      %1127 = vmatpush.bf16.msra.mxu0 %v1105
      %1128 = vmatmul.bf16.gmra.mxu0 %v1099
      %v1129 = vpop.f32.mrf.mxu0
      %v1130 = vadd.f32 0.0, %v1129
      %v1131 = vpop.f32.mrf.mxu0
      %1132 = vdwg.mxu0
      %v1133 = vadd.f32 %v1079, %v1117
      %v1134 = vadd.f32 %v1080, %v1130
      %v1135 = vmul.f32 %v983, %v524
      %v1136 = vmul.f32 %v984, %v528
      %v1137 = vmul.f32 %v1026, %v526
      %v1138 = vpack.c.bf16 %v1135, %v1135
      %v1139 = vpack.c.bf16 %v1136, %v1136
      %v1140 = vpack.c.bf16 %v1137, %v1137
      %1144 = vrot.lane.b32.xlu0 %v1138, 112
      %v1145 = vpop.permute.xlu0 %1144
      %1146 = vrot.lane.b32.xlu0 %v1139, 112
      %v1147 = vpop.permute.xlu0 %1146
      %1148 = vrot.lane.b32.xlu0 %v1140, 112
      %v1149 = vpop.permute.xlu0 %1148
      %v1150 = vsel %vm547, %v1145, %v1147
      %v1151 = vsel %vm547, %v1147, %v1149
      %v1153 = vsel %vm359, %v264, 0
      %v1156 = vsel %vm363, %v1150, 0
      %v1159 = vsel %vm363, %v1151, 0
      %1161 = vmatpush.bf16.msra.mxu0 0
      %1162 = vmatpush.bf16.msra.mxu0 0
      %1163 = vmatpush.bf16.msra.mxu0 0
      %1164 = vmatpush.bf16.msra.mxu0 0
      %1165 = vmatpush.bf16.msra.mxu0 0
      %1166 = vmatpush.bf16.msra.mxu0 0
      %1167 = vmatpush.bf16.msra.mxu0 0
      %1168 = vmatpush.bf16.msra.mxu0 %v1156
      %1169 = vmatmul.bf16.gmra.mxu0 %v1153
      %v1170 = vpop.f32.mrf.mxu0
      %v1171 = vadd.f32 0.0, %v1170
      %v1172 = vpop.f32.mrf.mxu0
      %1173 = vdwg.mxu0
      %1174 = vmatpush.bf16.msra.mxu0 0
      %1175 = vmatpush.bf16.msra.mxu0 0
      %1176 = vmatpush.bf16.msra.mxu0 0
      %1177 = vmatpush.bf16.msra.mxu0 0
      %1178 = vmatpush.bf16.msra.mxu0 0
      %1179 = vmatpush.bf16.msra.mxu0 0
      %1180 = vmatpush.bf16.msra.mxu0 0
      %1181 = vmatpush.bf16.msra.mxu0 %v1159
      %1182 = vmatmul.bf16.gmra.mxu0 %v1153
      %v1183 = vpop.f32.mrf.mxu0
      %v1184 = vadd.f32 0.0, %v1183
      %v1185 = vpop.f32.mrf.mxu0
      %1186 = vdwg.mxu0
      %v1187 = vadd.f32 %v1133, %v1171
      %v1188 = vadd.f32 %v1134, %v1184
      %v1189 = vmul.f32 %v983, %v602
      %v1190 = vmul.f32 %v984, %v606
      %v1191 = vmul.f32 %v1026, %v604
      %v1192 = vpack.c.bf16 %v1189, %v1189
      %v1193 = vpack.c.bf16 %v1190, %v1190
      %v1194 = vpack.c.bf16 %v1191, %v1191
      %1198 = vrot.lane.b32.xlu0 %v1192, 111
      %v1199 = vpop.permute.xlu0 %1198
      %1200 = vrot.lane.b32.xlu0 %v1193, 111
      %v1201 = vpop.permute.xlu0 %1200
      %1202 = vrot.lane.b32.xlu0 %v1194, 111
      %v1203 = vpop.permute.xlu0 %1202
      %v1204 = vsel %vm625, %v1199, %v1201
      %v1205 = vsel %vm625, %v1201, %v1203
      %v1207 = vsel %vm359, %v266, 0
      %v1210 = vsel %vm363, %v1204, 0
      %v1213 = vsel %vm363, %v1205, 0
      %1215 = vmatpush.bf16.msra.mxu0 0
      %1216 = vmatpush.bf16.msra.mxu0 0
      %1217 = vmatpush.bf16.msra.mxu0 0
      %1218 = vmatpush.bf16.msra.mxu0 0
      %1219 = vmatpush.bf16.msra.mxu0 0
      %1220 = vmatpush.bf16.msra.mxu0 0
      %1221 = vmatpush.bf16.msra.mxu0 0
      %1222 = vmatpush.bf16.msra.mxu0 %v1210
      %1223 = vmatmul.bf16.gmra.mxu0 %v1207
      %v1224 = vpop.f32.mrf.mxu0
      %v1225 = vadd.f32 0.0, %v1224
      %v1226 = vpop.f32.mrf.mxu0
      %1227 = vdwg.mxu0
      %1228 = vmatpush.bf16.msra.mxu0 0
      %1229 = vmatpush.bf16.msra.mxu0 0
      %1230 = vmatpush.bf16.msra.mxu0 0
      %1231 = vmatpush.bf16.msra.mxu0 0
      %1232 = vmatpush.bf16.msra.mxu0 0
      %1233 = vmatpush.bf16.msra.mxu0 0
      %1234 = vmatpush.bf16.msra.mxu0 0
      %1235 = vmatpush.bf16.msra.mxu0 %v1213
      %1236 = vmatmul.bf16.gmra.mxu0 %v1207
      %v1237 = vpop.f32.mrf.mxu0
      %v1238 = vadd.f32 0.0, %v1237
      %v1239 = vpop.f32.mrf.mxu0
      %1240 = vdwg.mxu0
      %v1241 = vadd.f32 %v1187, %v1225
      %v1242 = vadd.f32 %v1188, %v1238
      %v1243 = vmul.f32 %v983, %v680
      %v1244 = vmul.f32 %v984, %v684
      %v1245 = vmul.f32 %v1026, %v682
      %v1246 = vpack.c.bf16 %v1243, %v1243
      %v1247 = vpack.c.bf16 %v1244, %v1244
      %v1248 = vpack.c.bf16 %v1245, %v1245
      %1252 = vrot.lane.b32.xlu0 %v1246, 110
      %v1253 = vpop.permute.xlu0 %1252
      %1254 = vrot.lane.b32.xlu0 %v1247, 110
      %v1255 = vpop.permute.xlu0 %1254
      %1256 = vrot.lane.b32.xlu0 %v1248, 110
      %v1257 = vpop.permute.xlu0 %1256
      %v1258 = vsel %vm703, %v1253, %v1255
      %v1259 = vsel %vm703, %v1255, %v1257
      %v1261 = vsel %vm359, %v268, 0
      %v1264 = vsel %vm363, %v1258, 0
      %v1267 = vsel %vm363, %v1259, 0
      %1269 = vmatpush.bf16.msra.mxu0 0
      %1270 = vmatpush.bf16.msra.mxu0 0
      %1271 = vmatpush.bf16.msra.mxu0 0
      %1272 = vmatpush.bf16.msra.mxu0 0
      %1273 = vmatpush.bf16.msra.mxu0 0
      %1274 = vmatpush.bf16.msra.mxu0 0
      %1275 = vmatpush.bf16.msra.mxu0 0
      %1276 = vmatpush.bf16.msra.mxu0 %v1264
      %1277 = vmatmul.bf16.gmra.mxu0 %v1261
      %v1278 = vpop.f32.mrf.mxu0
      %v1279 = vadd.f32 0.0, %v1278
      %v1280 = vpop.f32.mrf.mxu0
      %1281 = vdwg.mxu0
      %1282 = vmatpush.bf16.msra.mxu0 0
      %1283 = vmatpush.bf16.msra.mxu0 0
      %1284 = vmatpush.bf16.msra.mxu0 0
      %1285 = vmatpush.bf16.msra.mxu0 0
      %1286 = vmatpush.bf16.msra.mxu0 0
      %1287 = vmatpush.bf16.msra.mxu0 0
      %1288 = vmatpush.bf16.msra.mxu0 0
      %1289 = vmatpush.bf16.msra.mxu0 %v1267
      %1290 = vmatmul.bf16.gmra.mxu0 %v1261
      %v1291 = vpop.f32.mrf.mxu0
      %v1292 = vadd.f32 0.0, %v1291
      %v1293 = vpop.f32.mrf.mxu0
      %1294 = vdwg.mxu0
      %v1295 = vadd.f32 %v1241, %v1279
      %v1296 = vadd.f32 %v1242, %v1292
      %v1297 = vmul.f32 %v983, %v758
      %v1298 = vmul.f32 %v984, %v762
      %v1299 = vmul.f32 %v1026, %v760
      %v1300 = vpack.c.bf16 %v1297, %v1297
      %v1301 = vpack.c.bf16 %v1298, %v1298
      %v1302 = vpack.c.bf16 %v1299, %v1299
      %1306 = vrot.lane.b32.xlu0 %v1300, 96
      %v1307 = vpop.permute.xlu0 %1306
      %1308 = vrot.lane.b32.xlu0 %v1301, 96
      %v1309 = vpop.permute.xlu0 %1308
      %1310 = vrot.lane.b32.xlu0 %v1302, 96
      %v1311 = vpop.permute.xlu0 %1310
      %v1312 = vsel %vm781, %v1307, %v1309
      %v1313 = vsel %vm781, %v1309, %v1311
      %v1315 = vsel %vm359, %v270, 0
      %v1318 = vsel %vm363, %v1312, 0
      %v1321 = vsel %vm363, %v1313, 0
      %1323 = vmatpush.bf16.msra.mxu0 0
      %1324 = vmatpush.bf16.msra.mxu0 0
      %1325 = vmatpush.bf16.msra.mxu0 0
      %1326 = vmatpush.bf16.msra.mxu0 0
      %1327 = vmatpush.bf16.msra.mxu0 0
      %1328 = vmatpush.bf16.msra.mxu0 0
      %1329 = vmatpush.bf16.msra.mxu0 0
      %1330 = vmatpush.bf16.msra.mxu0 %v1318
      %1331 = vmatmul.bf16.gmra.mxu0 %v1315
      %v1332 = vpop.f32.mrf.mxu0
      %v1333 = vadd.f32 0.0, %v1332
      %v1334 = vpop.f32.mrf.mxu0
      %1335 = vdwg.mxu0
      %1336 = vmatpush.bf16.msra.mxu0 0
      %1337 = vmatpush.bf16.msra.mxu0 0
      %1338 = vmatpush.bf16.msra.mxu0 0
      %1339 = vmatpush.bf16.msra.mxu0 0
      %1340 = vmatpush.bf16.msra.mxu0 0
      %1341 = vmatpush.bf16.msra.mxu0 0
      %1342 = vmatpush.bf16.msra.mxu0 0
      %1343 = vmatpush.bf16.msra.mxu0 %v1321
      %1344 = vmatmul.bf16.gmra.mxu0 %v1315
      %v1345 = vpop.f32.mrf.mxu0
      %v1346 = vadd.f32 0.0, %v1345
      %v1347 = vpop.f32.mrf.mxu0
      %1348 = vdwg.mxu0
      %v1349 = vadd.f32 %v1295, %v1333
      %v1350 = vadd.f32 %v1296, %v1346
      %v1351 = vmul.f32 %v983, %v836
      %v1352 = vmul.f32 %v984, %v840
      %v1353 = vmul.f32 %v1026, %v838
      %v1354 = vpack.c.bf16 %v1351, %v1351
      %v1355 = vpack.c.bf16 %v1352, %v1352
      %v1356 = vpack.c.bf16 %v1353, %v1353
      %1360 = vrot.lane.b32.xlu0 %v1354, 95
      %v1361 = vpop.permute.xlu0 %1360
      %1362 = vrot.lane.b32.xlu0 %v1355, 95
      %v1363 = vpop.permute.xlu0 %1362
      %1364 = vrot.lane.b32.xlu0 %v1356, 95
      %v1365 = vpop.permute.xlu0 %1364
      %v1366 = vsel %vm859, %v1361, %v1363
      %v1367 = vsel %vm859, %v1363, %v1365
      %v1369 = vsel %vm359, %v272, 0
      %v1372 = vsel %vm363, %v1366, 0
      %v1375 = vsel %vm363, %v1367, 0
      %1377 = vmatpush.bf16.msra.mxu0 0
      %1378 = vmatpush.bf16.msra.mxu0 0
      %1379 = vmatpush.bf16.msra.mxu0 0
      %1380 = vmatpush.bf16.msra.mxu0 0
      %1381 = vmatpush.bf16.msra.mxu0 0
      %1382 = vmatpush.bf16.msra.mxu0 0
      %1383 = vmatpush.bf16.msra.mxu0 0
      %1384 = vmatpush.bf16.msra.mxu0 %v1372
      %1385 = vmatmul.bf16.gmra.mxu0 %v1369
      %v1386 = vpop.f32.mrf.mxu0
      %v1387 = vadd.f32 0.0, %v1386
      %v1388 = vpop.f32.mrf.mxu0
      %1389 = vdwg.mxu0
      %1390 = vmatpush.bf16.msra.mxu0 0
      %1391 = vmatpush.bf16.msra.mxu0 0
      %1392 = vmatpush.bf16.msra.mxu0 0
      %1393 = vmatpush.bf16.msra.mxu0 0
      %1394 = vmatpush.bf16.msra.mxu0 0
      %1395 = vmatpush.bf16.msra.mxu0 0
      %1396 = vmatpush.bf16.msra.mxu0 0
      %1397 = vmatpush.bf16.msra.mxu0 %v1375
      %1398 = vmatmul.bf16.gmra.mxu0 %v1369
      %v1399 = vpop.f32.mrf.mxu0
      %v1400 = vadd.f32 0.0, %v1399
      %v1401 = vpop.f32.mrf.mxu0
      %1402 = vdwg.mxu0
      %v1403 = vadd.f32 %v1349, %v1387
      %v1404 = vadd.f32 %v1350, %v1400
      %v1405 = vmul.f32 %v983, %v914
      %v1406 = vmul.f32 %v984, %v918
      %v1407 = vmul.f32 %v1026, %v916
      %v1408 = vpack.c.bf16 %v1405, %v1405
      %v1409 = vpack.c.bf16 %v1406, %v1406
      %v1410 = vpack.c.bf16 %v1407, %v1407
      %1414 = vrot.lane.b32.xlu0 %v1408, 94
      %v1415 = vpop.permute.xlu0 %1414
      %1416 = vrot.lane.b32.xlu0 %v1409, 94
      %v1417 = vpop.permute.xlu0 %1416
      %1418 = vrot.lane.b32.xlu0 %v1410, 94
      %v1419 = vpop.permute.xlu0 %1418
      %v1420 = vsel %vm937, %v1415, %v1417
      %v1421 = vsel %vm937, %v1417, %v1419
      %v1423 = vsel %vm359, %v274, 0
      %v1426 = vsel %vm363, %v1420, 0
      %v1429 = vsel %vm363, %v1421, 0
      %1431 = vmatpush.bf16.msra.mxu0 0
      %1432 = vmatpush.bf16.msra.mxu0 0
      %1433 = vmatpush.bf16.msra.mxu0 0
      %1434 = vmatpush.bf16.msra.mxu0 0
      %1435 = vmatpush.bf16.msra.mxu0 0
      %1436 = vmatpush.bf16.msra.mxu0 0
      %1437 = vmatpush.bf16.msra.mxu0 0
      %1438 = vmatpush.bf16.msra.mxu0 %v1426
      %1439 = vmatmul.bf16.gmra.mxu0 %v1423
      %v1440 = vpop.f32.mrf.mxu0
      %v1441 = vadd.f32 0.0, %v1440
      %v1442 = vpop.f32.mrf.mxu0
      %1443 = vdwg.mxu0
      %1444 = vmatpush.bf16.msra.mxu0 0
      %1445 = vmatpush.bf16.msra.mxu0 0
      %1446 = vmatpush.bf16.msra.mxu0 0
      %1447 = vmatpush.bf16.msra.mxu0 0
      %1448 = vmatpush.bf16.msra.mxu0 0
      %1449 = vmatpush.bf16.msra.mxu0 0
      %1450 = vmatpush.bf16.msra.mxu0 0
      %1451 = vmatpush.bf16.msra.mxu0 %v1429
      %1452 = vmatmul.bf16.gmra.mxu0 %v1423
      %v1453 = vpop.f32.mrf.mxu0
      %v1454 = vadd.f32 0.0, %v1453
      %v1455 = vpop.f32.mrf.mxu0
      %1456 = vdwg.mxu0
      %v1457 = vadd.f32 %v1403, %v1441
      %v1458 = vadd.f32 %v1404, %v1454
      %s1459 = sadd.s32 %s293, 2
      %s1460 = smul.u32 %s1459, 3
      %s1461 = smul.addr %s1460, 4
      %s1462 = scalar_lea.vmem %s210, %s1461
      %v1463 = vld [vmem:[%s1462] sm:$0xff]
      %v1464 = vld [vmem:[%s1462 + $0x8] sm:$0xf]
      %v1465 = vunpack.c.l.bf16 %v1463
      %v1466 = vunpack.c.h.bf16 %v1463
      %v1467 = vmul.f32 %v1465, %v311
      %v1468 = vmul.f32 %v1466, %v312
      %v1469 = vpack.c.bf16 %v1467, %v1467
      %v1470 = vpack.c.bf16 %v1468, %v1468
      %v1472 = vsel %vm359, %v276, 0
      %v1475 = vsel %vm363, %v1469, 0
      %v1478 = vsel %vm363, %v1470, 0
      %1480 = vmatpush.bf16.msra.mxu0 0
      %1481 = vmatpush.bf16.msra.mxu0 0
      %1482 = vmatpush.bf16.msra.mxu0 0
      %1483 = vmatpush.bf16.msra.mxu0 0
      %1484 = vmatpush.bf16.msra.mxu0 0
      %1485 = vmatpush.bf16.msra.mxu0 0
      %1486 = vmatpush.bf16.msra.mxu0 0
      %1487 = vmatpush.bf16.msra.mxu0 %v1475
      %1488 = vmatmul.bf16.gmra.mxu0 %v1472
      %v1489 = vpop.f32.mrf.mxu0
      %v1490 = vadd.f32 0.0, %v1489
      %v1491 = vpop.f32.mrf.mxu0
      %1492 = vdwg.mxu0
      %1493 = vmatpush.bf16.msra.mxu0 0
      %1494 = vmatpush.bf16.msra.mxu0 0
      %1495 = vmatpush.bf16.msra.mxu0 0
      %1496 = vmatpush.bf16.msra.mxu0 0
      %1497 = vmatpush.bf16.msra.mxu0 0
      %1498 = vmatpush.bf16.msra.mxu0 0
      %1499 = vmatpush.bf16.msra.mxu0 0
      %1500 = vmatpush.bf16.msra.mxu0 %v1478
      %1501 = vmatmul.bf16.gmra.mxu0 %v1472
      %v1502 = vpop.f32.mrf.mxu0
      %v1503 = vadd.f32 0.0, %v1502
      %v1504 = vpop.f32.mrf.mxu0
      %1505 = vdwg.mxu0
      %v1506 = vadd.f32 %v1457, %v1490
      %v1507 = vadd.f32 %v1458, %v1503
      %v1508 = vunpack.c.l.bf16 %v1464
      %v1509 = vmul.f32 %v1465, %v333
      %v1510 = vmul.f32 %v1466, %v337
      %v1511 = vmul.f32 %v1508, %v335
      %v1512 = vpack.c.bf16 %v1509, %v1509
      %v1513 = vpack.c.bf16 %v1510, %v1510
      %v1514 = vpack.c.bf16 %v1511, %v1511
      %1518 = vrot.lane.b32.xlu0 %v1512, 127
      %v1519 = vpop.permute.xlu0 %1518
      %1520 = vrot.lane.b32.xlu0 %v1513, 127
      %v1521 = vpop.permute.xlu0 %1520
      %1522 = vrot.lane.b32.xlu0 %v1514, 127
      %v1523 = vpop.permute.xlu0 %1522
      %v1524 = vsel %vm356, %v1519, %v1521
      %v1525 = vsel %vm356, %v1521, %v1523
      %v1527 = vsel %vm359, %v278, 0
      %v1530 = vsel %vm363, %v1524, 0
      %v1533 = vsel %vm363, %v1525, 0
      %1535 = vmatpush.bf16.msra.mxu0 0
      %1536 = vmatpush.bf16.msra.mxu0 0
      %1537 = vmatpush.bf16.msra.mxu0 0
      %1538 = vmatpush.bf16.msra.mxu0 0
      %1539 = vmatpush.bf16.msra.mxu0 0
      %1540 = vmatpush.bf16.msra.mxu0 0
      %1541 = vmatpush.bf16.msra.mxu0 0
      %1542 = vmatpush.bf16.msra.mxu0 %v1530
      %1543 = vmatmul.bf16.gmra.mxu0 %v1527
      %v1544 = vpop.f32.mrf.mxu0
      %v1545 = vadd.f32 0.0, %v1544
      %v1546 = vpop.f32.mrf.mxu0
      %1547 = vdwg.mxu0
      %1548 = vmatpush.bf16.msra.mxu0 0
      %1549 = vmatpush.bf16.msra.mxu0 0
      %1550 = vmatpush.bf16.msra.mxu0 0
      %1551 = vmatpush.bf16.msra.mxu0 0
      %1552 = vmatpush.bf16.msra.mxu0 0
      %1553 = vmatpush.bf16.msra.mxu0 0
      %1554 = vmatpush.bf16.msra.mxu0 0
      %1555 = vmatpush.bf16.msra.mxu0 %v1533
      %1556 = vmatmul.bf16.gmra.mxu0 %v1527
      %v1557 = vpop.f32.mrf.mxu0
      %v1558 = vadd.f32 0.0, %v1557
      %v1559 = vpop.f32.mrf.mxu0
      %1560 = vdwg.mxu0
      %v1561 = vadd.f32 %v1506, %v1545
      %v1562 = vadd.f32 %v1507, %v1558
      %v1563 = vmul.f32 %v1465, %v446
      %v1564 = vmul.f32 %v1466, %v450
      %v1565 = vmul.f32 %v1508, %v448
      %v1566 = vpack.c.bf16 %v1563, %v1563
      %v1567 = vpack.c.bf16 %v1564, %v1564
      %v1568 = vpack.c.bf16 %v1565, %v1565
      %1572 = vrot.lane.b32.xlu0 %v1566, 126
      %v1573 = vpop.permute.xlu0 %1572
      %1574 = vrot.lane.b32.xlu0 %v1567, 126
      %v1575 = vpop.permute.xlu0 %1574
      %1576 = vrot.lane.b32.xlu0 %v1568, 126
      %v1577 = vpop.permute.xlu0 %1576
      %v1578 = vsel %vm469, %v1573, %v1575
      %v1579 = vsel %vm469, %v1575, %v1577
      %v1581 = vsel %vm359, %v280, 0
      %v1584 = vsel %vm363, %v1578, 0
      %v1587 = vsel %vm363, %v1579, 0
      %1589 = vmatpush.bf16.msra.mxu0 0
      %1590 = vmatpush.bf16.msra.mxu0 0
      %1591 = vmatpush.bf16.msra.mxu0 0
      %1592 = vmatpush.bf16.msra.mxu0 0
      %1593 = vmatpush.bf16.msra.mxu0 0
      %1594 = vmatpush.bf16.msra.mxu0 0
      %1595 = vmatpush.bf16.msra.mxu0 0
      %1596 = vmatpush.bf16.msra.mxu0 %v1584
      %1597 = vmatmul.bf16.gmra.mxu0 %v1581
      %v1598 = vpop.f32.mrf.mxu0
      %v1599 = vadd.f32 0.0, %v1598
      %v1600 = vpop.f32.mrf.mxu0
      %1601 = vdwg.mxu0
      %1602 = vmatpush.bf16.msra.mxu0 0
      %1603 = vmatpush.bf16.msra.mxu0 0
      %1604 = vmatpush.bf16.msra.mxu0 0
      %1605 = vmatpush.bf16.msra.mxu0 0
      %1606 = vmatpush.bf16.msra.mxu0 0
      %1607 = vmatpush.bf16.msra.mxu0 0
      %1608 = vmatpush.bf16.msra.mxu0 0
      %1609 = vmatpush.bf16.msra.mxu0 %v1587
      %1610 = vmatmul.bf16.gmra.mxu0 %v1581
      %v1611 = vpop.f32.mrf.mxu0
      %v1612 = vadd.f32 0.0, %v1611
      %v1613 = vpop.f32.mrf.mxu0
      %1614 = vdwg.mxu0
      %v1615 = vadd.f32 %v1561, %v1599
      %v1616 = vadd.f32 %v1562, %v1612
      %v1617 = vmul.f32 %v1465, %v524
      %v1618 = vmul.f32 %v1466, %v528
      %v1619 = vmul.f32 %v1508, %v526
      %v1620 = vpack.c.bf16 %v1617, %v1617
      %v1621 = vpack.c.bf16 %v1618, %v1618
      %v1622 = vpack.c.bf16 %v1619, %v1619
      %1626 = vrot.lane.b32.xlu0 %v1620, 112
      %v1627 = vpop.permute.xlu0 %1626
      %1628 = vrot.lane.b32.xlu0 %v1621, 112
      %v1629 = vpop.permute.xlu0 %1628
      %1630 = vrot.lane.b32.xlu0 %v1622, 112
      %v1631 = vpop.permute.xlu0 %1630
      %v1632 = vsel %vm547, %v1627, %v1629
      %v1633 = vsel %vm547, %v1629, %v1631
      %v1635 = vsel %vm359, %v282, 0
      %v1638 = vsel %vm363, %v1632, 0
      %v1641 = vsel %vm363, %v1633, 0
      %1643 = vmatpush.bf16.msra.mxu0 0
      %1644 = vmatpush.bf16.msra.mxu0 0
      %1645 = vmatpush.bf16.msra.mxu0 0
      %1646 = vmatpush.bf16.msra.mxu0 0
      %1647 = vmatpush.bf16.msra.mxu0 0
      %1648 = vmatpush.bf16.msra.mxu0 0
      %1649 = vmatpush.bf16.msra.mxu0 0
      %1650 = vmatpush.bf16.msra.mxu0 %v1638
      %1651 = vmatmul.bf16.gmra.mxu0 %v1635
      %v1652 = vpop.f32.mrf.mxu0
      %v1653 = vadd.f32 0.0, %v1652
      %v1654 = vpop.f32.mrf.mxu0
      %1655 = vdwg.mxu0
      %1656 = vmatpush.bf16.msra.mxu0 0
      %1657 = vmatpush.bf16.msra.mxu0 0
      %1658 = vmatpush.bf16.msra.mxu0 0
      %1659 = vmatpush.bf16.msra.mxu0 0
      %1660 = vmatpush.bf16.msra.mxu0 0
      %1661 = vmatpush.bf16.msra.mxu0 0
      %1662 = vmatpush.bf16.msra.mxu0 0
      %1663 = vmatpush.bf16.msra.mxu0 %v1641
      %1664 = vmatmul.bf16.gmra.mxu0 %v1635
      %v1665 = vpop.f32.mrf.mxu0
      %v1666 = vadd.f32 0.0, %v1665
      %v1667 = vpop.f32.mrf.mxu0
      %1668 = vdwg.mxu0
      %v1669 = vadd.f32 %v1615, %v1653
      %v1670 = vadd.f32 %v1616, %v1666
      %v1671 = vmul.f32 %v1465, %v602
      %v1672 = vmul.f32 %v1466, %v606
      %v1673 = vmul.f32 %v1508, %v604
      %v1674 = vpack.c.bf16 %v1671, %v1671
      %v1675 = vpack.c.bf16 %v1672, %v1672
      %v1676 = vpack.c.bf16 %v1673, %v1673
      %1680 = vrot.lane.b32.xlu0 %v1674, 111
      %v1681 = vpop.permute.xlu0 %1680
      %1682 = vrot.lane.b32.xlu0 %v1675, 111
      %v1683 = vpop.permute.xlu0 %1682
      %1684 = vrot.lane.b32.xlu0 %v1676, 111
      %v1685 = vpop.permute.xlu0 %1684
      %v1686 = vsel %vm625, %v1681, %v1683
      %v1687 = vsel %vm625, %v1683, %v1685
      %v1689 = vsel %vm359, %v284, 0
      %v1692 = vsel %vm363, %v1686, 0
      %v1695 = vsel %vm363, %v1687, 0
      %1697 = vmatpush.bf16.msra.mxu0 0
      %1698 = vmatpush.bf16.msra.mxu0 0
      %1699 = vmatpush.bf16.msra.mxu0 0
      %1700 = vmatpush.bf16.msra.mxu0 0
      %1701 = vmatpush.bf16.msra.mxu0 0
      %1702 = vmatpush.bf16.msra.mxu0 0
      %1703 = vmatpush.bf16.msra.mxu0 0
      %1704 = vmatpush.bf16.msra.mxu0 %v1692
      %1705 = vmatmul.bf16.gmra.mxu0 %v1689
      %v1706 = vpop.f32.mrf.mxu0
      %v1707 = vadd.f32 0.0, %v1706
      %v1708 = vpop.f32.mrf.mxu0
      %1709 = vdwg.mxu0
      %1710 = vmatpush.bf16.msra.mxu0 0
      %1711 = vmatpush.bf16.msra.mxu0 0
      %1712 = vmatpush.bf16.msra.mxu0 0
      %1713 = vmatpush.bf16.msra.mxu0 0
      %1714 = vmatpush.bf16.msra.mxu0 0
      %1715 = vmatpush.bf16.msra.mxu0 0
      %1716 = vmatpush.bf16.msra.mxu0 0
      %1717 = vmatpush.bf16.msra.mxu0 %v1695
      %1718 = vmatmul.bf16.gmra.mxu0 %v1689
      %v1719 = vpop.f32.mrf.mxu0
      %v1720 = vadd.f32 0.0, %v1719
      %v1721 = vpop.f32.mrf.mxu0
      %1722 = vdwg.mxu0
      %v1723 = vadd.f32 %v1669, %v1707
      %v1724 = vadd.f32 %v1670, %v1720
      %v1725 = vmul.f32 %v1465, %v680
      %v1726 = vmul.f32 %v1466, %v684
      %v1727 = vmul.f32 %v1508, %v682
      %v1728 = vpack.c.bf16 %v1725, %v1725
      %v1729 = vpack.c.bf16 %v1726, %v1726
      %v1730 = vpack.c.bf16 %v1727, %v1727
      %1734 = vrot.lane.b32.xlu0 %v1728, 110
      %v1735 = vpop.permute.xlu0 %1734
      %1736 = vrot.lane.b32.xlu0 %v1729, 110
      %v1737 = vpop.permute.xlu0 %1736
      %1738 = vrot.lane.b32.xlu0 %v1730, 110
      %v1739 = vpop.permute.xlu0 %1738
      %v1740 = vsel %vm703, %v1735, %v1737
      %v1741 = vsel %vm703, %v1737, %v1739
      %v1743 = vsel %vm359, %v286, 0
      %v1746 = vsel %vm363, %v1740, 0
      %v1749 = vsel %vm363, %v1741, 0
      %1751 = vmatpush.bf16.msra.mxu0 0
      %1752 = vmatpush.bf16.msra.mxu0 0
      %1753 = vmatpush.bf16.msra.mxu0 0
      %1754 = vmatpush.bf16.msra.mxu0 0
      %1755 = vmatpush.bf16.msra.mxu0 0
      %1756 = vmatpush.bf16.msra.mxu0 0
      %1757 = vmatpush.bf16.msra.mxu0 0
      %1758 = vmatpush.bf16.msra.mxu0 %v1746
      %1759 = vmatmul.bf16.gmra.mxu0 %v1743
      %v1760 = vpop.f32.mrf.mxu0
      %v1761 = vadd.f32 0.0, %v1760
      %v1762 = vpop.f32.mrf.mxu0
      %1763 = vdwg.mxu0
      %1764 = vmatpush.bf16.msra.mxu0 0
      %1765 = vmatpush.bf16.msra.mxu0 0
      %1766 = vmatpush.bf16.msra.mxu0 0
      %1767 = vmatpush.bf16.msra.mxu0 0
      %1768 = vmatpush.bf16.msra.mxu0 0
      %1769 = vmatpush.bf16.msra.mxu0 0
      %1770 = vmatpush.bf16.msra.mxu0 0
      %1771 = vmatpush.bf16.msra.mxu0 %v1749
      %1772 = vmatmul.bf16.gmra.mxu0 %v1743
      %v1773 = vpop.f32.mrf.mxu0
      %v1774 = vadd.f32 0.0, %v1773
      %v1775 = vpop.f32.mrf.mxu0
      %1776 = vdwg.mxu0
      %v1777 = vadd.f32 %v1723, %v1761
      %v1778 = vadd.f32 %v1724, %v1774
      %v1779 = vmul.f32 %v1465, %v758
      %v1780 = vmul.f32 %v1466, %v762
      %v1781 = vmul.f32 %v1508, %v760
      %v1782 = vpack.c.bf16 %v1779, %v1779
      %v1783 = vpack.c.bf16 %v1780, %v1780
      %v1784 = vpack.c.bf16 %v1781, %v1781
      %1788 = vrot.lane.b32.xlu0 %v1782, 96
      %v1789 = vpop.permute.xlu0 %1788
      %1790 = vrot.lane.b32.xlu0 %v1783, 96
      %v1791 = vpop.permute.xlu0 %1790
      %1792 = vrot.lane.b32.xlu0 %v1784, 96
      %v1793 = vpop.permute.xlu0 %1792
      %v1794 = vsel %vm781, %v1789, %v1791
      %v1795 = vsel %vm781, %v1791, %v1793
      %v1797 = vsel %vm359, %v288, 0
      %v1800 = vsel %vm363, %v1794, 0
      %v1803 = vsel %vm363, %v1795, 0
      %1805 = vmatpush.bf16.msra.mxu0 0
      %1806 = vmatpush.bf16.msra.mxu0 0
      %1807 = vmatpush.bf16.msra.mxu0 0
      %1808 = vmatpush.bf16.msra.mxu0 0
      %1809 = vmatpush.bf16.msra.mxu0 0
      %1810 = vmatpush.bf16.msra.mxu0 0
      %1811 = vmatpush.bf16.msra.mxu0 0
      %1812 = vmatpush.bf16.msra.mxu0 %v1800
      %1813 = vmatmul.bf16.gmra.mxu0 %v1797
      %v1814 = vpop.f32.mrf.mxu0
      %v1815 = vadd.f32 0.0, %v1814
      %v1816 = vpop.f32.mrf.mxu0
      %1817 = vdwg.mxu0
      %1818 = vmatpush.bf16.msra.mxu0 0
      %1819 = vmatpush.bf16.msra.mxu0 0
      %1820 = vmatpush.bf16.msra.mxu0 0
      %1821 = vmatpush.bf16.msra.mxu0 0
      %1822 = vmatpush.bf16.msra.mxu0 0
      %1823 = vmatpush.bf16.msra.mxu0 0
      %1824 = vmatpush.bf16.msra.mxu0 0
      %1825 = vmatpush.bf16.msra.mxu0 %v1803
      %1826 = vmatmul.bf16.gmra.mxu0 %v1797
      %v1827 = vpop.f32.mrf.mxu0
      %v1828 = vadd.f32 0.0, %v1827
      %v1829 = vpop.f32.mrf.mxu0
      %1830 = vdwg.mxu0
      %v1831 = vadd.f32 %v1777, %v1815
      %v1832 = vadd.f32 %v1778, %v1828
      %v1833 = vmul.f32 %v1465, %v836
      %v1834 = vmul.f32 %v1466, %v840
      %v1835 = vmul.f32 %v1508, %v838
      %v1836 = vpack.c.bf16 %v1833, %v1833
      %v1837 = vpack.c.bf16 %v1834, %v1834
      %v1838 = vpack.c.bf16 %v1835, %v1835
      %1842 = vrot.lane.b32.xlu0 %v1836, 95
      %v1843 = vpop.permute.xlu0 %1842
      %1844 = vrot.lane.b32.xlu0 %v1837, 95
      %v1845 = vpop.permute.xlu0 %1844
      %1846 = vrot.lane.b32.xlu0 %v1838, 95
      %v1847 = vpop.permute.xlu0 %1846
      %v1848 = vsel %vm859, %v1843, %v1845
      %v1849 = vsel %vm859, %v1845, %v1847
      %v1851 = vsel %vm359, %v290, 0
      %v1854 = vsel %vm363, %v1848, 0
      %v1857 = vsel %vm363, %v1849, 0
      %1859 = vmatpush.bf16.msra.mxu0 0
      %1860 = vmatpush.bf16.msra.mxu0 0
      %1861 = vmatpush.bf16.msra.mxu0 0
      %1862 = vmatpush.bf16.msra.mxu0 0
      %1863 = vmatpush.bf16.msra.mxu0 0
      %1864 = vmatpush.bf16.msra.mxu0 0
      %1865 = vmatpush.bf16.msra.mxu0 0
      %1866 = vmatpush.bf16.msra.mxu0 %v1854
      %1867 = vmatmul.bf16.gmra.mxu0 %v1851
      %v1868 = vpop.f32.mrf.mxu0
      %v1869 = vadd.f32 0.0, %v1868
      %v1870 = vpop.f32.mrf.mxu0
      %1871 = vdwg.mxu0
      %1872 = vmatpush.bf16.msra.mxu0 0
      %1873 = vmatpush.bf16.msra.mxu0 0
      %1874 = vmatpush.bf16.msra.mxu0 0
      %1875 = vmatpush.bf16.msra.mxu0 0
      %1876 = vmatpush.bf16.msra.mxu0 0
      %1877 = vmatpush.bf16.msra.mxu0 0
      %1878 = vmatpush.bf16.msra.mxu0 0
      %1879 = vmatpush.bf16.msra.mxu0 %v1857
      %1880 = vmatmul.bf16.gmra.mxu0 %v1851
      %v1881 = vpop.f32.mrf.mxu0
      %v1882 = vadd.f32 0.0, %v1881
      %v1883 = vpop.f32.mrf.mxu0
      %1884 = vdwg.mxu0
      %v1885 = vadd.f32 %v1831, %v1869
      %v1886 = vadd.f32 %v1832, %v1882
      %v1887 = vmul.f32 %v1465, %v914
      %v1888 = vmul.f32 %v1466, %v918
      %v1889 = vmul.f32 %v1508, %v916
      %v1890 = vpack.c.bf16 %v1887, %v1887
      %v1891 = vpack.c.bf16 %v1888, %v1888
      %v1892 = vpack.c.bf16 %v1889, %v1889
      %1896 = vrot.lane.b32.xlu0 %v1890, 94
      %v1897 = vpop.permute.xlu0 %1896
      %1898 = vrot.lane.b32.xlu0 %v1891, 94
      %v1899 = vpop.permute.xlu0 %1898
      %1900 = vrot.lane.b32.xlu0 %v1892, 94
      %v1901 = vpop.permute.xlu0 %1900
      %v1902 = vsel %vm937, %v1897, %v1899
      %v1903 = vsel %vm937, %v1899, %v1901
      %v1905 = vsel %vm359, %v292, 0
      %v1908 = vsel %vm363, %v1902, 0
      %v1911 = vsel %vm363, %v1903, 0
      %1913 = vmatpush.bf16.msra.mxu0 0
      %1914 = vmatpush.bf16.msra.mxu0 0
      %1915 = vmatpush.bf16.msra.mxu0 0
      %1916 = vmatpush.bf16.msra.mxu0 0
      %1917 = vmatpush.bf16.msra.mxu0 0
      %1918 = vmatpush.bf16.msra.mxu0 0
      %1919 = vmatpush.bf16.msra.mxu0 0
      %1920 = vmatpush.bf16.msra.mxu0 %v1908
      %1921 = vmatmul.bf16.gmra.mxu0 %v1905
      %v1922 = vpop.f32.mrf.mxu0
      %v1923 = vadd.f32 0.0, %v1922
      %v1924 = vpop.f32.mrf.mxu0
      %1925 = vdwg.mxu0
      %1926 = vmatpush.bf16.msra.mxu0 0
      %1927 = vmatpush.bf16.msra.mxu0 0
      %1928 = vmatpush.bf16.msra.mxu0 0
      %1929 = vmatpush.bf16.msra.mxu0 0
      %1930 = vmatpush.bf16.msra.mxu0 0
      %1931 = vmatpush.bf16.msra.mxu0 0
      %1932 = vmatpush.bf16.msra.mxu0 0
      %1933 = vmatpush.bf16.msra.mxu0 %v1911
      %1934 = vmatmul.bf16.gmra.mxu0 %v1905
      %v1935 = vpop.f32.mrf.mxu0
      %v1936 = vadd.f32 0.0, %v1935
      %v1937 = vpop.f32.mrf.mxu0
      %1938 = vdwg.mxu0
      %v1939 = vadd.f32 %v1885, %v1923
      %v1940 = vadd.f32 %v1886, %v1936
      %1942 = vset.pattern.permute.xlu0 0
      %1943 = vperm.xlu0 %1942, %v222
      %v1944 = vpop.permute.xlu0 %1943
      %v1946 = vadd.f32 %v1939, %v1944
      %v1947 = vadd.f32 %v1940, %v1944
      %v1948 = vmax.f32 %v1946, 0.0
      %v1949 = vmax.f32 %v1947, 0.0
      %1950 = vst [vmem:[%s219] sm:$0xff] %v1948
      %1951 = vst [vmem:[%s219 + $0x8] sm:$0xff] %v1949
      %v1952 = vld [vmem:[%s980] sm:$0xff]
      %v1953 = vld [vmem:[%s980 + $0x8] sm:$0xf]
      %v1954 = vunpack.c.l.bf16 %v1952
      %v1955 = vunpack.c.h.bf16 %v1952
      %v1956 = vmul.f32 %v1954, %v311
      %v1957 = vmul.f32 %v1955, %v312
      %v1958 = vpack.c.bf16 %v1956, %v1956
      %v1959 = vpack.c.bf16 %v1957, %v1957
      %v1960 = vunpack.c.l.bf16 %v1953
      %v1961 = vmul.f32 %v1954, %v333
      %v1962 = vmul.f32 %v1955, %v337
      %v1963 = vmul.f32 %v1960, %v335
      %v1964 = vpack.c.bf16 %v1961, %v1961
      %v1965 = vpack.c.bf16 %v1962, %v1962
      %v1966 = vpack.c.bf16 %v1963, %v1963
      %1970 = vrot.lane.b32.xlu0 %v1964, 127
      %v1971 = vpop.permute.xlu0 %1970
      %1972 = vrot.lane.b32.xlu0 %v1965, 127
      %v1973 = vpop.permute.xlu0 %1972
      %1974 = vrot.lane.b32.xlu0 %v1966, 127
      %v1975 = vpop.permute.xlu0 %1974
      %v1976 = vsel %vm356, %v1971, %v1973
      %v1977 = vsel %vm356, %v1973, %v1975
      %v1979 = vsel %vm363, %v1976, 0
      %v1982 = vsel %vm363, %v1977, 0
      %1984 = vmatpush.bf16.msra.mxu0 0
      %1985 = vmatpush.bf16.msra.mxu0 0
      %1986 = vmatpush.bf16.msra.mxu0 0
      %1987 = vmatpush.bf16.msra.mxu0 0
      %1988 = vmatpush.bf16.msra.mxu0 0
      %1989 = vmatpush.bf16.msra.mxu0 0
      %1990 = vmatpush.bf16.msra.mxu0 0
      %1991 = vmatpush.bf16.msra.mxu0 %v1979
      %1992 = vmatmul.bf16.gmra.mxu0 %v361
      %v1993 = vpop.f32.mrf.mxu0
      %v1994 = vadd.f32 0.0, %v1993
      %v1995 = vpop.f32.mrf.mxu0
      %1996 = vdwg.mxu0
      %1997 = vmatpush.bf16.msra.mxu0 0
      %1998 = vmatpush.bf16.msra.mxu0 0
      %1999 = vmatpush.bf16.msra.mxu0 0
      %2000 = vmatpush.bf16.msra.mxu0 0
      %2001 = vmatpush.bf16.msra.mxu0 0
      %2002 = vmatpush.bf16.msra.mxu0 0
      %2003 = vmatpush.bf16.msra.mxu0 0
      %2004 = vmatpush.bf16.msra.mxu0 %v1982
      %2005 = vmatmul.bf16.gmra.mxu0 %v361
      %v2006 = vpop.f32.mrf.mxu0
      %v2007 = vadd.f32 0.0, %v2006
      %v2008 = vpop.f32.mrf.mxu0
      %2009 = vdwg.mxu0
      %v2011 = vsel %vm363, %v1958, 0
      %v2014 = vsel %vm363, %v1959, 0
      %2016 = vmatpush.bf16.msra.mxu0 0
      %2017 = vmatpush.bf16.msra.mxu0 0
      %2018 = vmatpush.bf16.msra.mxu0 0
      %2019 = vmatpush.bf16.msra.mxu0 0
      %2020 = vmatpush.bf16.msra.mxu0 0
      %2021 = vmatpush.bf16.msra.mxu0 0
      %2022 = vmatpush.bf16.msra.mxu0 0
      %2023 = vmatpush.bf16.msra.mxu0 %v2011
      %2024 = vmatmul.bf16.gmra.mxu0 %v397
      %v2025 = vpop.f32.mrf.mxu0
      %v2026 = vadd.f32 %v1994, %v2025
      %v2027 = vpop.f32.mrf.mxu0
      %2028 = vdwg.mxu0
      %2029 = vmatpush.bf16.msra.mxu0 0
      %2030 = vmatpush.bf16.msra.mxu0 0
      %2031 = vmatpush.bf16.msra.mxu0 0
      %2032 = vmatpush.bf16.msra.mxu0 0
      %2033 = vmatpush.bf16.msra.mxu0 0
      %2034 = vmatpush.bf16.msra.mxu0 0
      %2035 = vmatpush.bf16.msra.mxu0 0
      %2036 = vmatpush.bf16.msra.mxu0 %v2014
      %2037 = vmatmul.bf16.gmra.mxu0 %v397
      %v2038 = vpop.f32.mrf.mxu0
      %v2039 = vadd.f32 %v2007, %v2038
      %v2040 = vpop.f32.mrf.mxu0
      %2041 = vdwg.mxu0
      %v2042 = vmul.f32 %v1954, %v446
      %v2043 = vmul.f32 %v1955, %v450
      %v2044 = vmul.f32 %v1960, %v448
      %v2045 = vpack.c.bf16 %v2042, %v2042
      %v2046 = vpack.c.bf16 %v2043, %v2043
      %v2047 = vpack.c.bf16 %v2044, %v2044
      %2051 = vrot.lane.b32.xlu0 %v2045, 126
      %v2052 = vpop.permute.xlu0 %2051
      %2053 = vrot.lane.b32.xlu0 %v2046, 126
      %v2054 = vpop.permute.xlu0 %2053
      %2055 = vrot.lane.b32.xlu0 %v2047, 126
      %v2056 = vpop.permute.xlu0 %2055
      %v2057 = vsel %vm469, %v2052, %v2054
      %v2058 = vsel %vm469, %v2054, %v2056
      %v2060 = vsel %vm363, %v2057, 0
      %v2063 = vsel %vm363, %v2058, 0
      %2065 = vmatpush.bf16.msra.mxu0 0
      %2066 = vmatpush.bf16.msra.mxu0 0
      %2067 = vmatpush.bf16.msra.mxu0 0
      %2068 = vmatpush.bf16.msra.mxu0 0
      %2069 = vmatpush.bf16.msra.mxu0 0
      %2070 = vmatpush.bf16.msra.mxu0 0
      %2071 = vmatpush.bf16.msra.mxu0 0
      %2072 = vmatpush.bf16.msra.mxu0 %v2060
      %2073 = vmatmul.bf16.gmra.mxu0 %v473
      %v2074 = vpop.f32.mrf.mxu0
      %v2075 = vadd.f32 0.0, %v2074
      %v2076 = vpop.f32.mrf.mxu0
      %2077 = vdwg.mxu0
      %2078 = vmatpush.bf16.msra.mxu0 0
      %2079 = vmatpush.bf16.msra.mxu0 0
      %2080 = vmatpush.bf16.msra.mxu0 0
      %2081 = vmatpush.bf16.msra.mxu0 0
      %2082 = vmatpush.bf16.msra.mxu0 0
      %2083 = vmatpush.bf16.msra.mxu0 0
      %2084 = vmatpush.bf16.msra.mxu0 0
      %2085 = vmatpush.bf16.msra.mxu0 %v2063
      %2086 = vmatmul.bf16.gmra.mxu0 %v473
      %v2087 = vpop.f32.mrf.mxu0
      %v2088 = vadd.f32 0.0, %v2087
      %v2089 = vpop.f32.mrf.mxu0
      %2090 = vdwg.mxu0
      %v2091 = vadd.f32 %v2026, %v2075
      %v2092 = vadd.f32 %v2039, %v2088
      %v2093 = vmul.f32 %v1954, %v524
      %v2094 = vmul.f32 %v1955, %v528
      %v2095 = vmul.f32 %v1960, %v526
      %v2096 = vpack.c.bf16 %v2093, %v2093
      %v2097 = vpack.c.bf16 %v2094, %v2094
      %v2098 = vpack.c.bf16 %v2095, %v2095
      %2102 = vrot.lane.b32.xlu0 %v2096, 112
      %v2103 = vpop.permute.xlu0 %2102
      %2104 = vrot.lane.b32.xlu0 %v2097, 112
      %v2105 = vpop.permute.xlu0 %2104
      %2106 = vrot.lane.b32.xlu0 %v2098, 112
      %v2107 = vpop.permute.xlu0 %2106
      %v2108 = vsel %vm547, %v2103, %v2105
      %v2109 = vsel %vm547, %v2105, %v2107
      %v2111 = vsel %vm363, %v2108, 0
      %v2114 = vsel %vm363, %v2109, 0
      %2116 = vmatpush.bf16.msra.mxu0 0
      %2117 = vmatpush.bf16.msra.mxu0 0
      %2118 = vmatpush.bf16.msra.mxu0 0
      %2119 = vmatpush.bf16.msra.mxu0 0
      %2120 = vmatpush.bf16.msra.mxu0 0
      %2121 = vmatpush.bf16.msra.mxu0 0
      %2122 = vmatpush.bf16.msra.mxu0 0
      %2123 = vmatpush.bf16.msra.mxu0 %v2111
      %2124 = vmatmul.bf16.gmra.mxu0 %v551
      %v2125 = vpop.f32.mrf.mxu0
      %v2126 = vadd.f32 0.0, %v2125
      %v2127 = vpop.f32.mrf.mxu0
      %2128 = vdwg.mxu0
      %2129 = vmatpush.bf16.msra.mxu0 0
      %2130 = vmatpush.bf16.msra.mxu0 0
      %2131 = vmatpush.bf16.msra.mxu0 0
      %2132 = vmatpush.bf16.msra.mxu0 0
      %2133 = vmatpush.bf16.msra.mxu0 0
      %2134 = vmatpush.bf16.msra.mxu0 0
      %2135 = vmatpush.bf16.msra.mxu0 0
      %2136 = vmatpush.bf16.msra.mxu0 %v2114
      %2137 = vmatmul.bf16.gmra.mxu0 %v551
      %v2138 = vpop.f32.mrf.mxu0
      %v2139 = vadd.f32 0.0, %v2138
      %v2140 = vpop.f32.mrf.mxu0
      %2141 = vdwg.mxu0
      %v2142 = vadd.f32 %v2091, %v2126
      %v2143 = vadd.f32 %v2092, %v2139
      %v2144 = vmul.f32 %v1954, %v602
      %v2145 = vmul.f32 %v1955, %v606
      %v2146 = vmul.f32 %v1960, %v604
      %v2147 = vpack.c.bf16 %v2144, %v2144
      %v2148 = vpack.c.bf16 %v2145, %v2145
      %v2149 = vpack.c.bf16 %v2146, %v2146
      %2153 = vrot.lane.b32.xlu0 %v2147, 111
      %v2154 = vpop.permute.xlu0 %2153
      %2155 = vrot.lane.b32.xlu0 %v2148, 111
      %v2156 = vpop.permute.xlu0 %2155
      %2157 = vrot.lane.b32.xlu0 %v2149, 111
      %v2158 = vpop.permute.xlu0 %2157
      %v2159 = vsel %vm625, %v2154, %v2156
      %v2160 = vsel %vm625, %v2156, %v2158
      %v2162 = vsel %vm363, %v2159, 0
      %v2165 = vsel %vm363, %v2160, 0
      %2167 = vmatpush.bf16.msra.mxu0 0
      %2168 = vmatpush.bf16.msra.mxu0 0
      %2169 = vmatpush.bf16.msra.mxu0 0
      %2170 = vmatpush.bf16.msra.mxu0 0
      %2171 = vmatpush.bf16.msra.mxu0 0
      %2172 = vmatpush.bf16.msra.mxu0 0
      %2173 = vmatpush.bf16.msra.mxu0 0
      %2174 = vmatpush.bf16.msra.mxu0 %v2162
      %2175 = vmatmul.bf16.gmra.mxu0 %v629
      %v2176 = vpop.f32.mrf.mxu0
      %v2177 = vadd.f32 0.0, %v2176
      %v2178 = vpop.f32.mrf.mxu0
      %2179 = vdwg.mxu0
      %2180 = vmatpush.bf16.msra.mxu0 0
      %2181 = vmatpush.bf16.msra.mxu0 0
      %2182 = vmatpush.bf16.msra.mxu0 0
      %2183 = vmatpush.bf16.msra.mxu0 0
      %2184 = vmatpush.bf16.msra.mxu0 0
      %2185 = vmatpush.bf16.msra.mxu0 0
      %2186 = vmatpush.bf16.msra.mxu0 0
      %2187 = vmatpush.bf16.msra.mxu0 %v2165
      %2188 = vmatmul.bf16.gmra.mxu0 %v629
      %v2189 = vpop.f32.mrf.mxu0
      %v2190 = vadd.f32 0.0, %v2189
      %v2191 = vpop.f32.mrf.mxu0
      %2192 = vdwg.mxu0
      %v2193 = vadd.f32 %v2142, %v2177
      %v2194 = vadd.f32 %v2143, %v2190
      %v2195 = vmul.f32 %v1954, %v680
      %v2196 = vmul.f32 %v1955, %v684
      %v2197 = vmul.f32 %v1960, %v682
      %v2198 = vpack.c.bf16 %v2195, %v2195
      %v2199 = vpack.c.bf16 %v2196, %v2196
      %v2200 = vpack.c.bf16 %v2197, %v2197
      %2204 = vrot.lane.b32.xlu0 %v2198, 110
      %v2205 = vpop.permute.xlu0 %2204
      %2206 = vrot.lane.b32.xlu0 %v2199, 110
      %v2207 = vpop.permute.xlu0 %2206
      %2208 = vrot.lane.b32.xlu0 %v2200, 110
      %v2209 = vpop.permute.xlu0 %2208
      %v2210 = vsel %vm703, %v2205, %v2207
      %v2211 = vsel %vm703, %v2207, %v2209
      %v2213 = vsel %vm363, %v2210, 0
      %v2216 = vsel %vm363, %v2211, 0
      %2218 = vmatpush.bf16.msra.mxu0 0
      %2219 = vmatpush.bf16.msra.mxu0 0
      %2220 = vmatpush.bf16.msra.mxu0 0
      %2221 = vmatpush.bf16.msra.mxu0 0
      %2222 = vmatpush.bf16.msra.mxu0 0
      %2223 = vmatpush.bf16.msra.mxu0 0
      %2224 = vmatpush.bf16.msra.mxu0 0
      %2225 = vmatpush.bf16.msra.mxu0 %v2213
      %2226 = vmatmul.bf16.gmra.mxu0 %v707
      %v2227 = vpop.f32.mrf.mxu0
      %v2228 = vadd.f32 0.0, %v2227
      %v2229 = vpop.f32.mrf.mxu0
      %2230 = vdwg.mxu0
      %2231 = vmatpush.bf16.msra.mxu0 0
      %2232 = vmatpush.bf16.msra.mxu0 0
      %2233 = vmatpush.bf16.msra.mxu0 0
      %2234 = vmatpush.bf16.msra.mxu0 0
      %2235 = vmatpush.bf16.msra.mxu0 0
      %2236 = vmatpush.bf16.msra.mxu0 0
      %2237 = vmatpush.bf16.msra.mxu0 0
      %2238 = vmatpush.bf16.msra.mxu0 %v2216
      %2239 = vmatmul.bf16.gmra.mxu0 %v707
      %v2240 = vpop.f32.mrf.mxu0
      %v2241 = vadd.f32 0.0, %v2240
      %v2242 = vpop.f32.mrf.mxu0
      %2243 = vdwg.mxu0
      %v2244 = vadd.f32 %v2193, %v2228
      %v2245 = vadd.f32 %v2194, %v2241
      %v2246 = vmul.f32 %v1954, %v758
      %v2247 = vmul.f32 %v1955, %v762
      %v2248 = vmul.f32 %v1960, %v760
      %v2249 = vpack.c.bf16 %v2246, %v2246
      %v2250 = vpack.c.bf16 %v2247, %v2247
      %v2251 = vpack.c.bf16 %v2248, %v2248
      %2255 = vrot.lane.b32.xlu0 %v2249, 96
      %v2256 = vpop.permute.xlu0 %2255
      %2257 = vrot.lane.b32.xlu0 %v2250, 96
      %v2258 = vpop.permute.xlu0 %2257
      %2259 = vrot.lane.b32.xlu0 %v2251, 96
      %v2260 = vpop.permute.xlu0 %2259
      %v2261 = vsel %vm781, %v2256, %v2258
      %v2262 = vsel %vm781, %v2258, %v2260
      %v2264 = vsel %vm363, %v2261, 0
      %v2267 = vsel %vm363, %v2262, 0
      %2269 = vmatpush.bf16.msra.mxu0 0
      %2270 = vmatpush.bf16.msra.mxu0 0
      %2271 = vmatpush.bf16.msra.mxu0 0
      %2272 = vmatpush.bf16.msra.mxu0 0
      %2273 = vmatpush.bf16.msra.mxu0 0
      %2274 = vmatpush.bf16.msra.mxu0 0
      %2275 = vmatpush.bf16.msra.mxu0 0
      %2276 = vmatpush.bf16.msra.mxu0 %v2264
      %2277 = vmatmul.bf16.gmra.mxu0 %v785
      %v2278 = vpop.f32.mrf.mxu0
      %v2279 = vadd.f32 0.0, %v2278
      %v2280 = vpop.f32.mrf.mxu0
      %2281 = vdwg.mxu0
      %2282 = vmatpush.bf16.msra.mxu0 0
      %2283 = vmatpush.bf16.msra.mxu0 0
      %2284 = vmatpush.bf16.msra.mxu0 0
      %2285 = vmatpush.bf16.msra.mxu0 0
      %2286 = vmatpush.bf16.msra.mxu0 0
      %2287 = vmatpush.bf16.msra.mxu0 0
      %2288 = vmatpush.bf16.msra.mxu0 0
      %2289 = vmatpush.bf16.msra.mxu0 %v2267
      %2290 = vmatmul.bf16.gmra.mxu0 %v785
      %v2291 = vpop.f32.mrf.mxu0
      %v2292 = vadd.f32 0.0, %v2291
      %v2293 = vpop.f32.mrf.mxu0
      %2294 = vdwg.mxu0
      %v2295 = vadd.f32 %v2244, %v2279
      %v2296 = vadd.f32 %v2245, %v2292
      %v2297 = vmul.f32 %v1954, %v836
      %v2298 = vmul.f32 %v1955, %v840
      %v2299 = vmul.f32 %v1960, %v838
      %v2300 = vpack.c.bf16 %v2297, %v2297
      %v2301 = vpack.c.bf16 %v2298, %v2298
      %v2302 = vpack.c.bf16 %v2299, %v2299
      %2306 = vrot.lane.b32.xlu0 %v2300, 95
      %v2307 = vpop.permute.xlu0 %2306
      %2308 = vrot.lane.b32.xlu0 %v2301, 95
      %v2309 = vpop.permute.xlu0 %2308
      %2310 = vrot.lane.b32.xlu0 %v2302, 95
      %v2311 = vpop.permute.xlu0 %2310
      %v2312 = vsel %vm859, %v2307, %v2309
      %v2313 = vsel %vm859, %v2309, %v2311
      %v2315 = vsel %vm363, %v2312, 0
      %v2318 = vsel %vm363, %v2313, 0
      %2320 = vmatpush.bf16.msra.mxu0 0
      %2321 = vmatpush.bf16.msra.mxu0 0
      %2322 = vmatpush.bf16.msra.mxu0 0
      %2323 = vmatpush.bf16.msra.mxu0 0
      %2324 = vmatpush.bf16.msra.mxu0 0
      %2325 = vmatpush.bf16.msra.mxu0 0
      %2326 = vmatpush.bf16.msra.mxu0 0
      %2327 = vmatpush.bf16.msra.mxu0 %v2315
      %2328 = vmatmul.bf16.gmra.mxu0 %v863
      %v2329 = vpop.f32.mrf.mxu0
      %v2330 = vadd.f32 0.0, %v2329
      %v2331 = vpop.f32.mrf.mxu0
      %2332 = vdwg.mxu0
      %2333 = vmatpush.bf16.msra.mxu0 0
      %2334 = vmatpush.bf16.msra.mxu0 0
      %2335 = vmatpush.bf16.msra.mxu0 0
      %2336 = vmatpush.bf16.msra.mxu0 0
      %2337 = vmatpush.bf16.msra.mxu0 0
      %2338 = vmatpush.bf16.msra.mxu0 0
      %2339 = vmatpush.bf16.msra.mxu0 0
      %2340 = vmatpush.bf16.msra.mxu0 %v2318
      %2341 = vmatmul.bf16.gmra.mxu0 %v863
      %v2342 = vpop.f32.mrf.mxu0
      %v2343 = vadd.f32 0.0, %v2342
      %v2344 = vpop.f32.mrf.mxu0
      %2345 = vdwg.mxu0
      %v2346 = vadd.f32 %v2295, %v2330
      %v2347 = vadd.f32 %v2296, %v2343
      %v2348 = vmul.f32 %v1954, %v914
      %v2349 = vmul.f32 %v1955, %v918
      %v2350 = vmul.f32 %v1960, %v916
      %v2351 = vpack.c.bf16 %v2348, %v2348
      %v2352 = vpack.c.bf16 %v2349, %v2349
      %v2353 = vpack.c.bf16 %v2350, %v2350
      %2357 = vrot.lane.b32.xlu0 %v2351, 94
      %v2358 = vpop.permute.xlu0 %2357
      %2359 = vrot.lane.b32.xlu0 %v2352, 94
      %v2360 = vpop.permute.xlu0 %2359
      %2361 = vrot.lane.b32.xlu0 %v2353, 94
      %v2362 = vpop.permute.xlu0 %2361
      %v2363 = vsel %vm937, %v2358, %v2360
      %v2364 = vsel %vm937, %v2360, %v2362
      %v2366 = vsel %vm363, %v2363, 0
      %v2369 = vsel %vm363, %v2364, 0
      %2371 = vmatpush.bf16.msra.mxu0 0
      %2372 = vmatpush.bf16.msra.mxu0 0
      %2373 = vmatpush.bf16.msra.mxu0 0
      %2374 = vmatpush.bf16.msra.mxu0 0
      %2375 = vmatpush.bf16.msra.mxu0 0
      %2376 = vmatpush.bf16.msra.mxu0 0
      %2377 = vmatpush.bf16.msra.mxu0 0
      %2378 = vmatpush.bf16.msra.mxu0 %v2366
      %2379 = vmatmul.bf16.gmra.mxu0 %v941
      %v2380 = vpop.f32.mrf.mxu0
      %v2381 = vadd.f32 0.0, %v2380
      %v2382 = vpop.f32.mrf.mxu0
      %2383 = vdwg.mxu0
      %2384 = vmatpush.bf16.msra.mxu0 0
      %2385 = vmatpush.bf16.msra.mxu0 0
      %2386 = vmatpush.bf16.msra.mxu0 0
      %2387 = vmatpush.bf16.msra.mxu0 0
      %2388 = vmatpush.bf16.msra.mxu0 0
      %2389 = vmatpush.bf16.msra.mxu0 0
      %2390 = vmatpush.bf16.msra.mxu0 0
      %2391 = vmatpush.bf16.msra.mxu0 %v2369
      %2392 = vmatmul.bf16.gmra.mxu0 %v941
      %v2393 = vpop.f32.mrf.mxu0
      %v2394 = vadd.f32 0.0, %v2393
      %v2395 = vpop.f32.mrf.mxu0
      %2396 = vdwg.mxu0
      %v2397 = vadd.f32 %v2346, %v2381
      %v2398 = vadd.f32 %v2347, %v2394
      %v2399 = vld [vmem:[%s1462] sm:$0xff]
      %v2400 = vld [vmem:[%s1462 + $0x8] sm:$0xf]
      %v2401 = vunpack.c.l.bf16 %v2399
      %v2402 = vunpack.c.h.bf16 %v2399
      %v2403 = vmul.f32 %v2401, %v311
      %v2404 = vmul.f32 %v2402, %v312
      %v2405 = vpack.c.bf16 %v2403, %v2403
      %v2406 = vpack.c.bf16 %v2404, %v2404
      %v2408 = vsel %vm363, %v2405, 0
      %v2411 = vsel %vm363, %v2406, 0
      %2413 = vmatpush.bf16.msra.mxu0 0
      %2414 = vmatpush.bf16.msra.mxu0 0
      %2415 = vmatpush.bf16.msra.mxu0 0
      %2416 = vmatpush.bf16.msra.mxu0 0
      %2417 = vmatpush.bf16.msra.mxu0 0
      %2418 = vmatpush.bf16.msra.mxu0 0
      %2419 = vmatpush.bf16.msra.mxu0 0
      %2420 = vmatpush.bf16.msra.mxu0 %v2408
      %2421 = vmatmul.bf16.gmra.mxu0 %v990
      %v2422 = vpop.f32.mrf.mxu0
      %v2423 = vadd.f32 0.0, %v2422
      %v2424 = vpop.f32.mrf.mxu0
      %2425 = vdwg.mxu0
      %2426 = vmatpush.bf16.msra.mxu0 0
      %2427 = vmatpush.bf16.msra.mxu0 0
      %2428 = vmatpush.bf16.msra.mxu0 0
      %2429 = vmatpush.bf16.msra.mxu0 0
      %2430 = vmatpush.bf16.msra.mxu0 0
      %2431 = vmatpush.bf16.msra.mxu0 0
      %2432 = vmatpush.bf16.msra.mxu0 0
      %2433 = vmatpush.bf16.msra.mxu0 %v2411
      %2434 = vmatmul.bf16.gmra.mxu0 %v990
      %v2435 = vpop.f32.mrf.mxu0
      %v2436 = vadd.f32 0.0, %v2435
      %v2437 = vpop.f32.mrf.mxu0
      %2438 = vdwg.mxu0
      %v2439 = vadd.f32 %v2397, %v2423
      %v2440 = vadd.f32 %v2398, %v2436
      %v2441 = vunpack.c.l.bf16 %v2400
      %v2442 = vmul.f32 %v2401, %v333
      %v2443 = vmul.f32 %v2402, %v337
      %v2444 = vmul.f32 %v2441, %v335
      %v2445 = vpack.c.bf16 %v2442, %v2442
      %v2446 = vpack.c.bf16 %v2443, %v2443
      %v2447 = vpack.c.bf16 %v2444, %v2444
      %2451 = vrot.lane.b32.xlu0 %v2445, 127
      %v2452 = vpop.permute.xlu0 %2451
      %2453 = vrot.lane.b32.xlu0 %v2446, 127
      %v2454 = vpop.permute.xlu0 %2453
      %2455 = vrot.lane.b32.xlu0 %v2447, 127
      %v2456 = vpop.permute.xlu0 %2455
      %v2457 = vsel %vm356, %v2452, %v2454
      %v2458 = vsel %vm356, %v2454, %v2456
      %v2460 = vsel %vm363, %v2457, 0
      %v2463 = vsel %vm363, %v2458, 0
      %2465 = vmatpush.bf16.msra.mxu0 0
      %2466 = vmatpush.bf16.msra.mxu0 0
      %2467 = vmatpush.bf16.msra.mxu0 0
      %2468 = vmatpush.bf16.msra.mxu0 0
      %2469 = vmatpush.bf16.msra.mxu0 0
      %2470 = vmatpush.bf16.msra.mxu0 0
      %2471 = vmatpush.bf16.msra.mxu0 0
      %2472 = vmatpush.bf16.msra.mxu0 %v2460
      %2473 = vmatmul.bf16.gmra.mxu0 %v1045
      %v2474 = vpop.f32.mrf.mxu0
      %v2475 = vadd.f32 0.0, %v2474
      %v2476 = vpop.f32.mrf.mxu0
      %2477 = vdwg.mxu0
      %2478 = vmatpush.bf16.msra.mxu0 0
      %2479 = vmatpush.bf16.msra.mxu0 0
      %2480 = vmatpush.bf16.msra.mxu0 0
      %2481 = vmatpush.bf16.msra.mxu0 0
      %2482 = vmatpush.bf16.msra.mxu0 0
      %2483 = vmatpush.bf16.msra.mxu0 0
      %2484 = vmatpush.bf16.msra.mxu0 0
      %2485 = vmatpush.bf16.msra.mxu0 %v2463
      %2486 = vmatmul.bf16.gmra.mxu0 %v1045
      %v2487 = vpop.f32.mrf.mxu0
      %v2488 = vadd.f32 0.0, %v2487
      %v2489 = vpop.f32.mrf.mxu0
      %2490 = vdwg.mxu0
      %v2491 = vadd.f32 %v2439, %v2475
      %v2492 = vadd.f32 %v2440, %v2488
      %v2493 = vmul.f32 %v2401, %v446
      %v2494 = vmul.f32 %v2402, %v450
      %v2495 = vmul.f32 %v2441, %v448
      %v2496 = vpack.c.bf16 %v2493, %v2493
      %v2497 = vpack.c.bf16 %v2494, %v2494
      %v2498 = vpack.c.bf16 %v2495, %v2495
      %2502 = vrot.lane.b32.xlu0 %v2496, 126
      %v2503 = vpop.permute.xlu0 %2502
      %2504 = vrot.lane.b32.xlu0 %v2497, 126
      %v2505 = vpop.permute.xlu0 %2504
      %2506 = vrot.lane.b32.xlu0 %v2498, 126
      %v2507 = vpop.permute.xlu0 %2506
      %v2508 = vsel %vm469, %v2503, %v2505
      %v2509 = vsel %vm469, %v2505, %v2507
      %v2511 = vsel %vm363, %v2508, 0
      %v2514 = vsel %vm363, %v2509, 0
      %2516 = vmatpush.bf16.msra.mxu0 0
      %2517 = vmatpush.bf16.msra.mxu0 0
      %2518 = vmatpush.bf16.msra.mxu0 0
      %2519 = vmatpush.bf16.msra.mxu0 0
      %2520 = vmatpush.bf16.msra.mxu0 0
      %2521 = vmatpush.bf16.msra.mxu0 0
      %2522 = vmatpush.bf16.msra.mxu0 0
      %2523 = vmatpush.bf16.msra.mxu0 %v2511
      %2524 = vmatmul.bf16.gmra.mxu0 %v1099
      %v2525 = vpop.f32.mrf.mxu0
      %v2526 = vadd.f32 0.0, %v2525
      %v2527 = vpop.f32.mrf.mxu0
      %2528 = vdwg.mxu0
      %2529 = vmatpush.bf16.msra.mxu0 0
      %2530 = vmatpush.bf16.msra.mxu0 0
      %2531 = vmatpush.bf16.msra.mxu0 0
      %2532 = vmatpush.bf16.msra.mxu0 0
      %2533 = vmatpush.bf16.msra.mxu0 0
      %2534 = vmatpush.bf16.msra.mxu0 0
      %2535 = vmatpush.bf16.msra.mxu0 0
      %2536 = vmatpush.bf16.msra.mxu0 %v2514
      %2537 = vmatmul.bf16.gmra.mxu0 %v1099
      %v2538 = vpop.f32.mrf.mxu0
      %v2539 = vadd.f32 0.0, %v2538
      %v2540 = vpop.f32.mrf.mxu0
      %2541 = vdwg.mxu0
      %v2542 = vadd.f32 %v2491, %v2526
      %v2543 = vadd.f32 %v2492, %v2539
      %v2544 = vmul.f32 %v2401, %v524
      %v2545 = vmul.f32 %v2402, %v528
      %v2546 = vmul.f32 %v2441, %v526
      %v2547 = vpack.c.bf16 %v2544, %v2544
      %v2548 = vpack.c.bf16 %v2545, %v2545
      %v2549 = vpack.c.bf16 %v2546, %v2546
      %2553 = vrot.lane.b32.xlu0 %v2547, 112
      %v2554 = vpop.permute.xlu0 %2553
      %2555 = vrot.lane.b32.xlu0 %v2548, 112
      %v2556 = vpop.permute.xlu0 %2555
      %2557 = vrot.lane.b32.xlu0 %v2549, 112
      %v2558 = vpop.permute.xlu0 %2557
      %v2559 = vsel %vm547, %v2554, %v2556
      %v2560 = vsel %vm547, %v2556, %v2558
      %v2562 = vsel %vm363, %v2559, 0
      %v2565 = vsel %vm363, %v2560, 0
      %2567 = vmatpush.bf16.msra.mxu0 0
      %2568 = vmatpush.bf16.msra.mxu0 0
      %2569 = vmatpush.bf16.msra.mxu0 0
      %2570 = vmatpush.bf16.msra.mxu0 0
      %2571 = vmatpush.bf16.msra.mxu0 0
      %2572 = vmatpush.bf16.msra.mxu0 0
      %2573 = vmatpush.bf16.msra.mxu0 0
      %2574 = vmatpush.bf16.msra.mxu0 %v2562
      %2575 = vmatmul.bf16.gmra.mxu0 %v1153
      %v2576 = vpop.f32.mrf.mxu0
      %v2577 = vadd.f32 0.0, %v2576
      %v2578 = vpop.f32.mrf.mxu0
      %2579 = vdwg.mxu0
      %2580 = vmatpush.bf16.msra.mxu0 0
      %2581 = vmatpush.bf16.msra.mxu0 0
      %2582 = vmatpush.bf16.msra.mxu0 0
      %2583 = vmatpush.bf16.msra.mxu0 0
      %2584 = vmatpush.bf16.msra.mxu0 0
      %2585 = vmatpush.bf16.msra.mxu0 0
      %2586 = vmatpush.bf16.msra.mxu0 0
      %2587 = vmatpush.bf16.msra.mxu0 %v2565
      %2588 = vmatmul.bf16.gmra.mxu0 %v1153
      %v2589 = vpop.f32.mrf.mxu0
      %v2590 = vadd.f32 0.0, %v2589
      %v2591 = vpop.f32.mrf.mxu0
      %2592 = vdwg.mxu0
      %v2593 = vadd.f32 %v2542, %v2577
      %v2594 = vadd.f32 %v2543, %v2590
      %v2595 = vmul.f32 %v2401, %v602
      %v2596 = vmul.f32 %v2402, %v606
      %v2597 = vmul.f32 %v2441, %v604
      %v2598 = vpack.c.bf16 %v2595, %v2595
      %v2599 = vpack.c.bf16 %v2596, %v2596
      %v2600 = vpack.c.bf16 %v2597, %v2597
      %2604 = vrot.lane.b32.xlu0 %v2598, 111
      %v2605 = vpop.permute.xlu0 %2604
      %2606 = vrot.lane.b32.xlu0 %v2599, 111
      %v2607 = vpop.permute.xlu0 %2606
      %2608 = vrot.lane.b32.xlu0 %v2600, 111
      %v2609 = vpop.permute.xlu0 %2608
      %v2610 = vsel %vm625, %v2605, %v2607
      %v2611 = vsel %vm625, %v2607, %v2609
      %v2613 = vsel %vm363, %v2610, 0
      %v2616 = vsel %vm363, %v2611, 0
      %2618 = vmatpush.bf16.msra.mxu0 0
      %2619 = vmatpush.bf16.msra.mxu0 0
      %2620 = vmatpush.bf16.msra.mxu0 0
      %2621 = vmatpush.bf16.msra.mxu0 0
      %2622 = vmatpush.bf16.msra.mxu0 0
      %2623 = vmatpush.bf16.msra.mxu0 0
      %2624 = vmatpush.bf16.msra.mxu0 0
      %2625 = vmatpush.bf16.msra.mxu0 %v2613
      %2626 = vmatmul.bf16.gmra.mxu0 %v1207
      %v2627 = vpop.f32.mrf.mxu0
      %v2628 = vadd.f32 0.0, %v2627
      %v2629 = vpop.f32.mrf.mxu0
      %2630 = vdwg.mxu0
      %2631 = vmatpush.bf16.msra.mxu0 0
      %2632 = vmatpush.bf16.msra.mxu0 0
      %2633 = vmatpush.bf16.msra.mxu0 0
      %2634 = vmatpush.bf16.msra.mxu0 0
      %2635 = vmatpush.bf16.msra.mxu0 0
      %2636 = vmatpush.bf16.msra.mxu0 0
      %2637 = vmatpush.bf16.msra.mxu0 0
      %2638 = vmatpush.bf16.msra.mxu0 %v2616
      %2639 = vmatmul.bf16.gmra.mxu0 %v1207
      %v2640 = vpop.f32.mrf.mxu0
      %v2641 = vadd.f32 0.0, %v2640
      %v2642 = vpop.f32.mrf.mxu0
      %2643 = vdwg.mxu0
      %v2644 = vadd.f32 %v2593, %v2628
      %v2645 = vadd.f32 %v2594, %v2641
      %v2646 = vmul.f32 %v2401, %v680
      %v2647 = vmul.f32 %v2402, %v684
      %v2648 = vmul.f32 %v2441, %v682
      %v2649 = vpack.c.bf16 %v2646, %v2646
      %v2650 = vpack.c.bf16 %v2647, %v2647
      %v2651 = vpack.c.bf16 %v2648, %v2648
      %2655 = vrot.lane.b32.xlu0 %v2649, 110
      %v2656 = vpop.permute.xlu0 %2655
      %2657 = vrot.lane.b32.xlu0 %v2650, 110
      %v2658 = vpop.permute.xlu0 %2657
      %2659 = vrot.lane.b32.xlu0 %v2651, 110
      %v2660 = vpop.permute.xlu0 %2659
      %v2661 = vsel %vm703, %v2656, %v2658
      %v2662 = vsel %vm703, %v2658, %v2660
      %v2664 = vsel %vm363, %v2661, 0
      %v2667 = vsel %vm363, %v2662, 0
      %2669 = vmatpush.bf16.msra.mxu0 0
      %2670 = vmatpush.bf16.msra.mxu0 0
      %2671 = vmatpush.bf16.msra.mxu0 0
      %2672 = vmatpush.bf16.msra.mxu0 0
      %2673 = vmatpush.bf16.msra.mxu0 0
      %2674 = vmatpush.bf16.msra.mxu0 0
      %2675 = vmatpush.bf16.msra.mxu0 0
      %2676 = vmatpush.bf16.msra.mxu0 %v2664
      %2677 = vmatmul.bf16.gmra.mxu0 %v1261
      %v2678 = vpop.f32.mrf.mxu0
      %v2679 = vadd.f32 0.0, %v2678
      %v2680 = vpop.f32.mrf.mxu0
      %2681 = vdwg.mxu0
      %2682 = vmatpush.bf16.msra.mxu0 0
      %2683 = vmatpush.bf16.msra.mxu0 0
      %2684 = vmatpush.bf16.msra.mxu0 0
      %2685 = vmatpush.bf16.msra.mxu0 0
      %2686 = vmatpush.bf16.msra.mxu0 0
      %2687 = vmatpush.bf16.msra.mxu0 0
      %2688 = vmatpush.bf16.msra.mxu0 0
      %2689 = vmatpush.bf16.msra.mxu0 %v2667
      %2690 = vmatmul.bf16.gmra.mxu0 %v1261
      %v2691 = vpop.f32.mrf.mxu0
      %v2692 = vadd.f32 0.0, %v2691
      %v2693 = vpop.f32.mrf.mxu0
      %2694 = vdwg.mxu0
      %v2695 = vadd.f32 %v2644, %v2679
      %v2696 = vadd.f32 %v2645, %v2692
      %v2697 = vmul.f32 %v2401, %v758
      %v2698 = vmul.f32 %v2402, %v762
      %v2699 = vmul.f32 %v2441, %v760
      %v2700 = vpack.c.bf16 %v2697, %v2697
      %v2701 = vpack.c.bf16 %v2698, %v2698
      %v2702 = vpack.c.bf16 %v2699, %v2699
      %2706 = vrot.lane.b32.xlu0 %v2700, 96
      %v2707 = vpop.permute.xlu0 %2706
      %2708 = vrot.lane.b32.xlu0 %v2701, 96
      %v2709 = vpop.permute.xlu0 %2708
      %2710 = vrot.lane.b32.xlu0 %v2702, 96
      %v2711 = vpop.permute.xlu0 %2710
      %v2712 = vsel %vm781, %v2707, %v2709
      %v2713 = vsel %vm781, %v2709, %v2711
      %v2715 = vsel %vm363, %v2712, 0
      %v2718 = vsel %vm363, %v2713, 0
      %2720 = vmatpush.bf16.msra.mxu0 0
      %2721 = vmatpush.bf16.msra.mxu0 0
      %2722 = vmatpush.bf16.msra.mxu0 0
      %2723 = vmatpush.bf16.msra.mxu0 0
      %2724 = vmatpush.bf16.msra.mxu0 0
      %2725 = vmatpush.bf16.msra.mxu0 0
      %2726 = vmatpush.bf16.msra.mxu0 0
      %2727 = vmatpush.bf16.msra.mxu0 %v2715
      %2728 = vmatmul.bf16.gmra.mxu0 %v1315
      %v2729 = vpop.f32.mrf.mxu0
      %v2730 = vadd.f32 0.0, %v2729
      %v2731 = vpop.f32.mrf.mxu0
      %2732 = vdwg.mxu0
      %2733 = vmatpush.bf16.msra.mxu0 0
      %2734 = vmatpush.bf16.msra.mxu0 0
      %2735 = vmatpush.bf16.msra.mxu0 0
      %2736 = vmatpush.bf16.msra.mxu0 0
      %2737 = vmatpush.bf16.msra.mxu0 0
      %2738 = vmatpush.bf16.msra.mxu0 0
      %2739 = vmatpush.bf16.msra.mxu0 0
      %2740 = vmatpush.bf16.msra.mxu0 %v2718
      %2741 = vmatmul.bf16.gmra.mxu0 %v1315
      %v2742 = vpop.f32.mrf.mxu0
      %v2743 = vadd.f32 0.0, %v2742
      %v2744 = vpop.f32.mrf.mxu0
      %2745 = vdwg.mxu0
      %v2746 = vadd.f32 %v2695, %v2730
      %v2747 = vadd.f32 %v2696, %v2743
      %v2748 = vmul.f32 %v2401, %v836
      %v2749 = vmul.f32 %v2402, %v840
      %v2750 = vmul.f32 %v2441, %v838
      %v2751 = vpack.c.bf16 %v2748, %v2748
      %v2752 = vpack.c.bf16 %v2749, %v2749
      %v2753 = vpack.c.bf16 %v2750, %v2750
      %2757 = vrot.lane.b32.xlu0 %v2751, 95
      %v2758 = vpop.permute.xlu0 %2757
      %2759 = vrot.lane.b32.xlu0 %v2752, 95
      %v2760 = vpop.permute.xlu0 %2759
      %2761 = vrot.lane.b32.xlu0 %v2753, 95
      %v2762 = vpop.permute.xlu0 %2761
      %v2763 = vsel %vm859, %v2758, %v2760
      %v2764 = vsel %vm859, %v2760, %v2762
      %v2766 = vsel %vm363, %v2763, 0
      %v2769 = vsel %vm363, %v2764, 0
      %2771 = vmatpush.bf16.msra.mxu0 0
      %2772 = vmatpush.bf16.msra.mxu0 0
      %2773 = vmatpush.bf16.msra.mxu0 0
      %2774 = vmatpush.bf16.msra.mxu0 0
      %2775 = vmatpush.bf16.msra.mxu0 0
      %2776 = vmatpush.bf16.msra.mxu0 0
      %2777 = vmatpush.bf16.msra.mxu0 0
      %2778 = vmatpush.bf16.msra.mxu0 %v2766
      %2779 = vmatmul.bf16.gmra.mxu0 %v1369
      %v2780 = vpop.f32.mrf.mxu0
      %v2781 = vadd.f32 0.0, %v2780
      %v2782 = vpop.f32.mrf.mxu0
      %2783 = vdwg.mxu0
      %2784 = vmatpush.bf16.msra.mxu0 0
      %2785 = vmatpush.bf16.msra.mxu0 0
      %2786 = vmatpush.bf16.msra.mxu0 0
      %2787 = vmatpush.bf16.msra.mxu0 0
      %2788 = vmatpush.bf16.msra.mxu0 0
      %2789 = vmatpush.bf16.msra.mxu0 0
      %2790 = vmatpush.bf16.msra.mxu0 0
      %2791 = vmatpush.bf16.msra.mxu0 %v2769
      %2792 = vmatmul.bf16.gmra.mxu0 %v1369
      %v2793 = vpop.f32.mrf.mxu0
      %v2794 = vadd.f32 0.0, %v2793
      %v2795 = vpop.f32.mrf.mxu0
      %2796 = vdwg.mxu0
      %v2797 = vadd.f32 %v2746, %v2781
      %v2798 = vadd.f32 %v2747, %v2794
      %v2799 = vmul.f32 %v2401, %v914
      %v2800 = vmul.f32 %v2402, %v918
      %v2801 = vmul.f32 %v2441, %v916
      %v2802 = vpack.c.bf16 %v2799, %v2799
      %v2803 = vpack.c.bf16 %v2800, %v2800
      %v2804 = vpack.c.bf16 %v2801, %v2801
      %2808 = vrot.lane.b32.xlu0 %v2802, 94
      %v2809 = vpop.permute.xlu0 %2808
      %2810 = vrot.lane.b32.xlu0 %v2803, 94
      %v2811 = vpop.permute.xlu0 %2810
      %2812 = vrot.lane.b32.xlu0 %v2804, 94
      %v2813 = vpop.permute.xlu0 %2812
      %v2814 = vsel %vm937, %v2809, %v2811
      %v2815 = vsel %vm937, %v2811, %v2813
      %v2817 = vsel %vm363, %v2814, 0
      %v2820 = vsel %vm363, %v2815, 0
      %2822 = vmatpush.bf16.msra.mxu0 0
      %2823 = vmatpush.bf16.msra.mxu0 0
      %2824 = vmatpush.bf16.msra.mxu0 0
      %2825 = vmatpush.bf16.msra.mxu0 0
      %2826 = vmatpush.bf16.msra.mxu0 0
      %2827 = vmatpush.bf16.msra.mxu0 0
      %2828 = vmatpush.bf16.msra.mxu0 0
      %2829 = vmatpush.bf16.msra.mxu0 %v2817
      %2830 = vmatmul.bf16.gmra.mxu0 %v1423
      %v2831 = vpop.f32.mrf.mxu0
      %v2832 = vadd.f32 0.0, %v2831
      %v2833 = vpop.f32.mrf.mxu0
      %2834 = vdwg.mxu0
      %2835 = vmatpush.bf16.msra.mxu0 0
      %2836 = vmatpush.bf16.msra.mxu0 0
      %2837 = vmatpush.bf16.msra.mxu0 0
      %2838 = vmatpush.bf16.msra.mxu0 0
      %2839 = vmatpush.bf16.msra.mxu0 0
      %2840 = vmatpush.bf16.msra.mxu0 0
      %2841 = vmatpush.bf16.msra.mxu0 0
      %2842 = vmatpush.bf16.msra.mxu0 %v2820
      %2843 = vmatmul.bf16.gmra.mxu0 %v1423
      %v2844 = vpop.f32.mrf.mxu0
      %v2845 = vadd.f32 0.0, %v2844
      %v2846 = vpop.f32.mrf.mxu0
      %2847 = vdwg.mxu0
      %v2848 = vadd.f32 %v2797, %v2832
      %v2849 = vadd.f32 %v2798, %v2845
      %s2850 = sadd.s32 %s293, 3
      %s2851 = smul.u32 %s2850, 3
      %s2852 = smul.addr %s2851, 4
      %s2853 = scalar_lea.vmem %s210, %s2852
      %v2854 = vld [vmem:[%s2853] sm:$0xff]
      %v2855 = vld [vmem:[%s2853 + $0x8] sm:$0xf]
      %v2856 = vunpack.c.l.bf16 %v2854
      %v2857 = vunpack.c.h.bf16 %v2854
      %v2858 = vmul.f32 %v2856, %v311
      %v2859 = vmul.f32 %v2857, %v312
      %v2860 = vpack.c.bf16 %v2858, %v2858
      %v2861 = vpack.c.bf16 %v2859, %v2859
      %v2863 = vsel %vm363, %v2860, 0
      %v2866 = vsel %vm363, %v2861, 0
      %2868 = vmatpush.bf16.msra.mxu0 0
      %2869 = vmatpush.bf16.msra.mxu0 0
      %2870 = vmatpush.bf16.msra.mxu0 0
      %2871 = vmatpush.bf16.msra.mxu0 0
      %2872 = vmatpush.bf16.msra.mxu0 0
      %2873 = vmatpush.bf16.msra.mxu0 0
      %2874 = vmatpush.bf16.msra.mxu0 0
      %2875 = vmatpush.bf16.msra.mxu0 %v2863
      %2876 = vmatmul.bf16.gmra.mxu0 %v1472
      %v2877 = vpop.f32.mrf.mxu0
      %v2878 = vadd.f32 0.0, %v2877
      %v2879 = vpop.f32.mrf.mxu0
      %2880 = vdwg.mxu0
      %2881 = vmatpush.bf16.msra.mxu0 0
      %2882 = vmatpush.bf16.msra.mxu0 0
      %2883 = vmatpush.bf16.msra.mxu0 0
      %2884 = vmatpush.bf16.msra.mxu0 0
      %2885 = vmatpush.bf16.msra.mxu0 0
      %2886 = vmatpush.bf16.msra.mxu0 0
      %2887 = vmatpush.bf16.msra.mxu0 0
      %2888 = vmatpush.bf16.msra.mxu0 %v2866
      %2889 = vmatmul.bf16.gmra.mxu0 %v1472
      %v2890 = vpop.f32.mrf.mxu0
      %v2891 = vadd.f32 0.0, %v2890
      %v2892 = vpop.f32.mrf.mxu0
      %2893 = vdwg.mxu0
      %v2894 = vadd.f32 %v2848, %v2878
      %v2895 = vadd.f32 %v2849, %v2891
      %v2896 = vunpack.c.l.bf16 %v2855
      %v2897 = vmul.f32 %v2856, %v333
      %v2898 = vmul.f32 %v2857, %v337
      %v2899 = vmul.f32 %v2896, %v335
      %v2900 = vpack.c.bf16 %v2897, %v2897
      %v2901 = vpack.c.bf16 %v2898, %v2898
      %v2902 = vpack.c.bf16 %v2899, %v2899
      %2906 = vrot.lane.b32.xlu0 %v2900, 127
      %v2907 = vpop.permute.xlu0 %2906
      %2908 = vrot.lane.b32.xlu0 %v2901, 127
      %v2909 = vpop.permute.xlu0 %2908
      %2910 = vrot.lane.b32.xlu0 %v2902, 127
      %v2911 = vpop.permute.xlu0 %2910
      %v2912 = vsel %vm356, %v2907, %v2909
      %v2913 = vsel %vm356, %v2909, %v2911
      %v2915 = vsel %vm363, %v2912, 0
      %v2918 = vsel %vm363, %v2913, 0
      %2920 = vmatpush.bf16.msra.mxu0 0
      %2921 = vmatpush.bf16.msra.mxu0 0
      %2922 = vmatpush.bf16.msra.mxu0 0
      %2923 = vmatpush.bf16.msra.mxu0 0
      %2924 = vmatpush.bf16.msra.mxu0 0
      %2925 = vmatpush.bf16.msra.mxu0 0
      %2926 = vmatpush.bf16.msra.mxu0 0
      %2927 = vmatpush.bf16.msra.mxu0 %v2915
      %2928 = vmatmul.bf16.gmra.mxu0 %v1527
      %v2929 = vpop.f32.mrf.mxu0
      %v2930 = vadd.f32 0.0, %v2929
      %v2931 = vpop.f32.mrf.mxu0
      %2932 = vdwg.mxu0
      %2933 = vmatpush.bf16.msra.mxu0 0
      %2934 = vmatpush.bf16.msra.mxu0 0
      %2935 = vmatpush.bf16.msra.mxu0 0
      %2936 = vmatpush.bf16.msra.mxu0 0
      %2937 = vmatpush.bf16.msra.mxu0 0
      %2938 = vmatpush.bf16.msra.mxu0 0
      %2939 = vmatpush.bf16.msra.mxu0 0
      %2940 = vmatpush.bf16.msra.mxu0 %v2918
      %2941 = vmatmul.bf16.gmra.mxu0 %v1527
      %v2942 = vpop.f32.mrf.mxu0
      %v2943 = vadd.f32 0.0, %v2942
      %v2944 = vpop.f32.mrf.mxu0
      %2945 = vdwg.mxu0
      %v2946 = vadd.f32 %v2894, %v2930
      %v2947 = vadd.f32 %v2895, %v2943
      %v2948 = vmul.f32 %v2856, %v446
      %v2949 = vmul.f32 %v2857, %v450
      %v2950 = vmul.f32 %v2896, %v448
      %v2951 = vpack.c.bf16 %v2948, %v2948
      %v2952 = vpack.c.bf16 %v2949, %v2949
      %v2953 = vpack.c.bf16 %v2950, %v2950
      %2957 = vrot.lane.b32.xlu0 %v2951, 126
      %v2958 = vpop.permute.xlu0 %2957
      %2959 = vrot.lane.b32.xlu0 %v2952, 126
      %v2960 = vpop.permute.xlu0 %2959
      %2961 = vrot.lane.b32.xlu0 %v2953, 126
      %v2962 = vpop.permute.xlu0 %2961
      %v2963 = vsel %vm469, %v2958, %v2960
      %v2964 = vsel %vm469, %v2960, %v2962
      %v2966 = vsel %vm363, %v2963, 0
      %v2969 = vsel %vm363, %v2964, 0
      %2971 = vmatpush.bf16.msra.mxu0 0
      %2972 = vmatpush.bf16.msra.mxu0 0
      %2973 = vmatpush.bf16.msra.mxu0 0
      %2974 = vmatpush.bf16.msra.mxu0 0
      %2975 = vmatpush.bf16.msra.mxu0 0
      %2976 = vmatpush.bf16.msra.mxu0 0
      %2977 = vmatpush.bf16.msra.mxu0 0
      %2978 = vmatpush.bf16.msra.mxu0 %v2966
      %2979 = vmatmul.bf16.gmra.mxu0 %v1581
      %v2980 = vpop.f32.mrf.mxu0
      %v2981 = vadd.f32 0.0, %v2980
      %v2982 = vpop.f32.mrf.mxu0
      %2983 = vdwg.mxu0
      %2984 = vmatpush.bf16.msra.mxu0 0
      %2985 = vmatpush.bf16.msra.mxu0 0
      %2986 = vmatpush.bf16.msra.mxu0 0
      %2987 = vmatpush.bf16.msra.mxu0 0
      %2988 = vmatpush.bf16.msra.mxu0 0
      %2989 = vmatpush.bf16.msra.mxu0 0
      %2990 = vmatpush.bf16.msra.mxu0 0
      %2991 = vmatpush.bf16.msra.mxu0 %v2969
      %2992 = vmatmul.bf16.gmra.mxu0 %v1581
      %v2993 = vpop.f32.mrf.mxu0
      %v2994 = vadd.f32 0.0, %v2993
      %v2995 = vpop.f32.mrf.mxu0
      %2996 = vdwg.mxu0
      %v2997 = vadd.f32 %v2946, %v2981
      %v2998 = vadd.f32 %v2947, %v2994
      %v2999 = vmul.f32 %v2856, %v524
      %v3000 = vmul.f32 %v2857, %v528
      %v3001 = vmul.f32 %v2896, %v526
      %v3002 = vpack.c.bf16 %v2999, %v2999
      %v3003 = vpack.c.bf16 %v3000, %v3000
      %v3004 = vpack.c.bf16 %v3001, %v3001
      %3008 = vrot.lane.b32.xlu0 %v3002, 112
      %v3009 = vpop.permute.xlu0 %3008
      %3010 = vrot.lane.b32.xlu0 %v3003, 112
      %v3011 = vpop.permute.xlu0 %3010
      %3012 = vrot.lane.b32.xlu0 %v3004, 112
      %v3013 = vpop.permute.xlu0 %3012
      %v3014 = vsel %vm547, %v3009, %v3011
      %v3015 = vsel %vm547, %v3011, %v3013
      %v3017 = vsel %vm363, %v3014, 0
      %v3020 = vsel %vm363, %v3015, 0
      %3022 = vmatpush.bf16.msra.mxu0 0
      %3023 = vmatpush.bf16.msra.mxu0 0
      %3024 = vmatpush.bf16.msra.mxu0 0
      %3025 = vmatpush.bf16.msra.mxu0 0
      %3026 = vmatpush.bf16.msra.mxu0 0
      %3027 = vmatpush.bf16.msra.mxu0 0
      %3028 = vmatpush.bf16.msra.mxu0 0
      %3029 = vmatpush.bf16.msra.mxu0 %v3017
      %3030 = vmatmul.bf16.gmra.mxu0 %v1635
      %v3031 = vpop.f32.mrf.mxu0
      %v3032 = vadd.f32 0.0, %v3031
      %v3033 = vpop.f32.mrf.mxu0
      %3034 = vdwg.mxu0
      %3035 = vmatpush.bf16.msra.mxu0 0
      %3036 = vmatpush.bf16.msra.mxu0 0
      %3037 = vmatpush.bf16.msra.mxu0 0
      %3038 = vmatpush.bf16.msra.mxu0 0
      %3039 = vmatpush.bf16.msra.mxu0 0
      %3040 = vmatpush.bf16.msra.mxu0 0
      %3041 = vmatpush.bf16.msra.mxu0 0
      %3042 = vmatpush.bf16.msra.mxu0 %v3020
      %3043 = vmatmul.bf16.gmra.mxu0 %v1635
      %v3044 = vpop.f32.mrf.mxu0
      %v3045 = vadd.f32 0.0, %v3044
      %v3046 = vpop.f32.mrf.mxu0
      %3047 = vdwg.mxu0
      %v3048 = vadd.f32 %v2997, %v3032
      %v3049 = vadd.f32 %v2998, %v3045
      %v3050 = vmul.f32 %v2856, %v602
      %v3051 = vmul.f32 %v2857, %v606
      %v3052 = vmul.f32 %v2896, %v604
      %v3053 = vpack.c.bf16 %v3050, %v3050
      %v3054 = vpack.c.bf16 %v3051, %v3051
      %v3055 = vpack.c.bf16 %v3052, %v3052
      %3059 = vrot.lane.b32.xlu0 %v3053, 111
      %v3060 = vpop.permute.xlu0 %3059
      %3061 = vrot.lane.b32.xlu0 %v3054, 111
      %v3062 = vpop.permute.xlu0 %3061
      %3063 = vrot.lane.b32.xlu0 %v3055, 111
      %v3064 = vpop.permute.xlu0 %3063
      %v3065 = vsel %vm625, %v3060, %v3062
      %v3066 = vsel %vm625, %v3062, %v3064
      %v3068 = vsel %vm363, %v3065, 0
      %v3071 = vsel %vm363, %v3066, 0
      %3073 = vmatpush.bf16.msra.mxu0 0
      %3074 = vmatpush.bf16.msra.mxu0 0
      %3075 = vmatpush.bf16.msra.mxu0 0
      %3076 = vmatpush.bf16.msra.mxu0 0
      %3077 = vmatpush.bf16.msra.mxu0 0
      %3078 = vmatpush.bf16.msra.mxu0 0
      %3079 = vmatpush.bf16.msra.mxu0 0
      %3080 = vmatpush.bf16.msra.mxu0 %v3068
      %3081 = vmatmul.bf16.gmra.mxu0 %v1689
      %v3082 = vpop.f32.mrf.mxu0
      %v3083 = vadd.f32 0.0, %v3082
      %v3084 = vpop.f32.mrf.mxu0
      %3085 = vdwg.mxu0
      %3086 = vmatpush.bf16.msra.mxu0 0
      %3087 = vmatpush.bf16.msra.mxu0 0
      %3088 = vmatpush.bf16.msra.mxu0 0
      %3089 = vmatpush.bf16.msra.mxu0 0
      %3090 = vmatpush.bf16.msra.mxu0 0
      %3091 = vmatpush.bf16.msra.mxu0 0
      %3092 = vmatpush.bf16.msra.mxu0 0
      %3093 = vmatpush.bf16.msra.mxu0 %v3071
      %3094 = vmatmul.bf16.gmra.mxu0 %v1689
      %v3095 = vpop.f32.mrf.mxu0
      %v3096 = vadd.f32 0.0, %v3095
      %v3097 = vpop.f32.mrf.mxu0
      %3098 = vdwg.mxu0
      %v3099 = vadd.f32 %v3048, %v3083
      %v3100 = vadd.f32 %v3049, %v3096
      %v3101 = vmul.f32 %v2856, %v680
      %v3102 = vmul.f32 %v2857, %v684
      %v3103 = vmul.f32 %v2896, %v682
      %v3104 = vpack.c.bf16 %v3101, %v3101
      %v3105 = vpack.c.bf16 %v3102, %v3102
      %v3106 = vpack.c.bf16 %v3103, %v3103
      %3110 = vrot.lane.b32.xlu0 %v3104, 110
      %v3111 = vpop.permute.xlu0 %3110
      %3112 = vrot.lane.b32.xlu0 %v3105, 110
      %v3113 = vpop.permute.xlu0 %3112
      %3114 = vrot.lane.b32.xlu0 %v3106, 110
      %v3115 = vpop.permute.xlu0 %3114
      %v3116 = vsel %vm703, %v3111, %v3113
      %v3117 = vsel %vm703, %v3113, %v3115
      %v3119 = vsel %vm363, %v3116, 0
      %v3122 = vsel %vm363, %v3117, 0
      %3124 = vmatpush.bf16.msra.mxu0 0
      %3125 = vmatpush.bf16.msra.mxu0 0
      %3126 = vmatpush.bf16.msra.mxu0 0
      %3127 = vmatpush.bf16.msra.mxu0 0
      %3128 = vmatpush.bf16.msra.mxu0 0
      %3129 = vmatpush.bf16.msra.mxu0 0
      %3130 = vmatpush.bf16.msra.mxu0 0
      %3131 = vmatpush.bf16.msra.mxu0 %v3119
      %3132 = vmatmul.bf16.gmra.mxu0 %v1743
      %v3133 = vpop.f32.mrf.mxu0
      %v3134 = vadd.f32 0.0, %v3133
      %v3135 = vpop.f32.mrf.mxu0
      %3136 = vdwg.mxu0
      %3137 = vmatpush.bf16.msra.mxu0 0
      %3138 = vmatpush.bf16.msra.mxu0 0
      %3139 = vmatpush.bf16.msra.mxu0 0
      %3140 = vmatpush.bf16.msra.mxu0 0
      %3141 = vmatpush.bf16.msra.mxu0 0
      %3142 = vmatpush.bf16.msra.mxu0 0
      %3143 = vmatpush.bf16.msra.mxu0 0
      %3144 = vmatpush.bf16.msra.mxu0 %v3122
      %3145 = vmatmul.bf16.gmra.mxu0 %v1743
      %v3146 = vpop.f32.mrf.mxu0
      %v3147 = vadd.f32 0.0, %v3146
      %v3148 = vpop.f32.mrf.mxu0
      %3149 = vdwg.mxu0
      %v3150 = vadd.f32 %v3099, %v3134
      %v3151 = vadd.f32 %v3100, %v3147
      %v3152 = vmul.f32 %v2856, %v758
      %v3153 = vmul.f32 %v2857, %v762
      %v3154 = vmul.f32 %v2896, %v760
      %v3155 = vpack.c.bf16 %v3152, %v3152
      %v3156 = vpack.c.bf16 %v3153, %v3153
      %v3157 = vpack.c.bf16 %v3154, %v3154
      %3161 = vrot.lane.b32.xlu0 %v3155, 96
      %v3162 = vpop.permute.xlu0 %3161
      %3163 = vrot.lane.b32.xlu0 %v3156, 96
      %v3164 = vpop.permute.xlu0 %3163
      %3165 = vrot.lane.b32.xlu0 %v3157, 96
      %v3166 = vpop.permute.xlu0 %3165
      %v3167 = vsel %vm781, %v3162, %v3164
      %v3168 = vsel %vm781, %v3164, %v3166
      %v3170 = vsel %vm363, %v3167, 0
      %v3173 = vsel %vm363, %v3168, 0
      %3175 = vmatpush.bf16.msra.mxu0 0
      %3176 = vmatpush.bf16.msra.mxu0 0
      %3177 = vmatpush.bf16.msra.mxu0 0
      %3178 = vmatpush.bf16.msra.mxu0 0
      %3179 = vmatpush.bf16.msra.mxu0 0
      %3180 = vmatpush.bf16.msra.mxu0 0
      %3181 = vmatpush.bf16.msra.mxu0 0
      %3182 = vmatpush.bf16.msra.mxu0 %v3170
      %3183 = vmatmul.bf16.gmra.mxu0 %v1797
      %v3184 = vpop.f32.mrf.mxu0
      %v3185 = vadd.f32 0.0, %v3184
      %v3186 = vpop.f32.mrf.mxu0
      %3187 = vdwg.mxu0
      %3188 = vmatpush.bf16.msra.mxu0 0
      %3189 = vmatpush.bf16.msra.mxu0 0
      %3190 = vmatpush.bf16.msra.mxu0 0
      %3191 = vmatpush.bf16.msra.mxu0 0
      %3192 = vmatpush.bf16.msra.mxu0 0
      %3193 = vmatpush.bf16.msra.mxu0 0
      %3194 = vmatpush.bf16.msra.mxu0 0
      %3195 = vmatpush.bf16.msra.mxu0 %v3173
      %3196 = vmatmul.bf16.gmra.mxu0 %v1797
      %v3197 = vpop.f32.mrf.mxu0
      %v3198 = vadd.f32 0.0, %v3197
      %v3199 = vpop.f32.mrf.mxu0
      %3200 = vdwg.mxu0
      %v3201 = vadd.f32 %v3150, %v3185
      %v3202 = vadd.f32 %v3151, %v3198
      %v3203 = vmul.f32 %v2856, %v836
      %v3204 = vmul.f32 %v2857, %v840
      %v3205 = vmul.f32 %v2896, %v838
      %v3206 = vpack.c.bf16 %v3203, %v3203
      %v3207 = vpack.c.bf16 %v3204, %v3204
      %v3208 = vpack.c.bf16 %v3205, %v3205
      %3212 = vrot.lane.b32.xlu0 %v3206, 95
      %v3213 = vpop.permute.xlu0 %3212
      %3214 = vrot.lane.b32.xlu0 %v3207, 95
      %v3215 = vpop.permute.xlu0 %3214
      %3216 = vrot.lane.b32.xlu0 %v3208, 95
      %v3217 = vpop.permute.xlu0 %3216
      %v3218 = vsel %vm859, %v3213, %v3215
      %v3219 = vsel %vm859, %v3215, %v3217
      %v3221 = vsel %vm363, %v3218, 0
      %v3224 = vsel %vm363, %v3219, 0
      %3226 = vmatpush.bf16.msra.mxu0 0
      %3227 = vmatpush.bf16.msra.mxu0 0
      %3228 = vmatpush.bf16.msra.mxu0 0
      %3229 = vmatpush.bf16.msra.mxu0 0
      %3230 = vmatpush.bf16.msra.mxu0 0
      %3231 = vmatpush.bf16.msra.mxu0 0
      %3232 = vmatpush.bf16.msra.mxu0 0
      %3233 = vmatpush.bf16.msra.mxu0 %v3221
      %3234 = vmatmul.bf16.gmra.mxu0 %v1851
      %v3235 = vpop.f32.mrf.mxu0
      %v3236 = vadd.f32 0.0, %v3235
      %v3237 = vpop.f32.mrf.mxu0
      %3238 = vdwg.mxu0
      %3239 = vmatpush.bf16.msra.mxu0 0
      %3240 = vmatpush.bf16.msra.mxu0 0
      %3241 = vmatpush.bf16.msra.mxu0 0
      %3242 = vmatpush.bf16.msra.mxu0 0
      %3243 = vmatpush.bf16.msra.mxu0 0
      %3244 = vmatpush.bf16.msra.mxu0 0
      %3245 = vmatpush.bf16.msra.mxu0 0
      %3246 = vmatpush.bf16.msra.mxu0 %v3224
      %3247 = vmatmul.bf16.gmra.mxu0 %v1851
      %v3248 = vpop.f32.mrf.mxu0
      %v3249 = vadd.f32 0.0, %v3248
      %v3250 = vpop.f32.mrf.mxu0
      %3251 = vdwg.mxu0
      %v3252 = vadd.f32 %v3201, %v3236
      %v3253 = vadd.f32 %v3202, %v3249
      %v3254 = vmul.f32 %v2856, %v914
      %v3255 = vmul.f32 %v2857, %v918
      %v3256 = vmul.f32 %v2896, %v916
      %v3257 = vpack.c.bf16 %v3254, %v3254
      %v3258 = vpack.c.bf16 %v3255, %v3255
      %v3259 = vpack.c.bf16 %v3256, %v3256
      %3263 = vrot.lane.b32.xlu0 %v3257, 94
      %v3264 = vpop.permute.xlu0 %3263
      %3265 = vrot.lane.b32.xlu0 %v3258, 94
      %v3266 = vpop.permute.xlu0 %3265
      %3267 = vrot.lane.b32.xlu0 %v3259, 94
      %v3268 = vpop.permute.xlu0 %3267
      %v3269 = vsel %vm937, %v3264, %v3266
      %v3270 = vsel %vm937, %v3266, %v3268
      %v3272 = vsel %vm363, %v3269, 0
      %v3275 = vsel %vm363, %v3270, 0
      %3277 = vmatpush.bf16.msra.mxu0 0
      %3278 = vmatpush.bf16.msra.mxu0 0
      %3279 = vmatpush.bf16.msra.mxu0 0
      %3280 = vmatpush.bf16.msra.mxu0 0
      %3281 = vmatpush.bf16.msra.mxu0 0
      %3282 = vmatpush.bf16.msra.mxu0 0
      %3283 = vmatpush.bf16.msra.mxu0 0
      %3284 = vmatpush.bf16.msra.mxu0 %v3272
      %3285 = vmatmul.bf16.gmra.mxu0 %v1905
      %v3286 = vpop.f32.mrf.mxu0
      %v3287 = vadd.f32 0.0, %v3286
      %v3288 = vpop.f32.mrf.mxu0
      %3289 = vdwg.mxu0
      %3290 = vmatpush.bf16.msra.mxu0 0
      %3291 = vmatpush.bf16.msra.mxu0 0
      %3292 = vmatpush.bf16.msra.mxu0 0
      %3293 = vmatpush.bf16.msra.mxu0 0
      %3294 = vmatpush.bf16.msra.mxu0 0
      %3295 = vmatpush.bf16.msra.mxu0 0
      %3296 = vmatpush.bf16.msra.mxu0 0
      %3297 = vmatpush.bf16.msra.mxu0 %v3275
      %3298 = vmatmul.bf16.gmra.mxu0 %v1905
      %v3299 = vpop.f32.mrf.mxu0
      %v3300 = vadd.f32 0.0, %v3299
      %v3301 = vpop.f32.mrf.mxu0
      %3302 = vdwg.mxu0
      %v3303 = vadd.f32 %v3252, %v3287
      %v3304 = vadd.f32 %v3253, %v3300
      %v3305 = vadd.f32 %v3303, %v1944
      %v3306 = vadd.f32 %v3304, %v1944
      %v3307 = vmax.f32 %v3305, 0.0
      %v3308 = vmax.f32 %v3306, 0.0
      %3309 = vst [vmem:[%s219 + $0x10] sm:$0xff] %v3307
      %3310 = vst [vmem:[%s219 + $0x18] sm:$0xff] %v3308
      %v3311 = vld [vmem:[%s1462] sm:$0xff]
      %v3312 = vld [vmem:[%s1462 + $0x8] sm:$0xf]
      %v3313 = vunpack.c.l.bf16 %v3311
      %v3314 = vunpack.c.h.bf16 %v3311
      %v3315 = vmul.f32 %v3313, %v311
      %v3316 = vmul.f32 %v3314, %v312
      %v3317 = vpack.c.bf16 %v3315, %v3315
      %v3318 = vpack.c.bf16 %v3316, %v3316
      %v3319 = vunpack.c.l.bf16 %v3312
      %v3320 = vmul.f32 %v3313, %v333
      %v3321 = vmul.f32 %v3314, %v337
      %v3322 = vmul.f32 %v3319, %v335
      %v3323 = vpack.c.bf16 %v3320, %v3320
      %v3324 = vpack.c.bf16 %v3321, %v3321
      %v3325 = vpack.c.bf16 %v3322, %v3322
      %3329 = vrot.lane.b32.xlu0 %v3323, 127
      %v3330 = vpop.permute.xlu0 %3329
      %3331 = vrot.lane.b32.xlu0 %v3324, 127
      %v3332 = vpop.permute.xlu0 %3331
      %3333 = vrot.lane.b32.xlu0 %v3325, 127
      %v3334 = vpop.permute.xlu0 %3333
      %v3335 = vsel %vm356, %v3330, %v3332
      %v3336 = vsel %vm356, %v3332, %v3334
      %v3338 = vsel %vm363, %v3335, 0
      %v3341 = vsel %vm363, %v3336, 0
      %3343 = vmatpush.bf16.msra.mxu0 0
      %3344 = vmatpush.bf16.msra.mxu0 0
      %3345 = vmatpush.bf16.msra.mxu0 0
      %3346 = vmatpush.bf16.msra.mxu0 0
      %3347 = vmatpush.bf16.msra.mxu0 0
      %3348 = vmatpush.bf16.msra.mxu0 0
      %3349 = vmatpush.bf16.msra.mxu0 0
      %3350 = vmatpush.bf16.msra.mxu0 %v3338
      %3351 = vmatmul.bf16.gmra.mxu0 %v361
      %v3352 = vpop.f32.mrf.mxu0
      %v3353 = vadd.f32 0.0, %v3352
      %v3354 = vpop.f32.mrf.mxu0
      %3355 = vdwg.mxu0
      %3356 = vmatpush.bf16.msra.mxu0 0
      %3357 = vmatpush.bf16.msra.mxu0 0
      %3358 = vmatpush.bf16.msra.mxu0 0
      %3359 = vmatpush.bf16.msra.mxu0 0
      %3360 = vmatpush.bf16.msra.mxu0 0
      %3361 = vmatpush.bf16.msra.mxu0 0
      %3362 = vmatpush.bf16.msra.mxu0 0
      %3363 = vmatpush.bf16.msra.mxu0 %v3341
      %3364 = vmatmul.bf16.gmra.mxu0 %v361
      %v3365 = vpop.f32.mrf.mxu0
      %v3366 = vadd.f32 0.0, %v3365
      %v3367 = vpop.f32.mrf.mxu0
      %3368 = vdwg.mxu0
      %v3370 = vsel %vm363, %v3317, 0
      %v3373 = vsel %vm363, %v3318, 0
      %3375 = vmatpush.bf16.msra.mxu0 0
      %3376 = vmatpush.bf16.msra.mxu0 0
      %3377 = vmatpush.bf16.msra.mxu0 0
      %3378 = vmatpush.bf16.msra.mxu0 0
      %3379 = vmatpush.bf16.msra.mxu0 0
      %3380 = vmatpush.bf16.msra.mxu0 0
      %3381 = vmatpush.bf16.msra.mxu0 0
      %3382 = vmatpush.bf16.msra.mxu0 %v3370
      %3383 = vmatmul.bf16.gmra.mxu0 %v397
      %v3384 = vpop.f32.mrf.mxu0
      %v3385 = vadd.f32 %v3353, %v3384
      %v3386 = vpop.f32.mrf.mxu0
      %3387 = vdwg.mxu0
      %3388 = vmatpush.bf16.msra.mxu0 0
      %3389 = vmatpush.bf16.msra.mxu0 0
      %3390 = vmatpush.bf16.msra.mxu0 0
      %3391 = vmatpush.bf16.msra.mxu0 0
      %3392 = vmatpush.bf16.msra.mxu0 0
      %3393 = vmatpush.bf16.msra.mxu0 0
      %3394 = vmatpush.bf16.msra.mxu0 0
      %3395 = vmatpush.bf16.msra.mxu0 %v3373
      %3396 = vmatmul.bf16.gmra.mxu0 %v397
      %v3397 = vpop.f32.mrf.mxu0
      %v3398 = vadd.f32 %v3366, %v3397
      %v3399 = vpop.f32.mrf.mxu0
      %3400 = vdwg.mxu0
      %v3401 = vmul.f32 %v3313, %v446
      %v3402 = vmul.f32 %v3314, %v450
      %v3403 = vmul.f32 %v3319, %v448
      %v3404 = vpack.c.bf16 %v3401, %v3401
      %v3405 = vpack.c.bf16 %v3402, %v3402
      %v3406 = vpack.c.bf16 %v3403, %v3403
      %3410 = vrot.lane.b32.xlu0 %v3404, 126
      %v3411 = vpop.permute.xlu0 %3410
      %3412 = vrot.lane.b32.xlu0 %v3405, 126
      %v3413 = vpop.permute.xlu0 %3412
      %3414 = vrot.lane.b32.xlu0 %v3406, 126
      %v3415 = vpop.permute.xlu0 %3414
      %v3416 = vsel %vm469, %v3411, %v3413
      %v3417 = vsel %vm469, %v3413, %v3415
      %v3419 = vsel %vm363, %v3416, 0
      %v3422 = vsel %vm363, %v3417, 0
      %3424 = vmatpush.bf16.msra.mxu0 0
      %3425 = vmatpush.bf16.msra.mxu0 0
      %3426 = vmatpush.bf16.msra.mxu0 0
      %3427 = vmatpush.bf16.msra.mxu0 0
      %3428 = vmatpush.bf16.msra.mxu0 0
      %3429 = vmatpush.bf16.msra.mxu0 0
      %3430 = vmatpush.bf16.msra.mxu0 0
      %3431 = vmatpush.bf16.msra.mxu0 %v3419
      %3432 = vmatmul.bf16.gmra.mxu0 %v473
      %v3433 = vpop.f32.mrf.mxu0
      %v3434 = vadd.f32 0.0, %v3433
      %v3435 = vpop.f32.mrf.mxu0
      %3436 = vdwg.mxu0
      %3437 = vmatpush.bf16.msra.mxu0 0
      %3438 = vmatpush.bf16.msra.mxu0 0
      %3439 = vmatpush.bf16.msra.mxu0 0
      %3440 = vmatpush.bf16.msra.mxu0 0
      %3441 = vmatpush.bf16.msra.mxu0 0
      %3442 = vmatpush.bf16.msra.mxu0 0
      %3443 = vmatpush.bf16.msra.mxu0 0
      %3444 = vmatpush.bf16.msra.mxu0 %v3422
      %3445 = vmatmul.bf16.gmra.mxu0 %v473
      %v3446 = vpop.f32.mrf.mxu0
      %v3447 = vadd.f32 0.0, %v3446
      %v3448 = vpop.f32.mrf.mxu0
      %3449 = vdwg.mxu0
      %v3450 = vadd.f32 %v3385, %v3434
      %v3451 = vadd.f32 %v3398, %v3447
      %v3452 = vmul.f32 %v3313, %v524
      %v3453 = vmul.f32 %v3314, %v528
      %v3454 = vmul.f32 %v3319, %v526
      %v3455 = vpack.c.bf16 %v3452, %v3452
      %v3456 = vpack.c.bf16 %v3453, %v3453
      %v3457 = vpack.c.bf16 %v3454, %v3454
      %3461 = vrot.lane.b32.xlu0 %v3455, 112
      %v3462 = vpop.permute.xlu0 %3461
      %3463 = vrot.lane.b32.xlu0 %v3456, 112
      %v3464 = vpop.permute.xlu0 %3463
      %3465 = vrot.lane.b32.xlu0 %v3457, 112
      %v3466 = vpop.permute.xlu0 %3465
      %v3467 = vsel %vm547, %v3462, %v3464
      %v3468 = vsel %vm547, %v3464, %v3466
      %v3470 = vsel %vm363, %v3467, 0
      %v3473 = vsel %vm363, %v3468, 0
      %3475 = vmatpush.bf16.msra.mxu0 0
      %3476 = vmatpush.bf16.msra.mxu0 0
      %3477 = vmatpush.bf16.msra.mxu0 0
      %3478 = vmatpush.bf16.msra.mxu0 0
      %3479 = vmatpush.bf16.msra.mxu0 0
      %3480 = vmatpush.bf16.msra.mxu0 0
      %3481 = vmatpush.bf16.msra.mxu0 0
      %3482 = vmatpush.bf16.msra.mxu0 %v3470
      %3483 = vmatmul.bf16.gmra.mxu0 %v551
      %v3484 = vpop.f32.mrf.mxu0
      %v3485 = vadd.f32 0.0, %v3484
      %v3486 = vpop.f32.mrf.mxu0
      %3487 = vdwg.mxu0
      %3488 = vmatpush.bf16.msra.mxu0 0
      %3489 = vmatpush.bf16.msra.mxu0 0
      %3490 = vmatpush.bf16.msra.mxu0 0
      %3491 = vmatpush.bf16.msra.mxu0 0
      %3492 = vmatpush.bf16.msra.mxu0 0
      %3493 = vmatpush.bf16.msra.mxu0 0
      %3494 = vmatpush.bf16.msra.mxu0 0
      %3495 = vmatpush.bf16.msra.mxu0 %v3473
      %3496 = vmatmul.bf16.gmra.mxu0 %v551
      %v3497 = vpop.f32.mrf.mxu0
      %v3498 = vadd.f32 0.0, %v3497
      %v3499 = vpop.f32.mrf.mxu0
      %3500 = vdwg.mxu0
      %v3501 = vadd.f32 %v3450, %v3485
      %v3502 = vadd.f32 %v3451, %v3498
      %v3503 = vmul.f32 %v3313, %v602
      %v3504 = vmul.f32 %v3314, %v606
      %v3505 = vmul.f32 %v3319, %v604
      %v3506 = vpack.c.bf16 %v3503, %v3503
      %v3507 = vpack.c.bf16 %v3504, %v3504
      %v3508 = vpack.c.bf16 %v3505, %v3505
      %3512 = vrot.lane.b32.xlu0 %v3506, 111
      %v3513 = vpop.permute.xlu0 %3512
      %3514 = vrot.lane.b32.xlu0 %v3507, 111
      %v3515 = vpop.permute.xlu0 %3514
      %3516 = vrot.lane.b32.xlu0 %v3508, 111
      %v3517 = vpop.permute.xlu0 %3516
      %v3518 = vsel %vm625, %v3513, %v3515
      %v3519 = vsel %vm625, %v3515, %v3517
      %v3521 = vsel %vm363, %v3518, 0
      %v3524 = vsel %vm363, %v3519, 0
      %3526 = vmatpush.bf16.msra.mxu0 0
      %3527 = vmatpush.bf16.msra.mxu0 0
      %3528 = vmatpush.bf16.msra.mxu0 0
      %3529 = vmatpush.bf16.msra.mxu0 0
      %3530 = vmatpush.bf16.msra.mxu0 0
      %3531 = vmatpush.bf16.msra.mxu0 0
      %3532 = vmatpush.bf16.msra.mxu0 0
      %3533 = vmatpush.bf16.msra.mxu0 %v3521
      %3534 = vmatmul.bf16.gmra.mxu0 %v629
      %v3535 = vpop.f32.mrf.mxu0
      %v3536 = vadd.f32 0.0, %v3535
      %v3537 = vpop.f32.mrf.mxu0
      %3538 = vdwg.mxu0
      %3539 = vmatpush.bf16.msra.mxu0 0
      %3540 = vmatpush.bf16.msra.mxu0 0
      %3541 = vmatpush.bf16.msra.mxu0 0
      %3542 = vmatpush.bf16.msra.mxu0 0
      %3543 = vmatpush.bf16.msra.mxu0 0
      %3544 = vmatpush.bf16.msra.mxu0 0
      %3545 = vmatpush.bf16.msra.mxu0 0
      %3546 = vmatpush.bf16.msra.mxu0 %v3524
      %3547 = vmatmul.bf16.gmra.mxu0 %v629
      %v3548 = vpop.f32.mrf.mxu0
      %v3549 = vadd.f32 0.0, %v3548
      %v3550 = vpop.f32.mrf.mxu0
      %3551 = vdwg.mxu0
      %v3552 = vadd.f32 %v3501, %v3536
      %v3553 = vadd.f32 %v3502, %v3549
      %v3554 = vmul.f32 %v3313, %v680
      %v3555 = vmul.f32 %v3314, %v684
      %v3556 = vmul.f32 %v3319, %v682
      %v3557 = vpack.c.bf16 %v3554, %v3554
      %v3558 = vpack.c.bf16 %v3555, %v3555
      %v3559 = vpack.c.bf16 %v3556, %v3556
      %3563 = vrot.lane.b32.xlu0 %v3557, 110
      %v3564 = vpop.permute.xlu0 %3563
      %3565 = vrot.lane.b32.xlu0 %v3558, 110
      %v3566 = vpop.permute.xlu0 %3565
      %3567 = vrot.lane.b32.xlu0 %v3559, 110
      %v3568 = vpop.permute.xlu0 %3567
      %v3569 = vsel %vm703, %v3564, %v3566
      %v3570 = vsel %vm703, %v3566, %v3568
      %v3572 = vsel %vm363, %v3569, 0
      %v3575 = vsel %vm363, %v3570, 0
      %3577 = vmatpush.bf16.msra.mxu0 0
      %3578 = vmatpush.bf16.msra.mxu0 0
      %3579 = vmatpush.bf16.msra.mxu0 0
      %3580 = vmatpush.bf16.msra.mxu0 0
      %3581 = vmatpush.bf16.msra.mxu0 0
      %3582 = vmatpush.bf16.msra.mxu0 0
      %3583 = vmatpush.bf16.msra.mxu0 0
      %3584 = vmatpush.bf16.msra.mxu0 %v3572
      %3585 = vmatmul.bf16.gmra.mxu0 %v707
      %v3586 = vpop.f32.mrf.mxu0
      %v3587 = vadd.f32 0.0, %v3586
      %v3588 = vpop.f32.mrf.mxu0
      %3589 = vdwg.mxu0
      %3590 = vmatpush.bf16.msra.mxu0 0
      %3591 = vmatpush.bf16.msra.mxu0 0
      %3592 = vmatpush.bf16.msra.mxu0 0
      %3593 = vmatpush.bf16.msra.mxu0 0
      %3594 = vmatpush.bf16.msra.mxu0 0
      %3595 = vmatpush.bf16.msra.mxu0 0
      %3596 = vmatpush.bf16.msra.mxu0 0
      %3597 = vmatpush.bf16.msra.mxu0 %v3575
      %3598 = vmatmul.bf16.gmra.mxu0 %v707
      %v3599 = vpop.f32.mrf.mxu0
      %v3600 = vadd.f32 0.0, %v3599
      %v3601 = vpop.f32.mrf.mxu0
      %3602 = vdwg.mxu0
      %v3603 = vadd.f32 %v3552, %v3587
      %v3604 = vadd.f32 %v3553, %v3600
      %v3605 = vmul.f32 %v3313, %v758
      %v3606 = vmul.f32 %v3314, %v762
      %v3607 = vmul.f32 %v3319, %v760
      %v3608 = vpack.c.bf16 %v3605, %v3605
      %v3609 = vpack.c.bf16 %v3606, %v3606
      %v3610 = vpack.c.bf16 %v3607, %v3607
      %3614 = vrot.lane.b32.xlu0 %v3608, 96
      %v3615 = vpop.permute.xlu0 %3614
      %3616 = vrot.lane.b32.xlu0 %v3609, 96
      %v3617 = vpop.permute.xlu0 %3616
      %3618 = vrot.lane.b32.xlu0 %v3610, 96
      %v3619 = vpop.permute.xlu0 %3618
      %v3620 = vsel %vm781, %v3615, %v3617
      %v3621 = vsel %vm781, %v3617, %v3619
      %v3623 = vsel %vm363, %v3620, 0
      %v3626 = vsel %vm363, %v3621, 0
      %3628 = vmatpush.bf16.msra.mxu0 0
      %3629 = vmatpush.bf16.msra.mxu0 0
      %3630 = vmatpush.bf16.msra.mxu0 0
      %3631 = vmatpush.bf16.msra.mxu0 0
      %3632 = vmatpush.bf16.msra.mxu0 0
      %3633 = vmatpush.bf16.msra.mxu0 0
      %3634 = vmatpush.bf16.msra.mxu0 0
      %3635 = vmatpush.bf16.msra.mxu0 %v3623
      %3636 = vmatmul.bf16.gmra.mxu0 %v785
      %v3637 = vpop.f32.mrf.mxu0
      %v3638 = vadd.f32 0.0, %v3637
      %v3639 = vpop.f32.mrf.mxu0
      %3640 = vdwg.mxu0
      %3641 = vmatpush.bf16.msra.mxu0 0
      %3642 = vmatpush.bf16.msra.mxu0 0
      %3643 = vmatpush.bf16.msra.mxu0 0
      %3644 = vmatpush.bf16.msra.mxu0 0
      %3645 = vmatpush.bf16.msra.mxu0 0
      %3646 = vmatpush.bf16.msra.mxu0 0
      %3647 = vmatpush.bf16.msra.mxu0 0
      %3648 = vmatpush.bf16.msra.mxu0 %v3626
      %3649 = vmatmul.bf16.gmra.mxu0 %v785
      %v3650 = vpop.f32.mrf.mxu0
      %v3651 = vadd.f32 0.0, %v3650
      %v3652 = vpop.f32.mrf.mxu0
      %3653 = vdwg.mxu0
      %v3654 = vadd.f32 %v3603, %v3638
      %v3655 = vadd.f32 %v3604, %v3651
      %v3656 = vmul.f32 %v3313, %v836
      %v3657 = vmul.f32 %v3314, %v840
      %v3658 = vmul.f32 %v3319, %v838
      %v3659 = vpack.c.bf16 %v3656, %v3656
      %v3660 = vpack.c.bf16 %v3657, %v3657
      %v3661 = vpack.c.bf16 %v3658, %v3658
      %3665 = vrot.lane.b32.xlu0 %v3659, 95
      %v3666 = vpop.permute.xlu0 %3665
      %3667 = vrot.lane.b32.xlu0 %v3660, 95
      %v3668 = vpop.permute.xlu0 %3667
      %3669 = vrot.lane.b32.xlu0 %v3661, 95
      %v3670 = vpop.permute.xlu0 %3669
      %v3671 = vsel %vm859, %v3666, %v3668
      %v3672 = vsel %vm859, %v3668, %v3670
      %v3674 = vsel %vm363, %v3671, 0
      %v3677 = vsel %vm363, %v3672, 0
      %3679 = vmatpush.bf16.msra.mxu0 0
      %3680 = vmatpush.bf16.msra.mxu0 0
      %3681 = vmatpush.bf16.msra.mxu0 0
      %3682 = vmatpush.bf16.msra.mxu0 0
      %3683 = vmatpush.bf16.msra.mxu0 0
      %3684 = vmatpush.bf16.msra.mxu0 0
      %3685 = vmatpush.bf16.msra.mxu0 0
      %3686 = vmatpush.bf16.msra.mxu0 %v3674
      %3687 = vmatmul.bf16.gmra.mxu0 %v863
      %v3688 = vpop.f32.mrf.mxu0
      %v3689 = vadd.f32 0.0, %v3688
      %v3690 = vpop.f32.mrf.mxu0
      %3691 = vdwg.mxu0
      %3692 = vmatpush.bf16.msra.mxu0 0
      %3693 = vmatpush.bf16.msra.mxu0 0
      %3694 = vmatpush.bf16.msra.mxu0 0
      %3695 = vmatpush.bf16.msra.mxu0 0
      %3696 = vmatpush.bf16.msra.mxu0 0
      %3697 = vmatpush.bf16.msra.mxu0 0
      %3698 = vmatpush.bf16.msra.mxu0 0
      %3699 = vmatpush.bf16.msra.mxu0 %v3677
      %3700 = vmatmul.bf16.gmra.mxu0 %v863
      %v3701 = vpop.f32.mrf.mxu0
      %v3702 = vadd.f32 0.0, %v3701
      %v3703 = vpop.f32.mrf.mxu0
      %3704 = vdwg.mxu0
      %v3705 = vadd.f32 %v3654, %v3689
      %v3706 = vadd.f32 %v3655, %v3702
      %v3707 = vmul.f32 %v3313, %v914
      %v3708 = vmul.f32 %v3314, %v918
      %v3709 = vmul.f32 %v3319, %v916
      %v3710 = vpack.c.bf16 %v3707, %v3707
      %v3711 = vpack.c.bf16 %v3708, %v3708
      %v3712 = vpack.c.bf16 %v3709, %v3709
      %3716 = vrot.lane.b32.xlu0 %v3710, 94
      %v3717 = vpop.permute.xlu0 %3716
      %3718 = vrot.lane.b32.xlu0 %v3711, 94
      %v3719 = vpop.permute.xlu0 %3718
      %3720 = vrot.lane.b32.xlu0 %v3712, 94
      %v3721 = vpop.permute.xlu0 %3720
      %v3722 = vsel %vm937, %v3717, %v3719
      %v3723 = vsel %vm937, %v3719, %v3721
      %v3725 = vsel %vm363, %v3722, 0
      %v3728 = vsel %vm363, %v3723, 0
      %3730 = vmatpush.bf16.msra.mxu0 0
      %3731 = vmatpush.bf16.msra.mxu0 0
      %3732 = vmatpush.bf16.msra.mxu0 0
      %3733 = vmatpush.bf16.msra.mxu0 0
      %3734 = vmatpush.bf16.msra.mxu0 0
      %3735 = vmatpush.bf16.msra.mxu0 0
      %3736 = vmatpush.bf16.msra.mxu0 0
      %3737 = vmatpush.bf16.msra.mxu0 %v3725
      %3738 = vmatmul.bf16.gmra.mxu0 %v941
      %v3739 = vpop.f32.mrf.mxu0
      %v3740 = vadd.f32 0.0, %v3739
      %v3741 = vpop.f32.mrf.mxu0
      %3742 = vdwg.mxu0
      %3743 = vmatpush.bf16.msra.mxu0 0
      %3744 = vmatpush.bf16.msra.mxu0 0
      %3745 = vmatpush.bf16.msra.mxu0 0
      %3746 = vmatpush.bf16.msra.mxu0 0
      %3747 = vmatpush.bf16.msra.mxu0 0
      %3748 = vmatpush.bf16.msra.mxu0 0
      %3749 = vmatpush.bf16.msra.mxu0 0
      %3750 = vmatpush.bf16.msra.mxu0 %v3728
      %3751 = vmatmul.bf16.gmra.mxu0 %v941
      %v3752 = vpop.f32.mrf.mxu0
      %v3753 = vadd.f32 0.0, %v3752
      %v3754 = vpop.f32.mrf.mxu0
      %3755 = vdwg.mxu0
      %v3756 = vadd.f32 %v3705, %v3740
      %v3757 = vadd.f32 %v3706, %v3753
      %v3758 = vld [vmem:[%s2853] sm:$0xff]
      %v3759 = vld [vmem:[%s2853 + $0x8] sm:$0xf]
      %v3760 = vunpack.c.l.bf16 %v3758
      %v3761 = vunpack.c.h.bf16 %v3758
      %v3762 = vmul.f32 %v3760, %v311
      %v3763 = vmul.f32 %v3761, %v312
      %v3764 = vpack.c.bf16 %v3762, %v3762
      %v3765 = vpack.c.bf16 %v3763, %v3763
      %v3767 = vsel %vm363, %v3764, 0
      %v3770 = vsel %vm363, %v3765, 0
      %3772 = vmatpush.bf16.msra.mxu0 0
      %3773 = vmatpush.bf16.msra.mxu0 0
      %3774 = vmatpush.bf16.msra.mxu0 0
      %3775 = vmatpush.bf16.msra.mxu0 0
      %3776 = vmatpush.bf16.msra.mxu0 0
      %3777 = vmatpush.bf16.msra.mxu0 0
      %3778 = vmatpush.bf16.msra.mxu0 0
      %3779 = vmatpush.bf16.msra.mxu0 %v3767
      %3780 = vmatmul.bf16.gmra.mxu0 %v990
      %v3781 = vpop.f32.mrf.mxu0
      %v3782 = vadd.f32 0.0, %v3781
      %v3783 = vpop.f32.mrf.mxu0
      %3784 = vdwg.mxu0
      %3785 = vmatpush.bf16.msra.mxu0 0
      %3786 = vmatpush.bf16.msra.mxu0 0
      %3787 = vmatpush.bf16.msra.mxu0 0
      %3788 = vmatpush.bf16.msra.mxu0 0
      %3789 = vmatpush.bf16.msra.mxu0 0
      %3790 = vmatpush.bf16.msra.mxu0 0
      %3791 = vmatpush.bf16.msra.mxu0 0
      %3792 = vmatpush.bf16.msra.mxu0 %v3770
      %3793 = vmatmul.bf16.gmra.mxu0 %v990
      %v3794 = vpop.f32.mrf.mxu0
      %v3795 = vadd.f32 0.0, %v3794
      %v3796 = vpop.f32.mrf.mxu0
      %3797 = vdwg.mxu0
      %v3798 = vadd.f32 %v3756, %v3782
      %v3799 = vadd.f32 %v3757, %v3795
      %v3800 = vunpack.c.l.bf16 %v3759
      %v3801 = vmul.f32 %v3760, %v333
      %v3802 = vmul.f32 %v3761, %v337
      %v3803 = vmul.f32 %v3800, %v335
      %v3804 = vpack.c.bf16 %v3801, %v3801
      %v3805 = vpack.c.bf16 %v3802, %v3802
      %v3806 = vpack.c.bf16 %v3803, %v3803
      %3810 = vrot.lane.b32.xlu0 %v3804, 127
      %v3811 = vpop.permute.xlu0 %3810
      %3812 = vrot.lane.b32.xlu0 %v3805, 127
      %v3813 = vpop.permute.xlu0 %3812
      %3814 = vrot.lane.b32.xlu0 %v3806, 127
      %v3815 = vpop.permute.xlu0 %3814
      %v3816 = vsel %vm356, %v3811, %v3813
      %v3817 = vsel %vm356, %v3813, %v3815
      %v3819 = vsel %vm363, %v3816, 0
      %v3822 = vsel %vm363, %v3817, 0
      %3824 = vmatpush.bf16.msra.mxu0 0
      %3825 = vmatpush.bf16.msra.mxu0 0
      %3826 = vmatpush.bf16.msra.mxu0 0
      %3827 = vmatpush.bf16.msra.mxu0 0
      %3828 = vmatpush.bf16.msra.mxu0 0
      %3829 = vmatpush.bf16.msra.mxu0 0
      %3830 = vmatpush.bf16.msra.mxu0 0
      %3831 = vmatpush.bf16.msra.mxu0 %v3819
      %3832 = vmatmul.bf16.gmra.mxu0 %v1045
      %v3833 = vpop.f32.mrf.mxu0
      %v3834 = vadd.f32 0.0, %v3833
      %v3835 = vpop.f32.mrf.mxu0
      %3836 = vdwg.mxu0
      %3837 = vmatpush.bf16.msra.mxu0 0
      %3838 = vmatpush.bf16.msra.mxu0 0
      %3839 = vmatpush.bf16.msra.mxu0 0
      %3840 = vmatpush.bf16.msra.mxu0 0
      %3841 = vmatpush.bf16.msra.mxu0 0
      %3842 = vmatpush.bf16.msra.mxu0 0
      %3843 = vmatpush.bf16.msra.mxu0 0
      %3844 = vmatpush.bf16.msra.mxu0 %v3822
      %3845 = vmatmul.bf16.gmra.mxu0 %v1045
      %v3846 = vpop.f32.mrf.mxu0
      %v3847 = vadd.f32 0.0, %v3846
      %v3848 = vpop.f32.mrf.mxu0
      %3849 = vdwg.mxu0
      %v3850 = vadd.f32 %v3798, %v3834
      %v3851 = vadd.f32 %v3799, %v3847
      %v3852 = vmul.f32 %v3760, %v446
      %v3853 = vmul.f32 %v3761, %v450
      %v3854 = vmul.f32 %v3800, %v448
      %v3855 = vpack.c.bf16 %v3852, %v3852
      %v3856 = vpack.c.bf16 %v3853, %v3853
      %v3857 = vpack.c.bf16 %v3854, %v3854
      %3861 = vrot.lane.b32.xlu0 %v3855, 126
      %v3862 = vpop.permute.xlu0 %3861
      %3863 = vrot.lane.b32.xlu0 %v3856, 126
      %v3864 = vpop.permute.xlu0 %3863
      %3865 = vrot.lane.b32.xlu0 %v3857, 126
      %v3866 = vpop.permute.xlu0 %3865
      %v3867 = vsel %vm469, %v3862, %v3864
      %v3868 = vsel %vm469, %v3864, %v3866
      %v3870 = vsel %vm363, %v3867, 0
      %v3873 = vsel %vm363, %v3868, 0
      %3875 = vmatpush.bf16.msra.mxu0 0
      %3876 = vmatpush.bf16.msra.mxu0 0
      %3877 = vmatpush.bf16.msra.mxu0 0
      %3878 = vmatpush.bf16.msra.mxu0 0
      %3879 = vmatpush.bf16.msra.mxu0 0
      %3880 = vmatpush.bf16.msra.mxu0 0
      %3881 = vmatpush.bf16.msra.mxu0 0
      %3882 = vmatpush.bf16.msra.mxu0 %v3870
      %3883 = vmatmul.bf16.gmra.mxu0 %v1099
      %v3884 = vpop.f32.mrf.mxu0
      %v3885 = vadd.f32 0.0, %v3884
      %v3886 = vpop.f32.mrf.mxu0
      %3887 = vdwg.mxu0
      %3888 = vmatpush.bf16.msra.mxu0 0
      %3889 = vmatpush.bf16.msra.mxu0 0
      %3890 = vmatpush.bf16.msra.mxu0 0
      %3891 = vmatpush.bf16.msra.mxu0 0
      %3892 = vmatpush.bf16.msra.mxu0 0
      %3893 = vmatpush.bf16.msra.mxu0 0
      %3894 = vmatpush.bf16.msra.mxu0 0
      %3895 = vmatpush.bf16.msra.mxu0 %v3873
      %3896 = vmatmul.bf16.gmra.mxu0 %v1099
      %v3897 = vpop.f32.mrf.mxu0
      %v3898 = vadd.f32 0.0, %v3897
      %v3899 = vpop.f32.mrf.mxu0
      %3900 = vdwg.mxu0
      %v3901 = vadd.f32 %v3850, %v3885
      %v3902 = vadd.f32 %v3851, %v3898
      %v3903 = vmul.f32 %v3760, %v524
      %v3904 = vmul.f32 %v3761, %v528
      %v3905 = vmul.f32 %v3800, %v526
      %v3906 = vpack.c.bf16 %v3903, %v3903
      %v3907 = vpack.c.bf16 %v3904, %v3904
      %v3908 = vpack.c.bf16 %v3905, %v3905
      %3912 = vrot.lane.b32.xlu0 %v3906, 112
      %v3913 = vpop.permute.xlu0 %3912
      %3914 = vrot.lane.b32.xlu0 %v3907, 112
      %v3915 = vpop.permute.xlu0 %3914
      %3916 = vrot.lane.b32.xlu0 %v3908, 112
      %v3917 = vpop.permute.xlu0 %3916
      %v3918 = vsel %vm547, %v3913, %v3915
      %v3919 = vsel %vm547, %v3915, %v3917
      %v3921 = vsel %vm363, %v3918, 0
      %v3924 = vsel %vm363, %v3919, 0
      %3926 = vmatpush.bf16.msra.mxu0 0
      %3927 = vmatpush.bf16.msra.mxu0 0
      %3928 = vmatpush.bf16.msra.mxu0 0
      %3929 = vmatpush.bf16.msra.mxu0 0
      %3930 = vmatpush.bf16.msra.mxu0 0
      %3931 = vmatpush.bf16.msra.mxu0 0
      %3932 = vmatpush.bf16.msra.mxu0 0
      %3933 = vmatpush.bf16.msra.mxu0 %v3921
      %3934 = vmatmul.bf16.gmra.mxu0 %v1153
      %v3935 = vpop.f32.mrf.mxu0
      %v3936 = vadd.f32 0.0, %v3935
      %v3937 = vpop.f32.mrf.mxu0
      %3938 = vdwg.mxu0
      %3939 = vmatpush.bf16.msra.mxu0 0
      %3940 = vmatpush.bf16.msra.mxu0 0
      %3941 = vmatpush.bf16.msra.mxu0 0
      %3942 = vmatpush.bf16.msra.mxu0 0
      %3943 = vmatpush.bf16.msra.mxu0 0
      %3944 = vmatpush.bf16.msra.mxu0 0
      %3945 = vmatpush.bf16.msra.mxu0 0
      %3946 = vmatpush.bf16.msra.mxu0 %v3924
      %3947 = vmatmul.bf16.gmra.mxu0 %v1153
      %v3948 = vpop.f32.mrf.mxu0
      %v3949 = vadd.f32 0.0, %v3948
      %v3950 = vpop.f32.mrf.mxu0
      %3951 = vdwg.mxu0
      %v3952 = vadd.f32 %v3901, %v3936
      %v3953 = vadd.f32 %v3902, %v3949
      %v3954 = vmul.f32 %v3760, %v602
      %v3955 = vmul.f32 %v3761, %v606
      %v3956 = vmul.f32 %v3800, %v604
      %v3957 = vpack.c.bf16 %v3954, %v3954
      %v3958 = vpack.c.bf16 %v3955, %v3955
      %v3959 = vpack.c.bf16 %v3956, %v3956
      %3963 = vrot.lane.b32.xlu0 %v3957, 111
      %v3964 = vpop.permute.xlu0 %3963
      %3965 = vrot.lane.b32.xlu0 %v3958, 111
      %v3966 = vpop.permute.xlu0 %3965
      %3967 = vrot.lane.b32.xlu0 %v3959, 111
      %v3968 = vpop.permute.xlu0 %3967
      %v3969 = vsel %vm625, %v3964, %v3966
      %v3970 = vsel %vm625, %v3966, %v3968
      %v3972 = vsel %vm363, %v3969, 0
      %v3975 = vsel %vm363, %v3970, 0
      %3977 = vmatpush.bf16.msra.mxu0 0
      %3978 = vmatpush.bf16.msra.mxu0 0
      %3979 = vmatpush.bf16.msra.mxu0 0
      %3980 = vmatpush.bf16.msra.mxu0 0
      %3981 = vmatpush.bf16.msra.mxu0 0
      %3982 = vmatpush.bf16.msra.mxu0 0
      %3983 = vmatpush.bf16.msra.mxu0 0
      %3984 = vmatpush.bf16.msra.mxu0 %v3972
      %3985 = vmatmul.bf16.gmra.mxu0 %v1207
      %v3986 = vpop.f32.mrf.mxu0
      %v3987 = vadd.f32 0.0, %v3986
      %v3988 = vpop.f32.mrf.mxu0
      %3989 = vdwg.mxu0
      %3990 = vmatpush.bf16.msra.mxu0 0
      %3991 = vmatpush.bf16.msra.mxu0 0
      %3992 = vmatpush.bf16.msra.mxu0 0
      %3993 = vmatpush.bf16.msra.mxu0 0
      %3994 = vmatpush.bf16.msra.mxu0 0
      %3995 = vmatpush.bf16.msra.mxu0 0
      %3996 = vmatpush.bf16.msra.mxu0 0
      %3997 = vmatpush.bf16.msra.mxu0 %v3975
      %3998 = vmatmul.bf16.gmra.mxu0 %v1207
      %v3999 = vpop.f32.mrf.mxu0
      %v4000 = vadd.f32 0.0, %v3999
      %v4001 = vpop.f32.mrf.mxu0
      %4002 = vdwg.mxu0
      %v4003 = vadd.f32 %v3952, %v3987
      %v4004 = vadd.f32 %v3953, %v4000
      %v4005 = vmul.f32 %v3760, %v680
      %v4006 = vmul.f32 %v3761, %v684
      %v4007 = vmul.f32 %v3800, %v682
      %v4008 = vpack.c.bf16 %v4005, %v4005
      %v4009 = vpack.c.bf16 %v4006, %v4006
      %v4010 = vpack.c.bf16 %v4007, %v4007
      %4014 = vrot.lane.b32.xlu0 %v4008, 110
      %v4015 = vpop.permute.xlu0 %4014
      %4016 = vrot.lane.b32.xlu0 %v4009, 110
      %v4017 = vpop.permute.xlu0 %4016
      %4018 = vrot.lane.b32.xlu0 %v4010, 110
      %v4019 = vpop.permute.xlu0 %4018
      %v4020 = vsel %vm703, %v4015, %v4017
      %v4021 = vsel %vm703, %v4017, %v4019
      %v4023 = vsel %vm363, %v4020, 0
      %v4026 = vsel %vm363, %v4021, 0
      %4028 = vmatpush.bf16.msra.mxu0 0
      %4029 = vmatpush.bf16.msra.mxu0 0
      %4030 = vmatpush.bf16.msra.mxu0 0
      %4031 = vmatpush.bf16.msra.mxu0 0
      %4032 = vmatpush.bf16.msra.mxu0 0
      %4033 = vmatpush.bf16.msra.mxu0 0
      %4034 = vmatpush.bf16.msra.mxu0 0
      %4035 = vmatpush.bf16.msra.mxu0 %v4023
      %4036 = vmatmul.bf16.gmra.mxu0 %v1261
      %v4037 = vpop.f32.mrf.mxu0
      %v4038 = vadd.f32 0.0, %v4037
      %v4039 = vpop.f32.mrf.mxu0
      %4040 = vdwg.mxu0
      %4041 = vmatpush.bf16.msra.mxu0 0
      %4042 = vmatpush.bf16.msra.mxu0 0
      %4043 = vmatpush.bf16.msra.mxu0 0
      %4044 = vmatpush.bf16.msra.mxu0 0
      %4045 = vmatpush.bf16.msra.mxu0 0
      %4046 = vmatpush.bf16.msra.mxu0 0
      %4047 = vmatpush.bf16.msra.mxu0 0
      %4048 = vmatpush.bf16.msra.mxu0 %v4026
      %4049 = vmatmul.bf16.gmra.mxu0 %v1261
      %v4050 = vpop.f32.mrf.mxu0
      %v4051 = vadd.f32 0.0, %v4050
      %v4052 = vpop.f32.mrf.mxu0
      %4053 = vdwg.mxu0
      %v4054 = vadd.f32 %v4003, %v4038
      %v4055 = vadd.f32 %v4004, %v4051
      %v4056 = vmul.f32 %v3760, %v758
      %v4057 = vmul.f32 %v3761, %v762
      %v4058 = vmul.f32 %v3800, %v760
      %v4059 = vpack.c.bf16 %v4056, %v4056
      %v4060 = vpack.c.bf16 %v4057, %v4057
      %v4061 = vpack.c.bf16 %v4058, %v4058
      %4065 = vrot.lane.b32.xlu0 %v4059, 96
      %v4066 = vpop.permute.xlu0 %4065
      %4067 = vrot.lane.b32.xlu0 %v4060, 96
      %v4068 = vpop.permute.xlu0 %4067
      %4069 = vrot.lane.b32.xlu0 %v4061, 96
      %v4070 = vpop.permute.xlu0 %4069
      %v4071 = vsel %vm781, %v4066, %v4068
      %v4072 = vsel %vm781, %v4068, %v4070
      %v4074 = vsel %vm363, %v4071, 0
      %v4077 = vsel %vm363, %v4072, 0
      %4079 = vmatpush.bf16.msra.mxu0 0
      %4080 = vmatpush.bf16.msra.mxu0 0
      %4081 = vmatpush.bf16.msra.mxu0 0
      %4082 = vmatpush.bf16.msra.mxu0 0
      %4083 = vmatpush.bf16.msra.mxu0 0
      %4084 = vmatpush.bf16.msra.mxu0 0
      %4085 = vmatpush.bf16.msra.mxu0 0
      %4086 = vmatpush.bf16.msra.mxu0 %v4074
      %4087 = vmatmul.bf16.gmra.mxu0 %v1315
      %v4088 = vpop.f32.mrf.mxu0
      %v4089 = vadd.f32 0.0, %v4088
      %v4090 = vpop.f32.mrf.mxu0
      %4091 = vdwg.mxu0
      %4092 = vmatpush.bf16.msra.mxu0 0
      %4093 = vmatpush.bf16.msra.mxu0 0
      %4094 = vmatpush.bf16.msra.mxu0 0
      %4095 = vmatpush.bf16.msra.mxu0 0
      %4096 = vmatpush.bf16.msra.mxu0 0
      %4097 = vmatpush.bf16.msra.mxu0 0
      %4098 = vmatpush.bf16.msra.mxu0 0
      %4099 = vmatpush.bf16.msra.mxu0 %v4077
      %4100 = vmatmul.bf16.gmra.mxu0 %v1315
      %v4101 = vpop.f32.mrf.mxu0
      %v4102 = vadd.f32 0.0, %v4101
      %v4103 = vpop.f32.mrf.mxu0
      %4104 = vdwg.mxu0
      %v4105 = vadd.f32 %v4054, %v4089
      %v4106 = vadd.f32 %v4055, %v4102
      %v4107 = vmul.f32 %v3760, %v836
      %v4108 = vmul.f32 %v3761, %v840
      %v4109 = vmul.f32 %v3800, %v838
      %v4110 = vpack.c.bf16 %v4107, %v4107
      %v4111 = vpack.c.bf16 %v4108, %v4108
      %v4112 = vpack.c.bf16 %v4109, %v4109
      %4116 = vrot.lane.b32.xlu0 %v4110, 95
      %v4117 = vpop.permute.xlu0 %4116
      %4118 = vrot.lane.b32.xlu0 %v4111, 95
      %v4119 = vpop.permute.xlu0 %4118
      %4120 = vrot.lane.b32.xlu0 %v4112, 95
      %v4121 = vpop.permute.xlu0 %4120
      %v4122 = vsel %vm859, %v4117, %v4119
      %v4123 = vsel %vm859, %v4119, %v4121
      %v4125 = vsel %vm363, %v4122, 0
      %v4128 = vsel %vm363, %v4123, 0
      %4130 = vmatpush.bf16.msra.mxu0 0
      %4131 = vmatpush.bf16.msra.mxu0 0
      %4132 = vmatpush.bf16.msra.mxu0 0
      %4133 = vmatpush.bf16.msra.mxu0 0
      %4134 = vmatpush.bf16.msra.mxu0 0
      %4135 = vmatpush.bf16.msra.mxu0 0
      %4136 = vmatpush.bf16.msra.mxu0 0
      %4137 = vmatpush.bf16.msra.mxu0 %v4125
      %4138 = vmatmul.bf16.gmra.mxu0 %v1369
      %v4139 = vpop.f32.mrf.mxu0
      %v4140 = vadd.f32 0.0, %v4139
      %v4141 = vpop.f32.mrf.mxu0
      %4142 = vdwg.mxu0
      %4143 = vmatpush.bf16.msra.mxu0 0
      %4144 = vmatpush.bf16.msra.mxu0 0
      %4145 = vmatpush.bf16.msra.mxu0 0
      %4146 = vmatpush.bf16.msra.mxu0 0
      %4147 = vmatpush.bf16.msra.mxu0 0
      %4148 = vmatpush.bf16.msra.mxu0 0
      %4149 = vmatpush.bf16.msra.mxu0 0
      %4150 = vmatpush.bf16.msra.mxu0 %v4128
      %4151 = vmatmul.bf16.gmra.mxu0 %v1369
      %v4152 = vpop.f32.mrf.mxu0
      %v4153 = vadd.f32 0.0, %v4152
      %v4154 = vpop.f32.mrf.mxu0
      %4155 = vdwg.mxu0
      %v4156 = vadd.f32 %v4105, %v4140
      %v4157 = vadd.f32 %v4106, %v4153
      %v4158 = vmul.f32 %v3760, %v914
      %v4159 = vmul.f32 %v3761, %v918
      %v4160 = vmul.f32 %v3800, %v916
      %v4161 = vpack.c.bf16 %v4158, %v4158
      %v4162 = vpack.c.bf16 %v4159, %v4159
      %v4163 = vpack.c.bf16 %v4160, %v4160
      %4167 = vrot.lane.b32.xlu0 %v4161, 94
      %v4168 = vpop.permute.xlu0 %4167
      %4169 = vrot.lane.b32.xlu0 %v4162, 94
      %v4170 = vpop.permute.xlu0 %4169
      %4171 = vrot.lane.b32.xlu0 %v4163, 94
      %v4172 = vpop.permute.xlu0 %4171
      %v4173 = vsel %vm937, %v4168, %v4170
      %v4174 = vsel %vm937, %v4170, %v4172
      %v4176 = vsel %vm363, %v4173, 0
      %v4179 = vsel %vm363, %v4174, 0
      %4181 = vmatpush.bf16.msra.mxu0 0
      %4182 = vmatpush.bf16.msra.mxu0 0
      %4183 = vmatpush.bf16.msra.mxu0 0
      %4184 = vmatpush.bf16.msra.mxu0 0
      %4185 = vmatpush.bf16.msra.mxu0 0
      %4186 = vmatpush.bf16.msra.mxu0 0
      %4187 = vmatpush.bf16.msra.mxu0 0
      %4188 = vmatpush.bf16.msra.mxu0 %v4176
      %4189 = vmatmul.bf16.gmra.mxu0 %v1423
      %v4190 = vpop.f32.mrf.mxu0
      %v4191 = vadd.f32 0.0, %v4190
      %v4192 = vpop.f32.mrf.mxu0
      %4193 = vdwg.mxu0
      %4194 = vmatpush.bf16.msra.mxu0 0
      %4195 = vmatpush.bf16.msra.mxu0 0
      %4196 = vmatpush.bf16.msra.mxu0 0
      %4197 = vmatpush.bf16.msra.mxu0 0
      %4198 = vmatpush.bf16.msra.mxu0 0
      %4199 = vmatpush.bf16.msra.mxu0 0
      %4200 = vmatpush.bf16.msra.mxu0 0
      %4201 = vmatpush.bf16.msra.mxu0 %v4179
      %4202 = vmatmul.bf16.gmra.mxu0 %v1423
      %v4203 = vpop.f32.mrf.mxu0
      %v4204 = vadd.f32 0.0, %v4203
      %v4205 = vpop.f32.mrf.mxu0
      %4206 = vdwg.mxu0
      %v4207 = vadd.f32 %v4156, %v4191
      %v4208 = vadd.f32 %v4157, %v4204
      %s4209 = sadd.s32 %s293, 4
      %s4210 = smul.u32 %s4209, 3
      %s4211 = smul.addr %s4210, 4
      %s4212 = scalar_lea.vmem %s210, %s4211
      %v4213 = vld [vmem:[%s4212] sm:$0xff]
      %v4214 = vld [vmem:[%s4212 + $0x8] sm:$0xf]
      %v4215 = vunpack.c.l.bf16 %v4213
      %v4216 = vunpack.c.h.bf16 %v4213
      %v4217 = vmul.f32 %v4215, %v311
      %v4218 = vmul.f32 %v4216, %v312
      %v4219 = vpack.c.bf16 %v4217, %v4217
      %v4220 = vpack.c.bf16 %v4218, %v4218
      %v4222 = vsel %vm363, %v4219, 0
      %v4225 = vsel %vm363, %v4220, 0
      %4227 = vmatpush.bf16.msra.mxu0 0
      %4228 = vmatpush.bf16.msra.mxu0 0
      %4229 = vmatpush.bf16.msra.mxu0 0
      %4230 = vmatpush.bf16.msra.mxu0 0
      %4231 = vmatpush.bf16.msra.mxu0 0
      %4232 = vmatpush.bf16.msra.mxu0 0
      %4233 = vmatpush.bf16.msra.mxu0 0
      %4234 = vmatpush.bf16.msra.mxu0 %v4222
      %4235 = vmatmul.bf16.gmra.mxu0 %v1472
      %v4236 = vpop.f32.mrf.mxu0
      %v4237 = vadd.f32 0.0, %v4236
      %v4238 = vpop.f32.mrf.mxu0
      %4239 = vdwg.mxu0
      %4240 = vmatpush.bf16.msra.mxu0 0
      %4241 = vmatpush.bf16.msra.mxu0 0
      %4242 = vmatpush.bf16.msra.mxu0 0
      %4243 = vmatpush.bf16.msra.mxu0 0
      %4244 = vmatpush.bf16.msra.mxu0 0
      %4245 = vmatpush.bf16.msra.mxu0 0
      %4246 = vmatpush.bf16.msra.mxu0 0
      %4247 = vmatpush.bf16.msra.mxu0 %v4225
      %4248 = vmatmul.bf16.gmra.mxu0 %v1472
      %v4249 = vpop.f32.mrf.mxu0
      %v4250 = vadd.f32 0.0, %v4249
      %v4251 = vpop.f32.mrf.mxu0
      %4252 = vdwg.mxu0
      %v4253 = vadd.f32 %v4207, %v4237
      %v4254 = vadd.f32 %v4208, %v4250
      %v4255 = vunpack.c.l.bf16 %v4214
      %v4256 = vmul.f32 %v4215, %v333
      %v4257 = vmul.f32 %v4216, %v337
      %v4258 = vmul.f32 %v4255, %v335
      %v4259 = vpack.c.bf16 %v4256, %v4256
      %v4260 = vpack.c.bf16 %v4257, %v4257
      %v4261 = vpack.c.bf16 %v4258, %v4258
      %4265 = vrot.lane.b32.xlu0 %v4259, 127
      %v4266 = vpop.permute.xlu0 %4265
      %4267 = vrot.lane.b32.xlu0 %v4260, 127
      %v4268 = vpop.permute.xlu0 %4267
      %4269 = vrot.lane.b32.xlu0 %v4261, 127
      %v4270 = vpop.permute.xlu0 %4269
      %v4271 = vsel %vm356, %v4266, %v4268
      %v4272 = vsel %vm356, %v4268, %v4270
      %v4274 = vsel %vm363, %v4271, 0
      %v4277 = vsel %vm363, %v4272, 0
      %4279 = vmatpush.bf16.msra.mxu0 0
      %4280 = vmatpush.bf16.msra.mxu0 0
      %4281 = vmatpush.bf16.msra.mxu0 0
      %4282 = vmatpush.bf16.msra.mxu0 0
      %4283 = vmatpush.bf16.msra.mxu0 0
      %4284 = vmatpush.bf16.msra.mxu0 0
      %4285 = vmatpush.bf16.msra.mxu0 0
      %4286 = vmatpush.bf16.msra.mxu0 %v4274
      %4287 = vmatmul.bf16.gmra.mxu0 %v1527
      %v4288 = vpop.f32.mrf.mxu0
      %v4289 = vadd.f32 0.0, %v4288
      %v4290 = vpop.f32.mrf.mxu0
      %4291 = vdwg.mxu0
      %4292 = vmatpush.bf16.msra.mxu0 0
      %4293 = vmatpush.bf16.msra.mxu0 0
      %4294 = vmatpush.bf16.msra.mxu0 0
      %4295 = vmatpush.bf16.msra.mxu0 0
      %4296 = vmatpush.bf16.msra.mxu0 0
      %4297 = vmatpush.bf16.msra.mxu0 0
      %4298 = vmatpush.bf16.msra.mxu0 0
      %4299 = vmatpush.bf16.msra.mxu0 %v4277
      %4300 = vmatmul.bf16.gmra.mxu0 %v1527
      %v4301 = vpop.f32.mrf.mxu0
      %v4302 = vadd.f32 0.0, %v4301
      %v4303 = vpop.f32.mrf.mxu0
      %4304 = vdwg.mxu0
      %v4305 = vadd.f32 %v4253, %v4289
      %v4306 = vadd.f32 %v4254, %v4302
      %v4307 = vmul.f32 %v4215, %v446
      %v4308 = vmul.f32 %v4216, %v450
      %v4309 = vmul.f32 %v4255, %v448
      %v4310 = vpack.c.bf16 %v4307, %v4307
      %v4311 = vpack.c.bf16 %v4308, %v4308
      %v4312 = vpack.c.bf16 %v4309, %v4309
      %4316 = vrot.lane.b32.xlu0 %v4310, 126
      %v4317 = vpop.permute.xlu0 %4316
      %4318 = vrot.lane.b32.xlu0 %v4311, 126
      %v4319 = vpop.permute.xlu0 %4318
      %4320 = vrot.lane.b32.xlu0 %v4312, 126
      %v4321 = vpop.permute.xlu0 %4320
      %v4322 = vsel %vm469, %v4317, %v4319
      %v4323 = vsel %vm469, %v4319, %v4321
      %v4325 = vsel %vm363, %v4322, 0
      %v4328 = vsel %vm363, %v4323, 0
      %4330 = vmatpush.bf16.msra.mxu0 0
      %4331 = vmatpush.bf16.msra.mxu0 0
      %4332 = vmatpush.bf16.msra.mxu0 0
      %4333 = vmatpush.bf16.msra.mxu0 0
      %4334 = vmatpush.bf16.msra.mxu0 0
      %4335 = vmatpush.bf16.msra.mxu0 0
      %4336 = vmatpush.bf16.msra.mxu0 0
      %4337 = vmatpush.bf16.msra.mxu0 %v4325
      %4338 = vmatmul.bf16.gmra.mxu0 %v1581
      %v4339 = vpop.f32.mrf.mxu0
      %v4340 = vadd.f32 0.0, %v4339
      %v4341 = vpop.f32.mrf.mxu0
      %4342 = vdwg.mxu0
      %4343 = vmatpush.bf16.msra.mxu0 0
      %4344 = vmatpush.bf16.msra.mxu0 0
      %4345 = vmatpush.bf16.msra.mxu0 0
      %4346 = vmatpush.bf16.msra.mxu0 0
      %4347 = vmatpush.bf16.msra.mxu0 0
      %4348 = vmatpush.bf16.msra.mxu0 0
      %4349 = vmatpush.bf16.msra.mxu0 0
      %4350 = vmatpush.bf16.msra.mxu0 %v4328
      %4351 = vmatmul.bf16.gmra.mxu0 %v1581
      %v4352 = vpop.f32.mrf.mxu0
      %v4353 = vadd.f32 0.0, %v4352
      %v4354 = vpop.f32.mrf.mxu0
      %4355 = vdwg.mxu0
      %v4356 = vadd.f32 %v4305, %v4340
      %v4357 = vadd.f32 %v4306, %v4353
      %v4358 = vmul.f32 %v4215, %v524
      %v4359 = vmul.f32 %v4216, %v528
      %v4360 = vmul.f32 %v4255, %v526
      %v4361 = vpack.c.bf16 %v4358, %v4358
      %v4362 = vpack.c.bf16 %v4359, %v4359
      %v4363 = vpack.c.bf16 %v4360, %v4360
      %4367 = vrot.lane.b32.xlu0 %v4361, 112
      %v4368 = vpop.permute.xlu0 %4367
      %4369 = vrot.lane.b32.xlu0 %v4362, 112
      %v4370 = vpop.permute.xlu0 %4369
      %4371 = vrot.lane.b32.xlu0 %v4363, 112
      %v4372 = vpop.permute.xlu0 %4371
      %v4373 = vsel %vm547, %v4368, %v4370
      %v4374 = vsel %vm547, %v4370, %v4372
      %v4376 = vsel %vm363, %v4373, 0
      %v4379 = vsel %vm363, %v4374, 0
      %4381 = vmatpush.bf16.msra.mxu0 0
      %4382 = vmatpush.bf16.msra.mxu0 0
      %4383 = vmatpush.bf16.msra.mxu0 0
      %4384 = vmatpush.bf16.msra.mxu0 0
      %4385 = vmatpush.bf16.msra.mxu0 0
      %4386 = vmatpush.bf16.msra.mxu0 0
      %4387 = vmatpush.bf16.msra.mxu0 0
      %4388 = vmatpush.bf16.msra.mxu0 %v4376
      %4389 = vmatmul.bf16.gmra.mxu0 %v1635
      %v4390 = vpop.f32.mrf.mxu0
      %v4391 = vadd.f32 0.0, %v4390
      %v4392 = vpop.f32.mrf.mxu0
      %4393 = vdwg.mxu0
      %4394 = vmatpush.bf16.msra.mxu0 0
      %4395 = vmatpush.bf16.msra.mxu0 0
      %4396 = vmatpush.bf16.msra.mxu0 0
      %4397 = vmatpush.bf16.msra.mxu0 0
      %4398 = vmatpush.bf16.msra.mxu0 0
      %4399 = vmatpush.bf16.msra.mxu0 0
      %4400 = vmatpush.bf16.msra.mxu0 0
      %4401 = vmatpush.bf16.msra.mxu0 %v4379
      %4402 = vmatmul.bf16.gmra.mxu0 %v1635
      %v4403 = vpop.f32.mrf.mxu0
      %v4404 = vadd.f32 0.0, %v4403
      %v4405 = vpop.f32.mrf.mxu0
      %4406 = vdwg.mxu0
      %v4407 = vadd.f32 %v4356, %v4391
      %v4408 = vadd.f32 %v4357, %v4404
      %v4409 = vmul.f32 %v4215, %v602
      %v4410 = vmul.f32 %v4216, %v606
      %v4411 = vmul.f32 %v4255, %v604
      %v4412 = vpack.c.bf16 %v4409, %v4409
      %v4413 = vpack.c.bf16 %v4410, %v4410
      %v4414 = vpack.c.bf16 %v4411, %v4411
      %4418 = vrot.lane.b32.xlu0 %v4412, 111
      %v4419 = vpop.permute.xlu0 %4418
      %4420 = vrot.lane.b32.xlu0 %v4413, 111
      %v4421 = vpop.permute.xlu0 %4420
      %4422 = vrot.lane.b32.xlu0 %v4414, 111
      %v4423 = vpop.permute.xlu0 %4422
      %v4424 = vsel %vm625, %v4419, %v4421
      %v4425 = vsel %vm625, %v4421, %v4423
      %v4427 = vsel %vm363, %v4424, 0
      %v4430 = vsel %vm363, %v4425, 0
      %4432 = vmatpush.bf16.msra.mxu0 0
      %4433 = vmatpush.bf16.msra.mxu0 0
      %4434 = vmatpush.bf16.msra.mxu0 0
      %4435 = vmatpush.bf16.msra.mxu0 0
      %4436 = vmatpush.bf16.msra.mxu0 0
      %4437 = vmatpush.bf16.msra.mxu0 0
      %4438 = vmatpush.bf16.msra.mxu0 0
      %4439 = vmatpush.bf16.msra.mxu0 %v4427
      %4440 = vmatmul.bf16.gmra.mxu0 %v1689
      %v4441 = vpop.f32.mrf.mxu0
      %v4442 = vadd.f32 0.0, %v4441
      %v4443 = vpop.f32.mrf.mxu0
      %4444 = vdwg.mxu0
      %4445 = vmatpush.bf16.msra.mxu0 0
      %4446 = vmatpush.bf16.msra.mxu0 0
      %4447 = vmatpush.bf16.msra.mxu0 0
      %4448 = vmatpush.bf16.msra.mxu0 0
      %4449 = vmatpush.bf16.msra.mxu0 0
      %4450 = vmatpush.bf16.msra.mxu0 0
      %4451 = vmatpush.bf16.msra.mxu0 0
      %4452 = vmatpush.bf16.msra.mxu0 %v4430
      %4453 = vmatmul.bf16.gmra.mxu0 %v1689
      %v4454 = vpop.f32.mrf.mxu0
      %v4455 = vadd.f32 0.0, %v4454
      %v4456 = vpop.f32.mrf.mxu0
      %4457 = vdwg.mxu0
      %v4458 = vadd.f32 %v4407, %v4442
      %v4459 = vadd.f32 %v4408, %v4455
      %v4460 = vmul.f32 %v4215, %v680
      %v4461 = vmul.f32 %v4216, %v684
      %v4462 = vmul.f32 %v4255, %v682
      %v4463 = vpack.c.bf16 %v4460, %v4460
      %v4464 = vpack.c.bf16 %v4461, %v4461
      %v4465 = vpack.c.bf16 %v4462, %v4462
      %4469 = vrot.lane.b32.xlu0 %v4463, 110
      %v4470 = vpop.permute.xlu0 %4469
      %4471 = vrot.lane.b32.xlu0 %v4464, 110
      %v4472 = vpop.permute.xlu0 %4471
      %4473 = vrot.lane.b32.xlu0 %v4465, 110
      %v4474 = vpop.permute.xlu0 %4473
      %v4475 = vsel %vm703, %v4470, %v4472
      %v4476 = vsel %vm703, %v4472, %v4474
      %v4478 = vsel %vm363, %v4475, 0
      %v4481 = vsel %vm363, %v4476, 0
      %4483 = vmatpush.bf16.msra.mxu0 0
      %4484 = vmatpush.bf16.msra.mxu0 0
      %4485 = vmatpush.bf16.msra.mxu0 0
      %4486 = vmatpush.bf16.msra.mxu0 0
      %4487 = vmatpush.bf16.msra.mxu0 0
      %4488 = vmatpush.bf16.msra.mxu0 0
      %4489 = vmatpush.bf16.msra.mxu0 0
      %4490 = vmatpush.bf16.msra.mxu0 %v4478
      %4491 = vmatmul.bf16.gmra.mxu0 %v1743
      %v4492 = vpop.f32.mrf.mxu0
      %v4493 = vadd.f32 0.0, %v4492
      %v4494 = vpop.f32.mrf.mxu0
      %4495 = vdwg.mxu0
      %4496 = vmatpush.bf16.msra.mxu0 0
      %4497 = vmatpush.bf16.msra.mxu0 0
      %4498 = vmatpush.bf16.msra.mxu0 0
      %4499 = vmatpush.bf16.msra.mxu0 0
      %4500 = vmatpush.bf16.msra.mxu0 0
      %4501 = vmatpush.bf16.msra.mxu0 0
      %4502 = vmatpush.bf16.msra.mxu0 0
      %4503 = vmatpush.bf16.msra.mxu0 %v4481
      %4504 = vmatmul.bf16.gmra.mxu0 %v1743
      %v4505 = vpop.f32.mrf.mxu0
      %v4506 = vadd.f32 0.0, %v4505
      %v4507 = vpop.f32.mrf.mxu0
      %4508 = vdwg.mxu0
      %v4509 = vadd.f32 %v4458, %v4493
      %v4510 = vadd.f32 %v4459, %v4506
      %v4511 = vmul.f32 %v4215, %v758
      %v4512 = vmul.f32 %v4216, %v762
      %v4513 = vmul.f32 %v4255, %v760
      %v4514 = vpack.c.bf16 %v4511, %v4511
      %v4515 = vpack.c.bf16 %v4512, %v4512
      %v4516 = vpack.c.bf16 %v4513, %v4513
      %4520 = vrot.lane.b32.xlu0 %v4514, 96
      %v4521 = vpop.permute.xlu0 %4520
      %4522 = vrot.lane.b32.xlu0 %v4515, 96
      %v4523 = vpop.permute.xlu0 %4522
      %4524 = vrot.lane.b32.xlu0 %v4516, 96
      %v4525 = vpop.permute.xlu0 %4524
      %v4526 = vsel %vm781, %v4521, %v4523
      %v4527 = vsel %vm781, %v4523, %v4525
      %v4529 = vsel %vm363, %v4526, 0
      %v4532 = vsel %vm363, %v4527, 0
      %4534 = vmatpush.bf16.msra.mxu0 0
      %4535 = vmatpush.bf16.msra.mxu0 0
      %4536 = vmatpush.bf16.msra.mxu0 0
      %4537 = vmatpush.bf16.msra.mxu0 0
      %4538 = vmatpush.bf16.msra.mxu0 0
      %4539 = vmatpush.bf16.msra.mxu0 0
      %4540 = vmatpush.bf16.msra.mxu0 0
      %4541 = vmatpush.bf16.msra.mxu0 %v4529
      %4542 = vmatmul.bf16.gmra.mxu0 %v1797
      %v4543 = vpop.f32.mrf.mxu0
      %v4544 = vadd.f32 0.0, %v4543
      %v4545 = vpop.f32.mrf.mxu0
      %4546 = vdwg.mxu0
      %4547 = vmatpush.bf16.msra.mxu0 0
      %4548 = vmatpush.bf16.msra.mxu0 0
      %4549 = vmatpush.bf16.msra.mxu0 0
      %4550 = vmatpush.bf16.msra.mxu0 0
      %4551 = vmatpush.bf16.msra.mxu0 0
      %4552 = vmatpush.bf16.msra.mxu0 0
      %4553 = vmatpush.bf16.msra.mxu0 0
      %4554 = vmatpush.bf16.msra.mxu0 %v4532
      %4555 = vmatmul.bf16.gmra.mxu0 %v1797
      %v4556 = vpop.f32.mrf.mxu0
      %v4557 = vadd.f32 0.0, %v4556
      %v4558 = vpop.f32.mrf.mxu0
      %4559 = vdwg.mxu0
      %v4560 = vadd.f32 %v4509, %v4544
      %v4561 = vadd.f32 %v4510, %v4557
      %v4562 = vmul.f32 %v4215, %v836
      %v4563 = vmul.f32 %v4216, %v840
      %v4564 = vmul.f32 %v4255, %v838
      %v4565 = vpack.c.bf16 %v4562, %v4562
      %v4566 = vpack.c.bf16 %v4563, %v4563
      %v4567 = vpack.c.bf16 %v4564, %v4564
      %4571 = vrot.lane.b32.xlu0 %v4565, 95
      %v4572 = vpop.permute.xlu0 %4571
      %4573 = vrot.lane.b32.xlu0 %v4566, 95
      %v4574 = vpop.permute.xlu0 %4573
      %4575 = vrot.lane.b32.xlu0 %v4567, 95
      %v4576 = vpop.permute.xlu0 %4575
      %v4577 = vsel %vm859, %v4572, %v4574
      %v4578 = vsel %vm859, %v4574, %v4576
      %v4580 = vsel %vm363, %v4577, 0
      %v4583 = vsel %vm363, %v4578, 0
      %4585 = vmatpush.bf16.msra.mxu0 0
      %4586 = vmatpush.bf16.msra.mxu0 0
      %4587 = vmatpush.bf16.msra.mxu0 0
      %4588 = vmatpush.bf16.msra.mxu0 0
      %4589 = vmatpush.bf16.msra.mxu0 0
      %4590 = vmatpush.bf16.msra.mxu0 0
      %4591 = vmatpush.bf16.msra.mxu0 0
      %4592 = vmatpush.bf16.msra.mxu0 %v4580
      %4593 = vmatmul.bf16.gmra.mxu0 %v1851
      %v4594 = vpop.f32.mrf.mxu0
      %v4595 = vadd.f32 0.0, %v4594
      %v4596 = vpop.f32.mrf.mxu0
      %4597 = vdwg.mxu0
      %4598 = vmatpush.bf16.msra.mxu0 0
      %4599 = vmatpush.bf16.msra.mxu0 0
      %4600 = vmatpush.bf16.msra.mxu0 0
      %4601 = vmatpush.bf16.msra.mxu0 0
      %4602 = vmatpush.bf16.msra.mxu0 0
      %4603 = vmatpush.bf16.msra.mxu0 0
      %4604 = vmatpush.bf16.msra.mxu0 0
      %4605 = vmatpush.bf16.msra.mxu0 %v4583
      %4606 = vmatmul.bf16.gmra.mxu0 %v1851
      %v4607 = vpop.f32.mrf.mxu0
      %v4608 = vadd.f32 0.0, %v4607
      %v4609 = vpop.f32.mrf.mxu0
      %4610 = vdwg.mxu0
      %v4611 = vadd.f32 %v4560, %v4595
      %v4612 = vadd.f32 %v4561, %v4608
      %v4613 = vmul.f32 %v4215, %v914
      %v4614 = vmul.f32 %v4216, %v918
      %v4615 = vmul.f32 %v4255, %v916
      %v4616 = vpack.c.bf16 %v4613, %v4613
      %v4617 = vpack.c.bf16 %v4614, %v4614
      %v4618 = vpack.c.bf16 %v4615, %v4615
      %4622 = vrot.lane.b32.xlu0 %v4616, 94
      %v4623 = vpop.permute.xlu0 %4622
      %4624 = vrot.lane.b32.xlu0 %v4617, 94
      %v4625 = vpop.permute.xlu0 %4624
      %4626 = vrot.lane.b32.xlu0 %v4618, 94
      %v4627 = vpop.permute.xlu0 %4626
      %v4628 = vsel %vm937, %v4623, %v4625
      %v4629 = vsel %vm937, %v4625, %v4627
      %v4631 = vsel %vm363, %v4628, 0
      %v4634 = vsel %vm363, %v4629, 0
      %4636 = vmatpush.bf16.msra.mxu0 0
      %4637 = vmatpush.bf16.msra.mxu0 0
      %4638 = vmatpush.bf16.msra.mxu0 0
      %4639 = vmatpush.bf16.msra.mxu0 0
      %4640 = vmatpush.bf16.msra.mxu0 0
      %4641 = vmatpush.bf16.msra.mxu0 0
      %4642 = vmatpush.bf16.msra.mxu0 0
      %4643 = vmatpush.bf16.msra.mxu0 %v4631
      %4644 = vmatmul.bf16.gmra.mxu0 %v1905
      %v4645 = vpop.f32.mrf.mxu0
      %v4646 = vadd.f32 0.0, %v4645
      %v4647 = vpop.f32.mrf.mxu0
      %4648 = vdwg.mxu0
      %4649 = vmatpush.bf16.msra.mxu0 0
      %4650 = vmatpush.bf16.msra.mxu0 0
      %4651 = vmatpush.bf16.msra.mxu0 0
      %4652 = vmatpush.bf16.msra.mxu0 0
      %4653 = vmatpush.bf16.msra.mxu0 0
      %4654 = vmatpush.bf16.msra.mxu0 0
      %4655 = vmatpush.bf16.msra.mxu0 0
      %4656 = vmatpush.bf16.msra.mxu0 %v4634
      %4657 = vmatmul.bf16.gmra.mxu0 %v1905
      %v4658 = vpop.f32.mrf.mxu0
      %v4659 = vadd.f32 0.0, %v4658
      %v4660 = vpop.f32.mrf.mxu0
      %4661 = vdwg.mxu0
      %v4662 = vadd.f32 %v4611, %v4646
      %v4663 = vadd.f32 %v4612, %v4659
      %v4664 = vadd.f32 %v4662, %v1944
      %v4665 = vadd.f32 %v4663, %v1944
      %v4666 = vmax.f32 %v4664, 0.0
      %v4667 = vmax.f32 %v4665, 0.0
      %4668 = vst [vmem:[%s219 + $0x20] sm:$0xff] %v4666
      %4669 = vst [vmem:[%s219 + $0x28] sm:$0xff] %v4667
      %v4670 = vld [vmem:[%s2853] sm:$0xff]
      %v4671 = vld [vmem:[%s2853 + $0x8] sm:$0xf]
      %v4672 = vunpack.c.l.bf16 %v4670
      %v4673 = vunpack.c.h.bf16 %v4670
      %v4674 = vmul.f32 %v4672, %v311
      %v4675 = vmul.f32 %v4673, %v312
      %v4676 = vpack.c.bf16 %v4674, %v4674
      %v4677 = vpack.c.bf16 %v4675, %v4675
      %v4678 = vunpack.c.l.bf16 %v4671
      %v4679 = vmul.f32 %v4672, %v333
      %v4680 = vmul.f32 %v4673, %v337
      %v4681 = vmul.f32 %v4678, %v335
      %v4682 = vpack.c.bf16 %v4679, %v4679
      %v4683 = vpack.c.bf16 %v4680, %v4680
      %v4684 = vpack.c.bf16 %v4681, %v4681
      %4688 = vrot.lane.b32.xlu0 %v4682, 127
      %v4689 = vpop.permute.xlu0 %4688
      %4690 = vrot.lane.b32.xlu0 %v4683, 127
      %v4691 = vpop.permute.xlu0 %4690
      %4692 = vrot.lane.b32.xlu0 %v4684, 127
      %v4693 = vpop.permute.xlu0 %4692
      %v4694 = vsel %vm356, %v4689, %v4691
      %v4695 = vsel %vm356, %v4691, %v4693
      %v4697 = vsel %vm363, %v4694, 0
      %v4700 = vsel %vm363, %v4695, 0
      %4702 = vmatpush.bf16.msra.mxu0 0
      %4703 = vmatpush.bf16.msra.mxu0 0
      %4704 = vmatpush.bf16.msra.mxu0 0
      %4705 = vmatpush.bf16.msra.mxu0 0
      %4706 = vmatpush.bf16.msra.mxu0 0
      %4707 = vmatpush.bf16.msra.mxu0 0
      %4708 = vmatpush.bf16.msra.mxu0 0
      %4709 = vmatpush.bf16.msra.mxu0 %v4697
      %4710 = vmatmul.bf16.gmra.mxu0 %v361
      %v4711 = vpop.f32.mrf.mxu0
      %v4712 = vadd.f32 0.0, %v4711
      %v4713 = vpop.f32.mrf.mxu0
      %4714 = vdwg.mxu0
      %4715 = vmatpush.bf16.msra.mxu0 0
      %4716 = vmatpush.bf16.msra.mxu0 0
      %4717 = vmatpush.bf16.msra.mxu0 0
      %4718 = vmatpush.bf16.msra.mxu0 0
      %4719 = vmatpush.bf16.msra.mxu0 0
      %4720 = vmatpush.bf16.msra.mxu0 0
      %4721 = vmatpush.bf16.msra.mxu0 0
      %4722 = vmatpush.bf16.msra.mxu0 %v4700
      %4723 = vmatmul.bf16.gmra.mxu0 %v361
      %v4724 = vpop.f32.mrf.mxu0
      %v4725 = vadd.f32 0.0, %v4724
      %v4726 = vpop.f32.mrf.mxu0
      %4727 = vdwg.mxu0
      %v4729 = vsel %vm363, %v4676, 0
      %v4732 = vsel %vm363, %v4677, 0
      %4734 = vmatpush.bf16.msra.mxu0 0
      %4735 = vmatpush.bf16.msra.mxu0 0
      %4736 = vmatpush.bf16.msra.mxu0 0
      %4737 = vmatpush.bf16.msra.mxu0 0
      %4738 = vmatpush.bf16.msra.mxu0 0
      %4739 = vmatpush.bf16.msra.mxu0 0
      %4740 = vmatpush.bf16.msra.mxu0 0
      %4741 = vmatpush.bf16.msra.mxu0 %v4729
      %4742 = vmatmul.bf16.gmra.mxu0 %v397
      %v4743 = vpop.f32.mrf.mxu0
      %v4744 = vadd.f32 %v4712, %v4743
      %v4745 = vpop.f32.mrf.mxu0
      %4746 = vdwg.mxu0
      %4747 = vmatpush.bf16.msra.mxu0 0
      %4748 = vmatpush.bf16.msra.mxu0 0
      %4749 = vmatpush.bf16.msra.mxu0 0
      %4750 = vmatpush.bf16.msra.mxu0 0
      %4751 = vmatpush.bf16.msra.mxu0 0
      %4752 = vmatpush.bf16.msra.mxu0 0
      %4753 = vmatpush.bf16.msra.mxu0 0
      %4754 = vmatpush.bf16.msra.mxu0 %v4732
      %4755 = vmatmul.bf16.gmra.mxu0 %v397
      %v4756 = vpop.f32.mrf.mxu0
      %v4757 = vadd.f32 %v4725, %v4756
      %v4758 = vpop.f32.mrf.mxu0
      %4759 = vdwg.mxu0
      %v4760 = vmul.f32 %v4672, %v446
      %v4761 = vmul.f32 %v4673, %v450
      %v4762 = vmul.f32 %v4678, %v448
      %v4763 = vpack.c.bf16 %v4760, %v4760
      %v4764 = vpack.c.bf16 %v4761, %v4761
      %v4765 = vpack.c.bf16 %v4762, %v4762
      %4769 = vrot.lane.b32.xlu0 %v4763, 126
      %v4770 = vpop.permute.xlu0 %4769
      %4771 = vrot.lane.b32.xlu0 %v4764, 126
      %v4772 = vpop.permute.xlu0 %4771
      %4773 = vrot.lane.b32.xlu0 %v4765, 126
      %v4774 = vpop.permute.xlu0 %4773
      %v4775 = vsel %vm469, %v4770, %v4772
      %v4776 = vsel %vm469, %v4772, %v4774
      %v4778 = vsel %vm363, %v4775, 0
      %v4781 = vsel %vm363, %v4776, 0
      %4783 = vmatpush.bf16.msra.mxu0 0
      %4784 = vmatpush.bf16.msra.mxu0 0
      %4785 = vmatpush.bf16.msra.mxu0 0
      %4786 = vmatpush.bf16.msra.mxu0 0
      %4787 = vmatpush.bf16.msra.mxu0 0
      %4788 = vmatpush.bf16.msra.mxu0 0
      %4789 = vmatpush.bf16.msra.mxu0 0
      %4790 = vmatpush.bf16.msra.mxu0 %v4778
      %4791 = vmatmul.bf16.gmra.mxu0 %v473
      %v4792 = vpop.f32.mrf.mxu0
      %v4793 = vadd.f32 0.0, %v4792
      %v4794 = vpop.f32.mrf.mxu0
      %4795 = vdwg.mxu0
      %4796 = vmatpush.bf16.msra.mxu0 0
      %4797 = vmatpush.bf16.msra.mxu0 0
      %4798 = vmatpush.bf16.msra.mxu0 0
      %4799 = vmatpush.bf16.msra.mxu0 0
      %4800 = vmatpush.bf16.msra.mxu0 0
      %4801 = vmatpush.bf16.msra.mxu0 0
      %4802 = vmatpush.bf16.msra.mxu0 0
      %4803 = vmatpush.bf16.msra.mxu0 %v4781
      %4804 = vmatmul.bf16.gmra.mxu0 %v473
      %v4805 = vpop.f32.mrf.mxu0
      %v4806 = vadd.f32 0.0, %v4805
      %v4807 = vpop.f32.mrf.mxu0
      %4808 = vdwg.mxu0
      %v4809 = vadd.f32 %v4744, %v4793
      %v4810 = vadd.f32 %v4757, %v4806
      %v4811 = vmul.f32 %v4672, %v524
      %v4812 = vmul.f32 %v4673, %v528
      %v4813 = vmul.f32 %v4678, %v526
      %v4814 = vpack.c.bf16 %v4811, %v4811
      %v4815 = vpack.c.bf16 %v4812, %v4812
      %v4816 = vpack.c.bf16 %v4813, %v4813
      %4820 = vrot.lane.b32.xlu0 %v4814, 112
      %v4821 = vpop.permute.xlu0 %4820
      %4822 = vrot.lane.b32.xlu0 %v4815, 112
      %v4823 = vpop.permute.xlu0 %4822
      %4824 = vrot.lane.b32.xlu0 %v4816, 112
      %v4825 = vpop.permute.xlu0 %4824
      %v4826 = vsel %vm547, %v4821, %v4823
      %v4827 = vsel %vm547, %v4823, %v4825
      %v4829 = vsel %vm363, %v4826, 0
      %v4832 = vsel %vm363, %v4827, 0
      %4834 = vmatpush.bf16.msra.mxu0 0
      %4835 = vmatpush.bf16.msra.mxu0 0
      %4836 = vmatpush.bf16.msra.mxu0 0
      %4837 = vmatpush.bf16.msra.mxu0 0
      %4838 = vmatpush.bf16.msra.mxu0 0
      %4839 = vmatpush.bf16.msra.mxu0 0
      %4840 = vmatpush.bf16.msra.mxu0 0
      %4841 = vmatpush.bf16.msra.mxu0 %v4829
      %4842 = vmatmul.bf16.gmra.mxu0 %v551
      %v4843 = vpop.f32.mrf.mxu0
      %v4844 = vadd.f32 0.0, %v4843
      %v4845 = vpop.f32.mrf.mxu0
      %4846 = vdwg.mxu0
      %4847 = vmatpush.bf16.msra.mxu0 0
      %4848 = vmatpush.bf16.msra.mxu0 0
      %4849 = vmatpush.bf16.msra.mxu0 0
      %4850 = vmatpush.bf16.msra.mxu0 0
      %4851 = vmatpush.bf16.msra.mxu0 0
      %4852 = vmatpush.bf16.msra.mxu0 0
      %4853 = vmatpush.bf16.msra.mxu0 0
      %4854 = vmatpush.bf16.msra.mxu0 %v4832
      %4855 = vmatmul.bf16.gmra.mxu0 %v551
      %v4856 = vpop.f32.mrf.mxu0
      %v4857 = vadd.f32 0.0, %v4856
      %v4858 = vpop.f32.mrf.mxu0
      %4859 = vdwg.mxu0
      %v4860 = vadd.f32 %v4809, %v4844
      %v4861 = vadd.f32 %v4810, %v4857
      %v4862 = vmul.f32 %v4672, %v602
      %v4863 = vmul.f32 %v4673, %v606
      %v4864 = vmul.f32 %v4678, %v604
      %v4865 = vpack.c.bf16 %v4862, %v4862
      %v4866 = vpack.c.bf16 %v4863, %v4863
      %v4867 = vpack.c.bf16 %v4864, %v4864
      %4871 = vrot.lane.b32.xlu0 %v4865, 111
      %v4872 = vpop.permute.xlu0 %4871
      %4873 = vrot.lane.b32.xlu0 %v4866, 111
      %v4874 = vpop.permute.xlu0 %4873
      %4875 = vrot.lane.b32.xlu0 %v4867, 111
      %v4876 = vpop.permute.xlu0 %4875
      %v4877 = vsel %vm625, %v4872, %v4874
      %v4878 = vsel %vm625, %v4874, %v4876
      %v4880 = vsel %vm363, %v4877, 0
      %v4883 = vsel %vm363, %v4878, 0
      %4885 = vmatpush.bf16.msra.mxu0 0
      %4886 = vmatpush.bf16.msra.mxu0 0
      %4887 = vmatpush.bf16.msra.mxu0 0
      %4888 = vmatpush.bf16.msra.mxu0 0
      %4889 = vmatpush.bf16.msra.mxu0 0
      %4890 = vmatpush.bf16.msra.mxu0 0
      %4891 = vmatpush.bf16.msra.mxu0 0
      %4892 = vmatpush.bf16.msra.mxu0 %v4880
      %4893 = vmatmul.bf16.gmra.mxu0 %v629
      %v4894 = vpop.f32.mrf.mxu0
      %v4895 = vadd.f32 0.0, %v4894
      %v4896 = vpop.f32.mrf.mxu0
      %4897 = vdwg.mxu0
      %4898 = vmatpush.bf16.msra.mxu0 0
      %4899 = vmatpush.bf16.msra.mxu0 0
      %4900 = vmatpush.bf16.msra.mxu0 0
      %4901 = vmatpush.bf16.msra.mxu0 0
      %4902 = vmatpush.bf16.msra.mxu0 0
      %4903 = vmatpush.bf16.msra.mxu0 0
      %4904 = vmatpush.bf16.msra.mxu0 0
      %4905 = vmatpush.bf16.msra.mxu0 %v4883
      %4906 = vmatmul.bf16.gmra.mxu0 %v629
      %v4907 = vpop.f32.mrf.mxu0
      %v4908 = vadd.f32 0.0, %v4907
      %v4909 = vpop.f32.mrf.mxu0
      %4910 = vdwg.mxu0
      %v4911 = vadd.f32 %v4860, %v4895
      %v4912 = vadd.f32 %v4861, %v4908
      %v4913 = vmul.f32 %v4672, %v680
      %v4914 = vmul.f32 %v4673, %v684
      %v4915 = vmul.f32 %v4678, %v682
      %v4916 = vpack.c.bf16 %v4913, %v4913
      %v4917 = vpack.c.bf16 %v4914, %v4914
      %v4918 = vpack.c.bf16 %v4915, %v4915
      %4922 = vrot.lane.b32.xlu0 %v4916, 110
      %v4923 = vpop.permute.xlu0 %4922
      %4924 = vrot.lane.b32.xlu0 %v4917, 110
      %v4925 = vpop.permute.xlu0 %4924
      %4926 = vrot.lane.b32.xlu0 %v4918, 110
      %v4927 = vpop.permute.xlu0 %4926
      %v4928 = vsel %vm703, %v4923, %v4925
      %v4929 = vsel %vm703, %v4925, %v4927
      %v4931 = vsel %vm363, %v4928, 0
      %v4934 = vsel %vm363, %v4929, 0
      %4936 = vmatpush.bf16.msra.mxu0 0
      %4937 = vmatpush.bf16.msra.mxu0 0
      %4938 = vmatpush.bf16.msra.mxu0 0
      %4939 = vmatpush.bf16.msra.mxu0 0
      %4940 = vmatpush.bf16.msra.mxu0 0
      %4941 = vmatpush.bf16.msra.mxu0 0
      %4942 = vmatpush.bf16.msra.mxu0 0
      %4943 = vmatpush.bf16.msra.mxu0 %v4931
      %4944 = vmatmul.bf16.gmra.mxu0 %v707
      %v4945 = vpop.f32.mrf.mxu0
      %v4946 = vadd.f32 0.0, %v4945
      %v4947 = vpop.f32.mrf.mxu0
      %4948 = vdwg.mxu0
      %4949 = vmatpush.bf16.msra.mxu0 0
      %4950 = vmatpush.bf16.msra.mxu0 0
      %4951 = vmatpush.bf16.msra.mxu0 0
      %4952 = vmatpush.bf16.msra.mxu0 0
      %4953 = vmatpush.bf16.msra.mxu0 0
      %4954 = vmatpush.bf16.msra.mxu0 0
      %4955 = vmatpush.bf16.msra.mxu0 0
      %4956 = vmatpush.bf16.msra.mxu0 %v4934
      %4957 = vmatmul.bf16.gmra.mxu0 %v707
      %v4958 = vpop.f32.mrf.mxu0
      %v4959 = vadd.f32 0.0, %v4958
      %v4960 = vpop.f32.mrf.mxu0
      %4961 = vdwg.mxu0
      %v4962 = vadd.f32 %v4911, %v4946
      %v4963 = vadd.f32 %v4912, %v4959
      %v4964 = vmul.f32 %v4672, %v758
      %v4965 = vmul.f32 %v4673, %v762
      %v4966 = vmul.f32 %v4678, %v760
      %v4967 = vpack.c.bf16 %v4964, %v4964
      %v4968 = vpack.c.bf16 %v4965, %v4965
      %v4969 = vpack.c.bf16 %v4966, %v4966
      %4973 = vrot.lane.b32.xlu0 %v4967, 96
      %v4974 = vpop.permute.xlu0 %4973
      %4975 = vrot.lane.b32.xlu0 %v4968, 96
      %v4976 = vpop.permute.xlu0 %4975
      %4977 = vrot.lane.b32.xlu0 %v4969, 96
      %v4978 = vpop.permute.xlu0 %4977
      %v4979 = vsel %vm781, %v4974, %v4976
      %v4980 = vsel %vm781, %v4976, %v4978
      %v4982 = vsel %vm363, %v4979, 0
      %v4985 = vsel %vm363, %v4980, 0
      %4987 = vmatpush.bf16.msra.mxu0 0
      %4988 = vmatpush.bf16.msra.mxu0 0
      %4989 = vmatpush.bf16.msra.mxu0 0
      %4990 = vmatpush.bf16.msra.mxu0 0
      %4991 = vmatpush.bf16.msra.mxu0 0
      %4992 = vmatpush.bf16.msra.mxu0 0
      %4993 = vmatpush.bf16.msra.mxu0 0
      %4994 = vmatpush.bf16.msra.mxu0 %v4982
      %4995 = vmatmul.bf16.gmra.mxu0 %v785
      %v4996 = vpop.f32.mrf.mxu0
      %v4997 = vadd.f32 0.0, %v4996
      %v4998 = vpop.f32.mrf.mxu0
      %4999 = vdwg.mxu0
      %5000 = vmatpush.bf16.msra.mxu0 0
      %5001 = vmatpush.bf16.msra.mxu0 0
      %5002 = vmatpush.bf16.msra.mxu0 0
      %5003 = vmatpush.bf16.msra.mxu0 0
      %5004 = vmatpush.bf16.msra.mxu0 0
      %5005 = vmatpush.bf16.msra.mxu0 0
      %5006 = vmatpush.bf16.msra.mxu0 0
      %5007 = vmatpush.bf16.msra.mxu0 %v4985
      %5008 = vmatmul.bf16.gmra.mxu0 %v785
      %v5009 = vpop.f32.mrf.mxu0
      %v5010 = vadd.f32 0.0, %v5009
      %v5011 = vpop.f32.mrf.mxu0
      %5012 = vdwg.mxu0
      %v5013 = vadd.f32 %v4962, %v4997
      %v5014 = vadd.f32 %v4963, %v5010
      %v5015 = vmul.f32 %v4672, %v836
      %v5016 = vmul.f32 %v4673, %v840
      %v5017 = vmul.f32 %v4678, %v838
      %v5018 = vpack.c.bf16 %v5015, %v5015
      %v5019 = vpack.c.bf16 %v5016, %v5016
      %v5020 = vpack.c.bf16 %v5017, %v5017
      %5024 = vrot.lane.b32.xlu0 %v5018, 95
      %v5025 = vpop.permute.xlu0 %5024
      %5026 = vrot.lane.b32.xlu0 %v5019, 95
      %v5027 = vpop.permute.xlu0 %5026
      %5028 = vrot.lane.b32.xlu0 %v5020, 95
      %v5029 = vpop.permute.xlu0 %5028
      %v5030 = vsel %vm859, %v5025, %v5027
      %v5031 = vsel %vm859, %v5027, %v5029
      %v5033 = vsel %vm363, %v5030, 0
      %v5036 = vsel %vm363, %v5031, 0
      %5038 = vmatpush.bf16.msra.mxu0 0
      %5039 = vmatpush.bf16.msra.mxu0 0
      %5040 = vmatpush.bf16.msra.mxu0 0
      %5041 = vmatpush.bf16.msra.mxu0 0
      %5042 = vmatpush.bf16.msra.mxu0 0
      %5043 = vmatpush.bf16.msra.mxu0 0
      %5044 = vmatpush.bf16.msra.mxu0 0
      %5045 = vmatpush.bf16.msra.mxu0 %v5033
      %5046 = vmatmul.bf16.gmra.mxu0 %v863
      %v5047 = vpop.f32.mrf.mxu0
      %v5048 = vadd.f32 0.0, %v5047
      %v5049 = vpop.f32.mrf.mxu0
      %5050 = vdwg.mxu0
      %5051 = vmatpush.bf16.msra.mxu0 0
      %5052 = vmatpush.bf16.msra.mxu0 0
      %5053 = vmatpush.bf16.msra.mxu0 0
      %5054 = vmatpush.bf16.msra.mxu0 0
      %5055 = vmatpush.bf16.msra.mxu0 0
      %5056 = vmatpush.bf16.msra.mxu0 0
      %5057 = vmatpush.bf16.msra.mxu0 0
      %5058 = vmatpush.bf16.msra.mxu0 %v5036
      %5059 = vmatmul.bf16.gmra.mxu0 %v863
      %v5060 = vpop.f32.mrf.mxu0
      %v5061 = vadd.f32 0.0, %v5060
      %v5062 = vpop.f32.mrf.mxu0
      %5063 = vdwg.mxu0
      %v5064 = vadd.f32 %v5013, %v5048
      %v5065 = vadd.f32 %v5014, %v5061
      %v5066 = vmul.f32 %v4672, %v914
      %v5067 = vmul.f32 %v4673, %v918
      %v5068 = vmul.f32 %v4678, %v916
      %v5069 = vpack.c.bf16 %v5066, %v5066
      %v5070 = vpack.c.bf16 %v5067, %v5067
      %v5071 = vpack.c.bf16 %v5068, %v5068
      %5075 = vrot.lane.b32.xlu0 %v5069, 94
      %v5076 = vpop.permute.xlu0 %5075
      %5077 = vrot.lane.b32.xlu0 %v5070, 94
      %v5078 = vpop.permute.xlu0 %5077
      %5079 = vrot.lane.b32.xlu0 %v5071, 94
      %v5080 = vpop.permute.xlu0 %5079
      %v5081 = vsel %vm937, %v5076, %v5078
      %v5082 = vsel %vm937, %v5078, %v5080
      %v5084 = vsel %vm363, %v5081, 0
      %v5087 = vsel %vm363, %v5082, 0
      %5089 = vmatpush.bf16.msra.mxu0 0
      %5090 = vmatpush.bf16.msra.mxu0 0
      %5091 = vmatpush.bf16.msra.mxu0 0
      %5092 = vmatpush.bf16.msra.mxu0 0
      %5093 = vmatpush.bf16.msra.mxu0 0
      %5094 = vmatpush.bf16.msra.mxu0 0
      %5095 = vmatpush.bf16.msra.mxu0 0
      %5096 = vmatpush.bf16.msra.mxu0 %v5084
      %5097 = vmatmul.bf16.gmra.mxu0 %v941
      %v5098 = vpop.f32.mrf.mxu0
      %v5099 = vadd.f32 0.0, %v5098
      %v5100 = vpop.f32.mrf.mxu0
      %5101 = vdwg.mxu0
      %5102 = vmatpush.bf16.msra.mxu0 0
      %5103 = vmatpush.bf16.msra.mxu0 0
      %5104 = vmatpush.bf16.msra.mxu0 0
      %5105 = vmatpush.bf16.msra.mxu0 0
      %5106 = vmatpush.bf16.msra.mxu0 0
      %5107 = vmatpush.bf16.msra.mxu0 0
      %5108 = vmatpush.bf16.msra.mxu0 0
      %5109 = vmatpush.bf16.msra.mxu0 %v5087
      %5110 = vmatmul.bf16.gmra.mxu0 %v941
      %v5111 = vpop.f32.mrf.mxu0
      %v5112 = vadd.f32 0.0, %v5111
      %v5113 = vpop.f32.mrf.mxu0
      %5114 = vdwg.mxu0
      %v5115 = vadd.f32 %v5064, %v5099
      %v5116 = vadd.f32 %v5065, %v5112
      %v5117 = vld [vmem:[%s4212] sm:$0xff]
      %v5118 = vld [vmem:[%s4212 + $0x8] sm:$0xf]
      %v5119 = vunpack.c.l.bf16 %v5117
      %v5120 = vunpack.c.h.bf16 %v5117
      %v5121 = vmul.f32 %v5119, %v311
      %v5122 = vmul.f32 %v5120, %v312
      %v5123 = vpack.c.bf16 %v5121, %v5121
      %v5124 = vpack.c.bf16 %v5122, %v5122
      %v5126 = vsel %vm363, %v5123, 0
      %v5129 = vsel %vm363, %v5124, 0
      %5131 = vmatpush.bf16.msra.mxu0 0
      %5132 = vmatpush.bf16.msra.mxu0 0
      %5133 = vmatpush.bf16.msra.mxu0 0
      %5134 = vmatpush.bf16.msra.mxu0 0
      %5135 = vmatpush.bf16.msra.mxu0 0
      %5136 = vmatpush.bf16.msra.mxu0 0
      %5137 = vmatpush.bf16.msra.mxu0 0
      %5138 = vmatpush.bf16.msra.mxu0 %v5126
      %5139 = vmatmul.bf16.gmra.mxu0 %v990
      %v5140 = vpop.f32.mrf.mxu0
      %v5141 = vadd.f32 0.0, %v5140
      %v5142 = vpop.f32.mrf.mxu0
      %5143 = vdwg.mxu0
      %5144 = vmatpush.bf16.msra.mxu0 0
      %5145 = vmatpush.bf16.msra.mxu0 0
      %5146 = vmatpush.bf16.msra.mxu0 0
      %5147 = vmatpush.bf16.msra.mxu0 0
      %5148 = vmatpush.bf16.msra.mxu0 0
      %5149 = vmatpush.bf16.msra.mxu0 0
      %5150 = vmatpush.bf16.msra.mxu0 0
      %5151 = vmatpush.bf16.msra.mxu0 %v5129
      %5152 = vmatmul.bf16.gmra.mxu0 %v990
      %v5153 = vpop.f32.mrf.mxu0
      %v5154 = vadd.f32 0.0, %v5153
      %v5155 = vpop.f32.mrf.mxu0
      %5156 = vdwg.mxu0
      %v5157 = vadd.f32 %v5115, %v5141
      %v5158 = vadd.f32 %v5116, %v5154
      %v5159 = vunpack.c.l.bf16 %v5118
      %v5160 = vmul.f32 %v5119, %v333
      %v5161 = vmul.f32 %v5120, %v337
      %v5162 = vmul.f32 %v5159, %v335
      %v5163 = vpack.c.bf16 %v5160, %v5160
      %v5164 = vpack.c.bf16 %v5161, %v5161
      %v5165 = vpack.c.bf16 %v5162, %v5162
      %5169 = vrot.lane.b32.xlu0 %v5163, 127
      %v5170 = vpop.permute.xlu0 %5169
      %5171 = vrot.lane.b32.xlu0 %v5164, 127
      %v5172 = vpop.permute.xlu0 %5171
      %5173 = vrot.lane.b32.xlu0 %v5165, 127
      %v5174 = vpop.permute.xlu0 %5173
      %v5175 = vsel %vm356, %v5170, %v5172
      %v5176 = vsel %vm356, %v5172, %v5174
      %v5178 = vsel %vm363, %v5175, 0
      %v5181 = vsel %vm363, %v5176, 0
      %5183 = vmatpush.bf16.msra.mxu0 0
      %5184 = vmatpush.bf16.msra.mxu0 0
      %5185 = vmatpush.bf16.msra.mxu0 0
      %5186 = vmatpush.bf16.msra.mxu0 0
      %5187 = vmatpush.bf16.msra.mxu0 0
      %5188 = vmatpush.bf16.msra.mxu0 0
      %5189 = vmatpush.bf16.msra.mxu0 0
      %5190 = vmatpush.bf16.msra.mxu0 %v5178
      %5191 = vmatmul.bf16.gmra.mxu0 %v1045
      %v5192 = vpop.f32.mrf.mxu0
      %v5193 = vadd.f32 0.0, %v5192
      %v5194 = vpop.f32.mrf.mxu0
      %5195 = vdwg.mxu0
      %5196 = vmatpush.bf16.msra.mxu0 0
      %5197 = vmatpush.bf16.msra.mxu0 0
      %5198 = vmatpush.bf16.msra.mxu0 0
      %5199 = vmatpush.bf16.msra.mxu0 0
      %5200 = vmatpush.bf16.msra.mxu0 0
      %5201 = vmatpush.bf16.msra.mxu0 0
      %5202 = vmatpush.bf16.msra.mxu0 0
      %5203 = vmatpush.bf16.msra.mxu0 %v5181
      %5204 = vmatmul.bf16.gmra.mxu0 %v1045
      %v5205 = vpop.f32.mrf.mxu0
      %v5206 = vadd.f32 0.0, %v5205
      %v5207 = vpop.f32.mrf.mxu0
      %5208 = vdwg.mxu0
      %v5209 = vadd.f32 %v5157, %v5193
      %v5210 = vadd.f32 %v5158, %v5206
      %v5211 = vmul.f32 %v5119, %v446
      %v5212 = vmul.f32 %v5120, %v450
      %v5213 = vmul.f32 %v5159, %v448
      %v5214 = vpack.c.bf16 %v5211, %v5211
      %v5215 = vpack.c.bf16 %v5212, %v5212
      %v5216 = vpack.c.bf16 %v5213, %v5213
      %5220 = vrot.lane.b32.xlu0 %v5214, 126
      %v5221 = vpop.permute.xlu0 %5220
      %5222 = vrot.lane.b32.xlu0 %v5215, 126
      %v5223 = vpop.permute.xlu0 %5222
      %5224 = vrot.lane.b32.xlu0 %v5216, 126
      %v5225 = vpop.permute.xlu0 %5224
      %v5226 = vsel %vm469, %v5221, %v5223
      %v5227 = vsel %vm469, %v5223, %v5225
      %v5229 = vsel %vm363, %v5226, 0
      %v5232 = vsel %vm363, %v5227, 0
      %5234 = vmatpush.bf16.msra.mxu0 0
      %5235 = vmatpush.bf16.msra.mxu0 0
      %5236 = vmatpush.bf16.msra.mxu0 0
      %5237 = vmatpush.bf16.msra.mxu0 0
      %5238 = vmatpush.bf16.msra.mxu0 0
      %5239 = vmatpush.bf16.msra.mxu0 0
      %5240 = vmatpush.bf16.msra.mxu0 0
      %5241 = vmatpush.bf16.msra.mxu0 %v5229
      %5242 = vmatmul.bf16.gmra.mxu0 %v1099
      %v5243 = vpop.f32.mrf.mxu0
      %v5244 = vadd.f32 0.0, %v5243
      %v5245 = vpop.f32.mrf.mxu0
      %5246 = vdwg.mxu0
      %5247 = vmatpush.bf16.msra.mxu0 0
      %5248 = vmatpush.bf16.msra.mxu0 0
      %5249 = vmatpush.bf16.msra.mxu0 0
      %5250 = vmatpush.bf16.msra.mxu0 0
      %5251 = vmatpush.bf16.msra.mxu0 0
      %5252 = vmatpush.bf16.msra.mxu0 0
      %5253 = vmatpush.bf16.msra.mxu0 0
      %5254 = vmatpush.bf16.msra.mxu0 %v5232
      %5255 = vmatmul.bf16.gmra.mxu0 %v1099
      %v5256 = vpop.f32.mrf.mxu0
      %v5257 = vadd.f32 0.0, %v5256
      %v5258 = vpop.f32.mrf.mxu0
      %5259 = vdwg.mxu0
      %v5260 = vadd.f32 %v5209, %v5244
      %v5261 = vadd.f32 %v5210, %v5257
      %v5262 = vmul.f32 %v5119, %v524
      %v5263 = vmul.f32 %v5120, %v528
      %v5264 = vmul.f32 %v5159, %v526
      %v5265 = vpack.c.bf16 %v5262, %v5262
      %v5266 = vpack.c.bf16 %v5263, %v5263
      %v5267 = vpack.c.bf16 %v5264, %v5264
      %5271 = vrot.lane.b32.xlu0 %v5265, 112
      %v5272 = vpop.permute.xlu0 %5271
      %5273 = vrot.lane.b32.xlu0 %v5266, 112
      %v5274 = vpop.permute.xlu0 %5273
      %5275 = vrot.lane.b32.xlu0 %v5267, 112
      %v5276 = vpop.permute.xlu0 %5275
      %v5277 = vsel %vm547, %v5272, %v5274
      %v5278 = vsel %vm547, %v5274, %v5276
      %v5280 = vsel %vm363, %v5277, 0
      %v5283 = vsel %vm363, %v5278, 0
      %5285 = vmatpush.bf16.msra.mxu0 0
      %5286 = vmatpush.bf16.msra.mxu0 0
      %5287 = vmatpush.bf16.msra.mxu0 0
      %5288 = vmatpush.bf16.msra.mxu0 0
      %5289 = vmatpush.bf16.msra.mxu0 0
      %5290 = vmatpush.bf16.msra.mxu0 0
      %5291 = vmatpush.bf16.msra.mxu0 0
      %5292 = vmatpush.bf16.msra.mxu0 %v5280
      %5293 = vmatmul.bf16.gmra.mxu0 %v1153
      %v5294 = vpop.f32.mrf.mxu0
      %v5295 = vadd.f32 0.0, %v5294
      %v5296 = vpop.f32.mrf.mxu0
      %5297 = vdwg.mxu0
      %5298 = vmatpush.bf16.msra.mxu0 0
      %5299 = vmatpush.bf16.msra.mxu0 0
      %5300 = vmatpush.bf16.msra.mxu0 0
      %5301 = vmatpush.bf16.msra.mxu0 0
      %5302 = vmatpush.bf16.msra.mxu0 0
      %5303 = vmatpush.bf16.msra.mxu0 0
      %5304 = vmatpush.bf16.msra.mxu0 0
      %5305 = vmatpush.bf16.msra.mxu0 %v5283
      %5306 = vmatmul.bf16.gmra.mxu0 %v1153
      %v5307 = vpop.f32.mrf.mxu0
      %v5308 = vadd.f32 0.0, %v5307
      %v5309 = vpop.f32.mrf.mxu0
      %5310 = vdwg.mxu0
      %v5311 = vadd.f32 %v5260, %v5295
      %v5312 = vadd.f32 %v5261, %v5308
      %v5313 = vmul.f32 %v5119, %v602
      %v5314 = vmul.f32 %v5120, %v606
      %v5315 = vmul.f32 %v5159, %v604
      %v5316 = vpack.c.bf16 %v5313, %v5313
      %v5317 = vpack.c.bf16 %v5314, %v5314
      %v5318 = vpack.c.bf16 %v5315, %v5315
      %5322 = vrot.lane.b32.xlu0 %v5316, 111
      %v5323 = vpop.permute.xlu0 %5322
      %5324 = vrot.lane.b32.xlu0 %v5317, 111
      %v5325 = vpop.permute.xlu0 %5324
      %5326 = vrot.lane.b32.xlu0 %v5318, 111
      %v5327 = vpop.permute.xlu0 %5326
      %v5328 = vsel %vm625, %v5323, %v5325
      %v5329 = vsel %vm625, %v5325, %v5327
      %v5331 = vsel %vm363, %v5328, 0
      %v5334 = vsel %vm363, %v5329, 0
      %5336 = vmatpush.bf16.msra.mxu0 0
      %5337 = vmatpush.bf16.msra.mxu0 0
      %5338 = vmatpush.bf16.msra.mxu0 0
      %5339 = vmatpush.bf16.msra.mxu0 0
      %5340 = vmatpush.bf16.msra.mxu0 0
      %5341 = vmatpush.bf16.msra.mxu0 0
      %5342 = vmatpush.bf16.msra.mxu0 0
      %5343 = vmatpush.bf16.msra.mxu0 %v5331
      %5344 = vmatmul.bf16.gmra.mxu0 %v1207
      %v5345 = vpop.f32.mrf.mxu0
      %v5346 = vadd.f32 0.0, %v5345
      %v5347 = vpop.f32.mrf.mxu0
      %5348 = vdwg.mxu0
      %5349 = vmatpush.bf16.msra.mxu0 0
      %5350 = vmatpush.bf16.msra.mxu0 0
      %5351 = vmatpush.bf16.msra.mxu0 0
      %5352 = vmatpush.bf16.msra.mxu0 0
      %5353 = vmatpush.bf16.msra.mxu0 0
      %5354 = vmatpush.bf16.msra.mxu0 0
      %5355 = vmatpush.bf16.msra.mxu0 0
      %5356 = vmatpush.bf16.msra.mxu0 %v5334
      %5357 = vmatmul.bf16.gmra.mxu0 %v1207
      %v5358 = vpop.f32.mrf.mxu0
      %v5359 = vadd.f32 0.0, %v5358
      %v5360 = vpop.f32.mrf.mxu0
      %5361 = vdwg.mxu0
      %v5362 = vadd.f32 %v5311, %v5346
      %v5363 = vadd.f32 %v5312, %v5359
      %v5364 = vmul.f32 %v5119, %v680
      %v5365 = vmul.f32 %v5120, %v684
      %v5366 = vmul.f32 %v5159, %v682
      %v5367 = vpack.c.bf16 %v5364, %v5364
      %v5368 = vpack.c.bf16 %v5365, %v5365
      %v5369 = vpack.c.bf16 %v5366, %v5366
      %5373 = vrot.lane.b32.xlu0 %v5367, 110
      %v5374 = vpop.permute.xlu0 %5373
      %5375 = vrot.lane.b32.xlu0 %v5368, 110
      %v5376 = vpop.permute.xlu0 %5375
      %5377 = vrot.lane.b32.xlu0 %v5369, 110
      %v5378 = vpop.permute.xlu0 %5377
      %v5379 = vsel %vm703, %v5374, %v5376
      %v5380 = vsel %vm703, %v5376, %v5378
      %v5382 = vsel %vm363, %v5379, 0
      %v5385 = vsel %vm363, %v5380, 0
      %5387 = vmatpush.bf16.msra.mxu0 0
      %5388 = vmatpush.bf16.msra.mxu0 0
      %5389 = vmatpush.bf16.msra.mxu0 0
      %5390 = vmatpush.bf16.msra.mxu0 0
      %5391 = vmatpush.bf16.msra.mxu0 0
      %5392 = vmatpush.bf16.msra.mxu0 0
      %5393 = vmatpush.bf16.msra.mxu0 0
      %5394 = vmatpush.bf16.msra.mxu0 %v5382
      %5395 = vmatmul.bf16.gmra.mxu0 %v1261
      %v5396 = vpop.f32.mrf.mxu0
      %v5397 = vadd.f32 0.0, %v5396
      %v5398 = vpop.f32.mrf.mxu0
      %5399 = vdwg.mxu0
      %5400 = vmatpush.bf16.msra.mxu0 0
      %5401 = vmatpush.bf16.msra.mxu0 0
      %5402 = vmatpush.bf16.msra.mxu0 0
      %5403 = vmatpush.bf16.msra.mxu0 0
      %5404 = vmatpush.bf16.msra.mxu0 0
      %5405 = vmatpush.bf16.msra.mxu0 0
      %5406 = vmatpush.bf16.msra.mxu0 0
      %5407 = vmatpush.bf16.msra.mxu0 %v5385
      %5408 = vmatmul.bf16.gmra.mxu0 %v1261
      %v5409 = vpop.f32.mrf.mxu0
      %v5410 = vadd.f32 0.0, %v5409
      %v5411 = vpop.f32.mrf.mxu0
      %5412 = vdwg.mxu0
      %v5413 = vadd.f32 %v5362, %v5397
      %v5414 = vadd.f32 %v5363, %v5410
      %v5415 = vmul.f32 %v5119, %v758
      %v5416 = vmul.f32 %v5120, %v762
      %v5417 = vmul.f32 %v5159, %v760
      %v5418 = vpack.c.bf16 %v5415, %v5415
      %v5419 = vpack.c.bf16 %v5416, %v5416
      %v5420 = vpack.c.bf16 %v5417, %v5417
      %5424 = vrot.lane.b32.xlu0 %v5418, 96
      %v5425 = vpop.permute.xlu0 %5424
      %5426 = vrot.lane.b32.xlu0 %v5419, 96
      %v5427 = vpop.permute.xlu0 %5426
      %5428 = vrot.lane.b32.xlu0 %v5420, 96
      %v5429 = vpop.permute.xlu0 %5428
      %v5430 = vsel %vm781, %v5425, %v5427
      %v5431 = vsel %vm781, %v5427, %v5429
      %v5433 = vsel %vm363, %v5430, 0
      %v5436 = vsel %vm363, %v5431, 0
      %5438 = vmatpush.bf16.msra.mxu0 0
      %5439 = vmatpush.bf16.msra.mxu0 0
      %5440 = vmatpush.bf16.msra.mxu0 0
      %5441 = vmatpush.bf16.msra.mxu0 0
      %5442 = vmatpush.bf16.msra.mxu0 0
      %5443 = vmatpush.bf16.msra.mxu0 0
      %5444 = vmatpush.bf16.msra.mxu0 0
      %5445 = vmatpush.bf16.msra.mxu0 %v5433
      %5446 = vmatmul.bf16.gmra.mxu0 %v1315
      %v5447 = vpop.f32.mrf.mxu0
      %v5448 = vadd.f32 0.0, %v5447
      %v5449 = vpop.f32.mrf.mxu0
      %5450 = vdwg.mxu0
      %5451 = vmatpush.bf16.msra.mxu0 0
      %5452 = vmatpush.bf16.msra.mxu0 0
      %5453 = vmatpush.bf16.msra.mxu0 0
      %5454 = vmatpush.bf16.msra.mxu0 0
      %5455 = vmatpush.bf16.msra.mxu0 0
      %5456 = vmatpush.bf16.msra.mxu0 0
      %5457 = vmatpush.bf16.msra.mxu0 0
      %5458 = vmatpush.bf16.msra.mxu0 %v5436
      %5459 = vmatmul.bf16.gmra.mxu0 %v1315
      %v5460 = vpop.f32.mrf.mxu0
      %v5461 = vadd.f32 0.0, %v5460
      %v5462 = vpop.f32.mrf.mxu0
      %5463 = vdwg.mxu0
      %v5464 = vadd.f32 %v5413, %v5448
      %v5465 = vadd.f32 %v5414, %v5461
      %v5466 = vmul.f32 %v5119, %v836
      %v5467 = vmul.f32 %v5120, %v840
      %v5468 = vmul.f32 %v5159, %v838
      %v5469 = vpack.c.bf16 %v5466, %v5466
      %v5470 = vpack.c.bf16 %v5467, %v5467
      %v5471 = vpack.c.bf16 %v5468, %v5468
      %5475 = vrot.lane.b32.xlu0 %v5469, 95
      %v5476 = vpop.permute.xlu0 %5475
      %5477 = vrot.lane.b32.xlu0 %v5470, 95
      %v5478 = vpop.permute.xlu0 %5477
      %5479 = vrot.lane.b32.xlu0 %v5471, 95
      %v5480 = vpop.permute.xlu0 %5479
      %v5481 = vsel %vm859, %v5476, %v5478
      %v5482 = vsel %vm859, %v5478, %v5480
      %v5484 = vsel %vm363, %v5481, 0
      %v5487 = vsel %vm363, %v5482, 0
      %5489 = vmatpush.bf16.msra.mxu0 0
      %5490 = vmatpush.bf16.msra.mxu0 0
      %5491 = vmatpush.bf16.msra.mxu0 0
      %5492 = vmatpush.bf16.msra.mxu0 0
      %5493 = vmatpush.bf16.msra.mxu0 0
      %5494 = vmatpush.bf16.msra.mxu0 0
      %5495 = vmatpush.bf16.msra.mxu0 0
      %5496 = vmatpush.bf16.msra.mxu0 %v5484
      %5497 = vmatmul.bf16.gmra.mxu0 %v1369
      %v5498 = vpop.f32.mrf.mxu0
      %v5499 = vadd.f32 0.0, %v5498
      %v5500 = vpop.f32.mrf.mxu0
      %5501 = vdwg.mxu0
      %5502 = vmatpush.bf16.msra.mxu0 0
      %5503 = vmatpush.bf16.msra.mxu0 0
      %5504 = vmatpush.bf16.msra.mxu0 0
      %5505 = vmatpush.bf16.msra.mxu0 0
      %5506 = vmatpush.bf16.msra.mxu0 0
      %5507 = vmatpush.bf16.msra.mxu0 0
      %5508 = vmatpush.bf16.msra.mxu0 0
      %5509 = vmatpush.bf16.msra.mxu0 %v5487
      %5510 = vmatmul.bf16.gmra.mxu0 %v1369
      %v5511 = vpop.f32.mrf.mxu0
      %v5512 = vadd.f32 0.0, %v5511
      %v5513 = vpop.f32.mrf.mxu0
      %5514 = vdwg.mxu0
      %v5515 = vadd.f32 %v5464, %v5499
      %v5516 = vadd.f32 %v5465, %v5512
      %v5517 = vmul.f32 %v5119, %v914
      %v5518 = vmul.f32 %v5120, %v918
      %v5519 = vmul.f32 %v5159, %v916
      %v5520 = vpack.c.bf16 %v5517, %v5517
      %v5521 = vpack.c.bf16 %v5518, %v5518
      %v5522 = vpack.c.bf16 %v5519, %v5519
      %5526 = vrot.lane.b32.xlu0 %v5520, 94
      %v5527 = vpop.permute.xlu0 %5526
      %5528 = vrot.lane.b32.xlu0 %v5521, 94
      %v5529 = vpop.permute.xlu0 %5528
      %5530 = vrot.lane.b32.xlu0 %v5522, 94
      %v5531 = vpop.permute.xlu0 %5530
      %v5532 = vsel %vm937, %v5527, %v5529
      %v5533 = vsel %vm937, %v5529, %v5531
      %v5535 = vsel %vm363, %v5532, 0
      %v5538 = vsel %vm363, %v5533, 0
      %5540 = vmatpush.bf16.msra.mxu0 0
      %5541 = vmatpush.bf16.msra.mxu0 0
      %5542 = vmatpush.bf16.msra.mxu0 0
      %5543 = vmatpush.bf16.msra.mxu0 0
      %5544 = vmatpush.bf16.msra.mxu0 0
      %5545 = vmatpush.bf16.msra.mxu0 0
      %5546 = vmatpush.bf16.msra.mxu0 0
      %5547 = vmatpush.bf16.msra.mxu0 %v5535
      %5548 = vmatmul.bf16.gmra.mxu0 %v1423
      %v5549 = vpop.f32.mrf.mxu0
      %v5550 = vadd.f32 0.0, %v5549
      %v5551 = vpop.f32.mrf.mxu0
      %5552 = vdwg.mxu0
      %5553 = vmatpush.bf16.msra.mxu0 0
      %5554 = vmatpush.bf16.msra.mxu0 0
      %5555 = vmatpush.bf16.msra.mxu0 0
      %5556 = vmatpush.bf16.msra.mxu0 0
      %5557 = vmatpush.bf16.msra.mxu0 0
      %5558 = vmatpush.bf16.msra.mxu0 0
      %5559 = vmatpush.bf16.msra.mxu0 0
      %5560 = vmatpush.bf16.msra.mxu0 %v5538
      %5561 = vmatmul.bf16.gmra.mxu0 %v1423
      %v5562 = vpop.f32.mrf.mxu0
      %v5563 = vadd.f32 0.0, %v5562
      %v5564 = vpop.f32.mrf.mxu0
      %5565 = vdwg.mxu0
      %v5566 = vadd.f32 %v5515, %v5550
      %v5567 = vadd.f32 %v5516, %v5563
      %s5568 = sadd.s32 %s293, 5
      %s5569 = smul.u32 %s5568, 3
      %s5570 = smul.addr %s5569, 4
      %s5571 = scalar_lea.vmem %s210, %s5570
      %v5572 = vld [vmem:[%s5571] sm:$0xff]
      %v5573 = vld [vmem:[%s5571 + $0x8] sm:$0xf]
      %v5574 = vunpack.c.l.bf16 %v5572
      %v5575 = vunpack.c.h.bf16 %v5572
      %v5576 = vmul.f32 %v5574, %v311
      %v5577 = vmul.f32 %v5575, %v312
      %v5578 = vpack.c.bf16 %v5576, %v5576
      %v5579 = vpack.c.bf16 %v5577, %v5577
      %v5581 = vsel %vm363, %v5578, 0
      %v5584 = vsel %vm363, %v5579, 0
      %5586 = vmatpush.bf16.msra.mxu0 0
      %5587 = vmatpush.bf16.msra.mxu0 0
      %5588 = vmatpush.bf16.msra.mxu0 0
      %5589 = vmatpush.bf16.msra.mxu0 0
      %5590 = vmatpush.bf16.msra.mxu0 0
      %5591 = vmatpush.bf16.msra.mxu0 0
      %5592 = vmatpush.bf16.msra.mxu0 0
      %5593 = vmatpush.bf16.msra.mxu0 %v5581
      %5594 = vmatmul.bf16.gmra.mxu0 %v1472
      %v5595 = vpop.f32.mrf.mxu0
      %v5596 = vadd.f32 0.0, %v5595
      %v5597 = vpop.f32.mrf.mxu0
      %5598 = vdwg.mxu0
      %5599 = vmatpush.bf16.msra.mxu0 0
      %5600 = vmatpush.bf16.msra.mxu0 0
      %5601 = vmatpush.bf16.msra.mxu0 0
      %5602 = vmatpush.bf16.msra.mxu0 0
      %5603 = vmatpush.bf16.msra.mxu0 0
      %5604 = vmatpush.bf16.msra.mxu0 0
      %5605 = vmatpush.bf16.msra.mxu0 0
      %5606 = vmatpush.bf16.msra.mxu0 %v5584
      %5607 = vmatmul.bf16.gmra.mxu0 %v1472
      %v5608 = vpop.f32.mrf.mxu0
      %v5609 = vadd.f32 0.0, %v5608
      %v5610 = vpop.f32.mrf.mxu0
      %5611 = vdwg.mxu0
      %v5612 = vadd.f32 %v5566, %v5596
      %v5613 = vadd.f32 %v5567, %v5609
      %v5614 = vunpack.c.l.bf16 %v5573
      %v5615 = vmul.f32 %v5574, %v333
      %v5616 = vmul.f32 %v5575, %v337
      %v5617 = vmul.f32 %v5614, %v335
      %v5618 = vpack.c.bf16 %v5615, %v5615
      %v5619 = vpack.c.bf16 %v5616, %v5616
      %v5620 = vpack.c.bf16 %v5617, %v5617
      %5624 = vrot.lane.b32.xlu0 %v5618, 127
      %v5625 = vpop.permute.xlu0 %5624
      %5626 = vrot.lane.b32.xlu0 %v5619, 127
      %v5627 = vpop.permute.xlu0 %5626
      %5628 = vrot.lane.b32.xlu0 %v5620, 127
      %v5629 = vpop.permute.xlu0 %5628
      %v5630 = vsel %vm356, %v5625, %v5627
      %v5631 = vsel %vm356, %v5627, %v5629
      %v5633 = vsel %vm363, %v5630, 0
      %v5636 = vsel %vm363, %v5631, 0
      %5638 = vmatpush.bf16.msra.mxu0 0
      %5639 = vmatpush.bf16.msra.mxu0 0
      %5640 = vmatpush.bf16.msra.mxu0 0
      %5641 = vmatpush.bf16.msra.mxu0 0
      %5642 = vmatpush.bf16.msra.mxu0 0
      %5643 = vmatpush.bf16.msra.mxu0 0
      %5644 = vmatpush.bf16.msra.mxu0 0
      %5645 = vmatpush.bf16.msra.mxu0 %v5633
      %5646 = vmatmul.bf16.gmra.mxu0 %v1527
      %v5647 = vpop.f32.mrf.mxu0
      %v5648 = vadd.f32 0.0, %v5647
      %v5649 = vpop.f32.mrf.mxu0
      %5650 = vdwg.mxu0
      %5651 = vmatpush.bf16.msra.mxu0 0
      %5652 = vmatpush.bf16.msra.mxu0 0
      %5653 = vmatpush.bf16.msra.mxu0 0
      %5654 = vmatpush.bf16.msra.mxu0 0
      %5655 = vmatpush.bf16.msra.mxu0 0
      %5656 = vmatpush.bf16.msra.mxu0 0
      %5657 = vmatpush.bf16.msra.mxu0 0
      %5658 = vmatpush.bf16.msra.mxu0 %v5636
      %5659 = vmatmul.bf16.gmra.mxu0 %v1527
      %v5660 = vpop.f32.mrf.mxu0
      %v5661 = vadd.f32 0.0, %v5660
      %v5662 = vpop.f32.mrf.mxu0
      %5663 = vdwg.mxu0
      %v5664 = vadd.f32 %v5612, %v5648
      %v5665 = vadd.f32 %v5613, %v5661
      %v5666 = vmul.f32 %v5574, %v446
      %v5667 = vmul.f32 %v5575, %v450
      %v5668 = vmul.f32 %v5614, %v448
      %v5669 = vpack.c.bf16 %v5666, %v5666
      %v5670 = vpack.c.bf16 %v5667, %v5667
      %v5671 = vpack.c.bf16 %v5668, %v5668
      %5675 = vrot.lane.b32.xlu0 %v5669, 126
      %v5676 = vpop.permute.xlu0 %5675
      %5677 = vrot.lane.b32.xlu0 %v5670, 126
      %v5678 = vpop.permute.xlu0 %5677
      %5679 = vrot.lane.b32.xlu0 %v5671, 126
      %v5680 = vpop.permute.xlu0 %5679
      %v5681 = vsel %vm469, %v5676, %v5678
      %v5682 = vsel %vm469, %v5678, %v5680
      %v5684 = vsel %vm363, %v5681, 0
      %v5687 = vsel %vm363, %v5682, 0
      %5689 = vmatpush.bf16.msra.mxu0 0
      %5690 = vmatpush.bf16.msra.mxu0 0
      %5691 = vmatpush.bf16.msra.mxu0 0
      %5692 = vmatpush.bf16.msra.mxu0 0
      %5693 = vmatpush.bf16.msra.mxu0 0
      %5694 = vmatpush.bf16.msra.mxu0 0
      %5695 = vmatpush.bf16.msra.mxu0 0
      %5696 = vmatpush.bf16.msra.mxu0 %v5684
      %5697 = vmatmul.bf16.gmra.mxu0 %v1581
      %v5698 = vpop.f32.mrf.mxu0
      %v5699 = vadd.f32 0.0, %v5698
      %v5700 = vpop.f32.mrf.mxu0
      %5701 = vdwg.mxu0
      %5702 = vmatpush.bf16.msra.mxu0 0
      %5703 = vmatpush.bf16.msra.mxu0 0
      %5704 = vmatpush.bf16.msra.mxu0 0
      %5705 = vmatpush.bf16.msra.mxu0 0
      %5706 = vmatpush.bf16.msra.mxu0 0
      %5707 = vmatpush.bf16.msra.mxu0 0
      %5708 = vmatpush.bf16.msra.mxu0 0
      %5709 = vmatpush.bf16.msra.mxu0 %v5687
      %5710 = vmatmul.bf16.gmra.mxu0 %v1581
      %v5711 = vpop.f32.mrf.mxu0
      %v5712 = vadd.f32 0.0, %v5711
      %v5713 = vpop.f32.mrf.mxu0
      %5714 = vdwg.mxu0
      %v5715 = vadd.f32 %v5664, %v5699
      %v5716 = vadd.f32 %v5665, %v5712
      %v5717 = vmul.f32 %v5574, %v524
      %v5718 = vmul.f32 %v5575, %v528
      %v5719 = vmul.f32 %v5614, %v526
      %v5720 = vpack.c.bf16 %v5717, %v5717
      %v5721 = vpack.c.bf16 %v5718, %v5718
      %v5722 = vpack.c.bf16 %v5719, %v5719
      %5726 = vrot.lane.b32.xlu0 %v5720, 112
      %v5727 = vpop.permute.xlu0 %5726
      %5728 = vrot.lane.b32.xlu0 %v5721, 112
      %v5729 = vpop.permute.xlu0 %5728
      %5730 = vrot.lane.b32.xlu0 %v5722, 112
      %v5731 = vpop.permute.xlu0 %5730
      %v5732 = vsel %vm547, %v5727, %v5729
      %v5733 = vsel %vm547, %v5729, %v5731
      %v5735 = vsel %vm363, %v5732, 0
      %v5738 = vsel %vm363, %v5733, 0
      %5740 = vmatpush.bf16.msra.mxu0 0
      %5741 = vmatpush.bf16.msra.mxu0 0
      %5742 = vmatpush.bf16.msra.mxu0 0
      %5743 = vmatpush.bf16.msra.mxu0 0
      %5744 = vmatpush.bf16.msra.mxu0 0
      %5745 = vmatpush.bf16.msra.mxu0 0
      %5746 = vmatpush.bf16.msra.mxu0 0
      %5747 = vmatpush.bf16.msra.mxu0 %v5735
      %5748 = vmatmul.bf16.gmra.mxu0 %v1635
      %v5749 = vpop.f32.mrf.mxu0
      %v5750 = vadd.f32 0.0, %v5749
      %v5751 = vpop.f32.mrf.mxu0
      %5752 = vdwg.mxu0
      %5753 = vmatpush.bf16.msra.mxu0 0
      %5754 = vmatpush.bf16.msra.mxu0 0
      %5755 = vmatpush.bf16.msra.mxu0 0
      %5756 = vmatpush.bf16.msra.mxu0 0
      %5757 = vmatpush.bf16.msra.mxu0 0
      %5758 = vmatpush.bf16.msra.mxu0 0
      %5759 = vmatpush.bf16.msra.mxu0 0
      %5760 = vmatpush.bf16.msra.mxu0 %v5738
      %5761 = vmatmul.bf16.gmra.mxu0 %v1635
      %v5762 = vpop.f32.mrf.mxu0
      %v5763 = vadd.f32 0.0, %v5762
      %v5764 = vpop.f32.mrf.mxu0
      %5765 = vdwg.mxu0
      %v5766 = vadd.f32 %v5715, %v5750
      %v5767 = vadd.f32 %v5716, %v5763
      %v5768 = vmul.f32 %v5574, %v602
      %v5769 = vmul.f32 %v5575, %v606
      %v5770 = vmul.f32 %v5614, %v604
      %v5771 = vpack.c.bf16 %v5768, %v5768
      %v5772 = vpack.c.bf16 %v5769, %v5769
      %v5773 = vpack.c.bf16 %v5770, %v5770
      %5777 = vrot.lane.b32.xlu0 %v5771, 111
      %v5778 = vpop.permute.xlu0 %5777
      %5779 = vrot.lane.b32.xlu0 %v5772, 111
      %v5780 = vpop.permute.xlu0 %5779
      %5781 = vrot.lane.b32.xlu0 %v5773, 111
      %v5782 = vpop.permute.xlu0 %5781
      %v5783 = vsel %vm625, %v5778, %v5780
      %v5784 = vsel %vm625, %v5780, %v5782
      %v5786 = vsel %vm363, %v5783, 0
      %v5789 = vsel %vm363, %v5784, 0
      %5791 = vmatpush.bf16.msra.mxu0 0
      %5792 = vmatpush.bf16.msra.mxu0 0
      %5793 = vmatpush.bf16.msra.mxu0 0
      %5794 = vmatpush.bf16.msra.mxu0 0
      %5795 = vmatpush.bf16.msra.mxu0 0
      %5796 = vmatpush.bf16.msra.mxu0 0
      %5797 = vmatpush.bf16.msra.mxu0 0
      %5798 = vmatpush.bf16.msra.mxu0 %v5786
      %5799 = vmatmul.bf16.gmra.mxu0 %v1689
      %v5800 = vpop.f32.mrf.mxu0
      %v5801 = vadd.f32 0.0, %v5800
      %v5802 = vpop.f32.mrf.mxu0
      %5803 = vdwg.mxu0
      %5804 = vmatpush.bf16.msra.mxu0 0
      %5805 = vmatpush.bf16.msra.mxu0 0
      %5806 = vmatpush.bf16.msra.mxu0 0
      %5807 = vmatpush.bf16.msra.mxu0 0
      %5808 = vmatpush.bf16.msra.mxu0 0
      %5809 = vmatpush.bf16.msra.mxu0 0
      %5810 = vmatpush.bf16.msra.mxu0 0
      %5811 = vmatpush.bf16.msra.mxu0 %v5789
      %5812 = vmatmul.bf16.gmra.mxu0 %v1689
      %v5813 = vpop.f32.mrf.mxu0
      %v5814 = vadd.f32 0.0, %v5813
      %v5815 = vpop.f32.mrf.mxu0
      %5816 = vdwg.mxu0
      %v5817 = vadd.f32 %v5766, %v5801
      %v5818 = vadd.f32 %v5767, %v5814
      %v5819 = vmul.f32 %v5574, %v680
      %v5820 = vmul.f32 %v5575, %v684
      %v5821 = vmul.f32 %v5614, %v682
      %v5822 = vpack.c.bf16 %v5819, %v5819
      %v5823 = vpack.c.bf16 %v5820, %v5820
      %v5824 = vpack.c.bf16 %v5821, %v5821
      %5828 = vrot.lane.b32.xlu0 %v5822, 110
      %v5829 = vpop.permute.xlu0 %5828
      %5830 = vrot.lane.b32.xlu0 %v5823, 110
      %v5831 = vpop.permute.xlu0 %5830
      %5832 = vrot.lane.b32.xlu0 %v5824, 110
      %v5833 = vpop.permute.xlu0 %5832
      %v5834 = vsel %vm703, %v5829, %v5831
      %v5835 = vsel %vm703, %v5831, %v5833
      %v5837 = vsel %vm363, %v5834, 0
      %v5840 = vsel %vm363, %v5835, 0
      %5842 = vmatpush.bf16.msra.mxu0 0
      %5843 = vmatpush.bf16.msra.mxu0 0
      %5844 = vmatpush.bf16.msra.mxu0 0
      %5845 = vmatpush.bf16.msra.mxu0 0
      %5846 = vmatpush.bf16.msra.mxu0 0
      %5847 = vmatpush.bf16.msra.mxu0 0
      %5848 = vmatpush.bf16.msra.mxu0 0
      %5849 = vmatpush.bf16.msra.mxu0 %v5837
      %5850 = vmatmul.bf16.gmra.mxu0 %v1743
      %v5851 = vpop.f32.mrf.mxu0
      %v5852 = vadd.f32 0.0, %v5851
      %v5853 = vpop.f32.mrf.mxu0
      %5854 = vdwg.mxu0
      %5855 = vmatpush.bf16.msra.mxu0 0
      %5856 = vmatpush.bf16.msra.mxu0 0
      %5857 = vmatpush.bf16.msra.mxu0 0
      %5858 = vmatpush.bf16.msra.mxu0 0
      %5859 = vmatpush.bf16.msra.mxu0 0
      %5860 = vmatpush.bf16.msra.mxu0 0
      %5861 = vmatpush.bf16.msra.mxu0 0
      %5862 = vmatpush.bf16.msra.mxu0 %v5840
      %5863 = vmatmul.bf16.gmra.mxu0 %v1743
      %v5864 = vpop.f32.mrf.mxu0
      %v5865 = vadd.f32 0.0, %v5864
      %v5866 = vpop.f32.mrf.mxu0
      %5867 = vdwg.mxu0
      %v5868 = vadd.f32 %v5817, %v5852
      %v5869 = vadd.f32 %v5818, %v5865
      %v5870 = vmul.f32 %v5574, %v758
      %v5871 = vmul.f32 %v5575, %v762
      %v5872 = vmul.f32 %v5614, %v760
      %v5873 = vpack.c.bf16 %v5870, %v5870
      %v5874 = vpack.c.bf16 %v5871, %v5871
      %v5875 = vpack.c.bf16 %v5872, %v5872
      %5879 = vrot.lane.b32.xlu0 %v5873, 96
      %v5880 = vpop.permute.xlu0 %5879
      %5881 = vrot.lane.b32.xlu0 %v5874, 96
      %v5882 = vpop.permute.xlu0 %5881
      %5883 = vrot.lane.b32.xlu0 %v5875, 96
      %v5884 = vpop.permute.xlu0 %5883
      %v5885 = vsel %vm781, %v5880, %v5882
      %v5886 = vsel %vm781, %v5882, %v5884
      %v5888 = vsel %vm363, %v5885, 0
      %v5891 = vsel %vm363, %v5886, 0
      %5893 = vmatpush.bf16.msra.mxu0 0
      %5894 = vmatpush.bf16.msra.mxu0 0
      %5895 = vmatpush.bf16.msra.mxu0 0
      %5896 = vmatpush.bf16.msra.mxu0 0
      %5897 = vmatpush.bf16.msra.mxu0 0
      %5898 = vmatpush.bf16.msra.mxu0 0
      %5899 = vmatpush.bf16.msra.mxu0 0
      %5900 = vmatpush.bf16.msra.mxu0 %v5888
      %5901 = vmatmul.bf16.gmra.mxu0 %v1797
      %v5902 = vpop.f32.mrf.mxu0
      %v5903 = vadd.f32 0.0, %v5902
      %v5904 = vpop.f32.mrf.mxu0
      %5905 = vdwg.mxu0
      %5906 = vmatpush.bf16.msra.mxu0 0
      %5907 = vmatpush.bf16.msra.mxu0 0
      %5908 = vmatpush.bf16.msra.mxu0 0
      %5909 = vmatpush.bf16.msra.mxu0 0
      %5910 = vmatpush.bf16.msra.mxu0 0
      %5911 = vmatpush.bf16.msra.mxu0 0
      %5912 = vmatpush.bf16.msra.mxu0 0
      %5913 = vmatpush.bf16.msra.mxu0 %v5891
      %5914 = vmatmul.bf16.gmra.mxu0 %v1797
      %v5915 = vpop.f32.mrf.mxu0
      %v5916 = vadd.f32 0.0, %v5915
      %v5917 = vpop.f32.mrf.mxu0
      %5918 = vdwg.mxu0
      %v5919 = vadd.f32 %v5868, %v5903
      %v5920 = vadd.f32 %v5869, %v5916
      %v5921 = vmul.f32 %v5574, %v836
      %v5922 = vmul.f32 %v5575, %v840
      %v5923 = vmul.f32 %v5614, %v838
      %v5924 = vpack.c.bf16 %v5921, %v5921
      %v5925 = vpack.c.bf16 %v5922, %v5922
      %v5926 = vpack.c.bf16 %v5923, %v5923
      %5930 = vrot.lane.b32.xlu0 %v5924, 95
      %v5931 = vpop.permute.xlu0 %5930
      %5932 = vrot.lane.b32.xlu0 %v5925, 95
      %v5933 = vpop.permute.xlu0 %5932
      %5934 = vrot.lane.b32.xlu0 %v5926, 95
      %v5935 = vpop.permute.xlu0 %5934
      %v5936 = vsel %vm859, %v5931, %v5933
      %v5937 = vsel %vm859, %v5933, %v5935
      %v5939 = vsel %vm363, %v5936, 0
      %v5942 = vsel %vm363, %v5937, 0
      %5944 = vmatpush.bf16.msra.mxu0 0
      %5945 = vmatpush.bf16.msra.mxu0 0
      %5946 = vmatpush.bf16.msra.mxu0 0
      %5947 = vmatpush.bf16.msra.mxu0 0
      %5948 = vmatpush.bf16.msra.mxu0 0
      %5949 = vmatpush.bf16.msra.mxu0 0
      %5950 = vmatpush.bf16.msra.mxu0 0
      %5951 = vmatpush.bf16.msra.mxu0 %v5939
      %5952 = vmatmul.bf16.gmra.mxu0 %v1851
      %v5953 = vpop.f32.mrf.mxu0
      %v5954 = vadd.f32 0.0, %v5953
      %v5955 = vpop.f32.mrf.mxu0
      %5956 = vdwg.mxu0
      %5957 = vmatpush.bf16.msra.mxu0 0
      %5958 = vmatpush.bf16.msra.mxu0 0
      %5959 = vmatpush.bf16.msra.mxu0 0
      %5960 = vmatpush.bf16.msra.mxu0 0
      %5961 = vmatpush.bf16.msra.mxu0 0
      %5962 = vmatpush.bf16.msra.mxu0 0
      %5963 = vmatpush.bf16.msra.mxu0 0
      %5964 = vmatpush.bf16.msra.mxu0 %v5942
      %5965 = vmatmul.bf16.gmra.mxu0 %v1851
      %v5966 = vpop.f32.mrf.mxu0
      %v5967 = vadd.f32 0.0, %v5966
      %v5968 = vpop.f32.mrf.mxu0
      %5969 = vdwg.mxu0
      %v5970 = vadd.f32 %v5919, %v5954
      %v5971 = vadd.f32 %v5920, %v5967
      %v5972 = vmul.f32 %v5574, %v914
      %v5973 = vmul.f32 %v5575, %v918
      %v5974 = vmul.f32 %v5614, %v916
      %v5975 = vpack.c.bf16 %v5972, %v5972
      %v5976 = vpack.c.bf16 %v5973, %v5973
      %v5977 = vpack.c.bf16 %v5974, %v5974
      %5981 = vrot.lane.b32.xlu0 %v5975, 94
      %v5982 = vpop.permute.xlu0 %5981
      %5983 = vrot.lane.b32.xlu0 %v5976, 94
      %v5984 = vpop.permute.xlu0 %5983
      %5985 = vrot.lane.b32.xlu0 %v5977, 94
      %v5986 = vpop.permute.xlu0 %5985
      %v5987 = vsel %vm937, %v5982, %v5984
      %v5988 = vsel %vm937, %v5984, %v5986
      %v5990 = vsel %vm363, %v5987, 0
      %v5993 = vsel %vm363, %v5988, 0
      %5995 = vmatpush.bf16.msra.mxu0 0
      %5996 = vmatpush.bf16.msra.mxu0 0
      %5997 = vmatpush.bf16.msra.mxu0 0
      %5998 = vmatpush.bf16.msra.mxu0 0
      %5999 = vmatpush.bf16.msra.mxu0 0
      %6000 = vmatpush.bf16.msra.mxu0 0
      %6001 = vmatpush.bf16.msra.mxu0 0
      %6002 = vmatpush.bf16.msra.mxu0 %v5990
      %6003 = vmatmul.bf16.gmra.mxu0 %v1905
      %v6004 = vpop.f32.mrf.mxu0
      %v6005 = vadd.f32 0.0, %v6004
      %v6006 = vpop.f32.mrf.mxu0
      %6007 = vdwg.mxu0
      %6008 = vmatpush.bf16.msra.mxu0 0
      %6009 = vmatpush.bf16.msra.mxu0 0
      %6010 = vmatpush.bf16.msra.mxu0 0
      %6011 = vmatpush.bf16.msra.mxu0 0
      %6012 = vmatpush.bf16.msra.mxu0 0
      %6013 = vmatpush.bf16.msra.mxu0 0
      %6014 = vmatpush.bf16.msra.mxu0 0
      %6015 = vmatpush.bf16.msra.mxu0 %v5993
      %6016 = vmatmul.bf16.gmra.mxu0 %v1905
      %v6017 = vpop.f32.mrf.mxu0
      %v6018 = vadd.f32 0.0, %v6017
      %v6019 = vpop.f32.mrf.mxu0
      %6020 = vdwg.mxu0
      %v6021 = vadd.f32 %v5970, %v6005
      %v6022 = vadd.f32 %v5971, %v6018
      %v6023 = vadd.f32 %v6021, %v1944
      %v6024 = vadd.f32 %v6022, %v1944
      %v6025 = vmax.f32 %v6023, 0.0
      %v6026 = vmax.f32 %v6024, 0.0
      %6027 = vst [vmem:[%s219 + $0x30] sm:$0xff] %v6025
      %6028 = vst [vmem:[%s219 + $0x38] sm:$0xff] %v6026
      %s6029 = smul.u32 8, %s20
      %p6030 = scmp.lt.s32.totalorder %s19, 1
      %s6031 = scalar_select %p6030, %s19, 1
      %p6032 = scmp.lt.s32.totalorder %s6029, 31
      %s6033 = scalar_select %p6032, %s6029, 31
      %s6034 = smul.addr %s6031, 32
      %s6035 = sadd.s32 %s6033, %s6034
      %s6036 = smul.addr %s6035, 8
      %s6037 = scalar_lea.vmem %s4, %s6036
      // Predicated region
      $region37: #{conv3d_block_forward.1} parent=35 // pred_check
        %p6038 = pneg %p136
      $region38: #{conv3d_block_forward.1} parent=35 // pred_check_branch
        %6040 = sbr.rel (%p6038) target = $region40
      $region39: #{conv3d_block_forward.1} parent=35 // pred_region
        %s6041 = smul.u32 8, %s20
      $region40: #{conv3d_block_forward.1} parent=35 // pred_fallthru
        _
    $region36: #{conv3d_block_forward.1} parent=5 // pred_fallthru
      _
    %p6042 = scmp.le.s32.totalorder 2, %s10
    // Predicated region
    $region41: #{conv3d_block_forward.1} parent=5 // pred_check
      %p6043 = pneg %p6042
    $region42: #{conv3d_block_forward.1} parent=5 // pred_check_branch
      %6045 = sbr.rel (%p6043) target = $region44
    $region43: #{conv3d_block_forward.1} parent=5 // pred_region
      %s6046 = ssub.s32 %s10, 2
      // Predicated region
      $region45: #{conv3d_block_forward.1} parent=43 // pred_check
        %p6047 = pneg %p142
      $region46: #{conv3d_block_forward.1} parent=43 // pred_check_branch
        %6049 = sbr.rel (%p6047) target = $region48
      $region47: #{conv3d_block_forward.1} parent=43 // pred_region
        %s6050 = smul.u32 8, %s22
        %p6051 = scmp.lt.s32.totalorder %s21, 1
        %s6052 = scalar_select %p6051, %s21, 1
        %p6053 = scmp.lt.s32.totalorder %s6050, 31
        %s6054 = scalar_select %p6053, %s6050, 31
        %s6055 = smul.addr %s6052, 32
        %s6056 = sadd.s32 %s6054, %s6055
        %s6057 = smul.addr %s6056, 8
        %s6058 = scalar_lea.vmem %s4, %s6057
      $region48: #{conv3d_block_forward.1} parent=43 // pred_fallthru
        _
    $region44: #{conv3d_block_forward.1} parent=5 // pred_fallthru
      _
  $region6: #{conv3d_block_forward.1} parent=0 // loop_footer
    %s14 = sadd.s32 1, %s10
  $region7: #{conv3d_block_forward.1} parent=0 // loop_footer_branch
    %9 = sbr.rel target = $region3
  $region8: #{conv3d_block_forward.1} parent=0 // loop_exit
    _

</llo_original>
